<compile_context>
chip_gen: v7x
topology: tpu7x:2x2x1
jax: 0.10.0
libtpu: 0.0.40
codegen_flags: <defaults>
</compile_context>

<pallas_src>
import jax
import jax.numpy as jnp
from jax.experimental import pallas as pl
from jax.experimental.pallas import tpu as pltpu


LAYER_DIMS = [(6000, 786), (786, 512), (512, 256), (256, 60)]
TK = 2048  # layer-1 reduction tile; 6000 -> padded 6144 = 3 grid steps


def _round_up(x, m):
    return ((x + m - 1) // m) * m


# ----------------------------- kernel ------------------------------------- #

def _encoder_kernel(x_ref, w1_ref, b1_ref, w2_ref, b2_ref, w3_ref, b3_ref,
                    w4_ref, b4_ref, alpha_ref, o_ref, acc_ref):
    """Fused 4-layer MLP encoder.

    Grid axis 0 tiles the layer-1 reduction (Kp = 6144) into TK chunks;
    partial products accumulate into acc_ref (VMEM f32). Layers 2-4 (+PReLUs)
    run in the epilogue on the last K step using VMEM-resident weights.
    """
    k = pl.program_id(0)

    @pl.when(k == 0)
    def _():
        acc_ref[...] = jnp.zeros_like(acc_ref)

    acc_ref[...] += jnp.dot(
        x_ref[...], w1_ref[...], preferred_element_type=jnp.float32
    )

    @pl.when(k == pl.num_programs(0) - 1)
    def _():
        a1 = alpha_ref[0]
        a2 = alpha_ref[1]
        a3 = alpha_ref[2]

        h = acc_ref[...] + b1_ref[...]
        h = jnp.where(h >= 0.0, h, a1 * h)                      # PReLU 1
        h = jnp.dot(h, w2_ref[...],
                    preferred_element_type=jnp.float32) + b2_ref[...]
        h = jnp.where(h >= 0.0, h, a2 * h)                      # PReLU 2
        h = jnp.dot(h, w3_ref[...],
                    preferred_element_type=jnp.float32) + b3_ref[...]
        h = jnp.where(h >= 0.0, h, a3 * h)                      # PReLU 3
        h = jnp.dot(h, w4_ref[...],
                    preferred_element_type=jnp.float32) + b4_ref[...]
        o_ref[...] = h.astype(o_ref.dtype)


# ----------------------------- params ------------------------------------- #

def init_encoder_params(key):
    """nn.Linear default init (U[-1/sqrt(fan_in), +1/sqrt(fan_in)]) and
    nn.PReLU default single shared alpha = 0.25."""
    params = []
    for i, (fan_in, fan_out) in enumerate(LAYER_DIMS):
        kw, kb = jax.random.split(jax.random.fold_in(key, i))
        bound = 1.0 / (fan_in ** 0.5)
        w = jax.random.uniform(kw, (fan_in, fan_out), jnp.float32,
                               minval=-bound, maxval=bound)
        b = jax.random.uniform(kb, (fan_out,), jnp.float32,
                               minval=-bound, maxval=bound)
        alpha = jnp.float32(0.25) if i < len(LAYER_DIMS) - 1 else None
        params.append((w, b, alpha))
    return params


def pack_params(params):
    """One-time packing (outside the hot path): pad layer-1 K to a TK
    multiple with zero rows (exact), reshape biases to (1, N), and gather the
    PReLU alphas into one SMEM-friendly vector."""
    (w1, b1, _), (w2, b2, _), (w3, b3, _), (w4, b4, _) = params
    K = w1.shape[0]
    Kp = _round_up(K, TK)
    w1p = jnp.pad(w1, ((0, Kp - K), (0, 0)))
    alphas = jnp.stack([params[0][2], params[1][2], params[2][2]]).astype(
        jnp.float32
    )
    return (w1p, b1.reshape(1, -1), w2, b2.reshape(1, -1),
            w3, b3.reshape(1, -1), w4, b4.reshape(1, -1), alphas)


# ----------------------------- forward ------------------------------------ #

@jax.jit
def encoder_forward(x, packed):
    """x: (batch, 6000) f32 -> (batch, 60) f32, single fused Pallas kernel."""
    w1, b1, w2, b2, w3, b3, w4, b4, alphas = packed
    M, K = x.shape
    Kp, N1 = w1.shape
    N2, N3, N4 = w2.shape[1], w3.shape[1], w4.shape[1]

    # Only per-call pad: the tiny activation (M x 6000 -> M x 6144).
    x_p = jnp.pad(x, ((0, 0), (0, Kp - K)))
    n_k = Kp // TK

    grid_spec = pltpu.PrefetchScalarGridSpec(
        num_scalar_prefetch=0,
        grid=(n_k,),
        in_specs=[
            pl.BlockSpec((M, TK), lambda k: (0, k)),        # x   : K-streamed
            pl.BlockSpec((TK, N1), lambda k: (k, 0)),       # w1  : K-streamed
            pl.BlockSpec((1, N1), lambda k: (0, 0)),        # b1  : resident
            pl.BlockSpec((N1, N2), lambda k: (0, 0)),       # w2  : resident
            pl.BlockSpec((1, N2), lambda k: (0, 0)),        # b2  : resident
            pl.BlockSpec((N2, N3), lambda k: (0, 0)),       # w3  : resident
            pl.BlockSpec((1, N3), lambda k: (0, 0)),        # b3  : resident
            pl.BlockSpec((N3, N4), lambda k: (0, 0)),       # w4  : resident
            pl.BlockSpec((1, N4), lambda k: (0, 0)),        # b4  : resident
            pl.BlockSpec(memory_space=pltpu.MemorySpace.SMEM),  # PReLU alphas
        ],
        out_specs=pl.BlockSpec((M, N4), lambda k: (0, 0)),
        scratch_shapes=[pltpu.VMEM((M, N1), jnp.float32)],  # layer-1 f32 acc
    )

    return pl.pallas_call(
        _encoder_kernel,
        out_shape=jax.ShapeDtypeStruct((M, N4), jnp.float32),
        grid_spec=grid_spec,
        compiler_params=pltpu.CompilerParams(
            dimension_semantics=("arbitrary",),       # reduction axis
            vmem_limit_bytes=32 * 1024 * 1024,        # ~17 MB budget, all gens
        ),
    )(x_p, w1, b1, w2, b2, w3, b3, w4, b4, alphas)


def encoder_reference(x, params):
    """Pure-JAX reference for correctness checking."""
    h = x
    for (w, b, alpha) in params:
        h = h @ w + b
        if alpha is not None:
            h = jnp.where(h >= 0.0, h, alpha * h)
    return h


# TODO(synk): net_loss (MSE + contractive penalty on the last weight) is a
# training-time loss, not part of forward(); not implemented as a kernel.


if __name__ == "__main__":
    key = jax.random.PRNGKey(0)
    kx, kp = jax.random.split(key)

    batch = 8
    x = jax.random.normal(kx, (batch, 6000), jnp.float32)

    params = init_encoder_params(kp)
    packed = pack_params(params)   # init-time packing, outside the hot path

    out = encoder_forward(x, packed)
    out = jax.block_until_ready(out)

    ref = encoder_reference(x, params)

    assert out.shape == (batch, 60), out.shape
    assert jnp.allclose(out, ref, rtol=2e-4, atol=2e-4), (
        float(jnp.max(jnp.abs(out - ref)))
    )

    print("KERNEL_OK")
</pallas_src>

<mosaic_0001>
module attributes {stable_mosaic.version = 11 : i64} {
  func.func @_encoder_kernel(%arg0: i32, %arg1: memref<8x2048xf32, #tpu.memory_space<vmem>>, %arg2: memref<2048x786xf32, #tpu.memory_space<vmem>>, %arg3: memref<1x786xf32, #tpu.memory_space<vmem>>, %arg4: memref<786x512xf32, #tpu.memory_space<vmem>>, %arg5: memref<1x512xf32, #tpu.memory_space<vmem>>, %arg6: memref<512x256xf32, #tpu.memory_space<vmem>>, %arg7: memref<1x256xf32, #tpu.memory_space<vmem>>, %arg8: memref<256x60xf32, #tpu.memory_space<vmem>>, %arg9: memref<1x60xf32, #tpu.memory_space<vmem>>, %arg10: memref<3xf32, #tpu.memory_space<smem>>, %arg11: memref<8x60xf32, #tpu.memory_space<vmem>>, %arg12: memref<8x786xf32, #tpu.memory_space<vmem>>) attributes {dimension_semantics = [#tpu.dimension_semantics<arbitrary>], iteration_bounds = array<i64: 3>, scalar_prefetch = 0 : i64, scratch_operands = 1 : i64, tpu.core_type = #tpu.core_type<tc>, window_params = [{transform_indices = @transform_0, window_bounds = array<i64: 8, 2048>}, {transform_indices = @transform_1, window_bounds = array<i64: 2048, 786>}, {pipeline_mode = #tpu.pipeline_mode<synchronous>, transform_indices = @transform_2, window_bounds = array<i64: 1, 786>}, {pipeline_mode = #tpu.pipeline_mode<synchronous>, transform_indices = @transform_3, window_bounds = array<i64: 786, 512>}, {pipeline_mode = #tpu.pipeline_mode<synchronous>, transform_indices = @transform_4, window_bounds = array<i64: 1, 512>}, {pipeline_mode = #tpu.pipeline_mode<synchronous>, transform_indices = @transform_5, window_bounds = array<i64: 512, 256>}, {pipeline_mode = #tpu.pipeline_mode<synchronous>, transform_indices = @transform_6, window_bounds = array<i64: 1, 256>}, {pipeline_mode = #tpu.pipeline_mode<synchronous>, transform_indices = @transform_7, window_bounds = array<i64: 256, 60>}, {pipeline_mode = #tpu.pipeline_mode<synchronous>, transform_indices = @transform_8, window_bounds = array<i64: 1, 60>}, {transform_indices = @transform_9, window_bounds = array<i64: 3>}, {pipeline_mode = #tpu.pipeline_mode<synchronous>, transform_indices = @transform_10, window_bounds = array<i64: 8, 60>}]} {
    %c0_i32 = arith.constant 0 : i32
    %0 = arith.cmpi eq, %arg0, %c0_i32 : i32
    %1 = arith.extui %0 : i1 to i32
    %c0_i32_0 = arith.constant 0 : i32
    %2 = arith.cmpi ne, %1, %c0_i32_0 : i32
    scf.if %2 {
      %cst_9 = arith.constant 0.000000e+00 : f32
      %12 = vector.broadcast %cst_9 : f32 to vector<8x786xf32>
      %c0_10 = arith.constant 0 : index
      %c0_11 = arith.constant 0 : index
      %13 = vector.load %arg12[%c0_10, %c0_11] : memref<8x786xf32, #tpu.memory_space<vmem>>, vector<8x786xf32>
      tpu.vector_store %arg12[%c0_10, %c0_11], %12 {strides = array<i32>} : memref<8x786xf32, #tpu.memory_space<vmem>>, vector<8x786xf32>,
    } else {
    }
    %c0 = arith.constant 0 : index
    %c0_1 = arith.constant 0 : index
    %3 = vector.load %arg12[%c0, %c0_1] : memref<8x786xf32, #tpu.memory_space<vmem>>, vector<8x786xf32>
    %c0_2 = arith.constant 0 : index
    %c0_3 = arith.constant 0 : index
    %4 = vector.load %arg1[%c0_2, %c0_3] : memref<8x2048xf32, #tpu.memory_space<vmem>>, vector<8x2048xf32>
    %c0_4 = arith.constant 0 : index
    %c0_5 = arith.constant 0 : index
    %5 = vector.load %arg2[%c0_4, %c0_5] : memref<2048x786xf32, #tpu.memory_space<vmem>>, vector<2048x786xf32>
    %cst = arith.constant dense<0.000000e+00> : vector<8x786xf32>
    %6 = tpu.matmul %4, %5, %cst {dimension_numbers = #tpu.dot_dimension_numbers<[1], [0], [0], [1], [0, 0, 1, 1], [], []>} : vector<8x2048xf32>, vector<2048x786xf32>, vector<8x786xf32> -> vector<8x786xf32>
    %7 = arith.addf %3, %6 : vector<8x786xf32>
    %c0_6 = arith.constant 0 : index
    %c0_7 = arith.constant 0 : index
    %8 = vector.load %arg12[%c0_6, %c0_7] : memref<8x786xf32, #tpu.memory_space<vmem>>, vector<8x786xf32>
    tpu.vector_store %arg12[%c0_6, %c0_7], %7 {strides = array<i32>} : memref<8x786xf32, #tpu.memory_space<vmem>>, vector<8x786xf32>,
    %c2_i32 = arith.constant 2 : i32
    %9 = arith.cmpi eq, %arg0, %c2_i32 : i32
    %10 = arith.extui %9 : i1 to i32
    %c0_i32_8 = arith.constant 0 : i32
    %11 = arith.cmpi ne, %10, %c0_i32_8 : i32
    scf.if %11 {
      %c0_9 = arith.constant 0 : index
      %12 = memref.load %arg10[%c0_9] : memref<3xf32, #tpu.memory_space<smem>>
      %c1 = arith.constant 1 : index
      %13 = memref.load %arg10[%c1] : memref<3xf32, #tpu.memory_space<smem>>
      %c2 = arith.constant 2 : index
      %14 = memref.load %arg10[%c2] : memref<3xf32, #tpu.memory_space<smem>>
      %c0_10 = arith.constant 0 : index
      %c0_11 = arith.constant 0 : index
      %15 = vector.load %arg12[%c0_10, %c0_11] : memref<8x786xf32, #tpu.memory_space<vmem>>, vector<8x786xf32>
      %c0_12 = arith.constant 0 : index
      %c0_13 = arith.constant 0 : index
      %16 = vector.load %arg3[%c0_12, %c0_13] : memref<1x786xf32, #tpu.memory_space<vmem>>, vector<1x786xf32>
      %17 = vector.broadcast %16 : vector<1x786xf32> to vector<8x786xf32>
      %18 = arith.addf %15, %17 : vector<8x786xf32>
      %cst_14 = arith.constant 0.000000e+00 : f32
      %19 = vector.broadcast %cst_14 : f32 to vector<8x786xf32>
      %20 = arith.cmpf oge, %18, %19 : vector<8x786xf32>
      %21 = vector.broadcast %12 : f32 to vector<8x786xf32>
      %22 = arith.mulf %21, %18 : vector<8x786xf32>
      %23 = arith.select %20, %18, %22 : vector<8x786xi1>, vector<8x786xf32>
      %c0_15 = arith.constant 0 : index
      %c0_16 = arith.constant 0 : index
      %24 = vector.load %arg4[%c0_15, %c0_16] : memref<786x512xf32, #tpu.memory_space<vmem>>, vector<786x512xf32>
      %cst_17 = arith.constant dense<0.000000e+00> : vector<8x512xf32>
      %25 = tpu.matmul %23, %24, %cst_17 {dimension_numbers = #tpu.dot_dimension_numbers<[1], [0], [0], [1], [0, 0, 1, 1], [], []>} : vector<8x786xf32>, vector<786x512xf32>, vector<8x512xf32> -> vector<8x512xf32>
      %c0_18 = arith.constant 0 : index
      %c0_19 = arith.constant 0 : index
      %26 = vector.load %arg5[%c0_18, %c0_19] : memref<1x512xf32, #tpu.memory_space<vmem>>, vector<1x512xf32>
      %27 = vector.broadcast %26 : vector<1x512xf32> to vector<8x512xf32>
      %28 = arith.addf %25, %27 : vector<8x512xf32>
      %cst_20 = arith.constant 0.000000e+00 : f32
      %29 = vector.broadcast %cst_20 : f32 to vector<8x512xf32>
      %30 = arith.cmpf oge, %28, %29 : vector<8x512xf32>
      %31 = vector.broadcast %13 : f32 to vector<8x512xf32>
      %32 = arith.mulf %31, %28 : vector<8x512xf32>
      %33 = arith.select %30, %28, %32 : vector<8x512xi1>, vector<8x512xf32>
      %c0_21 = arith.constant 0 : index
      %c0_22 = arith.constant 0 : index
      %34 = vector.load %arg6[%c0_21, %c0_22] : memref<512x256xf32, #tpu.memory_space<vmem>>, vector<512x256xf32>
      %cst_23 = arith.constant dense<0.000000e+00> : vector<8x256xf32>
      %35 = tpu.matmul %33, %34, %cst_23 {dimension_numbers = #tpu.dot_dimension_numbers<[1], [0], [0], [1], [0, 0, 1, 1], [], []>} : vector<8x512xf32>, vector<512x256xf32>, vector<8x256xf32> -> vector<8x256xf32>
      %c0_24 = arith.constant 0 : index
      %c0_25 = arith.constant 0 : index
      %36 = vector.load %arg7[%c0_24, %c0_25] : memref<1x256xf32, #tpu.memory_space<vmem>>, vector<1x256xf32>
      %37 = vector.broadcast %36 : vector<1x256xf32> to vector<8x256xf32>
      %38 = arith.addf %35, %37 : vector<8x256xf32>
      %cst_26 = arith.constant 0.000000e+00 : f32
      %39 = vector.broadcast %cst_26 : f32 to vector<8x256xf32>
      %40 = arith.cmpf oge, %38, %39 : vector<8x256xf32>
      %41 = vector.broadcast %14 : f32 to vector<8x256xf32>
      %42 = arith.mulf %41, %38 : vector<8x256xf32>
      %43 = arith.select %40, %38, %42 : vector<8x256xi1>, vector<8x256xf32>
      %c0_27 = arith.constant 0 : index
      %c0_28 = arith.constant 0 : index
      %44 = vector.load %arg8[%c0_27, %c0_28] : memref<256x60xf32, #tpu.memory_space<vmem>>, vector<256x60xf32>
      %cst_29 = arith.constant dense<0.000000e+00> : vector<8x60xf32>
      %45 = tpu.matmul %43, %44, %cst_29 {dimension_numbers = #tpu.dot_dimension_numbers<[1], [0], [0], [1], [0, 0, 1, 1], [], []>} : vector<8x256xf32>, vector<256x60xf32>, vector<8x60xf32> -> vector<8x60xf32>
      %c0_30 = arith.constant 0 : index
      %c0_31 = arith.constant 0 : index
      %46 = vector.load %arg9[%c0_30, %c0_31] : memref<1x60xf32, #tpu.memory_space<vmem>>, vector<1x60xf32>
      %47 = vector.broadcast %46 : vector<1x60xf32> to vector<8x60xf32>
      %48 = arith.addf %45, %47 : vector<8x60xf32>
      %c0_32 = arith.constant 0 : index
      %c0_33 = arith.constant 0 : index
      %49 = vector.load %arg11[%c0_32, %c0_33] : memref<8x60xf32, #tpu.memory_space<vmem>>, vector<8x60xf32>
      tpu.vector_store %arg11[%c0_32, %c0_33], %48 {strides = array<i32>} : memref<8x60xf32, #tpu.memory_space<vmem>>, vector<8x60xf32>,
    } else {
    }
    return
  }
  func.func @transform_0(%arg0: i32) -> (i32, i32) {
    %c0_i32 = arith.constant 0 : i32
    %c0_i32_0 = arith.constant 0 : i32
    return %c0_i32, %arg0 : i32, i32
  }
  func.func @transform_1(%arg0: i32) -> (i32, i32) {
    %c0_i32 = arith.constant 0 : i32
    %c0_i32_0 = arith.constant 0 : i32
    return %arg0, %c0_i32 : i32, i32
  }
  func.func @transform_2(%arg0: i32) -> (i32, i32) {
    %c0_i32 = arith.constant 0 : i32
    %c0_i32_0 = arith.constant 0 : i32
    %c0_i32_1 = arith.constant 0 : i32
    return %c0_i32, %c0_i32_0 : i32, i32
  }
  func.func @transform_3(%arg0: i32) -> (i32, i32) {
    %c0_i32 = arith.constant 0 : i32
    %c0_i32_0 = arith.constant 0 : i32
    %c0_i32_1 = arith.constant 0 : i32
    return %c0_i32, %c0_i32_0 : i32, i32
  }
  func.func @transform_4(%arg0: i32) -> (i32, i32) {
    %c0_i32 = arith.constant 0 : i32
    %c0_i32_0 = arith.constant 0 : i32
    %c0_i32_1 = arith.constant 0 : i32
    return %c0_i32, %c0_i32_0 : i32, i32
  }
  func.func @transform_5(%arg0: i32) -> (i32, i32) {
    %c0_i32 = arith.constant 0 : i32
    %c0_i32_0 = arith.constant 0 : i32
    %c0_i32_1 = arith.constant 0 : i32
    return %c0_i32, %c0_i32_0 : i32, i32
  }
  func.func @transform_6(%arg0: i32) -> (i32, i32) {
    %c0_i32 = arith.constant 0 : i32
    %c0_i32_0 = arith.constant 0 : i32
    %c0_i32_1 = arith.constant 0 : i32
    return %c0_i32, %c0_i32_0 : i32, i32
  }
  func.func @transform_7(%arg0: i32) -> (i32, i32) {
    %c0_i32 = arith.constant 0 : i32
    %c0_i32_0 = arith.constant 0 : i32
    %c0_i32_1 = arith.constant 0 : i32
    return %c0_i32, %c0_i32_0 : i32, i32
  }
  func.func @transform_8(%arg0: i32) -> (i32, i32) {
    %c0_i32 = arith.constant 0 : i32
    %c0_i32_0 = arith.constant 0 : i32
    %c0_i32_1 = arith.constant 0 : i32
    return %c0_i32, %c0_i32_0 : i32, i32
  }
  func.func @transform_9(%arg0: i32) -> i32 {
    %c0_i32 = arith.constant 0 : i32
    %c0_i32_0 = arith.constant 0 : i32
    return %c0_i32 : i32
  }
  func.func @transform_10(%arg0: i32) -> (i32, i32) {
    %c0_i32 = arith.constant 0 : i32
    %c0_i32_0 = arith.constant 0 : i32
    %c0_i32_1 = arith.constant 0 : i32
    return %c0_i32, %c0_i32_0 : i32, i32
  }
}

</mosaic_0001>

<llo_original>
// kernel: encoder_forward.1
$region0: #{encoder_forward.1}
  #allocation0 [shape = 'u32[]', space=smem, size = 0x4, offset = 0x4, fixed_abs, tag = 'smem constant byte address 0x4 - core index']
  #allocation1 [shape = 'u32[144,128]{1,0:T(1,128)}', space=vmem, size = 0x12000, scoped, tag = 'internal scratch']
  #allocation2 [shape = 'f32[8,786]{1,0:T(8,128)}', space=vmem, size = 0x7000, scoped, tag = 'scratch operand']
  %s0 = inlined_call_operand.vmem [shape: f32[8,6144], index: 0, kind: input, shape index: {}]
  %s1 = inlined_call_operand.vmem [shape: f32[6144,786], index: 1, kind: input, shape index: {}]
  %s2 = inlined_call_operand.vmem [shape: f32[1,786], index: 2, kind: input, shape index: {}]
  %s3 = inlined_call_operand.vmem [shape: f32[786,512], index: 3, kind: input, shape index: {}]
  %s4 = inlined_call_operand.vmem [shape: f32[1,512], index: 4, kind: input, shape index: {}]
  %s5 = inlined_call_operand.vmem [shape: f32[512,256], index: 5, kind: input, shape index: {}]
  %s6 = inlined_call_operand.vmem [shape: f32[1,256], index: 6, kind: input, shape index: {}]
  %s7 = inlined_call_operand.vmem [shape: f32[256,60], index: 7, kind: input, shape index: {}]
  %s8 = inlined_call_operand.vmem [shape: f32[1,60], index: 8, kind: input, shape index: {}]
  %s9 = inlined_call_operand.vmem [shape: f32[3], index: 9, kind: input, shape index: {}]
  %s10 = inlined_call_operand.hbm [shape: f32[8,60], index: 10, kind: output, shape index: {}]
  %s11 = sld [smem:[#allocation0]]
  $region85: #{encoder_forward.1} parent=0
    _
  %s13 = ssub.s32 1, %s11
  %s14 = scalar_select 0, %s13, %s11
  $region1: #{encoder_forward.1} parent=0
    #allocation3 [shape = 'u8[512]{0}', space=smem, size = 0x200, scoped, tag = 'input window, operand 9, single buffered']
    #allocation4 [shape = 's32[2]{0}', space=sflag, size = 0x8, scoped, tag = 'scoped memory for encoder_forward.1']
    #allocation5 [shape = 's32[2]{0}', space=sflag, size = 0x8, scoped, tag = 'scoped memory for encoder_forward.1']
    #allocation6 [shape = 'u8[4096]{0}', space=vmem, size = 0x1000, scoped, tag = 'output window, operand 0, single buffered']
    %15 = vsyncpa [#allocation5], 0
    %16 = vsyncpa [#allocation4], 0
    loop: start=0, step=1, limit=5
    $region2: #{encoder_forward.1} parent=1 // loop_pre_header
      _
    $region3: #{encoder_forward.1} parent=1 // loop_header
      %s18 = sphi 0, %s22
      %p19 = scmp.ge.s32.totalorder %s18, 5
      %s28 = sphi 0, %s30
      %s31 = sphi 0, %s28
      %s32 = sphi 0, %s31
      %s48 = sphi 0, %s32
      %s54 = sphi 0, %s56
      %s57 = sphi 0, %s54
      %s58 = sphi 0, %s57
      %s74 = sphi 0, %s58
      %s78 = sphi 0, %s78
      %s80 = sphi 0, %s78
      %s81 = sphi 0, %s80
      %s95 = sphi 0, %s81
      %s99 = sphi 0, %s99
      %s101 = sphi 0, %s99
      %s102 = sphi 0, %s101
      %s116 = sphi 0, %s102
      %s120 = sphi 0, %s120
      %s122 = sphi 0, %s120
      %s123 = sphi 0, %s122
      %s137 = sphi 0, %s123
      %s141 = sphi 0, %s141
      %s143 = sphi 0, %s141
      %s144 = sphi 0, %s143
      %s158 = sphi 0, %s144
      %s162 = sphi 0, %s162
      %s164 = sphi 0, %s162
      %s165 = sphi 0, %s164
      %s179 = sphi 0, %s165
      %s183 = sphi 0, %s183
      %s185 = sphi 0, %s183
      %s186 = sphi 0, %s185
      %s200 = sphi 0, %s186
      %s204 = sphi 0, %s204
      %s206 = sphi 0, %s204
      %s207 = sphi 0, %s206
      %s221 = sphi 0, %s207
      %s225 = sphi 0, %s225
      %s227 = sphi 0, %s225
      %s228 = sphi 0, %s227
      %s242 = sphi 0, %s228
      %s246 = sphi 0, %s246
      %s248 = sphi 0, %s246
      %s249 = sphi 0, %s248
      %s263 = sphi 0, %s249
    $region4: #{encoder_forward.1} parent=1 // loop_header_branch
      %21 = sbr.rel (%p19) target = $region8
    $region5: #{encoder_forward.1} parent=1 // loop_body
      %s23 = ssub.s32 %s18, 1
      %s24 = ssub.s32 %s18, 2
      %s25 = sadd.s32 %s18, 1
      %s26 = ssub.s32 %s18, %s25
      %p27 = scmp.eq.s32.totalorder %s26, 0
      %s29 = sadd.s32 %s28, 1
      %s30 = scalar_select %p27, %s28, %s29
      %p33 = pneg %p27
      %p34 = scmp.eq.s32.totalorder %s18, 2
      %p35 = por %p33, %p34
      %p36 = scmp.ne.s32.totalorder %s28, %s31
      %p37 = scmp.eq.s32.totalorder %s18, 0
      %p38 = por %p36, %p37
      %p39 = scmp.ne.s32.totalorder %s28, %s31
      %p40 = scmp.eq.s32.totalorder %s23, 2
      %p41 = por %p39, %p40
      %p42 = scmp.ne.s32.totalorder %s31, %s32
      %p43 = scmp.eq.s32.totalorder %s23, 0
      %p44 = por %p42, %p43
      %p45 = scmp.ne.s32.totalorder %s31, %s32
      %p46 = scmp.eq.s32.totalorder %s24, 2
      %p47 = por %p45, %p46
      %p49 = scmp.ne.s32.totalorder %s32, %s48
      %p50 = scmp.eq.s32.totalorder %s24, 0
      %p51 = por %p49, %p50
      %s52 = ssub.s32 %s18, %s25
      %p53 = scmp.eq.s32.totalorder %s52, 0
      %s55 = sadd.s32 %s54, 1
      %s56 = scalar_select %p53, %s54, %s55
      %p59 = pneg %p53
      %p60 = scmp.eq.s32.totalorder %s18, 2
      %p61 = por %p59, %p60
      %p62 = scmp.ne.s32.totalorder %s54, %s57
      %p63 = scmp.eq.s32.totalorder %s18, 0
      %p64 = por %p62, %p63
      %p65 = scmp.ne.s32.totalorder %s54, %s57
      %p66 = scmp.eq.s32.totalorder %s23, 2
      %p67 = por %p65, %p66
      %p68 = scmp.ne.s32.totalorder %s57, %s58
      %p69 = scmp.eq.s32.totalorder %s23, 0
      %p70 = por %p68, %p69
      %p71 = scmp.ne.s32.totalorder %s57, %s58
      %p72 = scmp.eq.s32.totalorder %s24, 2
      %p73 = por %p71, %p72
      %p75 = scmp.ne.s32.totalorder %s58, %s74
      %p76 = scmp.eq.s32.totalorder %s24, 0
      %p77 = por %p75, %p76
      %s79 = sadd.s32 %s78, 1
      %p82 = scmp.eq.s32.totalorder %s18, 2
      %p83 = scmp.ne.s32.totalorder %s78, %s80
      %p84 = scmp.eq.s32.totalorder %s18, 0
      %p85 = por %p83, %p84
      %p86 = scmp.ne.s32.totalorder %s78, %s80
      %p87 = scmp.eq.s32.totalorder %s23, 2
      %p88 = por %p86, %p87
      %p89 = scmp.ne.s32.totalorder %s80, %s81
      %p90 = scmp.eq.s32.totalorder %s23, 0
      %p91 = por %p89, %p90
      %p92 = scmp.ne.s32.totalorder %s80, %s81
      %p93 = scmp.eq.s32.totalorder %s24, 2
      %p94 = por %p92, %p93
      %p96 = scmp.ne.s32.totalorder %s81, %s95
      %p97 = scmp.eq.s32.totalorder %s24, 0
      %p98 = por %p96, %p97
      %s100 = sadd.s32 %s99, 1
      %p103 = scmp.eq.s32.totalorder %s18, 2
      %p104 = scmp.ne.s32.totalorder %s99, %s101
      %p105 = scmp.eq.s32.totalorder %s18, 0
      %p106 = por %p104, %p105
      %p107 = scmp.ne.s32.totalorder %s99, %s101
      %p108 = scmp.eq.s32.totalorder %s23, 2
      %p109 = por %p107, %p108
      %p110 = scmp.ne.s32.totalorder %s101, %s102
      %p111 = scmp.eq.s32.totalorder %s23, 0
      %p112 = por %p110, %p111
      %p113 = scmp.ne.s32.totalorder %s101, %s102
      %p114 = scmp.eq.s32.totalorder %s24, 2
      %p115 = por %p113, %p114
      %p117 = scmp.ne.s32.totalorder %s102, %s116
      %p118 = scmp.eq.s32.totalorder %s24, 0
      %p119 = por %p117, %p118
      %s121 = sadd.s32 %s120, 1
      %p124 = scmp.eq.s32.totalorder %s18, 2
      %p125 = scmp.ne.s32.totalorder %s120, %s122
      %p126 = scmp.eq.s32.totalorder %s18, 0
      %p127 = por %p125, %p126
      %p128 = scmp.ne.s32.totalorder %s120, %s122
      %p129 = scmp.eq.s32.totalorder %s23, 2
      %p130 = por %p128, %p129
      %p131 = scmp.ne.s32.totalorder %s122, %s123
      %p132 = scmp.eq.s32.totalorder %s23, 0
      %p133 = por %p131, %p132
      %p134 = scmp.ne.s32.totalorder %s122, %s123
      %p135 = scmp.eq.s32.totalorder %s24, 2
      %p136 = por %p134, %p135
      %p138 = scmp.ne.s32.totalorder %s123, %s137
      %p139 = scmp.eq.s32.totalorder %s24, 0
      %p140 = por %p138, %p139
      %s142 = sadd.s32 %s141, 1
      %p145 = scmp.eq.s32.totalorder %s18, 2
      %p146 = scmp.ne.s32.totalorder %s141, %s143
      %p147 = scmp.eq.s32.totalorder %s18, 0
      %p148 = por %p146, %p147
      %p149 = scmp.ne.s32.totalorder %s141, %s143
      %p150 = scmp.eq.s32.totalorder %s23, 2
      %p151 = por %p149, %p150
      %p152 = scmp.ne.s32.totalorder %s143, %s144
      %p153 = scmp.eq.s32.totalorder %s23, 0
      %p154 = por %p152, %p153
      %p155 = scmp.ne.s32.totalorder %s143, %s144
      %p156 = scmp.eq.s32.totalorder %s24, 2
      %p157 = por %p155, %p156
      %p159 = scmp.ne.s32.totalorder %s144, %s158
      %p160 = scmp.eq.s32.totalorder %s24, 0
      %p161 = por %p159, %p160
      %s163 = sadd.s32 %s162, 1
      %p166 = scmp.eq.s32.totalorder %s18, 2
      %p167 = scmp.ne.s32.totalorder %s162, %s164
      %p168 = scmp.eq.s32.totalorder %s18, 0
      %p169 = por %p167, %p168
      %p170 = scmp.ne.s32.totalorder %s162, %s164
      %p171 = scmp.eq.s32.totalorder %s23, 2
      %p172 = por %p170, %p171
      %p173 = scmp.ne.s32.totalorder %s164, %s165
      %p174 = scmp.eq.s32.totalorder %s23, 0
      %p175 = por %p173, %p174
      %p176 = scmp.ne.s32.totalorder %s164, %s165
      %p177 = scmp.eq.s32.totalorder %s24, 2
      %p178 = por %p176, %p177
      %p180 = scmp.ne.s32.totalorder %s165, %s179
      %p181 = scmp.eq.s32.totalorder %s24, 0
      %p182 = por %p180, %p181
      %s184 = sadd.s32 %s183, 1
      %p187 = scmp.eq.s32.totalorder %s18, 2
      %p188 = scmp.ne.s32.totalorder %s183, %s185
      %p189 = scmp.eq.s32.totalorder %s18, 0
      %p190 = por %p188, %p189
      %p191 = scmp.ne.s32.totalorder %s183, %s185
      %p192 = scmp.eq.s32.totalorder %s23, 2
      %p193 = por %p191, %p192
      %p194 = scmp.ne.s32.totalorder %s185, %s186
      %p195 = scmp.eq.s32.totalorder %s23, 0
      %p196 = por %p194, %p195
      %p197 = scmp.ne.s32.totalorder %s185, %s186
      %p198 = scmp.eq.s32.totalorder %s24, 2
      %p199 = por %p197, %p198
      %p201 = scmp.ne.s32.totalorder %s186, %s200
      %p202 = scmp.eq.s32.totalorder %s24, 0
      %p203 = por %p201, %p202
      %s205 = sadd.s32 %s204, 1
      %p208 = scmp.eq.s32.totalorder %s18, 2
      %p209 = scmp.ne.s32.totalorder %s204, %s206
      %p210 = scmp.eq.s32.totalorder %s18, 0
      %p211 = por %p209, %p210
      %p212 = scmp.ne.s32.totalorder %s204, %s206
      %p213 = scmp.eq.s32.totalorder %s23, 2
      %p214 = por %p212, %p213
      %p215 = scmp.ne.s32.totalorder %s206, %s207
      %p216 = scmp.eq.s32.totalorder %s23, 0
      %p217 = por %p215, %p216
      %p218 = scmp.ne.s32.totalorder %s206, %s207
      %p219 = scmp.eq.s32.totalorder %s24, 2
      %p220 = por %p218, %p219
      %p222 = scmp.ne.s32.totalorder %s207, %s221
      %p223 = scmp.eq.s32.totalorder %s24, 0
      %p224 = por %p222, %p223
      %s226 = sadd.s32 %s225, 1
      %p229 = scmp.eq.s32.totalorder %s18, 2
      %p230 = scmp.ne.s32.totalorder %s225, %s227
      %p231 = scmp.eq.s32.totalorder %s18, 0
      %p232 = por %p230, %p231
      %p233 = scmp.ne.s32.totalorder %s225, %s227
      %p234 = scmp.eq.s32.totalorder %s23, 2
      %p235 = por %p233, %p234
      %p236 = scmp.ne.s32.totalorder %s227, %s228
      %p237 = scmp.eq.s32.totalorder %s23, 0
      %p238 = por %p236, %p237
      %p239 = scmp.ne.s32.totalorder %s227, %s228
      %p240 = scmp.eq.s32.totalorder %s24, 2
      %p241 = por %p239, %p240
      %p243 = scmp.ne.s32.totalorder %s228, %s242
      %p244 = scmp.eq.s32.totalorder %s24, 0
      %p245 = por %p243, %p244
      %s247 = sadd.s32 %s246, 1
      %p250 = scmp.eq.s32.totalorder %s18, 2
      %p251 = scmp.ne.s32.totalorder %s246, %s248
      %p252 = scmp.eq.s32.totalorder %s18, 0
      %p253 = por %p251, %p252
      %p254 = scmp.ne.s32.totalorder %s246, %s248
      %p255 = scmp.eq.s32.totalorder %s23, 2
      %p256 = por %p254, %p255
      %p257 = scmp.ne.s32.totalorder %s248, %s249
      %p258 = scmp.eq.s32.totalorder %s23, 0
      %p259 = por %p257, %p258
      %p260 = scmp.ne.s32.totalorder %s248, %s249
      %p261 = scmp.eq.s32.totalorder %s24, 2
      %p262 = por %p260, %p261
      %p264 = scmp.ne.s32.totalorder %s249, %s263
      %p265 = scmp.eq.s32.totalorder %s24, 0
      %p266 = por %p264, %p265
      %p267 = scmp.le.s32.totalorder 1, %s18
      %p268 = scmp.lt.s32.totalorder %s18, 4
      %p269 = pnand %p267, %p268
      %p270 = pneg %p269
      // Predicated region
      $region9: #{encoder_forward.1} parent=5 // pred_check
        _
      $region10: #{encoder_forward.1} parent=5 // pred_check_branch
        %272 = sbr.rel (%p269) target = $region12
      $region11: #{encoder_forward.1} parent=5 // pred_region
        %s273 = ssub.s32 %s18, 1
        // Predicated region
        $region13: #{encoder_forward.1} parent=11 // pred_check
          %p274 = pneg %p91
        $region14: #{encoder_forward.1} parent=11 // pred_check_branch
          %276 = sbr.rel (%p274) target = $region16
        $region15: #{encoder_forward.1} parent=11 // pred_region
          _
        $region16: #{encoder_forward.1} parent=11 // pred_fallthru
          _
        // Predicated region
        $region17: #{encoder_forward.1} parent=11 // pred_check
          %p277 = pneg %p112
        $region18: #{encoder_forward.1} parent=11 // pred_check_branch
          %279 = sbr.rel (%p277) target = $region20
        $region19: #{encoder_forward.1} parent=11 // pred_region
          _
        $region20: #{encoder_forward.1} parent=11 // pred_fallthru
          _
        // Predicated region
        $region21: #{encoder_forward.1} parent=11 // pred_check
          %p280 = pneg %p133
        $region22: #{encoder_forward.1} parent=11 // pred_check_branch
          %282 = sbr.rel (%p280) target = $region24
        $region23: #{encoder_forward.1} parent=11 // pred_region
          _
        $region24: #{encoder_forward.1} parent=11 // pred_fallthru
          _
        // Predicated region
        $region25: #{encoder_forward.1} parent=11 // pred_check
          %p283 = pneg %p154
        $region26: #{encoder_forward.1} parent=11 // pred_check_branch
          %285 = sbr.rel (%p283) target = $region28
        $region27: #{encoder_forward.1} parent=11 // pred_region
          _
        $region28: #{encoder_forward.1} parent=11 // pred_fallthru
          _
        // Predicated region
        $region29: #{encoder_forward.1} parent=11 // pred_check
          %p286 = pneg %p175
        $region30: #{encoder_forward.1} parent=11 // pred_check_branch
          %288 = sbr.rel (%p286) target = $region32
        $region31: #{encoder_forward.1} parent=11 // pred_region
          _
        $region32: #{encoder_forward.1} parent=11 // pred_fallthru
          _
        // Predicated region
        $region33: #{encoder_forward.1} parent=11 // pred_check
          %p289 = pneg %p196
        $region34: #{encoder_forward.1} parent=11 // pred_check_branch
          %291 = sbr.rel (%p289) target = $region36
        $region35: #{encoder_forward.1} parent=11 // pred_region
          _
        $region36: #{encoder_forward.1} parent=11 // pred_fallthru
          _
        // Predicated region
        $region37: #{encoder_forward.1} parent=11 // pred_check
          %p292 = pneg %p217
        $region38: #{encoder_forward.1} parent=11 // pred_check_branch
          %294 = sbr.rel (%p292) target = $region40
        $region39: #{encoder_forward.1} parent=11 // pred_region
          _
        $region40: #{encoder_forward.1} parent=11 // pred_fallthru
          _
        // Predicated region
        $region41: #{encoder_forward.1} parent=11 // pred_check
          %p295 = pneg %p238
        $region42: #{encoder_forward.1} parent=11 // pred_check_branch
          %297 = sbr.rel (%p295) target = $region44
        $region43: #{encoder_forward.1} parent=11 // pred_region
          %s299 = ssub.s32 16, 16
          %300 = vsyncadd [#allocation5], %s299
          %s302 = sshll.u32 %s9, 4
          %s303 = int_to_ptr.vmem [resolvable:$true] %s302
          %305 = dma.vmem_to_smem %s303, 16, [#allocation3], [#allocation5]
        $region44: #{encoder_forward.1} parent=11 // pred_fallthru
          _
      $region12: #{encoder_forward.1} parent=5 // pred_fallthru
        _
      %p306 = scmp.lt.s32.totalorder %s18, 3
      // Predicated region
      $region45: #{encoder_forward.1} parent=5 // pred_check
        %p307 = pneg %p306
      $region46: #{encoder_forward.1} parent=5 // pred_check_branch
        %309 = sbr.rel (%p307) target = $region48
      $region47: #{encoder_forward.1} parent=5 // pred_region
        // Predicated region
        $region49: #{encoder_forward.1} parent=47 // pred_check
          %p310 = pneg %p38
        $region50: #{encoder_forward.1} parent=47 // pred_check_branch
          %312 = sbr.rel (%p310) target = $region52
        $region51: #{encoder_forward.1} parent=47 // pred_region
          %s313 = smul.u32 16, %s18
          %p314 = scmp.lt.s32.totalorder %s313, 47
          %s315 = scalar_select %p314, %s313, 47
          %s316 = smul.addr %s315, 8
          %s317 = scalar_lea.vmem %s0, %s316
          %s318 = smul.u32 16, %s18
        $region52: #{encoder_forward.1} parent=47 // pred_fallthru
          _
        // Predicated region
        $region53: #{encoder_forward.1} parent=47 // pred_check
          %p319 = pneg %p64
        $region54: #{encoder_forward.1} parent=47 // pred_check_branch
          %321 = sbr.rel (%p319) target = $region56
        $region55: #{encoder_forward.1} parent=47 // pred_region
          %s322 = smul.u32 256, %s18
          %p323 = scmp.lt.s32.totalorder %s322, 767
          %s324 = scalar_select %p323, %s322, 767
          %s325 = smul.addr %s324, 7
          %s326 = smul.addr %s325, 8
          %s327 = scalar_lea.vmem %s1, %s326
          %s328 = smul.u32 256, %s18
        $region56: #{encoder_forward.1} parent=47 // pred_fallthru
          _
      $region48: #{encoder_forward.1} parent=5 // pred_fallthru
        _
      %p329 = scmp.le.s32.totalorder 1, %s18
      %p330 = scmp.lt.s32.totalorder %s18, 4
      %p331 = pnand %p329, %p330
      %p332 = pneg %p331
      // Predicated region
      $region57: #{encoder_forward.1} parent=5 // pred_check
        _
      $region58: #{encoder_forward.1} parent=5 // pred_check_branch
        %334 = sbr.rel (%p331) target = $region60
      $region59: #{encoder_forward.1} parent=5 // pred_region
        %s335 = ssub.s32 %s18, 1
        // Predicated region
        $region61: #{encoder_forward.1} parent=59 // pred_check
          %p336 = pneg %p238
        $region62: #{encoder_forward.1} parent=59 // pred_check_branch
          %338 = sbr.rel (%p336) target = $region64
        $region63: #{encoder_forward.1} parent=59 // pred_region
          %339 = dma.done [#allocation5], 16
        $region64: #{encoder_forward.1} parent=59 // pred_fallthru
          _
        %340 = sfence
        %s341 = smul.u32 16, %s23
        %p342 = scmp.lt.s32.totalorder %s341, 47
        %s343 = scalar_select %p342, %s341, 47
        %s344 = smul.addr %s343, 8
        %s345 = scalar_lea.vmem %s0, %s344
        %p346 = pneg %p44
        %p347 = pneg %p41
        %s348 = smul.u32 256, %s23
        %p349 = scmp.lt.s32.totalorder %s348, 767
        %s350 = scalar_select %p349, %s348, 767
        %s351 = smul.addr %s350, 7
        %s352 = smul.addr %s351, 8
        %s353 = scalar_lea.vmem %s1, %s352
        %p354 = pneg %p70
        %p355 = pneg %p67
        %p356 = pneg %p91
        %p357 = pneg %p88
        %p358 = pneg %p112
        %p359 = pneg %p109
        %p360 = pneg %p133
        %p361 = pneg %p130
        %p362 = pneg %p154
        %p363 = pneg %p151
        %p364 = pneg %p175
        %p365 = pneg %p172
        %p366 = pneg %p196
        %p367 = pneg %p193
        %p368 = pneg %p217
        %p369 = pneg %p214
        %p370 = pneg %p238
        %p371 = pneg %p235
        %p372 = pneg %p259
        %p373 = pneg %p256
        %s374 = smul.u32 16, %s23
        %p375 = scmp.lt.s32.totalorder %s374, 47
        %s376 = scalar_select %p375, %s374, 47
        %s377 = smul.addr %s376, 8
        %s378 = scalar_lea.vmem %s0, %s377
        %s379 = smul.u32 16, %s23
        %s380 = smul.u32 256, %s23
        %p381 = scmp.lt.s32.totalorder %s380, 767
        %s382 = scalar_select %p381, %s380, 767
        %s383 = smul.addr %s382, 7
        %s384 = smul.addr %s383, 8
        %s385 = scalar_lea.vmem %s1, %s384
        %s386 = smul.u32 256, %s23
        %p387 = scmp.eq.s32.totalorder %s23, 0
        // Predicated region
        $region65: #{encoder_forward.1} parent=59 // pred_check
          %p388 = pneg %p387
        $region66: #{encoder_forward.1} parent=59 // pred_check_branch
          %390 = sbr.rel (%p388) target = $region68
        $region67: #{encoder_forward.1} parent=59 // pred_region
          %391 = vst [vmem:[#allocation2] sm:$0xff] 0.0
          %392 = vst [vmem:[#allocation2 + $0x8] sm:$0xff] 0.0
          %393 = vst [vmem:[#allocation2 + $0x10] sm:$0xff] 0.0
          %394 = vst [vmem:[#allocation2 + $0x18] sm:$0xff] 0.0
          %395 = vst [vmem:[#allocation2 + $0x20] sm:$0xff] 0.0
          %396 = vst [vmem:[#allocation2 + $0x28] sm:$0xff] 0.0
          %vm397 = vcmask 146432
          %398 = vst.msk [vmem:[#allocation2 + $0x30] sm:$0xff] %vm397, 0.0
        $region68: #{encoder_forward.1} parent=59 // pred_fallthru
          _
        %v399 = vld [vmem:[#allocation2] sm:$0xff]
        %v400 = vld [vmem:[#allocation2 + $0x8] sm:$0xff]
        %v401 = vld [vmem:[#allocation2 + $0x10] sm:$0xff]
        %v402 = vld [vmem:[#allocation2 + $0x18] sm:$0xff]
        %v403 = vld [vmem:[#allocation2 + $0x20] sm:$0xff]
        %v404 = vld [vmem:[#allocation2 + $0x28] sm:$0xff]
        %v405 = vld [vmem:[#allocation2 + $0x30] sm:$0xff]
        %v406 = vld [vmem:[%s378] sm:$0xff]
        %v407 = vld [vmem:[%s378 + $0x8] sm:$0xff]
        %v408 = vld [vmem:[%s378 + $0x10] sm:$0xff]
        %v409 = vld [vmem:[%s378 + $0x18] sm:$0xff]
        %v410 = vld [vmem:[%s378 + $0x20] sm:$0xff]
        %v411 = vld [vmem:[%s378 + $0x28] sm:$0xff]
        %v412 = vld [vmem:[%s378 + $0x30] sm:$0xff]
        %v413 = vld [vmem:[%s378 + $0x38] sm:$0xff]
        %v414 = vld [vmem:[%s378 + $0x40] sm:$0xff]
        %v415 = vld [vmem:[%s378 + $0x48] sm:$0xff]
        %v416 = vld [vmem:[%s378 + $0x50] sm:$0xff]
        %v417 = vld [vmem:[%s378 + $0x58] sm:$0xff]
        %v418 = vld [vmem:[%s378 + $0x60] sm:$0xff]
        %v419 = vld [vmem:[%s378 + $0x68] sm:$0xff]
        %v420 = vld [vmem:[%s378 + $0x70] sm:$0xff]
        %v421 = vld [vmem:[%s378 + $0x78] sm:$0xff]
        %v422 = vld [vmem:[%s385] sm:$0xff]
        %v423 = vld [vmem:[%s385 + $0x8] sm:$0xff]
        %v424 = vld [vmem:[%s385 + $0x10] sm:$0xff]
        %v425 = vld [vmem:[%s385 + $0x18] sm:$0xff]
        %v426 = vld [vmem:[%s385 + $0x20] sm:$0xff]
        %v427 = vld [vmem:[%s385 + $0x28] sm:$0xff]
        %v428 = vld [vmem:[%s385 + $0x30] sm:$0xff]
        %v429 = vld [vmem:[%s385 + $0x38] sm:$0xff]
        %v430 = vld [vmem:[%s385 + $0x40] sm:$0xff]
        %v431 = vld [vmem:[%s385 + $0x48] sm:$0xff]
        %v432 = vld [vmem:[%s385 + $0x50] sm:$0xff]
        %v433 = vld [vmem:[%s385 + $0x58] sm:$0xff]
        %v434 = vld [vmem:[%s385 + $0x60] sm:$0xff]
        %v435 = vld [vmem:[%s385 + $0x68] sm:$0xff]
        %v436 = vld [vmem:[%s385 + $0x70] sm:$0xff]
        %v437 = vld [vmem:[%s385 + $0x78] sm:$0xff]
        %v438 = vld [vmem:[%s385 + $0x80] sm:$0xff]
        %v439 = vld [vmem:[%s385 + $0x88] sm:$0xff]
        %v440 = vld [vmem:[%s385 + $0x90] sm:$0xff]
        %v441 = vld [vmem:[%s385 + $0x98] sm:$0xff]
        %v442 = vld [vmem:[%s385 + $0xa0] sm:$0xff]
        %v443 = vld [vmem:[%s385 + $0xa8] sm:$0xff]
        %v444 = vld [vmem:[%s385 + $0xb0] sm:$0xff]
        %v445 = vld [vmem:[%s385 + $0xb8] sm:$0xff]
        %v446 = vld [vmem:[%s385 + $0xc0] sm:$0xff]
        %v447 = vld [vmem:[%s385 + $0xc8] sm:$0xff]
        %v448 = vld [vmem:[%s385 + $0xd0] sm:$0xff]
        %v449 = vld [vmem:[%s385 + $0xd8] sm:$0xff]
        %v450 = vld [vmem:[%s385 + $0xe0] sm:$0xff]
        %v451 = vld [vmem:[%s385 + $0xe8] sm:$0xff]
        %v452 = vld [vmem:[%s385 + $0xf0] sm:$0xff]
        %v453 = vld [vmem:[%s385 + $0xf8] sm:$0xff]
        %v454 = vld [vmem:[%s385 + $0x100] sm:$0xff]
        %v455 = vld [vmem:[%s385 + $0x108] sm:$0xff]
        %v456 = vld [vmem:[%s385 + $0x110] sm:$0xff]
        %v457 = vld [vmem:[%s385 + $0x118] sm:$0xff]
        %v458 = vld [vmem:[%s385 + $0x120] sm:$0xff]
        %v459 = vld [vmem:[%s385 + $0x128] sm:$0xff]
        %v460 = vld [vmem:[%s385 + $0x130] sm:$0xff]
        %v461 = vld [vmem:[%s385 + $0x138] sm:$0xff]
        %v462 = vld [vmem:[%s385 + $0x140] sm:$0xff]
        %v463 = vld [vmem:[%s385 + $0x148] sm:$0xff]
        %v464 = vld [vmem:[%s385 + $0x150] sm:$0xff]
        %v465 = vld [vmem:[%s385 + $0x158] sm:$0xff]
        %v466 = vld [vmem:[%s385 + $0x160] sm:$0xff]
        %v467 = vld [vmem:[%s385 + $0x168] sm:$0xff]
        %v468 = vld [vmem:[%s385 + $0x170] sm:$0xff]
        %v469 = vld [vmem:[%s385 + $0x178] sm:$0xff]
        %v470 = vld [vmem:[%s385 + $0x180] sm:$0xff]
        %v471 = vld [vmem:[%s385 + $0x188] sm:$0xff]
        %v472 = vld [vmem:[%s385 + $0x190] sm:$0xff]
        %v473 = vld [vmem:[%s385 + $0x198] sm:$0xff]
        %v474 = vld [vmem:[%s385 + $0x1a0] sm:$0xff]
        %v475 = vld [vmem:[%s385 + $0x1a8] sm:$0xff]
        %v476 = vld [vmem:[%s385 + $0x1b0] sm:$0xff]
        %v477 = vld [vmem:[%s385 + $0x1b8] sm:$0xff]
        %v478 = vld [vmem:[%s385 + $0x1c0] sm:$0xff]
        %v479 = vld [vmem:[%s385 + $0x1c8] sm:$0xff]
        %v480 = vld [vmem:[%s385 + $0x1d0] sm:$0xff]
        %v481 = vld [vmem:[%s385 + $0x1d8] sm:$0xff]
        %v482 = vld [vmem:[%s385 + $0x1e0] sm:$0xff]
        %v483 = vld [vmem:[%s385 + $0x1e8] sm:$0xff]
        %v484 = vld [vmem:[%s385 + $0x1f0] sm:$0xff]
        %v485 = vld [vmem:[%s385 + $0x1f8] sm:$0xff]
        %v486 = vld [vmem:[%s385 + $0x200] sm:$0xff]
        %v487 = vld [vmem:[%s385 + $0x208] sm:$0xff]
        %v488 = vld [vmem:[%s385 + $0x210] sm:$0xff]
        %v489 = vld [vmem:[%s385 + $0x218] sm:$0xff]
        %v490 = vld [vmem:[%s385 + $0x220] sm:$0xff]
        %v491 = vld [vmem:[%s385 + $0x228] sm:$0xff]
        %v492 = vld [vmem:[%s385 + $0x230] sm:$0xff]
        %v493 = vld [vmem:[%s385 + $0x238] sm:$0xff]
        %v494 = vld [vmem:[%s385 + $0x240] sm:$0xff]
        %v495 = vld [vmem:[%s385 + $0x248] sm:$0xff]
        %v496 = vld [vmem:[%s385 + $0x250] sm:$0xff]
        %v497 = vld [vmem:[%s385 + $0x258] sm:$0xff]
        %v498 = vld [vmem:[%s385 + $0x260] sm:$0xff]
        %v499 = vld [vmem:[%s385 + $0x268] sm:$0xff]
        %v500 = vld [vmem:[%s385 + $0x270] sm:$0xff]
        %v501 = vld [vmem:[%s385 + $0x278] sm:$0xff]
        %v502 = vld [vmem:[%s385 + $0x280] sm:$0xff]
        %v503 = vld [vmem:[%s385 + $0x288] sm:$0xff]
        %v504 = vld [vmem:[%s385 + $0x290] sm:$0xff]
        %v505 = vld [vmem:[%s385 + $0x298] sm:$0xff]
        %v506 = vld [vmem:[%s385 + $0x2a0] sm:$0xff]
        %v507 = vld [vmem:[%s385 + $0x2a8] sm:$0xff]
        %v508 = vld [vmem:[%s385 + $0x2b0] sm:$0xff]
        %v509 = vld [vmem:[%s385 + $0x2b8] sm:$0xff]
        %v510 = vld [vmem:[%s385 + $0x2c0] sm:$0xff]
        %v511 = vld [vmem:[%s385 + $0x2c8] sm:$0xff]
        %v512 = vld [vmem:[%s385 + $0x2d0] sm:$0xff]
        %v513 = vld [vmem:[%s385 + $0x2d8] sm:$0xff]
        %v514 = vld [vmem:[%s385 + $0x2e0] sm:$0xff]
        %v515 = vld [vmem:[%s385 + $0x2e8] sm:$0xff]
        %v516 = vld [vmem:[%s385 + $0x2f0] sm:$0xff]
        %v517 = vld [vmem:[%s385 + $0x2f8] sm:$0xff]
        %v518 = vld [vmem:[%s385 + $0x300] sm:$0xff]
        %v519 = vld [vmem:[%s385 + $0x308] sm:$0xff]
        %v520 = vld [vmem:[%s385 + $0x310] sm:$0xff]
        %v521 = vld [vmem:[%s385 + $0x318] sm:$0xff]
        %v522 = vld [vmem:[%s385 + $0x320] sm:$0xff]
        %v523 = vld [vmem:[%s385 + $0x328] sm:$0xff]
        %v524 = vld [vmem:[%s385 + $0x330] sm:$0xff]
        %v525 = vld [vmem:[%s385 + $0x338] sm:$0xff]
        %v526 = vld [vmem:[%s385 + $0x340] sm:$0xff]
        %v527 = vld [vmem:[%s385 + $0x348] sm:$0xff]
        %v528 = vld [vmem:[%s385 + $0x350] sm:$0xff]
        %v529 = vld [vmem:[%s385 + $0x358] sm:$0xff]
        %v530 = vld [vmem:[%s385 + $0x360] sm:$0xff]
        %v531 = vld [vmem:[%s385 + $0x368] sm:$0xff]
        %v532 = vld [vmem:[%s385 + $0x370] sm:$0xff]
        %v533 = vld [vmem:[%s385 + $0x378] sm:$0xff]
        %v534 = vld [vmem:[%s385 + $0x380] sm:$0xff]
        %v535 = vld [vmem:[%s385 + $0x388] sm:$0xff]
        %v536 = vld [vmem:[%s385 + $0x390] sm:$0xff]
        %v537 = vld [vmem:[%s385 + $0x398] sm:$0xff]
        %v538 = vld [vmem:[%s385 + $0x3a0] sm:$0xff]
        %v539 = vld [vmem:[%s385 + $0x3a8] sm:$0xff]
        %v540 = vld [vmem:[%s385 + $0x3b0] sm:$0xff]
        %v541 = vld [vmem:[%s385 + $0x3b8] sm:$0xff]
        %v542 = vld [vmem:[%s385 + $0x3c0] sm:$0xff]
        %v543 = vld [vmem:[%s385 + $0x3c8] sm:$0xff]
        %v544 = vld [vmem:[%s385 + $0x3d0] sm:$0xff]
        %v545 = vld [vmem:[%s385 + $0x3d8] sm:$0xff]
        %v546 = vld [vmem:[%s385 + $0x3e0] sm:$0xff]
        %v547 = vld [vmem:[%s385 + $0x3e8] sm:$0xff]
        %v548 = vld [vmem:[%s385 + $0x3f0] sm:$0xff]
        %v549 = vld [vmem:[%s385 + $0x3f8] sm:$0xff]
        %v550 = vld [vmem:[%s385 + $0x400] sm:$0xff]
        %v551 = vld [vmem:[%s385 + $0x408] sm:$0xff]
        %v552 = vld [vmem:[%s385 + $0x410] sm:$0xff]
        %v553 = vld [vmem:[%s385 + $0x418] sm:$0xff]
        %v554 = vld [vmem:[%s385 + $0x420] sm:$0xff]
        %v555 = vld [vmem:[%s385 + $0x428] sm:$0xff]
        %v556 = vld [vmem:[%s385 + $0x430] sm:$0xff]
        %v557 = vld [vmem:[%s385 + $0x438] sm:$0xff]
        %v558 = vld [vmem:[%s385 + $0x440] sm:$0xff]
        %v559 = vld [vmem:[%s385 + $0x448] sm:$0xff]
        %v560 = vld [vmem:[%s385 + $0x450] sm:$0xff]
        %v561 = vld [vmem:[%s385 + $0x458] sm:$0xff]
        %v562 = vld [vmem:[%s385 + $0x460] sm:$0xff]
        %v563 = vld [vmem:[%s385 + $0x468] sm:$0xff]
        %v564 = vld [vmem:[%s385 + $0x470] sm:$0xff]
        %v565 = vld [vmem:[%s385 + $0x478] sm:$0xff]
        %v566 = vld [vmem:[%s385 + $0x480] sm:$0xff]
        %v567 = vld [vmem:[%s385 + $0x488] sm:$0xff]
        %v568 = vld [vmem:[%s385 + $0x490] sm:$0xff]
        %v569 = vld [vmem:[%s385 + $0x498] sm:$0xff]
        %v570 = vld [vmem:[%s385 + $0x4a0] sm:$0xff]
        %v571 = vld [vmem:[%s385 + $0x4a8] sm:$0xff]
        %v572 = vld [vmem:[%s385 + $0x4b0] sm:$0xff]
        %v573 = vld [vmem:[%s385 + $0x4b8] sm:$0xff]
        %v574 = vld [vmem:[%s385 + $0x4c0] sm:$0xff]
        %v575 = vld [vmem:[%s385 + $0x4c8] sm:$0xff]
        %v576 = vld [vmem:[%s385 + $0x4d0] sm:$0xff]
        %v577 = vld [vmem:[%s385 + $0x4d8] sm:$0xff]
        %v578 = vld [vmem:[%s385 + $0x4e0] sm:$0xff]
        %v579 = vld [vmem:[%s385 + $0x4e8] sm:$0xff]
        %v580 = vld [vmem:[%s385 + $0x4f0] sm:$0xff]
        %v581 = vld [vmem:[%s385 + $0x4f8] sm:$0xff]
        %v582 = vld [vmem:[%s385 + $0x500] sm:$0xff]
        %v583 = vld [vmem:[%s385 + $0x508] sm:$0xff]
        %v584 = vld [vmem:[%s385 + $0x510] sm:$0xff]
        %v585 = vld [vmem:[%s385 + $0x518] sm:$0xff]
        %v586 = vld [vmem:[%s385 + $0x520] sm:$0xff]
        %v587 = vld [vmem:[%s385 + $0x528] sm:$0xff]
        %v588 = vld [vmem:[%s385 + $0x530] sm:$0xff]
        %v589 = vld [vmem:[%s385 + $0x538] sm:$0xff]
        %v590 = vld [vmem:[%s385 + $0x540] sm:$0xff]
        %v591 = vld [vmem:[%s385 + $0x548] sm:$0xff]
        %v592 = vld [vmem:[%s385 + $0x550] sm:$0xff]
        %v593 = vld [vmem:[%s385 + $0x558] sm:$0xff]
        %v594 = vld [vmem:[%s385 + $0x560] sm:$0xff]
        %v595 = vld [vmem:[%s385 + $0x568] sm:$0xff]
        %v596 = vld [vmem:[%s385 + $0x570] sm:$0xff]
        %v597 = vld [vmem:[%s385 + $0x578] sm:$0xff]
        %v598 = vld [vmem:[%s385 + $0x580] sm:$0xff]
        %v599 = vld [vmem:[%s385 + $0x588] sm:$0xff]
        %v600 = vld [vmem:[%s385 + $0x590] sm:$0xff]
        %v601 = vld [vmem:[%s385 + $0x598] sm:$0xff]
        %v602 = vld [vmem:[%s385 + $0x5a0] sm:$0xff]
        %v603 = vld [vmem:[%s385 + $0x5a8] sm:$0xff]
        %v604 = vld [vmem:[%s385 + $0x5b0] sm:$0xff]
        %v605 = vld [vmem:[%s385 + $0x5b8] sm:$0xff]
        %v606 = vld [vmem:[%s385 + $0x5c0] sm:$0xff]
        %v607 = vld [vmem:[%s385 + $0x5c8] sm:$0xff]
        %v608 = vld [vmem:[%s385 + $0x5d0] sm:$0xff]
        %v609 = vld [vmem:[%s385 + $0x5d8] sm:$0xff]
        %v610 = vld [vmem:[%s385 + $0x5e0] sm:$0xff]
        %v611 = vld [vmem:[%s385 + $0x5e8] sm:$0xff]
        %v612 = vld [vmem:[%s385 + $0x5f0] sm:$0xff]
        %v613 = vld [vmem:[%s385 + $0x5f8] sm:$0xff]
        %v614 = vld [vmem:[%s385 + $0x600] sm:$0xff]
        %v615 = vld [vmem:[%s385 + $0x608] sm:$0xff]
        %v616 = vld [vmem:[%s385 + $0x610] sm:$0xff]
        %v617 = vld [vmem:[%s385 + $0x618] sm:$0xff]
        %v618 = vld [vmem:[%s385 + $0x620] sm:$0xff]
        %v619 = vld [vmem:[%s385 + $0x628] sm:$0xff]
        %v620 = vld [vmem:[%s385 + $0x630] sm:$0xff]
        %v621 = vld [vmem:[%s385 + $0x638] sm:$0xff]
        %v622 = vld [vmem:[%s385 + $0x640] sm:$0xff]
        %v623 = vld [vmem:[%s385 + $0x648] sm:$0xff]
        %v624 = vld [vmem:[%s385 + $0x650] sm:$0xff]
        %v625 = vld [vmem:[%s385 + $0x658] sm:$0xff]
        %v626 = vld [vmem:[%s385 + $0x660] sm:$0xff]
        %v627 = vld [vmem:[%s385 + $0x668] sm:$0xff]
        %v628 = vld [vmem:[%s385 + $0x670] sm:$0xff]
        %v629 = vld [vmem:[%s385 + $0x678] sm:$0xff]
        %v630 = vld [vmem:[%s385 + $0x680] sm:$0xff]
        %v631 = vld [vmem:[%s385 + $0x688] sm:$0xff]
        %v632 = vld [vmem:[%s385 + $0x690] sm:$0xff]
        %v633 = vld [vmem:[%s385 + $0x698] sm:$0xff]
        %v634 = vld [vmem:[%s385 + $0x6a0] sm:$0xff]
        %v635 = vld [vmem:[%s385 + $0x6a8] sm:$0xff]
        %v636 = vld [vmem:[%s385 + $0x6b0] sm:$0xff]
        %v637 = vld [vmem:[%s385 + $0x6b8] sm:$0xff]
        %v638 = vld [vmem:[%s385 + $0x6c0] sm:$0xff]
        %v639 = vld [vmem:[%s385 + $0x6c8] sm:$0xff]
        %v640 = vld [vmem:[%s385 + $0x6d0] sm:$0xff]
        %v641 = vld [vmem:[%s385 + $0x6d8] sm:$0xff]
        %v642 = vld [vmem:[%s385 + $0x6e0] sm:$0xff]
        %v643 = vld [vmem:[%s385 + $0x6e8] sm:$0xff]
        %v644 = vld [vmem:[%s385 + $0x6f0] sm:$0xff]
        %v645 = vld [vmem:[%s385 + $0x6f8] sm:$0xff]
        %v646 = vld [vmem:[%s385 + $0x700] sm:$0xff]
        %v647 = vld [vmem:[%s385 + $0x708] sm:$0xff]
        %v648 = vld [vmem:[%s385 + $0x710] sm:$0xff]
        %v649 = vld [vmem:[%s385 + $0x718] sm:$0xff]
        %v650 = vld [vmem:[%s385 + $0x720] sm:$0xff]
        %v651 = vld [vmem:[%s385 + $0x728] sm:$0xff]
        %v652 = vld [vmem:[%s385 + $0x730] sm:$0xff]
        %v653 = vld [vmem:[%s385 + $0x738] sm:$0xff]
        %v654 = vld [vmem:[%s385 + $0x740] sm:$0xff]
        %v655 = vld [vmem:[%s385 + $0x748] sm:$0xff]
        %v656 = vld [vmem:[%s385 + $0x750] sm:$0xff]
        %v657 = vld [vmem:[%s385 + $0x758] sm:$0xff]
        %v658 = vld [vmem:[%s385 + $0x760] sm:$0xff]
        %v659 = vld [vmem:[%s385 + $0x768] sm:$0xff]
        %v660 = vld [vmem:[%s385 + $0x770] sm:$0xff]
        %v661 = vld [vmem:[%s385 + $0x778] sm:$0xff]
        %v662 = vld [vmem:[%s385 + $0x780] sm:$0xff]
        %v663 = vld [vmem:[%s385 + $0x788] sm:$0xff]
        %v664 = vld [vmem:[%s385 + $0x790] sm:$0xff]
        %v665 = vld [vmem:[%s385 + $0x798] sm:$0xff]
        %v666 = vld [vmem:[%s385 + $0x7a0] sm:$0xff]
        %v667 = vld [vmem:[%s385 + $0x7a8] sm:$0xff]
        %v668 = vld [vmem:[%s385 + $0x7b0] sm:$0xff]
        %v669 = vld [vmem:[%s385 + $0x7b8] sm:$0xff]
        %v670 = vld [vmem:[%s385 + $0x7c0] sm:$0xff]
        %v671 = vld [vmem:[%s385 + $0x7c8] sm:$0xff]
        %v672 = vld [vmem:[%s385 + $0x7d0] sm:$0xff]
        %v673 = vld [vmem:[%s385 + $0x7d8] sm:$0xff]
        %v674 = vld [vmem:[%s385 + $0x7e0] sm:$0xff]
        %v675 = vld [vmem:[%s385 + $0x7e8] sm:$0xff]
        %v676 = vld [vmem:[%s385 + $0x7f0] sm:$0xff]
        %v677 = vld [vmem:[%s385 + $0x7f8] sm:$0xff]
        %v678 = vld [vmem:[%s385 + $0x800] sm:$0xff]
        %v679 = vld [vmem:[%s385 + $0x808] sm:$0xff]
        %v680 = vld [vmem:[%s385 + $0x810] sm:$0xff]
        %v681 = vld [vmem:[%s385 + $0x818] sm:$0xff]
        %v682 = vld [vmem:[%s385 + $0x820] sm:$0xff]
        %v683 = vld [vmem:[%s385 + $0x828] sm:$0xff]
        %v684 = vld [vmem:[%s385 + $0x830] sm:$0xff]
        %v685 = vld [vmem:[%s385 + $0x838] sm:$0xff]
        %v686 = vld [vmem:[%s385 + $0x840] sm:$0xff]
        %v687 = vld [vmem:[%s385 + $0x848] sm:$0xff]
        %v688 = vld [vmem:[%s385 + $0x850] sm:$0xff]
        %v689 = vld [vmem:[%s385 + $0x858] sm:$0xff]
        %v690 = vld [vmem:[%s385 + $0x860] sm:$0xff]
        %v691 = vld [vmem:[%s385 + $0x868] sm:$0xff]
        %v692 = vld [vmem:[%s385 + $0x870] sm:$0xff]
        %v693 = vld [vmem:[%s385 + $0x878] sm:$0xff]
        %v694 = vld [vmem:[%s385 + $0x880] sm:$0xff]
        %v695 = vld [vmem:[%s385 + $0x888] sm:$0xff]
        %v696 = vld [vmem:[%s385 + $0x890] sm:$0xff]
        %v697 = vld [vmem:[%s385 + $0x898] sm:$0xff]
        %v698 = vld [vmem:[%s385 + $0x8a0] sm:$0xff]
        %v699 = vld [vmem:[%s385 + $0x8a8] sm:$0xff]
        %v700 = vld [vmem:[%s385 + $0x8b0] sm:$0xff]
        %v701 = vld [vmem:[%s385 + $0x8b8] sm:$0xff]
        %v702 = vld [vmem:[%s385 + $0x8c0] sm:$0xff]
        %v703 = vld [vmem:[%s385 + $0x8c8] sm:$0xff]
        %v704 = vld [vmem:[%s385 + $0x8d0] sm:$0xff]
        %v705 = vld [vmem:[%s385 + $0x8d8] sm:$0xff]
        %v706 = vld [vmem:[%s385 + $0x8e0] sm:$0xff]
        %v707 = vld [vmem:[%s385 + $0x8e8] sm:$0xff]
        %v708 = vld [vmem:[%s385 + $0x8f0] sm:$0xff]
        %v709 = vld [vmem:[%s385 + $0x8f8] sm:$0xff]
        %v710 = vld [vmem:[%s385 + $0x900] sm:$0xff]
        %v711 = vld [vmem:[%s385 + $0x908] sm:$0xff]
        %v712 = vld [vmem:[%s385 + $0x910] sm:$0xff]
        %v713 = vld [vmem:[%s385 + $0x918] sm:$0xff]
        %v714 = vld [vmem:[%s385 + $0x920] sm:$0xff]
        %v715 = vld [vmem:[%s385 + $0x928] sm:$0xff]
        %v716 = vld [vmem:[%s385 + $0x930] sm:$0xff]
        %v717 = vld [vmem:[%s385 + $0x938] sm:$0xff]
        %v718 = vld [vmem:[%s385 + $0x940] sm:$0xff]
        %v719 = vld [vmem:[%s385 + $0x948] sm:$0xff]
        %v720 = vld [vmem:[%s385 + $0x950] sm:$0xff]
        %v721 = vld [vmem:[%s385 + $0x958] sm:$0xff]
        %v722 = vld [vmem:[%s385 + $0x960] sm:$0xff]
        %v723 = vld [vmem:[%s385 + $0x968] sm:$0xff]
        %v724 = vld [vmem:[%s385 + $0x970] sm:$0xff]
        %v725 = vld [vmem:[%s385 + $0x978] sm:$0xff]
        %v726 = vld [vmem:[%s385 + $0x980] sm:$0xff]
        %v727 = vld [vmem:[%s385 + $0x988] sm:$0xff]
        %v728 = vld [vmem:[%s385 + $0x990] sm:$0xff]
        %v729 = vld [vmem:[%s385 + $0x998] sm:$0xff]
        %v730 = vld [vmem:[%s385 + $0x9a0] sm:$0xff]
        %v731 = vld [vmem:[%s385 + $0x9a8] sm:$0xff]
        %v732 = vld [vmem:[%s385 + $0x9b0] sm:$0xff]
        %v733 = vld [vmem:[%s385 + $0x9b8] sm:$0xff]
        %v734 = vld [vmem:[%s385 + $0x9c0] sm:$0xff]
        %v735 = vld [vmem:[%s385 + $0x9c8] sm:$0xff]
        %v736 = vld [vmem:[%s385 + $0x9d0] sm:$0xff]
        %v737 = vld [vmem:[%s385 + $0x9d8] sm:$0xff]
        %v738 = vld [vmem:[%s385 + $0x9e0] sm:$0xff]
        %v739 = vld [vmem:[%s385 + $0x9e8] sm:$0xff]
        %v740 = vld [vmem:[%s385 + $0x9f0] sm:$0xff]
        %v741 = vld [vmem:[%s385 + $0x9f8] sm:$0xff]
        %v742 = vld [vmem:[%s385 + $0xa00] sm:$0xff]
        %v743 = vld [vmem:[%s385 + $0xa08] sm:$0xff]
        %v744 = vld [vmem:[%s385 + $0xa10] sm:$0xff]
        %v745 = vld [vmem:[%s385 + $0xa18] sm:$0xff]
        %v746 = vld [vmem:[%s385 + $0xa20] sm:$0xff]
        %v747 = vld [vmem:[%s385 + $0xa28] sm:$0xff]
        %v748 = vld [vmem:[%s385 + $0xa30] sm:$0xff]
        %v749 = vld [vmem:[%s385 + $0xa38] sm:$0xff]
        %v750 = vld [vmem:[%s385 + $0xa40] sm:$0xff]
        %v751 = vld [vmem:[%s385 + $0xa48] sm:$0xff]
        %v752 = vld [vmem:[%s385 + $0xa50] sm:$0xff]
        %v753 = vld [vmem:[%s385 + $0xa58] sm:$0xff]
        %v754 = vld [vmem:[%s385 + $0xa60] sm:$0xff]
        %v755 = vld [vmem:[%s385 + $0xa68] sm:$0xff]
        %v756 = vld [vmem:[%s385 + $0xa70] sm:$0xff]
        %v757 = vld [vmem:[%s385 + $0xa78] sm:$0xff]
        %v758 = vld [vmem:[%s385 + $0xa80] sm:$0xff]
        %v759 = vld [vmem:[%s385 + $0xa88] sm:$0xff]
        %v760 = vld [vmem:[%s385 + $0xa90] sm:$0xff]
        %v761 = vld [vmem:[%s385 + $0xa98] sm:$0xff]
        %v762 = vld [vmem:[%s385 + $0xaa0] sm:$0xff]
        %v763 = vld [vmem:[%s385 + $0xaa8] sm:$0xff]
        %v764 = vld [vmem:[%s385 + $0xab0] sm:$0xff]
        %v765 = vld [vmem:[%s385 + $0xab8] sm:$0xff]
        %v766 = vld [vmem:[%s385 + $0xac0] sm:$0xff]
        %v767 = vld [vmem:[%s385 + $0xac8] sm:$0xff]
        %v768 = vld [vmem:[%s385 + $0xad0] sm:$0xff]
        %v769 = vld [vmem:[%s385 + $0xad8] sm:$0xff]
        %v770 = vld [vmem:[%s385 + $0xae0] sm:$0xff]
        %v771 = vld [vmem:[%s385 + $0xae8] sm:$0xff]
        %v772 = vld [vmem:[%s385 + $0xaf0] sm:$0xff]
        %v773 = vld [vmem:[%s385 + $0xaf8] sm:$0xff]
        %v774 = vld [vmem:[%s385 + $0xb00] sm:$0xff]
        %v775 = vld [vmem:[%s385 + $0xb08] sm:$0xff]
        %v776 = vld [vmem:[%s385 + $0xb10] sm:$0xff]
        %v777 = vld [vmem:[%s385 + $0xb18] sm:$0xff]
        %v778 = vld [vmem:[%s385 + $0xb20] sm:$0xff]
        %v779 = vld [vmem:[%s385 + $0xb28] sm:$0xff]
        %v780 = vld [vmem:[%s385 + $0xb30] sm:$0xff]
        %v781 = vld [vmem:[%s385 + $0xb38] sm:$0xff]
        %v782 = vld [vmem:[%s385 + $0xb40] sm:$0xff]
        %v783 = vld [vmem:[%s385 + $0xb48] sm:$0xff]
        %v784 = vld [vmem:[%s385 + $0xb50] sm:$0xff]
        %v785 = vld [vmem:[%s385 + $0xb58] sm:$0xff]
        %v786 = vld [vmem:[%s385 + $0xb60] sm:$0xff]
        %v787 = vld [vmem:[%s385 + $0xb68] sm:$0xff]
        %v788 = vld [vmem:[%s385 + $0xb70] sm:$0xff]
        %v789 = vld [vmem:[%s385 + $0xb78] sm:$0xff]
        %v790 = vld [vmem:[%s385 + $0xb80] sm:$0xff]
        %v791 = vld [vmem:[%s385 + $0xb88] sm:$0xff]
        %v792 = vld [vmem:[%s385 + $0xb90] sm:$0xff]
        %v793 = vld [vmem:[%s385 + $0xb98] sm:$0xff]
        %v794 = vld [vmem:[%s385 + $0xba0] sm:$0xff]
        %v795 = vld [vmem:[%s385 + $0xba8] sm:$0xff]
        %v796 = vld [vmem:[%s385 + $0xbb0] sm:$0xff]
        %v797 = vld [vmem:[%s385 + $0xbb8] sm:$0xff]
        %v798 = vld [vmem:[%s385 + $0xbc0] sm:$0xff]
        %v799 = vld [vmem:[%s385 + $0xbc8] sm:$0xff]
        %v800 = vld [vmem:[%s385 + $0xbd0] sm:$0xff]
        %v801 = vld [vmem:[%s385 + $0xbd8] sm:$0xff]
        %v802 = vld [vmem:[%s385 + $0xbe0] sm:$0xff]
        %v803 = vld [vmem:[%s385 + $0xbe8] sm:$0xff]
        %v804 = vld [vmem:[%s385 + $0xbf0] sm:$0xff]
        %v805 = vld [vmem:[%s385 + $0xbf8] sm:$0xff]
        %v806 = vld [vmem:[%s385 + $0xc00] sm:$0xff]
        %v807 = vld [vmem:[%s385 + $0xc08] sm:$0xff]
        %v808 = vld [vmem:[%s385 + $0xc10] sm:$0xff]
        %v809 = vld [vmem:[%s385 + $0xc18] sm:$0xff]
        %v810 = vld [vmem:[%s385 + $0xc20] sm:$0xff]
        %v811 = vld [vmem:[%s385 + $0xc28] sm:$0xff]
        %v812 = vld [vmem:[%s385 + $0xc30] sm:$0xff]
        %v813 = vld [vmem:[%s385 + $0xc38] sm:$0xff]
        %v814 = vld [vmem:[%s385 + $0xc40] sm:$0xff]
        %v815 = vld [vmem:[%s385 + $0xc48] sm:$0xff]
        %v816 = vld [vmem:[%s385 + $0xc50] sm:$0xff]
        %v817 = vld [vmem:[%s385 + $0xc58] sm:$0xff]
        %v818 = vld [vmem:[%s385 + $0xc60] sm:$0xff]
        %v819 = vld [vmem:[%s385 + $0xc68] sm:$0xff]
        %v820 = vld [vmem:[%s385 + $0xc70] sm:$0xff]
        %v821 = vld [vmem:[%s385 + $0xc78] sm:$0xff]
        %v822 = vld [vmem:[%s385 + $0xc80] sm:$0xff]
        %v823 = vld [vmem:[%s385 + $0xc88] sm:$0xff]
        %v824 = vld [vmem:[%s385 + $0xc90] sm:$0xff]
        %v825 = vld [vmem:[%s385 + $0xc98] sm:$0xff]
        %v826 = vld [vmem:[%s385 + $0xca0] sm:$0xff]
        %v827 = vld [vmem:[%s385 + $0xca8] sm:$0xff]
        %v828 = vld [vmem:[%s385 + $0xcb0] sm:$0xff]
        %v829 = vld [vmem:[%s385 + $0xcb8] sm:$0xff]
        %v830 = vld [vmem:[%s385 + $0xcc0] sm:$0xff]
        %v831 = vld [vmem:[%s385 + $0xcc8] sm:$0xff]
        %v832 = vld [vmem:[%s385 + $0xcd0] sm:$0xff]
        %v833 = vld [vmem:[%s385 + $0xcd8] sm:$0xff]
        %v834 = vld [vmem:[%s385 + $0xce0] sm:$0xff]
        %v835 = vld [vmem:[%s385 + $0xce8] sm:$0xff]
        %v836 = vld [vmem:[%s385 + $0xcf0] sm:$0xff]
        %v837 = vld [vmem:[%s385 + $0xcf8] sm:$0xff]
        %v838 = vld [vmem:[%s385 + $0xd00] sm:$0xff]
        %v839 = vld [vmem:[%s385 + $0xd08] sm:$0xff]
        %v840 = vld [vmem:[%s385 + $0xd10] sm:$0xff]
        %v841 = vld [vmem:[%s385 + $0xd18] sm:$0xff]
        %v842 = vld [vmem:[%s385 + $0xd20] sm:$0xff]
        %v843 = vld [vmem:[%s385 + $0xd28] sm:$0xff]
        %v844 = vld [vmem:[%s385 + $0xd30] sm:$0xff]
        %v845 = vld [vmem:[%s385 + $0xd38] sm:$0xff]
        %v846 = vld [vmem:[%s385 + $0xd40] sm:$0xff]
        %v847 = vld [vmem:[%s385 + $0xd48] sm:$0xff]
        %v848 = vld [vmem:[%s385 + $0xd50] sm:$0xff]
        %v849 = vld [vmem:[%s385 + $0xd58] sm:$0xff]
        %v850 = vld [vmem:[%s385 + $0xd60] sm:$0xff]
        %v851 = vld [vmem:[%s385 + $0xd68] sm:$0xff]
        %v852 = vld [vmem:[%s385 + $0xd70] sm:$0xff]
        %v853 = vld [vmem:[%s385 + $0xd78] sm:$0xff]
        %v854 = vld [vmem:[%s385 + $0xd80] sm:$0xff]
        %v855 = vld [vmem:[%s385 + $0xd88] sm:$0xff]
        %v856 = vld [vmem:[%s385 + $0xd90] sm:$0xff]
        %v857 = vld [vmem:[%s385 + $0xd98] sm:$0xff]
        %v858 = vld [vmem:[%s385 + $0xda0] sm:$0xff]
        %v859 = vld [vmem:[%s385 + $0xda8] sm:$0xff]
        %v860 = vld [vmem:[%s385 + $0xdb0] sm:$0xff]
        %v861 = vld [vmem:[%s385 + $0xdb8] sm:$0xff]
        %v862 = vld [vmem:[%s385 + $0xdc0] sm:$0xff]
        %v863 = vld [vmem:[%s385 + $0xdc8] sm:$0xff]
        %v864 = vld [vmem:[%s385 + $0xdd0] sm:$0xff]
        %v865 = vld [vmem:[%s385 + $0xdd8] sm:$0xff]
        %v866 = vld [vmem:[%s385 + $0xde0] sm:$0xff]
        %v867 = vld [vmem:[%s385 + $0xde8] sm:$0xff]
        %v868 = vld [vmem:[%s385 + $0xdf0] sm:$0xff]
        %v869 = vld [vmem:[%s385 + $0xdf8] sm:$0xff]
        %v870 = vld [vmem:[%s385 + $0xe00] sm:$0xff]
        %v871 = vld [vmem:[%s385 + $0xe08] sm:$0xff]
        %v872 = vld [vmem:[%s385 + $0xe10] sm:$0xff]
        %v873 = vld [vmem:[%s385 + $0xe18] sm:$0xff]
        %v874 = vld [vmem:[%s385 + $0xe20] sm:$0xff]
        %v875 = vld [vmem:[%s385 + $0xe28] sm:$0xff]
        %v876 = vld [vmem:[%s385 + $0xe30] sm:$0xff]
        %v877 = vld [vmem:[%s385 + $0xe38] sm:$0xff]
        %v878 = vld [vmem:[%s385 + $0xe40] sm:$0xff]
        %v879 = vld [vmem:[%s385 + $0xe48] sm:$0xff]
        %v880 = vld [vmem:[%s385 + $0xe50] sm:$0xff]
        %v881 = vld [vmem:[%s385 + $0xe58] sm:$0xff]
        %v882 = vld [vmem:[%s385 + $0xe60] sm:$0xff]
        %v883 = vld [vmem:[%s385 + $0xe68] sm:$0xff]
        %v884 = vld [vmem:[%s385 + $0xe70] sm:$0xff]
        %v885 = vld [vmem:[%s385 + $0xe78] sm:$0xff]
        %v886 = vld [vmem:[%s385 + $0xe80] sm:$0xff]
        %v887 = vld [vmem:[%s385 + $0xe88] sm:$0xff]
        %v888 = vld [vmem:[%s385 + $0xe90] sm:$0xff]
        %v889 = vld [vmem:[%s385 + $0xe98] sm:$0xff]
        %v890 = vld [vmem:[%s385 + $0xea0] sm:$0xff]
        %v891 = vld [vmem:[%s385 + $0xea8] sm:$0xff]
        %v892 = vld [vmem:[%s385 + $0xeb0] sm:$0xff]
        %v893 = vld [vmem:[%s385 + $0xeb8] sm:$0xff]
        %v894 = vld [vmem:[%s385 + $0xec0] sm:$0xff]
        %v895 = vld [vmem:[%s385 + $0xec8] sm:$0xff]
        %v896 = vld [vmem:[%s385 + $0xed0] sm:$0xff]
        %v897 = vld [vmem:[%s385 + $0xed8] sm:$0xff]
        %v898 = vld [vmem:[%s385 + $0xee0] sm:$0xff]
        %v899 = vld [vmem:[%s385 + $0xee8] sm:$0xff]
        %v900 = vld [vmem:[%s385 + $0xef0] sm:$0xff]
        %v901 = vld [vmem:[%s385 + $0xef8] sm:$0xff]
        %v902 = vld [vmem:[%s385 + $0xf00] sm:$0xff]
        %v903 = vld [vmem:[%s385 + $0xf08] sm:$0xff]
        %v904 = vld [vmem:[%s385 + $0xf10] sm:$0xff]
        %v905 = vld [vmem:[%s385 + $0xf18] sm:$0xff]
        %v906 = vld [vmem:[%s385 + $0xf20] sm:$0xff]
        %v907 = vld [vmem:[%s385 + $0xf28] sm:$0xff]
        %v908 = vld [vmem:[%s385 + $0xf30] sm:$0xff]
        %v909 = vld [vmem:[%s385 + $0xf38] sm:$0xff]
        %v910 = vld [vmem:[%s385 + $0xf40] sm:$0xff]
        %v911 = vld [vmem:[%s385 + $0xf48] sm:$0xff]
        %v912 = vld [vmem:[%s385 + $0xf50] sm:$0xff]
        %v913 = vld [vmem:[%s385 + $0xf58] sm:$0xff]
        %v914 = vld [vmem:[%s385 + $0xf60] sm:$0xff]
        %v915 = vld [vmem:[%s385 + $0xf68] sm:$0xff]
        %v916 = vld [vmem:[%s385 + $0xf70] sm:$0xff]
        %v917 = vld [vmem:[%s385 + $0xf78] sm:$0xff]
        %v918 = vld [vmem:[%s385 + $0xf80] sm:$0xff]
        %v919 = vld [vmem:[%s385 + $0xf88] sm:$0xff]
        %v920 = vld [vmem:[%s385 + $0xf90] sm:$0xff]
        %v921 = vld [vmem:[%s385 + $0xf98] sm:$0xff]
        %v922 = vld [vmem:[%s385 + $0xfa0] sm:$0xff]
        %v923 = vld [vmem:[%s385 + $0xfa8] sm:$0xff]
        %v924 = vld [vmem:[%s385 + $0xfb0] sm:$0xff]
        %v925 = vld [vmem:[%s385 + $0xfb8] sm:$0xff]
        %v926 = vld [vmem:[%s385 + $0xfc0] sm:$0xff]
        %v927 = vld [vmem:[%s385 + $0xfc8] sm:$0xff]
        %v928 = vld [vmem:[%s385 + $0xfd0] sm:$0xff]
        %v929 = vld [vmem:[%s385 + $0xfd8] sm:$0xff]
        %v930 = vld [vmem:[%s385 + $0xfe0] sm:$0xff]
        %v931 = vld [vmem:[%s385 + $0xfe8] sm:$0xff]
        %v932 = vld [vmem:[%s385 + $0xff0] sm:$0xff]
        %v933 = vld [vmem:[%s385 + $0xff8] sm:$0xff]
        %v934 = vld [vmem:[%s385 + $0x1000] sm:$0xff]
        %v935 = vld [vmem:[%s385 + $0x1008] sm:$0xff]
        %v936 = vld [vmem:[%s385 + $0x1010] sm:$0xff]
        %v937 = vld [vmem:[%s385 + $0x1018] sm:$0xff]
        %v938 = vld [vmem:[%s385 + $0x1020] sm:$0xff]
        %v939 = vld [vmem:[%s385 + $0x1028] sm:$0xff]
        %v940 = vld [vmem:[%s385 + $0x1030] sm:$0xff]
        %v941 = vld [vmem:[%s385 + $0x1038] sm:$0xff]
        %v942 = vld [vmem:[%s385 + $0x1040] sm:$0xff]
        %v943 = vld [vmem:[%s385 + $0x1048] sm:$0xff]
        %v944 = vld [vmem:[%s385 + $0x1050] sm:$0xff]
        %v945 = vld [vmem:[%s385 + $0x1058] sm:$0xff]
        %v946 = vld [vmem:[%s385 + $0x1060] sm:$0xff]
        %v947 = vld [vmem:[%s385 + $0x1068] sm:$0xff]
        %v948 = vld [vmem:[%s385 + $0x1070] sm:$0xff]
        %v949 = vld [vmem:[%s385 + $0x1078] sm:$0xff]
        %v950 = vld [vmem:[%s385 + $0x1080] sm:$0xff]
        %v951 = vld [vmem:[%s385 + $0x1088] sm:$0xff]
        %v952 = vld [vmem:[%s385 + $0x1090] sm:$0xff]
        %v953 = vld [vmem:[%s385 + $0x1098] sm:$0xff]
        %v954 = vld [vmem:[%s385 + $0x10a0] sm:$0xff]
        %v955 = vld [vmem:[%s385 + $0x10a8] sm:$0xff]
        %v956 = vld [vmem:[%s385 + $0x10b0] sm:$0xff]
        %v957 = vld [vmem:[%s385 + $0x10b8] sm:$0xff]
        %v958 = vld [vmem:[%s385 + $0x10c0] sm:$0xff]
        %v959 = vld [vmem:[%s385 + $0x10c8] sm:$0xff]
        %v960 = vld [vmem:[%s385 + $0x10d0] sm:$0xff]
        %v961 = vld [vmem:[%s385 + $0x10d8] sm:$0xff]
        %v962 = vld [vmem:[%s385 + $0x10e0] sm:$0xff]
        %v963 = vld [vmem:[%s385 + $0x10e8] sm:$0xff]
        %v964 = vld [vmem:[%s385 + $0x10f0] sm:$0xff]
        %v965 = vld [vmem:[%s385 + $0x10f8] sm:$0xff]
        %v966 = vld [vmem:[%s385 + $0x1100] sm:$0xff]
        %v967 = vld [vmem:[%s385 + $0x1108] sm:$0xff]
        %v968 = vld [vmem:[%s385 + $0x1110] sm:$0xff]
        %v969 = vld [vmem:[%s385 + $0x1118] sm:$0xff]
        %v970 = vld [vmem:[%s385 + $0x1120] sm:$0xff]
        %v971 = vld [vmem:[%s385 + $0x1128] sm:$0xff]
        %v972 = vld [vmem:[%s385 + $0x1130] sm:$0xff]
        %v973 = vld [vmem:[%s385 + $0x1138] sm:$0xff]
        %v974 = vld [vmem:[%s385 + $0x1140] sm:$0xff]
        %v975 = vld [vmem:[%s385 + $0x1148] sm:$0xff]
        %v976 = vld [vmem:[%s385 + $0x1150] sm:$0xff]
        %v977 = vld [vmem:[%s385 + $0x1158] sm:$0xff]
        %v978 = vld [vmem:[%s385 + $0x1160] sm:$0xff]
        %v979 = vld [vmem:[%s385 + $0x1168] sm:$0xff]
        %v980 = vld [vmem:[%s385 + $0x1170] sm:$0xff]
        %v981 = vld [vmem:[%s385 + $0x1178] sm:$0xff]
        %v982 = vld [vmem:[%s385 + $0x1180] sm:$0xff]
        %v983 = vld [vmem:[%s385 + $0x1188] sm:$0xff]
        %v984 = vld [vmem:[%s385 + $0x1190] sm:$0xff]
        %v985 = vld [vmem:[%s385 + $0x1198] sm:$0xff]
        %v986 = vld [vmem:[%s385 + $0x11a0] sm:$0xff]
        %v987 = vld [vmem:[%s385 + $0x11a8] sm:$0xff]
        %v988 = vld [vmem:[%s385 + $0x11b0] sm:$0xff]
        %v989 = vld [vmem:[%s385 + $0x11b8] sm:$0xff]
        %v990 = vld [vmem:[%s385 + $0x11c0] sm:$0xff]
        %v991 = vld [vmem:[%s385 + $0x11c8] sm:$0xff]
        %v992 = vld [vmem:[%s385 + $0x11d0] sm:$0xff]
        %v993 = vld [vmem:[%s385 + $0x11d8] sm:$0xff]
        %v994 = vld [vmem:[%s385 + $0x11e0] sm:$0xff]
        %v995 = vld [vmem:[%s385 + $0x11e8] sm:$0xff]
        %v996 = vld [vmem:[%s385 + $0x11f0] sm:$0xff]
        %v997 = vld [vmem:[%s385 + $0x11f8] sm:$0xff]
        %v998 = vld [vmem:[%s385 + $0x1200] sm:$0xff]
        %v999 = vld [vmem:[%s385 + $0x1208] sm:$0xff]
        %v1000 = vld [vmem:[%s385 + $0x1210] sm:$0xff]
        %v1001 = vld [vmem:[%s385 + $0x1218] sm:$0xff]
        %v1002 = vld [vmem:[%s385 + $0x1220] sm:$0xff]
        %v1003 = vld [vmem:[%s385 + $0x1228] sm:$0xff]
        %v1004 = vld [vmem:[%s385 + $0x1230] sm:$0xff]
        %v1005 = vld [vmem:[%s385 + $0x1238] sm:$0xff]
        %v1006 = vld [vmem:[%s385 + $0x1240] sm:$0xff]
        %v1007 = vld [vmem:[%s385 + $0x1248] sm:$0xff]
        %v1008 = vld [vmem:[%s385 + $0x1250] sm:$0xff]
        %v1009 = vld [vmem:[%s385 + $0x1258] sm:$0xff]
        %v1010 = vld [vmem:[%s385 + $0x1260] sm:$0xff]
        %v1011 = vld [vmem:[%s385 + $0x1268] sm:$0xff]
        %v1012 = vld [vmem:[%s385 + $0x1270] sm:$0xff]
        %v1013 = vld [vmem:[%s385 + $0x1278] sm:$0xff]
        %v1014 = vld [vmem:[%s385 + $0x1280] sm:$0xff]
        %v1015 = vld [vmem:[%s385 + $0x1288] sm:$0xff]
        %v1016 = vld [vmem:[%s385 + $0x1290] sm:$0xff]
        %v1017 = vld [vmem:[%s385 + $0x1298] sm:$0xff]
        %v1018 = vld [vmem:[%s385 + $0x12a0] sm:$0xff]
        %v1019 = vld [vmem:[%s385 + $0x12a8] sm:$0xff]
        %v1020 = vld [vmem:[%s385 + $0x12b0] sm:$0xff]
        %v1021 = vld [vmem:[%s385 + $0x12b8] sm:$0xff]
        %v1022 = vld [vmem:[%s385 + $0x12c0] sm:$0xff]
        %v1023 = vld [vmem:[%s385 + $0x12c8] sm:$0xff]
        %v1024 = vld [vmem:[%s385 + $0x12d0] sm:$0xff]
        %v1025 = vld [vmem:[%s385 + $0x12d8] sm:$0xff]
        %v1026 = vld [vmem:[%s385 + $0x12e0] sm:$0xff]
        %v1027 = vld [vmem:[%s385 + $0x12e8] sm:$0xff]
        %v1028 = vld [vmem:[%s385 + $0x12f0] sm:$0xff]
        %v1029 = vld [vmem:[%s385 + $0x12f8] sm:$0xff]
        %v1030 = vld [vmem:[%s385 + $0x1300] sm:$0xff]
        %v1031 = vld [vmem:[%s385 + $0x1308] sm:$0xff]
        %v1032 = vld [vmem:[%s385 + $0x1310] sm:$0xff]
        %v1033 = vld [vmem:[%s385 + $0x1318] sm:$0xff]
        %v1034 = vld [vmem:[%s385 + $0x1320] sm:$0xff]
        %v1035 = vld [vmem:[%s385 + $0x1328] sm:$0xff]
        %v1036 = vld [vmem:[%s385 + $0x1330] sm:$0xff]
        %v1037 = vld [vmem:[%s385 + $0x1338] sm:$0xff]
        %v1038 = vld [vmem:[%s385 + $0x1340] sm:$0xff]
        %v1039 = vld [vmem:[%s385 + $0x1348] sm:$0xff]
        %v1040 = vld [vmem:[%s385 + $0x1350] sm:$0xff]
        %v1041 = vld [vmem:[%s385 + $0x1358] sm:$0xff]
        %v1042 = vld [vmem:[%s385 + $0x1360] sm:$0xff]
        %v1043 = vld [vmem:[%s385 + $0x1368] sm:$0xff]
        %v1044 = vld [vmem:[%s385 + $0x1370] sm:$0xff]
        %v1045 = vld [vmem:[%s385 + $0x1378] sm:$0xff]
        %v1046 = vld [vmem:[%s385 + $0x1380] sm:$0xff]
        %v1047 = vld [vmem:[%s385 + $0x1388] sm:$0xff]
        %v1048 = vld [vmem:[%s385 + $0x1390] sm:$0xff]
        %v1049 = vld [vmem:[%s385 + $0x1398] sm:$0xff]
        %v1050 = vld [vmem:[%s385 + $0x13a0] sm:$0xff]
        %v1051 = vld [vmem:[%s385 + $0x13a8] sm:$0xff]
        %v1052 = vld [vmem:[%s385 + $0x13b0] sm:$0xff]
        %v1053 = vld [vmem:[%s385 + $0x13b8] sm:$0xff]
        %v1054 = vld [vmem:[%s385 + $0x13c0] sm:$0xff]
        %v1055 = vld [vmem:[%s385 + $0x13c8] sm:$0xff]
        %v1056 = vld [vmem:[%s385 + $0x13d0] sm:$0xff]
        %v1057 = vld [vmem:[%s385 + $0x13d8] sm:$0xff]
        %v1058 = vld [vmem:[%s385 + $0x13e0] sm:$0xff]
        %v1059 = vld [vmem:[%s385 + $0x13e8] sm:$0xff]
        %v1060 = vld [vmem:[%s385 + $0x13f0] sm:$0xff]
        %v1061 = vld [vmem:[%s385 + $0x13f8] sm:$0xff]
        %v1062 = vld [vmem:[%s385 + $0x1400] sm:$0xff]
        %v1063 = vld [vmem:[%s385 + $0x1408] sm:$0xff]
        %v1064 = vld [vmem:[%s385 + $0x1410] sm:$0xff]
        %v1065 = vld [vmem:[%s385 + $0x1418] sm:$0xff]
        %v1066 = vld [vmem:[%s385 + $0x1420] sm:$0xff]
        %v1067 = vld [vmem:[%s385 + $0x1428] sm:$0xff]
        %v1068 = vld [vmem:[%s385 + $0x1430] sm:$0xff]
        %v1069 = vld [vmem:[%s385 + $0x1438] sm:$0xff]
        %v1070 = vld [vmem:[%s385 + $0x1440] sm:$0xff]
        %v1071 = vld [vmem:[%s385 + $0x1448] sm:$0xff]
        %v1072 = vld [vmem:[%s385 + $0x1450] sm:$0xff]
        %v1073 = vld [vmem:[%s385 + $0x1458] sm:$0xff]
        %v1074 = vld [vmem:[%s385 + $0x1460] sm:$0xff]
        %v1075 = vld [vmem:[%s385 + $0x1468] sm:$0xff]
        %v1076 = vld [vmem:[%s385 + $0x1470] sm:$0xff]
        %v1077 = vld [vmem:[%s385 + $0x1478] sm:$0xff]
        %v1078 = vld [vmem:[%s385 + $0x1480] sm:$0xff]
        %v1079 = vld [vmem:[%s385 + $0x1488] sm:$0xff]
        %v1080 = vld [vmem:[%s385 + $0x1490] sm:$0xff]
        %v1081 = vld [vmem:[%s385 + $0x1498] sm:$0xff]
        %v1082 = vld [vmem:[%s385 + $0x14a0] sm:$0xff]
        %v1083 = vld [vmem:[%s385 + $0x14a8] sm:$0xff]
        %v1084 = vld [vmem:[%s385 + $0x14b0] sm:$0xff]
        %v1085 = vld [vmem:[%s385 + $0x14b8] sm:$0xff]
        %v1086 = vld [vmem:[%s385 + $0x14c0] sm:$0xff]
        %v1087 = vld [vmem:[%s385 + $0x14c8] sm:$0xff]
        %v1088 = vld [vmem:[%s385 + $0x14d0] sm:$0xff]
        %v1089 = vld [vmem:[%s385 + $0x14d8] sm:$0xff]
        %v1090 = vld [vmem:[%s385 + $0x14e0] sm:$0xff]
        %v1091 = vld [vmem:[%s385 + $0x14e8] sm:$0xff]
        %v1092 = vld [vmem:[%s385 + $0x14f0] sm:$0xff]
        %v1093 = vld [vmem:[%s385 + $0x14f8] sm:$0xff]
        %v1094 = vld [vmem:[%s385 + $0x1500] sm:$0xff]
        %v1095 = vld [vmem:[%s385 + $0x1508] sm:$0xff]
        %v1096 = vld [vmem:[%s385 + $0x1510] sm:$0xff]
        %v1097 = vld [vmem:[%s385 + $0x1518] sm:$0xff]
        %v1098 = vld [vmem:[%s385 + $0x1520] sm:$0xff]
        %v1099 = vld [vmem:[%s385 + $0x1528] sm:$0xff]
        %v1100 = vld [vmem:[%s385 + $0x1530] sm:$0xff]
        %v1101 = vld [vmem:[%s385 + $0x1538] sm:$0xff]
        %v1102 = vld [vmem:[%s385 + $0x1540] sm:$0xff]
        %v1103 = vld [vmem:[%s385 + $0x1548] sm:$0xff]
        %v1104 = vld [vmem:[%s385 + $0x1550] sm:$0xff]
        %v1105 = vld [vmem:[%s385 + $0x1558] sm:$0xff]
        %v1106 = vld [vmem:[%s385 + $0x1560] sm:$0xff]
        %v1107 = vld [vmem:[%s385 + $0x1568] sm:$0xff]
        %v1108 = vld [vmem:[%s385 + $0x1570] sm:$0xff]
        %v1109 = vld [vmem:[%s385 + $0x1578] sm:$0xff]
        %v1110 = vld [vmem:[%s385 + $0x1580] sm:$0xff]
        %v1111 = vld [vmem:[%s385 + $0x1588] sm:$0xff]
        %v1112 = vld [vmem:[%s385 + $0x1590] sm:$0xff]
        %v1113 = vld [vmem:[%s385 + $0x1598] sm:$0xff]
        %v1114 = vld [vmem:[%s385 + $0x15a0] sm:$0xff]
        %v1115 = vld [vmem:[%s385 + $0x15a8] sm:$0xff]
        %v1116 = vld [vmem:[%s385 + $0x15b0] sm:$0xff]
        %v1117 = vld [vmem:[%s385 + $0x15b8] sm:$0xff]
        %v1118 = vld [vmem:[%s385 + $0x15c0] sm:$0xff]
        %v1119 = vld [vmem:[%s385 + $0x15c8] sm:$0xff]
        %v1120 = vld [vmem:[%s385 + $0x15d0] sm:$0xff]
        %v1121 = vld [vmem:[%s385 + $0x15d8] sm:$0xff]
        %v1122 = vld [vmem:[%s385 + $0x15e0] sm:$0xff]
        %v1123 = vld [vmem:[%s385 + $0x15e8] sm:$0xff]
        %v1124 = vld [vmem:[%s385 + $0x15f0] sm:$0xff]
        %v1125 = vld [vmem:[%s385 + $0x15f8] sm:$0xff]
        %v1126 = vld [vmem:[%s385 + $0x1600] sm:$0xff]
        %v1127 = vld [vmem:[%s385 + $0x1608] sm:$0xff]
        %v1128 = vld [vmem:[%s385 + $0x1610] sm:$0xff]
        %v1129 = vld [vmem:[%s385 + $0x1618] sm:$0xff]
        %v1130 = vld [vmem:[%s385 + $0x1620] sm:$0xff]
        %v1131 = vld [vmem:[%s385 + $0x1628] sm:$0xff]
        %v1132 = vld [vmem:[%s385 + $0x1630] sm:$0xff]
        %v1133 = vld [vmem:[%s385 + $0x1638] sm:$0xff]
        %v1134 = vld [vmem:[%s385 + $0x1640] sm:$0xff]
        %v1135 = vld [vmem:[%s385 + $0x1648] sm:$0xff]
        %v1136 = vld [vmem:[%s385 + $0x1650] sm:$0xff]
        %v1137 = vld [vmem:[%s385 + $0x1658] sm:$0xff]
        %v1138 = vld [vmem:[%s385 + $0x1660] sm:$0xff]
        %v1139 = vld [vmem:[%s385 + $0x1668] sm:$0xff]
        %v1140 = vld [vmem:[%s385 + $0x1670] sm:$0xff]
        %v1141 = vld [vmem:[%s385 + $0x1678] sm:$0xff]
        %v1142 = vld [vmem:[%s385 + $0x1680] sm:$0xff]
        %v1143 = vld [vmem:[%s385 + $0x1688] sm:$0xff]
        %v1144 = vld [vmem:[%s385 + $0x1690] sm:$0xff]
        %v1145 = vld [vmem:[%s385 + $0x1698] sm:$0xff]
        %v1146 = vld [vmem:[%s385 + $0x16a0] sm:$0xff]
        %v1147 = vld [vmem:[%s385 + $0x16a8] sm:$0xff]
        %v1148 = vld [vmem:[%s385 + $0x16b0] sm:$0xff]
        %v1149 = vld [vmem:[%s385 + $0x16b8] sm:$0xff]
        %v1150 = vld [vmem:[%s385 + $0x16c0] sm:$0xff]
        %v1151 = vld [vmem:[%s385 + $0x16c8] sm:$0xff]
        %v1152 = vld [vmem:[%s385 + $0x16d0] sm:$0xff]
        %v1153 = vld [vmem:[%s385 + $0x16d8] sm:$0xff]
        %v1154 = vld [vmem:[%s385 + $0x16e0] sm:$0xff]
        %v1155 = vld [vmem:[%s385 + $0x16e8] sm:$0xff]
        %v1156 = vld [vmem:[%s385 + $0x16f0] sm:$0xff]
        %v1157 = vld [vmem:[%s385 + $0x16f8] sm:$0xff]
        %v1158 = vld [vmem:[%s385 + $0x1700] sm:$0xff]
        %v1159 = vld [vmem:[%s385 + $0x1708] sm:$0xff]
        %v1160 = vld [vmem:[%s385 + $0x1710] sm:$0xff]
        %v1161 = vld [vmem:[%s385 + $0x1718] sm:$0xff]
        %v1162 = vld [vmem:[%s385 + $0x1720] sm:$0xff]
        %v1163 = vld [vmem:[%s385 + $0x1728] sm:$0xff]
        %v1164 = vld [vmem:[%s385 + $0x1730] sm:$0xff]
        %v1165 = vld [vmem:[%s385 + $0x1738] sm:$0xff]
        %v1166 = vld [vmem:[%s385 + $0x1740] sm:$0xff]
        %v1167 = vld [vmem:[%s385 + $0x1748] sm:$0xff]
        %v1168 = vld [vmem:[%s385 + $0x1750] sm:$0xff]
        %v1169 = vld [vmem:[%s385 + $0x1758] sm:$0xff]
        %v1170 = vld [vmem:[%s385 + $0x1760] sm:$0xff]
        %v1171 = vld [vmem:[%s385 + $0x1768] sm:$0xff]
        %v1172 = vld [vmem:[%s385 + $0x1770] sm:$0xff]
        %v1173 = vld [vmem:[%s385 + $0x1778] sm:$0xff]
        %v1174 = vld [vmem:[%s385 + $0x1780] sm:$0xff]
        %v1175 = vld [vmem:[%s385 + $0x1788] sm:$0xff]
        %v1176 = vld [vmem:[%s385 + $0x1790] sm:$0xff]
        %v1177 = vld [vmem:[%s385 + $0x1798] sm:$0xff]
        %v1178 = vld [vmem:[%s385 + $0x17a0] sm:$0xff]
        %v1179 = vld [vmem:[%s385 + $0x17a8] sm:$0xff]
        %v1180 = vld [vmem:[%s385 + $0x17b0] sm:$0xff]
        %v1181 = vld [vmem:[%s385 + $0x17b8] sm:$0xff]
        %v1182 = vld [vmem:[%s385 + $0x17c0] sm:$0xff]
        %v1183 = vld [vmem:[%s385 + $0x17c8] sm:$0xff]
        %v1184 = vld [vmem:[%s385 + $0x17d0] sm:$0xff]
        %v1185 = vld [vmem:[%s385 + $0x17d8] sm:$0xff]
        %v1186 = vld [vmem:[%s385 + $0x17e0] sm:$0xff]
        %v1187 = vld [vmem:[%s385 + $0x17e8] sm:$0xff]
        %v1188 = vld [vmem:[%s385 + $0x17f0] sm:$0xff]
        %v1189 = vld [vmem:[%s385 + $0x17f8] sm:$0xff]
        %v1190 = vld [vmem:[%s385 + $0x1800] sm:$0xff]
        %v1191 = vld [vmem:[%s385 + $0x1808] sm:$0xff]
        %v1192 = vld [vmem:[%s385 + $0x1810] sm:$0xff]
        %v1193 = vld [vmem:[%s385 + $0x1818] sm:$0xff]
        %v1194 = vld [vmem:[%s385 + $0x1820] sm:$0xff]
        %v1195 = vld [vmem:[%s385 + $0x1828] sm:$0xff]
        %v1196 = vld [vmem:[%s385 + $0x1830] sm:$0xff]
        %v1197 = vld [vmem:[%s385 + $0x1838] sm:$0xff]
        %v1198 = vld [vmem:[%s385 + $0x1840] sm:$0xff]
        %v1199 = vld [vmem:[%s385 + $0x1848] sm:$0xff]
        %v1200 = vld [vmem:[%s385 + $0x1850] sm:$0xff]
        %v1201 = vld [vmem:[%s385 + $0x1858] sm:$0xff]
        %v1202 = vld [vmem:[%s385 + $0x1860] sm:$0xff]
        %v1203 = vld [vmem:[%s385 + $0x1868] sm:$0xff]
        %v1204 = vld [vmem:[%s385 + $0x1870] sm:$0xff]
        %v1205 = vld [vmem:[%s385 + $0x1878] sm:$0xff]
        %v1206 = vld [vmem:[%s385 + $0x1880] sm:$0xff]
        %v1207 = vld [vmem:[%s385 + $0x1888] sm:$0xff]
        %v1208 = vld [vmem:[%s385 + $0x1890] sm:$0xff]
        %v1209 = vld [vmem:[%s385 + $0x1898] sm:$0xff]
        %v1210 = vld [vmem:[%s385 + $0x18a0] sm:$0xff]
        %v1211 = vld [vmem:[%s385 + $0x18a8] sm:$0xff]
        %v1212 = vld [vmem:[%s385 + $0x18b0] sm:$0xff]
        %v1213 = vld [vmem:[%s385 + $0x18b8] sm:$0xff]
        %v1214 = vld [vmem:[%s385 + $0x18c0] sm:$0xff]
        %v1215 = vld [vmem:[%s385 + $0x18c8] sm:$0xff]
        %v1216 = vld [vmem:[%s385 + $0x18d0] sm:$0xff]
        %v1217 = vld [vmem:[%s385 + $0x18d8] sm:$0xff]
        %v1218 = vld [vmem:[%s385 + $0x18e0] sm:$0xff]
        %v1219 = vld [vmem:[%s385 + $0x18e8] sm:$0xff]
        %v1220 = vld [vmem:[%s385 + $0x18f0] sm:$0xff]
        %v1221 = vld [vmem:[%s385 + $0x18f8] sm:$0xff]
        %v1222 = vld [vmem:[%s385 + $0x1900] sm:$0xff]
        %v1223 = vld [vmem:[%s385 + $0x1908] sm:$0xff]
        %v1224 = vld [vmem:[%s385 + $0x1910] sm:$0xff]
        %v1225 = vld [vmem:[%s385 + $0x1918] sm:$0xff]
        %v1226 = vld [vmem:[%s385 + $0x1920] sm:$0xff]
        %v1227 = vld [vmem:[%s385 + $0x1928] sm:$0xff]
        %v1228 = vld [vmem:[%s385 + $0x1930] sm:$0xff]
        %v1229 = vld [vmem:[%s385 + $0x1938] sm:$0xff]
        %v1230 = vld [vmem:[%s385 + $0x1940] sm:$0xff]
        %v1231 = vld [vmem:[%s385 + $0x1948] sm:$0xff]
        %v1232 = vld [vmem:[%s385 + $0x1950] sm:$0xff]
        %v1233 = vld [vmem:[%s385 + $0x1958] sm:$0xff]
        %v1234 = vld [vmem:[%s385 + $0x1960] sm:$0xff]
        %v1235 = vld [vmem:[%s385 + $0x1968] sm:$0xff]
        %v1236 = vld [vmem:[%s385 + $0x1970] sm:$0xff]
        %v1237 = vld [vmem:[%s385 + $0x1978] sm:$0xff]
        %v1238 = vld [vmem:[%s385 + $0x1980] sm:$0xff]
        %v1239 = vld [vmem:[%s385 + $0x1988] sm:$0xff]
        %v1240 = vld [vmem:[%s385 + $0x1990] sm:$0xff]
        %v1241 = vld [vmem:[%s385 + $0x1998] sm:$0xff]
        %v1242 = vld [vmem:[%s385 + $0x19a0] sm:$0xff]
        %v1243 = vld [vmem:[%s385 + $0x19a8] sm:$0xff]
        %v1244 = vld [vmem:[%s385 + $0x19b0] sm:$0xff]
        %v1245 = vld [vmem:[%s385 + $0x19b8] sm:$0xff]
        %v1246 = vld [vmem:[%s385 + $0x19c0] sm:$0xff]
        %v1247 = vld [vmem:[%s385 + $0x19c8] sm:$0xff]
        %v1248 = vld [vmem:[%s385 + $0x19d0] sm:$0xff]
        %v1249 = vld [vmem:[%s385 + $0x19d8] sm:$0xff]
        %v1250 = vld [vmem:[%s385 + $0x19e0] sm:$0xff]
        %v1251 = vld [vmem:[%s385 + $0x19e8] sm:$0xff]
        %v1252 = vld [vmem:[%s385 + $0x19f0] sm:$0xff]
        %v1253 = vld [vmem:[%s385 + $0x19f8] sm:$0xff]
        %v1254 = vld [vmem:[%s385 + $0x1a00] sm:$0xff]
        %v1255 = vld [vmem:[%s385 + $0x1a08] sm:$0xff]
        %v1256 = vld [vmem:[%s385 + $0x1a10] sm:$0xff]
        %v1257 = vld [vmem:[%s385 + $0x1a18] sm:$0xff]
        %v1258 = vld [vmem:[%s385 + $0x1a20] sm:$0xff]
        %v1259 = vld [vmem:[%s385 + $0x1a28] sm:$0xff]
        %v1260 = vld [vmem:[%s385 + $0x1a30] sm:$0xff]
        %v1261 = vld [vmem:[%s385 + $0x1a38] sm:$0xff]
        %v1262 = vld [vmem:[%s385 + $0x1a40] sm:$0xff]
        %v1263 = vld [vmem:[%s385 + $0x1a48] sm:$0xff]
        %v1264 = vld [vmem:[%s385 + $0x1a50] sm:$0xff]
        %v1265 = vld [vmem:[%s385 + $0x1a58] sm:$0xff]
        %v1266 = vld [vmem:[%s385 + $0x1a60] sm:$0xff]
        %v1267 = vld [vmem:[%s385 + $0x1a68] sm:$0xff]
        %v1268 = vld [vmem:[%s385 + $0x1a70] sm:$0xff]
        %v1269 = vld [vmem:[%s385 + $0x1a78] sm:$0xff]
        %v1270 = vld [vmem:[%s385 + $0x1a80] sm:$0xff]
        %v1271 = vld [vmem:[%s385 + $0x1a88] sm:$0xff]
        %v1272 = vld [vmem:[%s385 + $0x1a90] sm:$0xff]
        %v1273 = vld [vmem:[%s385 + $0x1a98] sm:$0xff]
        %v1274 = vld [vmem:[%s385 + $0x1aa0] sm:$0xff]
        %v1275 = vld [vmem:[%s385 + $0x1aa8] sm:$0xff]
        %v1276 = vld [vmem:[%s385 + $0x1ab0] sm:$0xff]
        %v1277 = vld [vmem:[%s385 + $0x1ab8] sm:$0xff]
        %v1278 = vld [vmem:[%s385 + $0x1ac0] sm:$0xff]
        %v1279 = vld [vmem:[%s385 + $0x1ac8] sm:$0xff]
        %v1280 = vld [vmem:[%s385 + $0x1ad0] sm:$0xff]
        %v1281 = vld [vmem:[%s385 + $0x1ad8] sm:$0xff]
        %v1282 = vld [vmem:[%s385 + $0x1ae0] sm:$0xff]
        %v1283 = vld [vmem:[%s385 + $0x1ae8] sm:$0xff]
        %v1284 = vld [vmem:[%s385 + $0x1af0] sm:$0xff]
        %v1285 = vld [vmem:[%s385 + $0x1af8] sm:$0xff]
        %v1286 = vld [vmem:[%s385 + $0x1b00] sm:$0xff]
        %v1287 = vld [vmem:[%s385 + $0x1b08] sm:$0xff]
        %v1288 = vld [vmem:[%s385 + $0x1b10] sm:$0xff]
        %v1289 = vld [vmem:[%s385 + $0x1b18] sm:$0xff]
        %v1290 = vld [vmem:[%s385 + $0x1b20] sm:$0xff]
        %v1291 = vld [vmem:[%s385 + $0x1b28] sm:$0xff]
        %v1292 = vld [vmem:[%s385 + $0x1b30] sm:$0xff]
        %v1293 = vld [vmem:[%s385 + $0x1b38] sm:$0xff]
        %v1294 = vld [vmem:[%s385 + $0x1b40] sm:$0xff]
        %v1295 = vld [vmem:[%s385 + $0x1b48] sm:$0xff]
        %v1296 = vld [vmem:[%s385 + $0x1b50] sm:$0xff]
        %v1297 = vld [vmem:[%s385 + $0x1b58] sm:$0xff]
        %v1298 = vld [vmem:[%s385 + $0x1b60] sm:$0xff]
        %v1299 = vld [vmem:[%s385 + $0x1b68] sm:$0xff]
        %v1300 = vld [vmem:[%s385 + $0x1b70] sm:$0xff]
        %v1301 = vld [vmem:[%s385 + $0x1b78] sm:$0xff]
        %v1302 = vld [vmem:[%s385 + $0x1b80] sm:$0xff]
        %v1303 = vld [vmem:[%s385 + $0x1b88] sm:$0xff]
        %v1304 = vld [vmem:[%s385 + $0x1b90] sm:$0xff]
        %v1305 = vld [vmem:[%s385 + $0x1b98] sm:$0xff]
        %v1306 = vld [vmem:[%s385 + $0x1ba0] sm:$0xff]
        %v1307 = vld [vmem:[%s385 + $0x1ba8] sm:$0xff]
        %v1308 = vld [vmem:[%s385 + $0x1bb0] sm:$0xff]
        %v1309 = vld [vmem:[%s385 + $0x1bb8] sm:$0xff]
        %v1310 = vld [vmem:[%s385 + $0x1bc0] sm:$0xff]
        %v1311 = vld [vmem:[%s385 + $0x1bc8] sm:$0xff]
        %v1312 = vld [vmem:[%s385 + $0x1bd0] sm:$0xff]
        %v1313 = vld [vmem:[%s385 + $0x1bd8] sm:$0xff]
        %v1314 = vld [vmem:[%s385 + $0x1be0] sm:$0xff]
        %v1315 = vld [vmem:[%s385 + $0x1be8] sm:$0xff]
        %v1316 = vld [vmem:[%s385 + $0x1bf0] sm:$0xff]
        %v1317 = vld [vmem:[%s385 + $0x1bf8] sm:$0xff]
        %v1318 = vld [vmem:[%s385 + $0x1c00] sm:$0xff]
        %v1319 = vld [vmem:[%s385 + $0x1c08] sm:$0xff]
        %v1320 = vld [vmem:[%s385 + $0x1c10] sm:$0xff]
        %v1321 = vld [vmem:[%s385 + $0x1c18] sm:$0xff]
        %v1322 = vld [vmem:[%s385 + $0x1c20] sm:$0xff]
        %v1323 = vld [vmem:[%s385 + $0x1c28] sm:$0xff]
        %v1324 = vld [vmem:[%s385 + $0x1c30] sm:$0xff]
        %v1325 = vld [vmem:[%s385 + $0x1c38] sm:$0xff]
        %v1326 = vld [vmem:[%s385 + $0x1c40] sm:$0xff]
        %v1327 = vld [vmem:[%s385 + $0x1c48] sm:$0xff]
        %v1328 = vld [vmem:[%s385 + $0x1c50] sm:$0xff]
        %v1329 = vld [vmem:[%s385 + $0x1c58] sm:$0xff]
        %v1330 = vld [vmem:[%s385 + $0x1c60] sm:$0xff]
        %v1331 = vld [vmem:[%s385 + $0x1c68] sm:$0xff]
        %v1332 = vld [vmem:[%s385 + $0x1c70] sm:$0xff]
        %v1333 = vld [vmem:[%s385 + $0x1c78] sm:$0xff]
        %v1334 = vld [vmem:[%s385 + $0x1c80] sm:$0xff]
        %v1335 = vld [vmem:[%s385 + $0x1c88] sm:$0xff]
        %v1336 = vld [vmem:[%s385 + $0x1c90] sm:$0xff]
        %v1337 = vld [vmem:[%s385 + $0x1c98] sm:$0xff]
        %v1338 = vld [vmem:[%s385 + $0x1ca0] sm:$0xff]
        %v1339 = vld [vmem:[%s385 + $0x1ca8] sm:$0xff]
        %v1340 = vld [vmem:[%s385 + $0x1cb0] sm:$0xff]
        %v1341 = vld [vmem:[%s385 + $0x1cb8] sm:$0xff]
        %v1342 = vld [vmem:[%s385 + $0x1cc0] sm:$0xff]
        %v1343 = vld [vmem:[%s385 + $0x1cc8] sm:$0xff]
        %v1344 = vld [vmem:[%s385 + $0x1cd0] sm:$0xff]
        %v1345 = vld [vmem:[%s385 + $0x1cd8] sm:$0xff]
        %v1346 = vld [vmem:[%s385 + $0x1ce0] sm:$0xff]
        %v1347 = vld [vmem:[%s385 + $0x1ce8] sm:$0xff]
        %v1348 = vld [vmem:[%s385 + $0x1cf0] sm:$0xff]
        %v1349 = vld [vmem:[%s385 + $0x1cf8] sm:$0xff]
        %v1350 = vld [vmem:[%s385 + $0x1d00] sm:$0xff]
        %v1351 = vld [vmem:[%s385 + $0x1d08] sm:$0xff]
        %v1352 = vld [vmem:[%s385 + $0x1d10] sm:$0xff]
        %v1353 = vld [vmem:[%s385 + $0x1d18] sm:$0xff]
        %v1354 = vld [vmem:[%s385 + $0x1d20] sm:$0xff]
        %v1355 = vld [vmem:[%s385 + $0x1d28] sm:$0xff]
        %v1356 = vld [vmem:[%s385 + $0x1d30] sm:$0xff]
        %v1357 = vld [vmem:[%s385 + $0x1d38] sm:$0xff]
        %v1358 = vld [vmem:[%s385 + $0x1d40] sm:$0xff]
        %v1359 = vld [vmem:[%s385 + $0x1d48] sm:$0xff]
        %v1360 = vld [vmem:[%s385 + $0x1d50] sm:$0xff]
        %v1361 = vld [vmem:[%s385 + $0x1d58] sm:$0xff]
        %v1362 = vld [vmem:[%s385 + $0x1d60] sm:$0xff]
        %v1363 = vld [vmem:[%s385 + $0x1d68] sm:$0xff]
        %v1364 = vld [vmem:[%s385 + $0x1d70] sm:$0xff]
        %v1365 = vld [vmem:[%s385 + $0x1d78] sm:$0xff]
        %v1366 = vld [vmem:[%s385 + $0x1d80] sm:$0xff]
        %v1367 = vld [vmem:[%s385 + $0x1d88] sm:$0xff]
        %v1368 = vld [vmem:[%s385 + $0x1d90] sm:$0xff]
        %v1369 = vld [vmem:[%s385 + $0x1d98] sm:$0xff]
        %v1370 = vld [vmem:[%s385 + $0x1da0] sm:$0xff]
        %v1371 = vld [vmem:[%s385 + $0x1da8] sm:$0xff]
        %v1372 = vld [vmem:[%s385 + $0x1db0] sm:$0xff]
        %v1373 = vld [vmem:[%s385 + $0x1db8] sm:$0xff]
        %v1374 = vld [vmem:[%s385 + $0x1dc0] sm:$0xff]
        %v1375 = vld [vmem:[%s385 + $0x1dc8] sm:$0xff]
        %v1376 = vld [vmem:[%s385 + $0x1dd0] sm:$0xff]
        %v1377 = vld [vmem:[%s385 + $0x1dd8] sm:$0xff]
        %v1378 = vld [vmem:[%s385 + $0x1de0] sm:$0xff]
        %v1379 = vld [vmem:[%s385 + $0x1de8] sm:$0xff]
        %v1380 = vld [vmem:[%s385 + $0x1df0] sm:$0xff]
        %v1381 = vld [vmem:[%s385 + $0x1df8] sm:$0xff]
        %v1382 = vld [vmem:[%s385 + $0x1e00] sm:$0xff]
        %v1383 = vld [vmem:[%s385 + $0x1e08] sm:$0xff]
        %v1384 = vld [vmem:[%s385 + $0x1e10] sm:$0xff]
        %v1385 = vld [vmem:[%s385 + $0x1e18] sm:$0xff]
        %v1386 = vld [vmem:[%s385 + $0x1e20] sm:$0xff]
        %v1387 = vld [vmem:[%s385 + $0x1e28] sm:$0xff]
        %v1388 = vld [vmem:[%s385 + $0x1e30] sm:$0xff]
        %v1389 = vld [vmem:[%s385 + $0x1e38] sm:$0xff]
        %v1390 = vld [vmem:[%s385 + $0x1e40] sm:$0xff]
        %v1391 = vld [vmem:[%s385 + $0x1e48] sm:$0xff]
        %v1392 = vld [vmem:[%s385 + $0x1e50] sm:$0xff]
        %v1393 = vld [vmem:[%s385 + $0x1e58] sm:$0xff]
        %v1394 = vld [vmem:[%s385 + $0x1e60] sm:$0xff]
        %v1395 = vld [vmem:[%s385 + $0x1e68] sm:$0xff]
        %v1396 = vld [vmem:[%s385 + $0x1e70] sm:$0xff]
        %v1397 = vld [vmem:[%s385 + $0x1e78] sm:$0xff]
        %v1398 = vld [vmem:[%s385 + $0x1e80] sm:$0xff]
        %v1399 = vld [vmem:[%s385 + $0x1e88] sm:$0xff]
        %v1400 = vld [vmem:[%s385 + $0x1e90] sm:$0xff]
        %v1401 = vld [vmem:[%s385 + $0x1e98] sm:$0xff]
        %v1402 = vld [vmem:[%s385 + $0x1ea0] sm:$0xff]
        %v1403 = vld [vmem:[%s385 + $0x1ea8] sm:$0xff]
        %v1404 = vld [vmem:[%s385 + $0x1eb0] sm:$0xff]
        %v1405 = vld [vmem:[%s385 + $0x1eb8] sm:$0xff]
        %v1406 = vld [vmem:[%s385 + $0x1ec0] sm:$0xff]
        %v1407 = vld [vmem:[%s385 + $0x1ec8] sm:$0xff]
        %v1408 = vld [vmem:[%s385 + $0x1ed0] sm:$0xff]
        %v1409 = vld [vmem:[%s385 + $0x1ed8] sm:$0xff]
        %v1410 = vld [vmem:[%s385 + $0x1ee0] sm:$0xff]
        %v1411 = vld [vmem:[%s385 + $0x1ee8] sm:$0xff]
        %v1412 = vld [vmem:[%s385 + $0x1ef0] sm:$0xff]
        %v1413 = vld [vmem:[%s385 + $0x1ef8] sm:$0xff]
        %v1414 = vld [vmem:[%s385 + $0x1f00] sm:$0xff]
        %v1415 = vld [vmem:[%s385 + $0x1f08] sm:$0xff]
        %v1416 = vld [vmem:[%s385 + $0x1f10] sm:$0xff]
        %v1417 = vld [vmem:[%s385 + $0x1f18] sm:$0xff]
        %v1418 = vld [vmem:[%s385 + $0x1f20] sm:$0xff]
        %v1419 = vld [vmem:[%s385 + $0x1f28] sm:$0xff]
        %v1420 = vld [vmem:[%s385 + $0x1f30] sm:$0xff]
        %v1421 = vld [vmem:[%s385 + $0x1f38] sm:$0xff]
        %v1422 = vld [vmem:[%s385 + $0x1f40] sm:$0xff]
        %v1423 = vld [vmem:[%s385 + $0x1f48] sm:$0xff]
        %v1424 = vld [vmem:[%s385 + $0x1f50] sm:$0xff]
        %v1425 = vld [vmem:[%s385 + $0x1f58] sm:$0xff]
        %v1426 = vld [vmem:[%s385 + $0x1f60] sm:$0xff]
        %v1427 = vld [vmem:[%s385 + $0x1f68] sm:$0xff]
        %v1428 = vld [vmem:[%s385 + $0x1f70] sm:$0xff]
        %v1429 = vld [vmem:[%s385 + $0x1f78] sm:$0xff]
        %v1430 = vld [vmem:[%s385 + $0x1f80] sm:$0xff]
        %v1431 = vld [vmem:[%s385 + $0x1f88] sm:$0xff]
        %v1432 = vld [vmem:[%s385 + $0x1f90] sm:$0xff]
        %v1433 = vld [vmem:[%s385 + $0x1f98] sm:$0xff]
        %v1434 = vld [vmem:[%s385 + $0x1fa0] sm:$0xff]
        %v1435 = vld [vmem:[%s385 + $0x1fa8] sm:$0xff]
        %v1436 = vld [vmem:[%s385 + $0x1fb0] sm:$0xff]
        %v1437 = vld [vmem:[%s385 + $0x1fb8] sm:$0xff]
        %v1438 = vld [vmem:[%s385 + $0x1fc0] sm:$0xff]
        %v1439 = vld [vmem:[%s385 + $0x1fc8] sm:$0xff]
        %v1440 = vld [vmem:[%s385 + $0x1fd0] sm:$0xff]
        %v1441 = vld [vmem:[%s385 + $0x1fd8] sm:$0xff]
        %v1442 = vld [vmem:[%s385 + $0x1fe0] sm:$0xff]
        %v1443 = vld [vmem:[%s385 + $0x1fe8] sm:$0xff]
        %v1444 = vld [vmem:[%s385 + $0x1ff0] sm:$0xff]
        %v1445 = vld [vmem:[%s385 + $0x1ff8] sm:$0xff]
        %v1446 = vld [vmem:[%s385 + $0x2000] sm:$0xff]
        %v1447 = vld [vmem:[%s385 + $0x2008] sm:$0xff]
        %v1448 = vld [vmem:[%s385 + $0x2010] sm:$0xff]
        %v1449 = vld [vmem:[%s385 + $0x2018] sm:$0xff]
        %v1450 = vld [vmem:[%s385 + $0x2020] sm:$0xff]
        %v1451 = vld [vmem:[%s385 + $0x2028] sm:$0xff]
        %v1452 = vld [vmem:[%s385 + $0x2030] sm:$0xff]
        %v1453 = vld [vmem:[%s385 + $0x2038] sm:$0xff]
        %v1454 = vld [vmem:[%s385 + $0x2040] sm:$0xff]
        %v1455 = vld [vmem:[%s385 + $0x2048] sm:$0xff]
        %v1456 = vld [vmem:[%s385 + $0x2050] sm:$0xff]
        %v1457 = vld [vmem:[%s385 + $0x2058] sm:$0xff]
        %v1458 = vld [vmem:[%s385 + $0x2060] sm:$0xff]
        %v1459 = vld [vmem:[%s385 + $0x2068] sm:$0xff]
        %v1460 = vld [vmem:[%s385 + $0x2070] sm:$0xff]
        %v1461 = vld [vmem:[%s385 + $0x2078] sm:$0xff]
        %v1462 = vld [vmem:[%s385 + $0x2080] sm:$0xff]
        %v1463 = vld [vmem:[%s385 + $0x2088] sm:$0xff]
        %v1464 = vld [vmem:[%s385 + $0x2090] sm:$0xff]
        %v1465 = vld [vmem:[%s385 + $0x2098] sm:$0xff]
        %v1466 = vld [vmem:[%s385 + $0x20a0] sm:$0xff]
        %v1467 = vld [vmem:[%s385 + $0x20a8] sm:$0xff]
        %v1468 = vld [vmem:[%s385 + $0x20b0] sm:$0xff]
        %v1469 = vld [vmem:[%s385 + $0x20b8] sm:$0xff]
        %v1470 = vld [vmem:[%s385 + $0x20c0] sm:$0xff]
        %v1471 = vld [vmem:[%s385 + $0x20c8] sm:$0xff]
        %v1472 = vld [vmem:[%s385 + $0x20d0] sm:$0xff]
        %v1473 = vld [vmem:[%s385 + $0x20d8] sm:$0xff]
        %v1474 = vld [vmem:[%s385 + $0x20e0] sm:$0xff]
        %v1475 = vld [vmem:[%s385 + $0x20e8] sm:$0xff]
        %v1476 = vld [vmem:[%s385 + $0x20f0] sm:$0xff]
        %v1477 = vld [vmem:[%s385 + $0x20f8] sm:$0xff]
        %v1478 = vld [vmem:[%s385 + $0x2100] sm:$0xff]
        %v1479 = vld [vmem:[%s385 + $0x2108] sm:$0xff]
        %v1480 = vld [vmem:[%s385 + $0x2110] sm:$0xff]
        %v1481 = vld [vmem:[%s385 + $0x2118] sm:$0xff]
        %v1482 = vld [vmem:[%s385 + $0x2120] sm:$0xff]
        %v1483 = vld [vmem:[%s385 + $0x2128] sm:$0xff]
        %v1484 = vld [vmem:[%s385 + $0x2130] sm:$0xff]
        %v1485 = vld [vmem:[%s385 + $0x2138] sm:$0xff]
        %v1486 = vld [vmem:[%s385 + $0x2140] sm:$0xff]
        %v1487 = vld [vmem:[%s385 + $0x2148] sm:$0xff]
        %v1488 = vld [vmem:[%s385 + $0x2150] sm:$0xff]
        %v1489 = vld [vmem:[%s385 + $0x2158] sm:$0xff]
        %v1490 = vld [vmem:[%s385 + $0x2160] sm:$0xff]
        %v1491 = vld [vmem:[%s385 + $0x2168] sm:$0xff]
        %v1492 = vld [vmem:[%s385 + $0x2170] sm:$0xff]
        %v1493 = vld [vmem:[%s385 + $0x2178] sm:$0xff]
        %v1494 = vld [vmem:[%s385 + $0x2180] sm:$0xff]
        %v1495 = vld [vmem:[%s385 + $0x2188] sm:$0xff]
        %v1496 = vld [vmem:[%s385 + $0x2190] sm:$0xff]
        %v1497 = vld [vmem:[%s385 + $0x2198] sm:$0xff]
        %v1498 = vld [vmem:[%s385 + $0x21a0] sm:$0xff]
        %v1499 = vld [vmem:[%s385 + $0x21a8] sm:$0xff]
        %v1500 = vld [vmem:[%s385 + $0x21b0] sm:$0xff]
        %v1501 = vld [vmem:[%s385 + $0x21b8] sm:$0xff]
        %v1502 = vld [vmem:[%s385 + $0x21c0] sm:$0xff]
        %v1503 = vld [vmem:[%s385 + $0x21c8] sm:$0xff]
        %v1504 = vld [vmem:[%s385 + $0x21d0] sm:$0xff]
        %v1505 = vld [vmem:[%s385 + $0x21d8] sm:$0xff]
        %v1506 = vld [vmem:[%s385 + $0x21e0] sm:$0xff]
        %v1507 = vld [vmem:[%s385 + $0x21e8] sm:$0xff]
        %v1508 = vld [vmem:[%s385 + $0x21f0] sm:$0xff]
        %v1509 = vld [vmem:[%s385 + $0x21f8] sm:$0xff]
        %v1510 = vld [vmem:[%s385 + $0x2200] sm:$0xff]
        %v1511 = vld [vmem:[%s385 + $0x2208] sm:$0xff]
        %v1512 = vld [vmem:[%s385 + $0x2210] sm:$0xff]
        %v1513 = vld [vmem:[%s385 + $0x2218] sm:$0xff]
        %v1514 = vld [vmem:[%s385 + $0x2220] sm:$0xff]
        %v1515 = vld [vmem:[%s385 + $0x2228] sm:$0xff]
        %v1516 = vld [vmem:[%s385 + $0x2230] sm:$0xff]
        %v1517 = vld [vmem:[%s385 + $0x2238] sm:$0xff]
        %v1518 = vld [vmem:[%s385 + $0x2240] sm:$0xff]
        %v1519 = vld [vmem:[%s385 + $0x2248] sm:$0xff]
        %v1520 = vld [vmem:[%s385 + $0x2250] sm:$0xff]
        %v1521 = vld [vmem:[%s385 + $0x2258] sm:$0xff]
        %v1522 = vld [vmem:[%s385 + $0x2260] sm:$0xff]
        %v1523 = vld [vmem:[%s385 + $0x2268] sm:$0xff]
        %v1524 = vld [vmem:[%s385 + $0x2270] sm:$0xff]
        %v1525 = vld [vmem:[%s385 + $0x2278] sm:$0xff]
        %v1526 = vld [vmem:[%s385 + $0x2280] sm:$0xff]
        %v1527 = vld [vmem:[%s385 + $0x2288] sm:$0xff]
        %v1528 = vld [vmem:[%s385 + $0x2290] sm:$0xff]
        %v1529 = vld [vmem:[%s385 + $0x2298] sm:$0xff]
        %v1530 = vld [vmem:[%s385 + $0x22a0] sm:$0xff]
        %v1531 = vld [vmem:[%s385 + $0x22a8] sm:$0xff]
        %v1532 = vld [vmem:[%s385 + $0x22b0] sm:$0xff]
        %v1533 = vld [vmem:[%s385 + $0x22b8] sm:$0xff]
        %v1534 = vld [vmem:[%s385 + $0x22c0] sm:$0xff]
        %v1535 = vld [vmem:[%s385 + $0x22c8] sm:$0xff]
        %v1536 = vld [vmem:[%s385 + $0x22d0] sm:$0xff]
        %v1537 = vld [vmem:[%s385 + $0x22d8] sm:$0xff]
        %v1538 = vld [vmem:[%s385 + $0x22e0] sm:$0xff]
        %v1539 = vld [vmem:[%s385 + $0x22e8] sm:$0xff]
        %v1540 = vld [vmem:[%s385 + $0x22f0] sm:$0xff]
        %v1541 = vld [vmem:[%s385 + $0x22f8] sm:$0xff]
        %v1542 = vld [vmem:[%s385 + $0x2300] sm:$0xff]
        %v1543 = vld [vmem:[%s385 + $0x2308] sm:$0xff]
        %v1544 = vld [vmem:[%s385 + $0x2310] sm:$0xff]
        %v1545 = vld [vmem:[%s385 + $0x2318] sm:$0xff]
        %v1546 = vld [vmem:[%s385 + $0x2320] sm:$0xff]
        %v1547 = vld [vmem:[%s385 + $0x2328] sm:$0xff]
        %v1548 = vld [vmem:[%s385 + $0x2330] sm:$0xff]
        %v1549 = vld [vmem:[%s385 + $0x2338] sm:$0xff]
        %v1550 = vld [vmem:[%s385 + $0x2340] sm:$0xff]
        %v1551 = vld [vmem:[%s385 + $0x2348] sm:$0xff]
        %v1552 = vld [vmem:[%s385 + $0x2350] sm:$0xff]
        %v1553 = vld [vmem:[%s385 + $0x2358] sm:$0xff]
        %v1554 = vld [vmem:[%s385 + $0x2360] sm:$0xff]
        %v1555 = vld [vmem:[%s385 + $0x2368] sm:$0xff]
        %v1556 = vld [vmem:[%s385 + $0x2370] sm:$0xff]
        %v1557 = vld [vmem:[%s385 + $0x2378] sm:$0xff]
        %v1558 = vld [vmem:[%s385 + $0x2380] sm:$0xff]
        %v1559 = vld [vmem:[%s385 + $0x2388] sm:$0xff]
        %v1560 = vld [vmem:[%s385 + $0x2390] sm:$0xff]
        %v1561 = vld [vmem:[%s385 + $0x2398] sm:$0xff]
        %v1562 = vld [vmem:[%s385 + $0x23a0] sm:$0xff]
        %v1563 = vld [vmem:[%s385 + $0x23a8] sm:$0xff]
        %v1564 = vld [vmem:[%s385 + $0x23b0] sm:$0xff]
        %v1565 = vld [vmem:[%s385 + $0x23b8] sm:$0xff]
        %v1566 = vld [vmem:[%s385 + $0x23c0] sm:$0xff]
        %v1567 = vld [vmem:[%s385 + $0x23c8] sm:$0xff]
        %v1568 = vld [vmem:[%s385 + $0x23d0] sm:$0xff]
        %v1569 = vld [vmem:[%s385 + $0x23d8] sm:$0xff]
        %v1570 = vld [vmem:[%s385 + $0x23e0] sm:$0xff]
        %v1571 = vld [vmem:[%s385 + $0x23e8] sm:$0xff]
        %v1572 = vld [vmem:[%s385 + $0x23f0] sm:$0xff]
        %v1573 = vld [vmem:[%s385 + $0x23f8] sm:$0xff]
        %v1574 = vld [vmem:[%s385 + $0x2400] sm:$0xff]
        %v1575 = vld [vmem:[%s385 + $0x2408] sm:$0xff]
        %v1576 = vld [vmem:[%s385 + $0x2410] sm:$0xff]
        %v1577 = vld [vmem:[%s385 + $0x2418] sm:$0xff]
        %v1578 = vld [vmem:[%s385 + $0x2420] sm:$0xff]
        %v1579 = vld [vmem:[%s385 + $0x2428] sm:$0xff]
        %v1580 = vld [vmem:[%s385 + $0x2430] sm:$0xff]
        %v1581 = vld [vmem:[%s385 + $0x2438] sm:$0xff]
        %v1582 = vld [vmem:[%s385 + $0x2440] sm:$0xff]
        %v1583 = vld [vmem:[%s385 + $0x2448] sm:$0xff]
        %v1584 = vld [vmem:[%s385 + $0x2450] sm:$0xff]
        %v1585 = vld [vmem:[%s385 + $0x2458] sm:$0xff]
        %v1586 = vld [vmem:[%s385 + $0x2460] sm:$0xff]
        %v1587 = vld [vmem:[%s385 + $0x2468] sm:$0xff]
        %v1588 = vld [vmem:[%s385 + $0x2470] sm:$0xff]
        %v1589 = vld [vmem:[%s385 + $0x2478] sm:$0xff]
        %v1590 = vld [vmem:[%s385 + $0x2480] sm:$0xff]
        %v1591 = vld [vmem:[%s385 + $0x2488] sm:$0xff]
        %v1592 = vld [vmem:[%s385 + $0x2490] sm:$0xff]
        %v1593 = vld [vmem:[%s385 + $0x2498] sm:$0xff]
        %v1594 = vld [vmem:[%s385 + $0x24a0] sm:$0xff]
        %v1595 = vld [vmem:[%s385 + $0x24a8] sm:$0xff]
        %v1596 = vld [vmem:[%s385 + $0x24b0] sm:$0xff]
        %v1597 = vld [vmem:[%s385 + $0x24b8] sm:$0xff]
        %v1598 = vld [vmem:[%s385 + $0x24c0] sm:$0xff]
        %v1599 = vld [vmem:[%s385 + $0x24c8] sm:$0xff]
        %v1600 = vld [vmem:[%s385 + $0x24d0] sm:$0xff]
        %v1601 = vld [vmem:[%s385 + $0x24d8] sm:$0xff]
        %v1602 = vld [vmem:[%s385 + $0x24e0] sm:$0xff]
        %v1603 = vld [vmem:[%s385 + $0x24e8] sm:$0xff]
        %v1604 = vld [vmem:[%s385 + $0x24f0] sm:$0xff]
        %v1605 = vld [vmem:[%s385 + $0x24f8] sm:$0xff]
        %v1606 = vld [vmem:[%s385 + $0x2500] sm:$0xff]
        %v1607 = vld [vmem:[%s385 + $0x2508] sm:$0xff]
        %v1608 = vld [vmem:[%s385 + $0x2510] sm:$0xff]
        %v1609 = vld [vmem:[%s385 + $0x2518] sm:$0xff]
        %v1610 = vld [vmem:[%s385 + $0x2520] sm:$0xff]
        %v1611 = vld [vmem:[%s385 + $0x2528] sm:$0xff]
        %v1612 = vld [vmem:[%s385 + $0x2530] sm:$0xff]
        %v1613 = vld [vmem:[%s385 + $0x2538] sm:$0xff]
        %v1614 = vld [vmem:[%s385 + $0x2540] sm:$0xff]
        %v1615 = vld [vmem:[%s385 + $0x2548] sm:$0xff]
        %v1616 = vld [vmem:[%s385 + $0x2550] sm:$0xff]
        %v1617 = vld [vmem:[%s385 + $0x2558] sm:$0xff]
        %v1618 = vld [vmem:[%s385 + $0x2560] sm:$0xff]
        %v1619 = vld [vmem:[%s385 + $0x2568] sm:$0xff]
        %v1620 = vld [vmem:[%s385 + $0x2570] sm:$0xff]
        %v1621 = vld [vmem:[%s385 + $0x2578] sm:$0xff]
        %v1622 = vld [vmem:[%s385 + $0x2580] sm:$0xff]
        %v1623 = vld [vmem:[%s385 + $0x2588] sm:$0xff]
        %v1624 = vld [vmem:[%s385 + $0x2590] sm:$0xff]
        %v1625 = vld [vmem:[%s385 + $0x2598] sm:$0xff]
        %v1626 = vld [vmem:[%s385 + $0x25a0] sm:$0xff]
        %v1627 = vld [vmem:[%s385 + $0x25a8] sm:$0xff]
        %v1628 = vld [vmem:[%s385 + $0x25b0] sm:$0xff]
        %v1629 = vld [vmem:[%s385 + $0x25b8] sm:$0xff]
        %v1630 = vld [vmem:[%s385 + $0x25c0] sm:$0xff]
        %v1631 = vld [vmem:[%s385 + $0x25c8] sm:$0xff]
        %v1632 = vld [vmem:[%s385 + $0x25d0] sm:$0xff]
        %v1633 = vld [vmem:[%s385 + $0x25d8] sm:$0xff]
        %v1634 = vld [vmem:[%s385 + $0x25e0] sm:$0xff]
        %v1635 = vld [vmem:[%s385 + $0x25e8] sm:$0xff]
        %v1636 = vld [vmem:[%s385 + $0x25f0] sm:$0xff]
        %v1637 = vld [vmem:[%s385 + $0x25f8] sm:$0xff]
        %v1638 = vld [vmem:[%s385 + $0x2600] sm:$0xff]
        %v1639 = vld [vmem:[%s385 + $0x2608] sm:$0xff]
        %v1640 = vld [vmem:[%s385 + $0x2610] sm:$0xff]
        %v1641 = vld [vmem:[%s385 + $0x2618] sm:$0xff]
        %v1642 = vld [vmem:[%s385 + $0x2620] sm:$0xff]
        %v1643 = vld [vmem:[%s385 + $0x2628] sm:$0xff]
        %v1644 = vld [vmem:[%s385 + $0x2630] sm:$0xff]
        %v1645 = vld [vmem:[%s385 + $0x2638] sm:$0xff]
        %v1646 = vld [vmem:[%s385 + $0x2640] sm:$0xff]
        %v1647 = vld [vmem:[%s385 + $0x2648] sm:$0xff]
        %v1648 = vld [vmem:[%s385 + $0x2650] sm:$0xff]
        %v1649 = vld [vmem:[%s385 + $0x2658] sm:$0xff]
        %v1650 = vld [vmem:[%s385 + $0x2660] sm:$0xff]
        %v1651 = vld [vmem:[%s385 + $0x2668] sm:$0xff]
        %v1652 = vld [vmem:[%s385 + $0x2670] sm:$0xff]
        %v1653 = vld [vmem:[%s385 + $0x2678] sm:$0xff]
        %v1654 = vld [vmem:[%s385 + $0x2680] sm:$0xff]
        %v1655 = vld [vmem:[%s385 + $0x2688] sm:$0xff]
        %v1656 = vld [vmem:[%s385 + $0x2690] sm:$0xff]
        %v1657 = vld [vmem:[%s385 + $0x2698] sm:$0xff]
        %v1658 = vld [vmem:[%s385 + $0x26a0] sm:$0xff]
        %v1659 = vld [vmem:[%s385 + $0x26a8] sm:$0xff]
        %v1660 = vld [vmem:[%s385 + $0x26b0] sm:$0xff]
        %v1661 = vld [vmem:[%s385 + $0x26b8] sm:$0xff]
        %v1662 = vld [vmem:[%s385 + $0x26c0] sm:$0xff]
        %v1663 = vld [vmem:[%s385 + $0x26c8] sm:$0xff]
        %v1664 = vld [vmem:[%s385 + $0x26d0] sm:$0xff]
        %v1665 = vld [vmem:[%s385 + $0x26d8] sm:$0xff]
        %v1666 = vld [vmem:[%s385 + $0x26e0] sm:$0xff]
        %v1667 = vld [vmem:[%s385 + $0x26e8] sm:$0xff]
        %v1668 = vld [vmem:[%s385 + $0x26f0] sm:$0xff]
        %v1669 = vld [vmem:[%s385 + $0x26f8] sm:$0xff]
        %v1670 = vld [vmem:[%s385 + $0x2700] sm:$0xff]
        %v1671 = vld [vmem:[%s385 + $0x2708] sm:$0xff]
        %v1672 = vld [vmem:[%s385 + $0x2710] sm:$0xff]
        %v1673 = vld [vmem:[%s385 + $0x2718] sm:$0xff]
        %v1674 = vld [vmem:[%s385 + $0x2720] sm:$0xff]
        %v1675 = vld [vmem:[%s385 + $0x2728] sm:$0xff]
        %v1676 = vld [vmem:[%s385 + $0x2730] sm:$0xff]
        %v1677 = vld [vmem:[%s385 + $0x2738] sm:$0xff]
        %v1678 = vld [vmem:[%s385 + $0x2740] sm:$0xff]
        %v1679 = vld [vmem:[%s385 + $0x2748] sm:$0xff]
        %v1680 = vld [vmem:[%s385 + $0x2750] sm:$0xff]
        %v1681 = vld [vmem:[%s385 + $0x2758] sm:$0xff]
        %v1682 = vld [vmem:[%s385 + $0x2760] sm:$0xff]
        %v1683 = vld [vmem:[%s385 + $0x2768] sm:$0xff]
        %v1684 = vld [vmem:[%s385 + $0x2770] sm:$0xff]
        %v1685 = vld [vmem:[%s385 + $0x2778] sm:$0xff]
        %v1686 = vld [vmem:[%s385 + $0x2780] sm:$0xff]
        %v1687 = vld [vmem:[%s385 + $0x2788] sm:$0xff]
        %v1688 = vld [vmem:[%s385 + $0x2790] sm:$0xff]
        %v1689 = vld [vmem:[%s385 + $0x2798] sm:$0xff]
        %v1690 = vld [vmem:[%s385 + $0x27a0] sm:$0xff]
        %v1691 = vld [vmem:[%s385 + $0x27a8] sm:$0xff]
        %v1692 = vld [vmem:[%s385 + $0x27b0] sm:$0xff]
        %v1693 = vld [vmem:[%s385 + $0x27b8] sm:$0xff]
        %v1694 = vld [vmem:[%s385 + $0x27c0] sm:$0xff]
        %v1695 = vld [vmem:[%s385 + $0x27c8] sm:$0xff]
        %v1696 = vld [vmem:[%s385 + $0x27d0] sm:$0xff]
        %v1697 = vld [vmem:[%s385 + $0x27d8] sm:$0xff]
        %v1698 = vld [vmem:[%s385 + $0x27e0] sm:$0xff]
        %v1699 = vld [vmem:[%s385 + $0x27e8] sm:$0xff]
        %v1700 = vld [vmem:[%s385 + $0x27f0] sm:$0xff]
        %v1701 = vld [vmem:[%s385 + $0x27f8] sm:$0xff]
        %v1702 = vld [vmem:[%s385 + $0x2800] sm:$0xff]
        %v1703 = vld [vmem:[%s385 + $0x2808] sm:$0xff]
        %v1704 = vld [vmem:[%s385 + $0x2810] sm:$0xff]
        %v1705 = vld [vmem:[%s385 + $0x2818] sm:$0xff]
        %v1706 = vld [vmem:[%s385 + $0x2820] sm:$0xff]
        %v1707 = vld [vmem:[%s385 + $0x2828] sm:$0xff]
        %v1708 = vld [vmem:[%s385 + $0x2830] sm:$0xff]
        %v1709 = vld [vmem:[%s385 + $0x2838] sm:$0xff]
        %v1710 = vld [vmem:[%s385 + $0x2840] sm:$0xff]
        %v1711 = vld [vmem:[%s385 + $0x2848] sm:$0xff]
        %v1712 = vld [vmem:[%s385 + $0x2850] sm:$0xff]
        %v1713 = vld [vmem:[%s385 + $0x2858] sm:$0xff]
        %v1714 = vld [vmem:[%s385 + $0x2860] sm:$0xff]
        %v1715 = vld [vmem:[%s385 + $0x2868] sm:$0xff]
        %v1716 = vld [vmem:[%s385 + $0x2870] sm:$0xff]
        %v1717 = vld [vmem:[%s385 + $0x2878] sm:$0xff]
        %v1718 = vld [vmem:[%s385 + $0x2880] sm:$0xff]
        %v1719 = vld [vmem:[%s385 + $0x2888] sm:$0xff]
        %v1720 = vld [vmem:[%s385 + $0x2890] sm:$0xff]
        %v1721 = vld [vmem:[%s385 + $0x2898] sm:$0xff]
        %v1722 = vld [vmem:[%s385 + $0x28a0] sm:$0xff]
        %v1723 = vld [vmem:[%s385 + $0x28a8] sm:$0xff]
        %v1724 = vld [vmem:[%s385 + $0x28b0] sm:$0xff]
        %v1725 = vld [vmem:[%s385 + $0x28b8] sm:$0xff]
        %v1726 = vld [vmem:[%s385 + $0x28c0] sm:$0xff]
        %v1727 = vld [vmem:[%s385 + $0x28c8] sm:$0xff]
        %v1728 = vld [vmem:[%s385 + $0x28d0] sm:$0xff]
        %v1729 = vld [vmem:[%s385 + $0x28d8] sm:$0xff]
        %v1730 = vld [vmem:[%s385 + $0x28e0] sm:$0xff]
        %v1731 = vld [vmem:[%s385 + $0x28e8] sm:$0xff]
        %v1732 = vld [vmem:[%s385 + $0x28f0] sm:$0xff]
        %v1733 = vld [vmem:[%s385 + $0x28f8] sm:$0xff]
        %v1734 = vld [vmem:[%s385 + $0x2900] sm:$0xff]
        %v1735 = vld [vmem:[%s385 + $0x2908] sm:$0xff]
        %v1736 = vld [vmem:[%s385 + $0x2910] sm:$0xff]
        %v1737 = vld [vmem:[%s385 + $0x2918] sm:$0xff]
        %v1738 = vld [vmem:[%s385 + $0x2920] sm:$0xff]
        %v1739 = vld [vmem:[%s385 + $0x2928] sm:$0xff]
        %v1740 = vld [vmem:[%s385 + $0x2930] sm:$0xff]
        %v1741 = vld [vmem:[%s385 + $0x2938] sm:$0xff]
        %v1742 = vld [vmem:[%s385 + $0x2940] sm:$0xff]
        %v1743 = vld [vmem:[%s385 + $0x2948] sm:$0xff]
        %v1744 = vld [vmem:[%s385 + $0x2950] sm:$0xff]
        %v1745 = vld [vmem:[%s385 + $0x2958] sm:$0xff]
        %v1746 = vld [vmem:[%s385 + $0x2960] sm:$0xff]
        %v1747 = vld [vmem:[%s385 + $0x2968] sm:$0xff]
        %v1748 = vld [vmem:[%s385 + $0x2970] sm:$0xff]
        %v1749 = vld [vmem:[%s385 + $0x2978] sm:$0xff]
        %v1750 = vld [vmem:[%s385 + $0x2980] sm:$0xff]
        %v1751 = vld [vmem:[%s385 + $0x2988] sm:$0xff]
        %v1752 = vld [vmem:[%s385 + $0x2990] sm:$0xff]
        %v1753 = vld [vmem:[%s385 + $0x2998] sm:$0xff]
        %v1754 = vld [vmem:[%s385 + $0x29a0] sm:$0xff]
        %v1755 = vld [vmem:[%s385 + $0x29a8] sm:$0xff]
        %v1756 = vld [vmem:[%s385 + $0x29b0] sm:$0xff]
        %v1757 = vld [vmem:[%s385 + $0x29b8] sm:$0xff]
        %v1758 = vld [vmem:[%s385 + $0x29c0] sm:$0xff]
        %v1759 = vld [vmem:[%s385 + $0x29c8] sm:$0xff]
        %v1760 = vld [vmem:[%s385 + $0x29d0] sm:$0xff]
        %v1761 = vld [vmem:[%s385 + $0x29d8] sm:$0xff]
        %v1762 = vld [vmem:[%s385 + $0x29e0] sm:$0xff]
        %v1763 = vld [vmem:[%s385 + $0x29e8] sm:$0xff]
        %v1764 = vld [vmem:[%s385 + $0x29f0] sm:$0xff]
        %v1765 = vld [vmem:[%s385 + $0x29f8] sm:$0xff]
        %v1766 = vld [vmem:[%s385 + $0x2a00] sm:$0xff]
        %v1767 = vld [vmem:[%s385 + $0x2a08] sm:$0xff]
        %v1768 = vld [vmem:[%s385 + $0x2a10] sm:$0xff]
        %v1769 = vld [vmem:[%s385 + $0x2a18] sm:$0xff]
        %v1770 = vld [vmem:[%s385 + $0x2a20] sm:$0xff]
        %v1771 = vld [vmem:[%s385 + $0x2a28] sm:$0xff]
        %v1772 = vld [vmem:[%s385 + $0x2a30] sm:$0xff]
        %v1773 = vld [vmem:[%s385 + $0x2a38] sm:$0xff]
        %v1774 = vld [vmem:[%s385 + $0x2a40] sm:$0xff]
        %v1775 = vld [vmem:[%s385 + $0x2a48] sm:$0xff]
        %v1776 = vld [vmem:[%s385 + $0x2a50] sm:$0xff]
        %v1777 = vld [vmem:[%s385 + $0x2a58] sm:$0xff]
        %v1778 = vld [vmem:[%s385 + $0x2a60] sm:$0xff]
        %v1779 = vld [vmem:[%s385 + $0x2a68] sm:$0xff]
        %v1780 = vld [vmem:[%s385 + $0x2a70] sm:$0xff]
        %v1781 = vld [vmem:[%s385 + $0x2a78] sm:$0xff]
        %v1782 = vld [vmem:[%s385 + $0x2a80] sm:$0xff]
        %v1783 = vld [vmem:[%s385 + $0x2a88] sm:$0xff]
        %v1784 = vld [vmem:[%s385 + $0x2a90] sm:$0xff]
        %v1785 = vld [vmem:[%s385 + $0x2a98] sm:$0xff]
        %v1786 = vld [vmem:[%s385 + $0x2aa0] sm:$0xff]
        %v1787 = vld [vmem:[%s385 + $0x2aa8] sm:$0xff]
        %v1788 = vld [vmem:[%s385 + $0x2ab0] sm:$0xff]
        %v1789 = vld [vmem:[%s385 + $0x2ab8] sm:$0xff]
        %v1790 = vld [vmem:[%s385 + $0x2ac0] sm:$0xff]
        %v1791 = vld [vmem:[%s385 + $0x2ac8] sm:$0xff]
        %v1792 = vld [vmem:[%s385 + $0x2ad0] sm:$0xff]
        %v1793 = vld [vmem:[%s385 + $0x2ad8] sm:$0xff]
        %v1794 = vld [vmem:[%s385 + $0x2ae0] sm:$0xff]
        %v1795 = vld [vmem:[%s385 + $0x2ae8] sm:$0xff]
        %v1796 = vld [vmem:[%s385 + $0x2af0] sm:$0xff]
        %v1797 = vld [vmem:[%s385 + $0x2af8] sm:$0xff]
        %v1798 = vld [vmem:[%s385 + $0x2b00] sm:$0xff]
        %v1799 = vld [vmem:[%s385 + $0x2b08] sm:$0xff]
        %v1800 = vld [vmem:[%s385 + $0x2b10] sm:$0xff]
        %v1801 = vld [vmem:[%s385 + $0x2b18] sm:$0xff]
        %v1802 = vld [vmem:[%s385 + $0x2b20] sm:$0xff]
        %v1803 = vld [vmem:[%s385 + $0x2b28] sm:$0xff]
        %v1804 = vld [vmem:[%s385 + $0x2b30] sm:$0xff]
        %v1805 = vld [vmem:[%s385 + $0x2b38] sm:$0xff]
        %v1806 = vld [vmem:[%s385 + $0x2b40] sm:$0xff]
        %v1807 = vld [vmem:[%s385 + $0x2b48] sm:$0xff]
        %v1808 = vld [vmem:[%s385 + $0x2b50] sm:$0xff]
        %v1809 = vld [vmem:[%s385 + $0x2b58] sm:$0xff]
        %v1810 = vld [vmem:[%s385 + $0x2b60] sm:$0xff]
        %v1811 = vld [vmem:[%s385 + $0x2b68] sm:$0xff]
        %v1812 = vld [vmem:[%s385 + $0x2b70] sm:$0xff]
        %v1813 = vld [vmem:[%s385 + $0x2b78] sm:$0xff]
        %v1814 = vld [vmem:[%s385 + $0x2b80] sm:$0xff]
        %v1815 = vld [vmem:[%s385 + $0x2b88] sm:$0xff]
        %v1816 = vld [vmem:[%s385 + $0x2b90] sm:$0xff]
        %v1817 = vld [vmem:[%s385 + $0x2b98] sm:$0xff]
        %v1818 = vld [vmem:[%s385 + $0x2ba0] sm:$0xff]
        %v1819 = vld [vmem:[%s385 + $0x2ba8] sm:$0xff]
        %v1820 = vld [vmem:[%s385 + $0x2bb0] sm:$0xff]
        %v1821 = vld [vmem:[%s385 + $0x2bb8] sm:$0xff]
        %v1822 = vld [vmem:[%s385 + $0x2bc0] sm:$0xff]
        %v1823 = vld [vmem:[%s385 + $0x2bc8] sm:$0xff]
        %v1824 = vld [vmem:[%s385 + $0x2bd0] sm:$0xff]
        %v1825 = vld [vmem:[%s385 + $0x2bd8] sm:$0xff]
        %v1826 = vld [vmem:[%s385 + $0x2be0] sm:$0xff]
        %v1827 = vld [vmem:[%s385 + $0x2be8] sm:$0xff]
        %v1828 = vld [vmem:[%s385 + $0x2bf0] sm:$0xff]
        %v1829 = vld [vmem:[%s385 + $0x2bf8] sm:$0xff]
        %v1830 = vld [vmem:[%s385 + $0x2c00] sm:$0xff]
        %v1831 = vld [vmem:[%s385 + $0x2c08] sm:$0xff]
        %v1832 = vld [vmem:[%s385 + $0x2c10] sm:$0xff]
        %v1833 = vld [vmem:[%s385 + $0x2c18] sm:$0xff]
        %v1834 = vld [vmem:[%s385 + $0x2c20] sm:$0xff]
        %v1835 = vld [vmem:[%s385 + $0x2c28] sm:$0xff]
        %v1836 = vld [vmem:[%s385 + $0x2c30] sm:$0xff]
        %v1837 = vld [vmem:[%s385 + $0x2c38] sm:$0xff]
        %v1838 = vld [vmem:[%s385 + $0x2c40] sm:$0xff]
        %v1839 = vld [vmem:[%s385 + $0x2c48] sm:$0xff]
        %v1840 = vld [vmem:[%s385 + $0x2c50] sm:$0xff]
        %v1841 = vld [vmem:[%s385 + $0x2c58] sm:$0xff]
        %v1842 = vld [vmem:[%s385 + $0x2c60] sm:$0xff]
        %v1843 = vld [vmem:[%s385 + $0x2c68] sm:$0xff]
        %v1844 = vld [vmem:[%s385 + $0x2c70] sm:$0xff]
        %v1845 = vld [vmem:[%s385 + $0x2c78] sm:$0xff]
        %v1846 = vld [vmem:[%s385 + $0x2c80] sm:$0xff]
        %v1847 = vld [vmem:[%s385 + $0x2c88] sm:$0xff]
        %v1848 = vld [vmem:[%s385 + $0x2c90] sm:$0xff]
        %v1849 = vld [vmem:[%s385 + $0x2c98] sm:$0xff]
        %v1850 = vld [vmem:[%s385 + $0x2ca0] sm:$0xff]
        %v1851 = vld [vmem:[%s385 + $0x2ca8] sm:$0xff]
        %v1852 = vld [vmem:[%s385 + $0x2cb0] sm:$0xff]
        %v1853 = vld [vmem:[%s385 + $0x2cb8] sm:$0xff]
        %v1854 = vld [vmem:[%s385 + $0x2cc0] sm:$0xff]
        %v1855 = vld [vmem:[%s385 + $0x2cc8] sm:$0xff]
        %v1856 = vld [vmem:[%s385 + $0x2cd0] sm:$0xff]
        %v1857 = vld [vmem:[%s385 + $0x2cd8] sm:$0xff]
        %v1858 = vld [vmem:[%s385 + $0x2ce0] sm:$0xff]
        %v1859 = vld [vmem:[%s385 + $0x2ce8] sm:$0xff]
        %v1860 = vld [vmem:[%s385 + $0x2cf0] sm:$0xff]
        %v1861 = vld [vmem:[%s385 + $0x2cf8] sm:$0xff]
        %v1862 = vld [vmem:[%s385 + $0x2d00] sm:$0xff]
        %v1863 = vld [vmem:[%s385 + $0x2d08] sm:$0xff]
        %v1864 = vld [vmem:[%s385 + $0x2d10] sm:$0xff]
        %v1865 = vld [vmem:[%s385 + $0x2d18] sm:$0xff]
        %v1866 = vld [vmem:[%s385 + $0x2d20] sm:$0xff]
        %v1867 = vld [vmem:[%s385 + $0x2d28] sm:$0xff]
        %v1868 = vld [vmem:[%s385 + $0x2d30] sm:$0xff]
        %v1869 = vld [vmem:[%s385 + $0x2d38] sm:$0xff]
        %v1870 = vld [vmem:[%s385 + $0x2d40] sm:$0xff]
        %v1871 = vld [vmem:[%s385 + $0x2d48] sm:$0xff]
        %v1872 = vld [vmem:[%s385 + $0x2d50] sm:$0xff]
        %v1873 = vld [vmem:[%s385 + $0x2d58] sm:$0xff]
        %v1874 = vld [vmem:[%s385 + $0x2d60] sm:$0xff]
        %v1875 = vld [vmem:[%s385 + $0x2d68] sm:$0xff]
        %v1876 = vld [vmem:[%s385 + $0x2d70] sm:$0xff]
        %v1877 = vld [vmem:[%s385 + $0x2d78] sm:$0xff]
        %v1878 = vld [vmem:[%s385 + $0x2d80] sm:$0xff]
        %v1879 = vld [vmem:[%s385 + $0x2d88] sm:$0xff]
        %v1880 = vld [vmem:[%s385 + $0x2d90] sm:$0xff]
        %v1881 = vld [vmem:[%s385 + $0x2d98] sm:$0xff]
        %v1882 = vld [vmem:[%s385 + $0x2da0] sm:$0xff]
        %v1883 = vld [vmem:[%s385 + $0x2da8] sm:$0xff]
        %v1884 = vld [vmem:[%s385 + $0x2db0] sm:$0xff]
        %v1885 = vld [vmem:[%s385 + $0x2db8] sm:$0xff]
        %v1886 = vld [vmem:[%s385 + $0x2dc0] sm:$0xff]
        %v1887 = vld [vmem:[%s385 + $0x2dc8] sm:$0xff]
        %v1888 = vld [vmem:[%s385 + $0x2dd0] sm:$0xff]
        %v1889 = vld [vmem:[%s385 + $0x2dd8] sm:$0xff]
        %v1890 = vld [vmem:[%s385 + $0x2de0] sm:$0xff]
        %v1891 = vld [vmem:[%s385 + $0x2de8] sm:$0xff]
        %v1892 = vld [vmem:[%s385 + $0x2df0] sm:$0xff]
        %v1893 = vld [vmem:[%s385 + $0x2df8] sm:$0xff]
        %v1894 = vld [vmem:[%s385 + $0x2e00] sm:$0xff]
        %v1895 = vld [vmem:[%s385 + $0x2e08] sm:$0xff]
        %v1896 = vld [vmem:[%s385 + $0x2e10] sm:$0xff]
        %v1897 = vld [vmem:[%s385 + $0x2e18] sm:$0xff]
        %v1898 = vld [vmem:[%s385 + $0x2e20] sm:$0xff]
        %v1899 = vld [vmem:[%s385 + $0x2e28] sm:$0xff]
        %v1900 = vld [vmem:[%s385 + $0x2e30] sm:$0xff]
        %v1901 = vld [vmem:[%s385 + $0x2e38] sm:$0xff]
        %v1902 = vld [vmem:[%s385 + $0x2e40] sm:$0xff]
        %v1903 = vld [vmem:[%s385 + $0x2e48] sm:$0xff]
        %v1904 = vld [vmem:[%s385 + $0x2e50] sm:$0xff]
        %v1905 = vld [vmem:[%s385 + $0x2e58] sm:$0xff]
        %v1906 = vld [vmem:[%s385 + $0x2e60] sm:$0xff]
        %v1907 = vld [vmem:[%s385 + $0x2e68] sm:$0xff]
        %v1908 = vld [vmem:[%s385 + $0x2e70] sm:$0xff]
        %v1909 = vld [vmem:[%s385 + $0x2e78] sm:$0xff]
        %v1910 = vld [vmem:[%s385 + $0x2e80] sm:$0xff]
        %v1911 = vld [vmem:[%s385 + $0x2e88] sm:$0xff]
        %v1912 = vld [vmem:[%s385 + $0x2e90] sm:$0xff]
        %v1913 = vld [vmem:[%s385 + $0x2e98] sm:$0xff]
        %v1914 = vld [vmem:[%s385 + $0x2ea0] sm:$0xff]
        %v1915 = vld [vmem:[%s385 + $0x2ea8] sm:$0xff]
        %v1916 = vld [vmem:[%s385 + $0x2eb0] sm:$0xff]
        %v1917 = vld [vmem:[%s385 + $0x2eb8] sm:$0xff]
        %v1918 = vld [vmem:[%s385 + $0x2ec0] sm:$0xff]
        %v1919 = vld [vmem:[%s385 + $0x2ec8] sm:$0xff]
        %v1920 = vld [vmem:[%s385 + $0x2ed0] sm:$0xff]
        %v1921 = vld [vmem:[%s385 + $0x2ed8] sm:$0xff]
        %v1922 = vld [vmem:[%s385 + $0x2ee0] sm:$0xff]
        %v1923 = vld [vmem:[%s385 + $0x2ee8] sm:$0xff]
        %v1924 = vld [vmem:[%s385 + $0x2ef0] sm:$0xff]
        %v1925 = vld [vmem:[%s385 + $0x2ef8] sm:$0xff]
        %v1926 = vld [vmem:[%s385 + $0x2f00] sm:$0xff]
        %v1927 = vld [vmem:[%s385 + $0x2f08] sm:$0xff]
        %v1928 = vld [vmem:[%s385 + $0x2f10] sm:$0xff]
        %v1929 = vld [vmem:[%s385 + $0x2f18] sm:$0xff]
        %v1930 = vld [vmem:[%s385 + $0x2f20] sm:$0xff]
        %v1931 = vld [vmem:[%s385 + $0x2f28] sm:$0xff]
        %v1932 = vld [vmem:[%s385 + $0x2f30] sm:$0xff]
        %v1933 = vld [vmem:[%s385 + $0x2f38] sm:$0xff]
        %v1934 = vld [vmem:[%s385 + $0x2f40] sm:$0xff]
        %v1935 = vld [vmem:[%s385 + $0x2f48] sm:$0xff]
        %v1936 = vld [vmem:[%s385 + $0x2f50] sm:$0xff]
        %v1937 = vld [vmem:[%s385 + $0x2f58] sm:$0xff]
        %v1938 = vld [vmem:[%s385 + $0x2f60] sm:$0xff]
        %v1939 = vld [vmem:[%s385 + $0x2f68] sm:$0xff]
        %v1940 = vld [vmem:[%s385 + $0x2f70] sm:$0xff]
        %v1941 = vld [vmem:[%s385 + $0x2f78] sm:$0xff]
        %v1942 = vld [vmem:[%s385 + $0x2f80] sm:$0xff]
        %v1943 = vld [vmem:[%s385 + $0x2f88] sm:$0xff]
        %v1944 = vld [vmem:[%s385 + $0x2f90] sm:$0xff]
        %v1945 = vld [vmem:[%s385 + $0x2f98] sm:$0xff]
        %v1946 = vld [vmem:[%s385 + $0x2fa0] sm:$0xff]
        %v1947 = vld [vmem:[%s385 + $0x2fa8] sm:$0xff]
        %v1948 = vld [vmem:[%s385 + $0x2fb0] sm:$0xff]
        %v1949 = vld [vmem:[%s385 + $0x2fb8] sm:$0xff]
        %v1950 = vld [vmem:[%s385 + $0x2fc0] sm:$0xff]
        %v1951 = vld [vmem:[%s385 + $0x2fc8] sm:$0xff]
        %v1952 = vld [vmem:[%s385 + $0x2fd0] sm:$0xff]
        %v1953 = vld [vmem:[%s385 + $0x2fd8] sm:$0xff]
        %v1954 = vld [vmem:[%s385 + $0x2fe0] sm:$0xff]
        %v1955 = vld [vmem:[%s385 + $0x2fe8] sm:$0xff]
        %v1956 = vld [vmem:[%s385 + $0x2ff0] sm:$0xff]
        %v1957 = vld [vmem:[%s385 + $0x2ff8] sm:$0xff]
        %v1958 = vld [vmem:[%s385 + $0x3000] sm:$0xff]
        %v1959 = vld [vmem:[%s385 + $0x3008] sm:$0xff]
        %v1960 = vld [vmem:[%s385 + $0x3010] sm:$0xff]
        %v1961 = vld [vmem:[%s385 + $0x3018] sm:$0xff]
        %v1962 = vld [vmem:[%s385 + $0x3020] sm:$0xff]
        %v1963 = vld [vmem:[%s385 + $0x3028] sm:$0xff]
        %v1964 = vld [vmem:[%s385 + $0x3030] sm:$0xff]
        %v1965 = vld [vmem:[%s385 + $0x3038] sm:$0xff]
        %v1966 = vld [vmem:[%s385 + $0x3040] sm:$0xff]
        %v1967 = vld [vmem:[%s385 + $0x3048] sm:$0xff]
        %v1968 = vld [vmem:[%s385 + $0x3050] sm:$0xff]
        %v1969 = vld [vmem:[%s385 + $0x3058] sm:$0xff]
        %v1970 = vld [vmem:[%s385 + $0x3060] sm:$0xff]
        %v1971 = vld [vmem:[%s385 + $0x3068] sm:$0xff]
        %v1972 = vld [vmem:[%s385 + $0x3070] sm:$0xff]
        %v1973 = vld [vmem:[%s385 + $0x3078] sm:$0xff]
        %v1974 = vld [vmem:[%s385 + $0x3080] sm:$0xff]
        %v1975 = vld [vmem:[%s385 + $0x3088] sm:$0xff]
        %v1976 = vld [vmem:[%s385 + $0x3090] sm:$0xff]
        %v1977 = vld [vmem:[%s385 + $0x3098] sm:$0xff]
        %v1978 = vld [vmem:[%s385 + $0x30a0] sm:$0xff]
        %v1979 = vld [vmem:[%s385 + $0x30a8] sm:$0xff]
        %v1980 = vld [vmem:[%s385 + $0x30b0] sm:$0xff]
        %v1981 = vld [vmem:[%s385 + $0x30b8] sm:$0xff]
        %v1982 = vld [vmem:[%s385 + $0x30c0] sm:$0xff]
        %v1983 = vld [vmem:[%s385 + $0x30c8] sm:$0xff]
        %v1984 = vld [vmem:[%s385 + $0x30d0] sm:$0xff]
        %v1985 = vld [vmem:[%s385 + $0x30d8] sm:$0xff]
        %v1986 = vld [vmem:[%s385 + $0x30e0] sm:$0xff]
        %v1987 = vld [vmem:[%s385 + $0x30e8] sm:$0xff]
        %v1988 = vld [vmem:[%s385 + $0x30f0] sm:$0xff]
        %v1989 = vld [vmem:[%s385 + $0x30f8] sm:$0xff]
        %v1990 = vld [vmem:[%s385 + $0x3100] sm:$0xff]
        %v1991 = vld [vmem:[%s385 + $0x3108] sm:$0xff]
        %v1992 = vld [vmem:[%s385 + $0x3110] sm:$0xff]
        %v1993 = vld [vmem:[%s385 + $0x3118] sm:$0xff]
        %v1994 = vld [vmem:[%s385 + $0x3120] sm:$0xff]
        %v1995 = vld [vmem:[%s385 + $0x3128] sm:$0xff]
        %v1996 = vld [vmem:[%s385 + $0x3130] sm:$0xff]
        %v1997 = vld [vmem:[%s385 + $0x3138] sm:$0xff]
        %v1998 = vld [vmem:[%s385 + $0x3140] sm:$0xff]
        %v1999 = vld [vmem:[%s385 + $0x3148] sm:$0xff]
        %v2000 = vld [vmem:[%s385 + $0x3150] sm:$0xff]
        %v2001 = vld [vmem:[%s385 + $0x3158] sm:$0xff]
        %v2002 = vld [vmem:[%s385 + $0x3160] sm:$0xff]
        %v2003 = vld [vmem:[%s385 + $0x3168] sm:$0xff]
        %v2004 = vld [vmem:[%s385 + $0x3170] sm:$0xff]
        %v2005 = vld [vmem:[%s385 + $0x3178] sm:$0xff]
        %v2006 = vld [vmem:[%s385 + $0x3180] sm:$0xff]
        %v2007 = vld [vmem:[%s385 + $0x3188] sm:$0xff]
        %v2008 = vld [vmem:[%s385 + $0x3190] sm:$0xff]
        %v2009 = vld [vmem:[%s385 + $0x3198] sm:$0xff]
        %v2010 = vld [vmem:[%s385 + $0x31a0] sm:$0xff]
        %v2011 = vld [vmem:[%s385 + $0x31a8] sm:$0xff]
        %v2012 = vld [vmem:[%s385 + $0x31b0] sm:$0xff]
        %v2013 = vld [vmem:[%s385 + $0x31b8] sm:$0xff]
        %v2014 = vld [vmem:[%s385 + $0x31c0] sm:$0xff]
        %v2015 = vld [vmem:[%s385 + $0x31c8] sm:$0xff]
        %v2016 = vld [vmem:[%s385 + $0x31d0] sm:$0xff]
        %v2017 = vld [vmem:[%s385 + $0x31d8] sm:$0xff]
        %v2018 = vld [vmem:[%s385 + $0x31e0] sm:$0xff]
        %v2019 = vld [vmem:[%s385 + $0x31e8] sm:$0xff]
        %v2020 = vld [vmem:[%s385 + $0x31f0] sm:$0xff]
        %v2021 = vld [vmem:[%s385 + $0x31f8] sm:$0xff]
        %v2022 = vld [vmem:[%s385 + $0x3200] sm:$0xff]
        %v2023 = vld [vmem:[%s385 + $0x3208] sm:$0xff]
        %v2024 = vld [vmem:[%s385 + $0x3210] sm:$0xff]
        %v2025 = vld [vmem:[%s385 + $0x3218] sm:$0xff]
        %v2026 = vld [vmem:[%s385 + $0x3220] sm:$0xff]
        %v2027 = vld [vmem:[%s385 + $0x3228] sm:$0xff]
        %v2028 = vld [vmem:[%s385 + $0x3230] sm:$0xff]
        %v2029 = vld [vmem:[%s385 + $0x3238] sm:$0xff]
        %v2030 = vld [vmem:[%s385 + $0x3240] sm:$0xff]
        %v2031 = vld [vmem:[%s385 + $0x3248] sm:$0xff]
        %v2032 = vld [vmem:[%s385 + $0x3250] sm:$0xff]
        %v2033 = vld [vmem:[%s385 + $0x3258] sm:$0xff]
        %v2034 = vld [vmem:[%s385 + $0x3260] sm:$0xff]
        %v2035 = vld [vmem:[%s385 + $0x3268] sm:$0xff]
        %v2036 = vld [vmem:[%s385 + $0x3270] sm:$0xff]
        %v2037 = vld [vmem:[%s385 + $0x3278] sm:$0xff]
        %v2038 = vld [vmem:[%s385 + $0x3280] sm:$0xff]
        %v2039 = vld [vmem:[%s385 + $0x3288] sm:$0xff]
        %v2040 = vld [vmem:[%s385 + $0x3290] sm:$0xff]
        %v2041 = vld [vmem:[%s385 + $0x3298] sm:$0xff]
        %v2042 = vld [vmem:[%s385 + $0x32a0] sm:$0xff]
        %v2043 = vld [vmem:[%s385 + $0x32a8] sm:$0xff]
        %v2044 = vld [vmem:[%s385 + $0x32b0] sm:$0xff]
        %v2045 = vld [vmem:[%s385 + $0x32b8] sm:$0xff]
        %v2046 = vld [vmem:[%s385 + $0x32c0] sm:$0xff]
        %v2047 = vld [vmem:[%s385 + $0x32c8] sm:$0xff]
        %v2048 = vld [vmem:[%s385 + $0x32d0] sm:$0xff]
        %v2049 = vld [vmem:[%s385 + $0x32d8] sm:$0xff]
        %v2050 = vld [vmem:[%s385 + $0x32e0] sm:$0xff]
        %v2051 = vld [vmem:[%s385 + $0x32e8] sm:$0xff]
        %v2052 = vld [vmem:[%s385 + $0x32f0] sm:$0xff]
        %v2053 = vld [vmem:[%s385 + $0x32f8] sm:$0xff]
        %v2054 = vld [vmem:[%s385 + $0x3300] sm:$0xff]
        %v2055 = vld [vmem:[%s385 + $0x3308] sm:$0xff]
        %v2056 = vld [vmem:[%s385 + $0x3310] sm:$0xff]
        %v2057 = vld [vmem:[%s385 + $0x3318] sm:$0xff]
        %v2058 = vld [vmem:[%s385 + $0x3320] sm:$0xff]
        %v2059 = vld [vmem:[%s385 + $0x3328] sm:$0xff]
        %v2060 = vld [vmem:[%s385 + $0x3330] sm:$0xff]
        %v2061 = vld [vmem:[%s385 + $0x3338] sm:$0xff]
        %v2062 = vld [vmem:[%s385 + $0x3340] sm:$0xff]
        %v2063 = vld [vmem:[%s385 + $0x3348] sm:$0xff]
        %v2064 = vld [vmem:[%s385 + $0x3350] sm:$0xff]
        %v2065 = vld [vmem:[%s385 + $0x3358] sm:$0xff]
        %v2066 = vld [vmem:[%s385 + $0x3360] sm:$0xff]
        %v2067 = vld [vmem:[%s385 + $0x3368] sm:$0xff]
        %v2068 = vld [vmem:[%s385 + $0x3370] sm:$0xff]
        %v2069 = vld [vmem:[%s385 + $0x3378] sm:$0xff]
        %v2070 = vld [vmem:[%s385 + $0x3380] sm:$0xff]
        %v2071 = vld [vmem:[%s385 + $0x3388] sm:$0xff]
        %v2072 = vld [vmem:[%s385 + $0x3390] sm:$0xff]
        %v2073 = vld [vmem:[%s385 + $0x3398] sm:$0xff]
        %v2074 = vld [vmem:[%s385 + $0x33a0] sm:$0xff]
        %v2075 = vld [vmem:[%s385 + $0x33a8] sm:$0xff]
        %v2076 = vld [vmem:[%s385 + $0x33b0] sm:$0xff]
        %v2077 = vld [vmem:[%s385 + $0x33b8] sm:$0xff]
        %v2078 = vld [vmem:[%s385 + $0x33c0] sm:$0xff]
        %v2079 = vld [vmem:[%s385 + $0x33c8] sm:$0xff]
        %v2080 = vld [vmem:[%s385 + $0x33d0] sm:$0xff]
        %v2081 = vld [vmem:[%s385 + $0x33d8] sm:$0xff]
        %v2082 = vld [vmem:[%s385 + $0x33e0] sm:$0xff]
        %v2083 = vld [vmem:[%s385 + $0x33e8] sm:$0xff]
        %v2084 = vld [vmem:[%s385 + $0x33f0] sm:$0xff]
        %v2085 = vld [vmem:[%s385 + $0x33f8] sm:$0xff]
        %v2086 = vld [vmem:[%s385 + $0x3400] sm:$0xff]
        %v2087 = vld [vmem:[%s385 + $0x3408] sm:$0xff]
        %v2088 = vld [vmem:[%s385 + $0x3410] sm:$0xff]
        %v2089 = vld [vmem:[%s385 + $0x3418] sm:$0xff]
        %v2090 = vld [vmem:[%s385 + $0x3420] sm:$0xff]
        %v2091 = vld [vmem:[%s385 + $0x3428] sm:$0xff]
        %v2092 = vld [vmem:[%s385 + $0x3430] sm:$0xff]
        %v2093 = vld [vmem:[%s385 + $0x3438] sm:$0xff]
        %v2094 = vld [vmem:[%s385 + $0x3440] sm:$0xff]
        %v2095 = vld [vmem:[%s385 + $0x3448] sm:$0xff]
        %v2096 = vld [vmem:[%s385 + $0x3450] sm:$0xff]
        %v2097 = vld [vmem:[%s385 + $0x3458] sm:$0xff]
        %v2098 = vld [vmem:[%s385 + $0x3460] sm:$0xff]
        %v2099 = vld [vmem:[%s385 + $0x3468] sm:$0xff]
        %v2100 = vld [vmem:[%s385 + $0x3470] sm:$0xff]
        %v2101 = vld [vmem:[%s385 + $0x3478] sm:$0xff]
        %v2102 = vld [vmem:[%s385 + $0x3480] sm:$0xff]
        %v2103 = vld [vmem:[%s385 + $0x3488] sm:$0xff]
        %v2104 = vld [vmem:[%s385 + $0x3490] sm:$0xff]
        %v2105 = vld [vmem:[%s385 + $0x3498] sm:$0xff]
        %v2106 = vld [vmem:[%s385 + $0x34a0] sm:$0xff]
        %v2107 = vld [vmem:[%s385 + $0x34a8] sm:$0xff]
        %v2108 = vld [vmem:[%s385 + $0x34b0] sm:$0xff]
        %v2109 = vld [vmem:[%s385 + $0x34b8] sm:$0xff]
        %v2110 = vld [vmem:[%s385 + $0x34c0] sm:$0xff]
        %v2111 = vld [vmem:[%s385 + $0x34c8] sm:$0xff]
        %v2112 = vld [vmem:[%s385 + $0x34d0] sm:$0xff]
        %v2113 = vld [vmem:[%s385 + $0x34d8] sm:$0xff]
        %v2114 = vld [vmem:[%s385 + $0x34e0] sm:$0xff]
        %v2115 = vld [vmem:[%s385 + $0x34e8] sm:$0xff]
        %v2116 = vld [vmem:[%s385 + $0x34f0] sm:$0xff]
        %v2117 = vld [vmem:[%s385 + $0x34f8] sm:$0xff]
        %v2118 = vld [vmem:[%s385 + $0x3500] sm:$0xff]
        %v2119 = vld [vmem:[%s385 + $0x3508] sm:$0xff]
        %v2120 = vld [vmem:[%s385 + $0x3510] sm:$0xff]
        %v2121 = vld [vmem:[%s385 + $0x3518] sm:$0xff]
        %v2122 = vld [vmem:[%s385 + $0x3520] sm:$0xff]
        %v2123 = vld [vmem:[%s385 + $0x3528] sm:$0xff]
        %v2124 = vld [vmem:[%s385 + $0x3530] sm:$0xff]
        %v2125 = vld [vmem:[%s385 + $0x3538] sm:$0xff]
        %v2126 = vld [vmem:[%s385 + $0x3540] sm:$0xff]
        %v2127 = vld [vmem:[%s385 + $0x3548] sm:$0xff]
        %v2128 = vld [vmem:[%s385 + $0x3550] sm:$0xff]
        %v2129 = vld [vmem:[%s385 + $0x3558] sm:$0xff]
        %v2130 = vld [vmem:[%s385 + $0x3560] sm:$0xff]
        %v2131 = vld [vmem:[%s385 + $0x3568] sm:$0xff]
        %v2132 = vld [vmem:[%s385 + $0x3570] sm:$0xff]
        %v2133 = vld [vmem:[%s385 + $0x3578] sm:$0xff]
        %v2134 = vld [vmem:[%s385 + $0x3580] sm:$0xff]
        %v2135 = vld [vmem:[%s385 + $0x3588] sm:$0xff]
        %v2136 = vld [vmem:[%s385 + $0x3590] sm:$0xff]
        %v2137 = vld [vmem:[%s385 + $0x3598] sm:$0xff]
        %v2138 = vld [vmem:[%s385 + $0x35a0] sm:$0xff]
        %v2139 = vld [vmem:[%s385 + $0x35a8] sm:$0xff]
        %v2140 = vld [vmem:[%s385 + $0x35b0] sm:$0xff]
        %v2141 = vld [vmem:[%s385 + $0x35b8] sm:$0xff]
        %v2142 = vld [vmem:[%s385 + $0x35c0] sm:$0xff]
        %v2143 = vld [vmem:[%s385 + $0x35c8] sm:$0xff]
        %v2144 = vld [vmem:[%s385 + $0x35d0] sm:$0xff]
        %v2145 = vld [vmem:[%s385 + $0x35d8] sm:$0xff]
        %v2146 = vld [vmem:[%s385 + $0x35e0] sm:$0xff]
        %v2147 = vld [vmem:[%s385 + $0x35e8] sm:$0xff]
        %v2148 = vld [vmem:[%s385 + $0x35f0] sm:$0xff]
        %v2149 = vld [vmem:[%s385 + $0x35f8] sm:$0xff]
        %v2150 = vld [vmem:[%s385 + $0x3600] sm:$0xff]
        %v2151 = vld [vmem:[%s385 + $0x3608] sm:$0xff]
        %v2152 = vld [vmem:[%s385 + $0x3610] sm:$0xff]
        %v2153 = vld [vmem:[%s385 + $0x3618] sm:$0xff]
        %v2154 = vld [vmem:[%s385 + $0x3620] sm:$0xff]
        %v2155 = vld [vmem:[%s385 + $0x3628] sm:$0xff]
        %v2156 = vld [vmem:[%s385 + $0x3630] sm:$0xff]
        %v2157 = vld [vmem:[%s385 + $0x3638] sm:$0xff]
        %v2158 = vld [vmem:[%s385 + $0x3640] sm:$0xff]
        %v2159 = vld [vmem:[%s385 + $0x3648] sm:$0xff]
        %v2160 = vld [vmem:[%s385 + $0x3650] sm:$0xff]
        %v2161 = vld [vmem:[%s385 + $0x3658] sm:$0xff]
        %v2162 = vld [vmem:[%s385 + $0x3660] sm:$0xff]
        %v2163 = vld [vmem:[%s385 + $0x3668] sm:$0xff]
        %v2164 = vld [vmem:[%s385 + $0x3670] sm:$0xff]
        %v2165 = vld [vmem:[%s385 + $0x3678] sm:$0xff]
        %v2166 = vld [vmem:[%s385 + $0x3680] sm:$0xff]
        %v2167 = vld [vmem:[%s385 + $0x3688] sm:$0xff]
        %v2168 = vld [vmem:[%s385 + $0x3690] sm:$0xff]
        %v2169 = vld [vmem:[%s385 + $0x3698] sm:$0xff]
        %v2170 = vld [vmem:[%s385 + $0x36a0] sm:$0xff]
        %v2171 = vld [vmem:[%s385 + $0x36a8] sm:$0xff]
        %v2172 = vld [vmem:[%s385 + $0x36b0] sm:$0xff]
        %v2173 = vld [vmem:[%s385 + $0x36b8] sm:$0xff]
        %v2174 = vld [vmem:[%s385 + $0x36c0] sm:$0xff]
        %v2175 = vld [vmem:[%s385 + $0x36c8] sm:$0xff]
        %v2176 = vld [vmem:[%s385 + $0x36d0] sm:$0xff]
        %v2177 = vld [vmem:[%s385 + $0x36d8] sm:$0xff]
        %v2178 = vld [vmem:[%s385 + $0x36e0] sm:$0xff]
        %v2179 = vld [vmem:[%s385 + $0x36e8] sm:$0xff]
        %v2180 = vld [vmem:[%s385 + $0x36f0] sm:$0xff]
        %v2181 = vld [vmem:[%s385 + $0x36f8] sm:$0xff]
        %v2182 = vld [vmem:[%s385 + $0x3700] sm:$0xff]
        %v2183 = vld [vmem:[%s385 + $0x3708] sm:$0xff]
        %v2184 = vld [vmem:[%s385 + $0x3710] sm:$0xff]
        %v2185 = vld [vmem:[%s385 + $0x3718] sm:$0xff]
        %v2186 = vld [vmem:[%s385 + $0x3720] sm:$0xff]
        %v2187 = vld [vmem:[%s385 + $0x3728] sm:$0xff]
        %v2188 = vld [vmem:[%s385 + $0x3730] sm:$0xff]
        %v2189 = vld [vmem:[%s385 + $0x3738] sm:$0xff]
        %v2190 = vld [vmem:[%s385 + $0x3740] sm:$0xff]
        %v2191 = vld [vmem:[%s385 + $0x3748] sm:$0xff]
        %v2192 = vld [vmem:[%s385 + $0x3750] sm:$0xff]
        %v2193 = vld [vmem:[%s385 + $0x3758] sm:$0xff]
        %v2194 = vld [vmem:[%s385 + $0x3760] sm:$0xff]
        %v2195 = vld [vmem:[%s385 + $0x3768] sm:$0xff]
        %v2196 = vld [vmem:[%s385 + $0x3770] sm:$0xff]
        %v2197 = vld [vmem:[%s385 + $0x3778] sm:$0xff]
        %v2198 = vld [vmem:[%s385 + $0x3780] sm:$0xff]
        %v2199 = vld [vmem:[%s385 + $0x3788] sm:$0xff]
        %v2200 = vld [vmem:[%s385 + $0x3790] sm:$0xff]
        %v2201 = vld [vmem:[%s385 + $0x3798] sm:$0xff]
        %v2202 = vld [vmem:[%s385 + $0x37a0] sm:$0xff]
        %v2203 = vld [vmem:[%s385 + $0x37a8] sm:$0xff]
        %v2204 = vld [vmem:[%s385 + $0x37b0] sm:$0xff]
        %v2205 = vld [vmem:[%s385 + $0x37b8] sm:$0xff]
        %v2206 = vld [vmem:[%s385 + $0x37c0] sm:$0xff]
        %v2207 = vld [vmem:[%s385 + $0x37c8] sm:$0xff]
        %v2208 = vld [vmem:[%s385 + $0x37d0] sm:$0xff]
        %v2209 = vld [vmem:[%s385 + $0x37d8] sm:$0xff]
        %v2210 = vld [vmem:[%s385 + $0x37e0] sm:$0xff]
        %v2211 = vld [vmem:[%s385 + $0x37e8] sm:$0xff]
        %v2212 = vld [vmem:[%s385 + $0x37f0] sm:$0xff]
        %v2213 = vld [vmem:[%s385 + $0x37f8] sm:$0xff]
        %2214 = vmatprep.subr.mxu0 %v423
        %2215 = vmatpush1.msra.mxu0 %v422
        %2216 = vmatprep.subr.mxu0 %v430
        %2217 = vmatpush1.msra.mxu0 %v429
        %2218 = vmatprep.subr.mxu0 %v437
        %2219 = vmatpush1.msra.mxu0 %v436
        %2220 = vmatprep.subr.mxu0 %v444
        %2221 = vmatpush1.msra.mxu0 %v443
        %2222 = vmatprep.subr.mxu0 %v451
        %2223 = vmatpush1.msra.mxu0 %v450
        %2224 = vmatprep.subr.mxu0 %v458
        %2225 = vmatpush1.msra.mxu0 %v457
        %2226 = vmatprep.subr.mxu0 %v465
        %2227 = vmatpush1.msra.mxu0 %v464
        %2228 = vmatprep.subr.mxu0 %v472
        %2229 = vmatpush1.msra.mxu0 %v471
        %2230 = vmatprep.subr.mxu0 %v479
        %2231 = vmatpush1.msra.mxu0 %v478
        %2232 = vmatprep.subr.mxu0 %v486
        %2233 = vmatpush1.msra.mxu0 %v485
        %2234 = vmatprep.subr.mxu0 %v493
        %2235 = vmatpush1.msra.mxu0 %v492
        %2236 = vmatprep.subr.mxu0 %v500
        %2237 = vmatpush1.msra.mxu0 %v499
        %2238 = vmatprep.subr.mxu0 %v507
        %2239 = vmatpush1.msra.mxu0 %v506
        %2240 = vmatprep.subr.mxu0 %v514
        %2241 = vmatpush1.msra.mxu0 %v513
        %2242 = vmatprep.subr.mxu0 %v521
        %2243 = vmatpush1.msra.mxu0 %v520
        %2244 = vmatprep.subr.mxu0 %v528
        %2245 = vmatpush1.msra.mxu0 %v527
        %2246 = vmatprep.subr.mxu0 %v535
        %2247 = vmatpush1.msra.mxu0 %v534
        %2248 = vmatprep.subr.mxu0 %v542
        %2249 = vmatpush1.msra.mxu0 %v541
        %2250 = vmatprep.subr.mxu0 %v549
        %2251 = vmatpush1.msra.mxu0 %v548
        %2252 = vmatprep.subr.mxu0 %v556
        %2253 = vmatpush1.msra.mxu0 %v555
        %2254 = vmatprep.subr.mxu0 %v563
        %2255 = vmatpush1.msra.mxu0 %v562
        %2256 = vmatprep.subr.mxu0 %v570
        %2257 = vmatpush1.msra.mxu0 %v569
        %2258 = vmatprep.subr.mxu0 %v577
        %2259 = vmatpush1.msra.mxu0 %v576
        %2260 = vmatprep.subr.mxu0 %v584
        %2261 = vmatpush1.msra.mxu0 %v583
        %2262 = vmatprep.subr.mxu0 %v591
        %2263 = vmatpush1.msra.mxu0 %v590
        %2264 = vmatprep.subr.mxu0 %v598
        %2265 = vmatpush1.msra.mxu0 %v597
        %2266 = vmatprep.subr.mxu0 %v605
        %2267 = vmatpush1.msra.mxu0 %v604
        %2268 = vmatprep.subr.mxu0 %v612
        %2269 = vmatpush1.msra.mxu0 %v611
        %2270 = vmatprep.subr.mxu0 %v619
        %2271 = vmatpush1.msra.mxu0 %v618
        %2272 = vmatprep.subr.mxu0 %v626
        %2273 = vmatpush1.msra.mxu0 %v625
        %2274 = vmatprep.subr.mxu0 %v633
        %2275 = vmatpush1.msra.mxu0 %v632
        %2276 = vmatprep.subr.mxu0 %v640
        %2277 = vmatpush1.msra.mxu0 %v639
        %2278 = vmatprep.mubr.f32.mxu0 %v407
        %2279 = vmatmul.mubr.f32.gmra.mrb[0].mxu0 %v406
        %v2280 = vpop.f32.mrb[0].mxu0
        %v2281 = vadd.f32 0.0, %v2280
        %v2282 = vpop.f32.mrb[0].mxu0
        %v2283 = vadd.f32 0.0, %v2282
        %2284 = vdwg.mxu0
        %2285 = vmatprep.subr.mxu0 %v647
        %2286 = vmatpush1.msra.mxu0 %v646
        %2287 = vmatprep.subr.mxu0 %v654
        %2288 = vmatpush1.msra.mxu0 %v653
        %2289 = vmatprep.subr.mxu0 %v661
        %2290 = vmatpush1.msra.mxu0 %v660
        %2291 = vmatprep.subr.mxu0 %v668
        %2292 = vmatpush1.msra.mxu0 %v667
        %2293 = vmatprep.subr.mxu0 %v675
        %2294 = vmatpush1.msra.mxu0 %v674
        %2295 = vmatprep.subr.mxu0 %v682
        %2296 = vmatpush1.msra.mxu0 %v681
        %2297 = vmatprep.subr.mxu0 %v689
        %2298 = vmatpush1.msra.mxu0 %v688
        %2299 = vmatprep.subr.mxu0 %v696
        %2300 = vmatpush1.msra.mxu0 %v695
        %2301 = vmatprep.subr.mxu0 %v703
        %2302 = vmatpush1.msra.mxu0 %v702
        %2303 = vmatprep.subr.mxu0 %v710
        %2304 = vmatpush1.msra.mxu0 %v709
        %2305 = vmatprep.subr.mxu0 %v717
        %2306 = vmatpush1.msra.mxu0 %v716
        %2307 = vmatprep.subr.mxu0 %v724
        %2308 = vmatpush1.msra.mxu0 %v723
        %2309 = vmatprep.subr.mxu0 %v731
        %2310 = vmatpush1.msra.mxu0 %v730
        %2311 = vmatprep.subr.mxu0 %v738
        %2312 = vmatpush1.msra.mxu0 %v737
        %2313 = vmatprep.subr.mxu0 %v745
        %2314 = vmatpush1.msra.mxu0 %v744
        %2315 = vmatprep.subr.mxu0 %v752
        %2316 = vmatpush1.msra.mxu0 %v751
        %2317 = vmatprep.subr.mxu0 %v759
        %2318 = vmatpush1.msra.mxu0 %v758
        %2319 = vmatprep.subr.mxu0 %v766
        %2320 = vmatpush1.msra.mxu0 %v765
        %2321 = vmatprep.subr.mxu0 %v773
        %2322 = vmatpush1.msra.mxu0 %v772
        %2323 = vmatprep.subr.mxu0 %v780
        %2324 = vmatpush1.msra.mxu0 %v779
        %2325 = vmatprep.subr.mxu0 %v787
        %2326 = vmatpush1.msra.mxu0 %v786
        %2327 = vmatprep.subr.mxu0 %v794
        %2328 = vmatpush1.msra.mxu0 %v793
        %2329 = vmatprep.subr.mxu0 %v801
        %2330 = vmatpush1.msra.mxu0 %v800
        %2331 = vmatprep.subr.mxu0 %v808
        %2332 = vmatpush1.msra.mxu0 %v807
        %2333 = vmatprep.subr.mxu0 %v815
        %2334 = vmatpush1.msra.mxu0 %v814
        %2335 = vmatprep.subr.mxu0 %v822
        %2336 = vmatpush1.msra.mxu0 %v821
        %2337 = vmatprep.subr.mxu0 %v829
        %2338 = vmatpush1.msra.mxu0 %v828
        %2339 = vmatprep.subr.mxu0 %v836
        %2340 = vmatpush1.msra.mxu0 %v835
        %2341 = vmatprep.subr.mxu0 %v843
        %2342 = vmatpush1.msra.mxu0 %v842
        %2343 = vmatprep.subr.mxu0 %v850
        %2344 = vmatpush1.msra.mxu0 %v849
        %2345 = vmatprep.subr.mxu0 %v857
        %2346 = vmatpush1.msra.mxu0 %v856
        %2347 = vmatprep.subr.mxu0 %v864
        %2348 = vmatpush1.msra.mxu0 %v863
        %2349 = vmatprep.mubr.f32.mxu0 %v409
        %2350 = vmatmul.mubr.f32.gmra.mrb[0].mxu0 %v408
        %v2351 = vpop.f32.mrb[0].mxu0
        %v2352 = vadd.f32 %v2281, %v2351
        %v2353 = vpop.f32.mrb[0].mxu0
        %v2354 = vadd.f32 %v2283, %v2353
        %2355 = vdwg.mxu0
        %2356 = vmatprep.subr.mxu0 %v871
        %2357 = vmatpush1.msra.mxu0 %v870
        %2358 = vmatprep.subr.mxu0 %v878
        %2359 = vmatpush1.msra.mxu0 %v877
        %2360 = vmatprep.subr.mxu0 %v885
        %2361 = vmatpush1.msra.mxu0 %v884
        %2362 = vmatprep.subr.mxu0 %v892
        %2363 = vmatpush1.msra.mxu0 %v891
        %2364 = vmatprep.subr.mxu0 %v899
        %2365 = vmatpush1.msra.mxu0 %v898
        %2366 = vmatprep.subr.mxu0 %v906
        %2367 = vmatpush1.msra.mxu0 %v905
        %2368 = vmatprep.subr.mxu0 %v913
        %2369 = vmatpush1.msra.mxu0 %v912
        %2370 = vmatprep.subr.mxu0 %v920
        %2371 = vmatpush1.msra.mxu0 %v919
        %2372 = vmatprep.subr.mxu0 %v927
        %2373 = vmatpush1.msra.mxu0 %v926
        %2374 = vmatprep.subr.mxu0 %v934
        %2375 = vmatpush1.msra.mxu0 %v933
        %2376 = vmatprep.subr.mxu0 %v941
        %2377 = vmatpush1.msra.mxu0 %v940
        %2378 = vmatprep.subr.mxu0 %v948
        %2379 = vmatpush1.msra.mxu0 %v947
        %2380 = vmatprep.subr.mxu0 %v955
        %2381 = vmatpush1.msra.mxu0 %v954
        %2382 = vmatprep.subr.mxu0 %v962
        %2383 = vmatpush1.msra.mxu0 %v961
        %2384 = vmatprep.subr.mxu0 %v969
        %2385 = vmatpush1.msra.mxu0 %v968
        %2386 = vmatprep.subr.mxu0 %v976
        %2387 = vmatpush1.msra.mxu0 %v975
        %2388 = vmatprep.subr.mxu0 %v983
        %2389 = vmatpush1.msra.mxu0 %v982
        %2390 = vmatprep.subr.mxu0 %v990
        %2391 = vmatpush1.msra.mxu0 %v989
        %2392 = vmatprep.subr.mxu0 %v997
        %2393 = vmatpush1.msra.mxu0 %v996
        %2394 = vmatprep.subr.mxu0 %v1004
        %2395 = vmatpush1.msra.mxu0 %v1003
        %2396 = vmatprep.subr.mxu0 %v1011
        %2397 = vmatpush1.msra.mxu0 %v1010
        %2398 = vmatprep.subr.mxu0 %v1018
        %2399 = vmatpush1.msra.mxu0 %v1017
        %2400 = vmatprep.subr.mxu0 %v1025
        %2401 = vmatpush1.msra.mxu0 %v1024
        %2402 = vmatprep.subr.mxu0 %v1032
        %2403 = vmatpush1.msra.mxu0 %v1031
        %2404 = vmatprep.subr.mxu0 %v1039
        %2405 = vmatpush1.msra.mxu0 %v1038
        %2406 = vmatprep.subr.mxu0 %v1046
        %2407 = vmatpush1.msra.mxu0 %v1045
        %2408 = vmatprep.subr.mxu0 %v1053
        %2409 = vmatpush1.msra.mxu0 %v1052
        %2410 = vmatprep.subr.mxu0 %v1060
        %2411 = vmatpush1.msra.mxu0 %v1059
        %2412 = vmatprep.subr.mxu0 %v1067
        %2413 = vmatpush1.msra.mxu0 %v1066
        %2414 = vmatprep.subr.mxu0 %v1074
        %2415 = vmatpush1.msra.mxu0 %v1073
        %2416 = vmatprep.subr.mxu0 %v1081
        %2417 = vmatpush1.msra.mxu0 %v1080
        %2418 = vmatprep.subr.mxu0 %v1088
        %2419 = vmatpush1.msra.mxu0 %v1087
        %2420 = vmatprep.mubr.f32.mxu0 %v411
        %2421 = vmatmul.mubr.f32.gmra.mrb[0].mxu0 %v410
        %v2422 = vpop.f32.mrb[0].mxu0
        %v2423 = vadd.f32 %v2352, %v2422
        %v2424 = vpop.f32.mrb[0].mxu0
        %v2425 = vadd.f32 %v2354, %v2424
        %2426 = vdwg.mxu0
        %2427 = vmatprep.subr.mxu0 %v1095
        %2428 = vmatpush1.msra.mxu0 %v1094
        %2429 = vmatprep.subr.mxu0 %v1102
        %2430 = vmatpush1.msra.mxu0 %v1101
        %2431 = vmatprep.subr.mxu0 %v1109
        %2432 = vmatpush1.msra.mxu0 %v1108
        %2433 = vmatprep.subr.mxu0 %v1116
        %2434 = vmatpush1.msra.mxu0 %v1115
        %2435 = vmatprep.subr.mxu0 %v1123
        %2436 = vmatpush1.msra.mxu0 %v1122
        %2437 = vmatprep.subr.mxu0 %v1130
        %2438 = vmatpush1.msra.mxu0 %v1129
        %2439 = vmatprep.subr.mxu0 %v1137
        %2440 = vmatpush1.msra.mxu0 %v1136
        %2441 = vmatprep.subr.mxu0 %v1144
        %2442 = vmatpush1.msra.mxu0 %v1143
        %2443 = vmatprep.subr.mxu0 %v1151
        %2444 = vmatpush1.msra.mxu0 %v1150
        %2445 = vmatprep.subr.mxu0 %v1158
        %2446 = vmatpush1.msra.mxu0 %v1157
        %2447 = vmatprep.subr.mxu0 %v1165
        %2448 = vmatpush1.msra.mxu0 %v1164
        %2449 = vmatprep.subr.mxu0 %v1172
        %2450 = vmatpush1.msra.mxu0 %v1171
        %2451 = vmatprep.subr.mxu0 %v1179
        %2452 = vmatpush1.msra.mxu0 %v1178
        %2453 = vmatprep.subr.mxu0 %v1186
        %2454 = vmatpush1.msra.mxu0 %v1185
        %2455 = vmatprep.subr.mxu0 %v1193
        %2456 = vmatpush1.msra.mxu0 %v1192
        %2457 = vmatprep.subr.mxu0 %v1200
        %2458 = vmatpush1.msra.mxu0 %v1199
        %2459 = vmatprep.subr.mxu0 %v1207
        %2460 = vmatpush1.msra.mxu0 %v1206
        %2461 = vmatprep.subr.mxu0 %v1214
        %2462 = vmatpush1.msra.mxu0 %v1213
        %2463 = vmatprep.subr.mxu0 %v1221
        %2464 = vmatpush1.msra.mxu0 %v1220
        %2465 = vmatprep.subr.mxu0 %v1228
        %2466 = vmatpush1.msra.mxu0 %v1227
        %2467 = vmatprep.subr.mxu0 %v1235
        %2468 = vmatpush1.msra.mxu0 %v1234
        %2469 = vmatprep.subr.mxu0 %v1242
        %2470 = vmatpush1.msra.mxu0 %v1241
        %2471 = vmatprep.subr.mxu0 %v1249
        %2472 = vmatpush1.msra.mxu0 %v1248
        %2473 = vmatprep.subr.mxu0 %v1256
        %2474 = vmatpush1.msra.mxu0 %v1255
        %2475 = vmatprep.subr.mxu0 %v1263
        %2476 = vmatpush1.msra.mxu0 %v1262
        %2477 = vmatprep.subr.mxu0 %v1270
        %2478 = vmatpush1.msra.mxu0 %v1269
        %2479 = vmatprep.subr.mxu0 %v1277
        %2480 = vmatpush1.msra.mxu0 %v1276
        %2481 = vmatprep.subr.mxu0 %v1284
        %2482 = vmatpush1.msra.mxu0 %v1283
        %2483 = vmatprep.subr.mxu0 %v1291
        %2484 = vmatpush1.msra.mxu0 %v1290
        %2485 = vmatprep.subr.mxu0 %v1298
        %2486 = vmatpush1.msra.mxu0 %v1297
        %2487 = vmatprep.subr.mxu0 %v1305
        %2488 = vmatpush1.msra.mxu0 %v1304
        %2489 = vmatprep.subr.mxu0 %v1312
        %2490 = vmatpush1.msra.mxu0 %v1311
        %2491 = vmatprep.mubr.f32.mxu0 %v413
        %2492 = vmatmul.mubr.f32.gmra.mrb[0].mxu0 %v412
        %v2493 = vpop.f32.mrb[0].mxu0
        %v2494 = vadd.f32 %v2423, %v2493
        %v2495 = vpop.f32.mrb[0].mxu0
        %v2496 = vadd.f32 %v2425, %v2495
        %2497 = vdwg.mxu0
        %2498 = vmatprep.subr.mxu0 %v1319
        %2499 = vmatpush1.msra.mxu0 %v1318
        %2500 = vmatprep.subr.mxu0 %v1326
        %2501 = vmatpush1.msra.mxu0 %v1325
        %2502 = vmatprep.subr.mxu0 %v1333
        %2503 = vmatpush1.msra.mxu0 %v1332
        %2504 = vmatprep.subr.mxu0 %v1340
        %2505 = vmatpush1.msra.mxu0 %v1339
        %2506 = vmatprep.subr.mxu0 %v1347
        %2507 = vmatpush1.msra.mxu0 %v1346
        %2508 = vmatprep.subr.mxu0 %v1354
        %2509 = vmatpush1.msra.mxu0 %v1353
        %2510 = vmatprep.subr.mxu0 %v1361
        %2511 = vmatpush1.msra.mxu0 %v1360
        %2512 = vmatprep.subr.mxu0 %v1368
        %2513 = vmatpush1.msra.mxu0 %v1367
        %2514 = vmatprep.subr.mxu0 %v1375
        %2515 = vmatpush1.msra.mxu0 %v1374
        %2516 = vmatprep.subr.mxu0 %v1382
        %2517 = vmatpush1.msra.mxu0 %v1381
        %2518 = vmatprep.subr.mxu0 %v1389
        %2519 = vmatpush1.msra.mxu0 %v1388
        %2520 = vmatprep.subr.mxu0 %v1396
        %2521 = vmatpush1.msra.mxu0 %v1395
        %2522 = vmatprep.subr.mxu0 %v1403
        %2523 = vmatpush1.msra.mxu0 %v1402
        %2524 = vmatprep.subr.mxu0 %v1410
        %2525 = vmatpush1.msra.mxu0 %v1409
        %2526 = vmatprep.subr.mxu0 %v1417
        %2527 = vmatpush1.msra.mxu0 %v1416
        %2528 = vmatprep.subr.mxu0 %v1424
        %2529 = vmatpush1.msra.mxu0 %v1423
        %2530 = vmatprep.subr.mxu0 %v1431
        %2531 = vmatpush1.msra.mxu0 %v1430
        %2532 = vmatprep.subr.mxu0 %v1438
        %2533 = vmatpush1.msra.mxu0 %v1437
        %2534 = vmatprep.subr.mxu0 %v1445
        %2535 = vmatpush1.msra.mxu0 %v1444
        %2536 = vmatprep.subr.mxu0 %v1452
        %2537 = vmatpush1.msra.mxu0 %v1451
        %2538 = vmatprep.subr.mxu0 %v1459
        %2539 = vmatpush1.msra.mxu0 %v1458
        %2540 = vmatprep.subr.mxu0 %v1466
        %2541 = vmatpush1.msra.mxu0 %v1465
        %2542 = vmatprep.subr.mxu0 %v1473
        %2543 = vmatpush1.msra.mxu0 %v1472
        %2544 = vmatprep.subr.mxu0 %v1480
        %2545 = vmatpush1.msra.mxu0 %v1479
        %2546 = vmatprep.subr.mxu0 %v1487
        %2547 = vmatpush1.msra.mxu0 %v1486
        %2548 = vmatprep.subr.mxu0 %v1494
        %2549 = vmatpush1.msra.mxu0 %v1493
        %2550 = vmatprep.subr.mxu0 %v1501
        %2551 = vmatpush1.msra.mxu0 %v1500
        %2552 = vmatprep.subr.mxu0 %v1508
        %2553 = vmatpush1.msra.mxu0 %v1507
        %2554 = vmatprep.subr.mxu0 %v1515
        %2555 = vmatpush1.msra.mxu0 %v1514
        %2556 = vmatprep.subr.mxu0 %v1522
        %2557 = vmatpush1.msra.mxu0 %v1521
        %2558 = vmatprep.subr.mxu0 %v1529
        %2559 = vmatpush1.msra.mxu0 %v1528
        %2560 = vmatprep.subr.mxu0 %v1536
        %2561 = vmatpush1.msra.mxu0 %v1535
        %2562 = vmatprep.mubr.f32.mxu0 %v415
        %2563 = vmatmul.mubr.f32.gmra.mrb[0].mxu0 %v414
        %v2564 = vpop.f32.mrb[0].mxu0
        %v2565 = vadd.f32 %v2494, %v2564
        %v2566 = vpop.f32.mrb[0].mxu0
        %v2567 = vadd.f32 %v2496, %v2566
        %2568 = vdwg.mxu0
        %2569 = vmatprep.subr.mxu0 %v1543
        %2570 = vmatpush1.msra.mxu0 %v1542
        %2571 = vmatprep.subr.mxu0 %v1550
        %2572 = vmatpush1.msra.mxu0 %v1549
        %2573 = vmatprep.subr.mxu0 %v1557
        %2574 = vmatpush1.msra.mxu0 %v1556
        %2575 = vmatprep.subr.mxu0 %v1564
        %2576 = vmatpush1.msra.mxu0 %v1563
        %2577 = vmatprep.subr.mxu0 %v1571
        %2578 = vmatpush1.msra.mxu0 %v1570
        %2579 = vmatprep.subr.mxu0 %v1578
        %2580 = vmatpush1.msra.mxu0 %v1577
        %2581 = vmatprep.subr.mxu0 %v1585
        %2582 = vmatpush1.msra.mxu0 %v1584
        %2583 = vmatprep.subr.mxu0 %v1592
        %2584 = vmatpush1.msra.mxu0 %v1591
        %2585 = vmatprep.subr.mxu0 %v1599
        %2586 = vmatpush1.msra.mxu0 %v1598
        %2587 = vmatprep.subr.mxu0 %v1606
        %2588 = vmatpush1.msra.mxu0 %v1605
        %2589 = vmatprep.subr.mxu0 %v1613
        %2590 = vmatpush1.msra.mxu0 %v1612
        %2591 = vmatprep.subr.mxu0 %v1620
        %2592 = vmatpush1.msra.mxu0 %v1619
        %2593 = vmatprep.subr.mxu0 %v1627
        %2594 = vmatpush1.msra.mxu0 %v1626
        %2595 = vmatprep.subr.mxu0 %v1634
        %2596 = vmatpush1.msra.mxu0 %v1633
        %2597 = vmatprep.subr.mxu0 %v1641
        %2598 = vmatpush1.msra.mxu0 %v1640
        %2599 = vmatprep.subr.mxu0 %v1648
        %2600 = vmatpush1.msra.mxu0 %v1647
        %2601 = vmatprep.subr.mxu0 %v1655
        %2602 = vmatpush1.msra.mxu0 %v1654
        %2603 = vmatprep.subr.mxu0 %v1662
        %2604 = vmatpush1.msra.mxu0 %v1661
        %2605 = vmatprep.subr.mxu0 %v1669
        %2606 = vmatpush1.msra.mxu0 %v1668
        %2607 = vmatprep.subr.mxu0 %v1676
        %2608 = vmatpush1.msra.mxu0 %v1675
        %2609 = vmatprep.subr.mxu0 %v1683
        %2610 = vmatpush1.msra.mxu0 %v1682
        %2611 = vmatprep.subr.mxu0 %v1690
        %2612 = vmatpush1.msra.mxu0 %v1689
        %2613 = vmatprep.subr.mxu0 %v1697
        %2614 = vmatpush1.msra.mxu0 %v1696
        %2615 = vmatprep.subr.mxu0 %v1704
        %2616 = vmatpush1.msra.mxu0 %v1703
        %2617 = vmatprep.subr.mxu0 %v1711
        %2618 = vmatpush1.msra.mxu0 %v1710
        %2619 = vmatprep.subr.mxu0 %v1718
        %2620 = vmatpush1.msra.mxu0 %v1717
        %2621 = vmatprep.subr.mxu0 %v1725
        %2622 = vmatpush1.msra.mxu0 %v1724
        %2623 = vmatprep.subr.mxu0 %v1732
        %2624 = vmatpush1.msra.mxu0 %v1731
        %2625 = vmatprep.subr.mxu0 %v1739
        %2626 = vmatpush1.msra.mxu0 %v1738
        %2627 = vmatprep.subr.mxu0 %v1746
        %2628 = vmatpush1.msra.mxu0 %v1745
        %2629 = vmatprep.subr.mxu0 %v1753
        %2630 = vmatpush1.msra.mxu0 %v1752
        %2631 = vmatprep.subr.mxu0 %v1760
        %2632 = vmatpush1.msra.mxu0 %v1759
        %2633 = vmatprep.mubr.f32.mxu0 %v417
        %2634 = vmatmul.mubr.f32.gmra.mrb[0].mxu0 %v416
        %v2635 = vpop.f32.mrb[0].mxu0
        %v2636 = vadd.f32 %v2565, %v2635
        %v2637 = vpop.f32.mrb[0].mxu0
        %v2638 = vadd.f32 %v2567, %v2637
        %2639 = vdwg.mxu0
        %2640 = vmatprep.subr.mxu0 %v1767
        %2641 = vmatpush1.msra.mxu0 %v1766
        %2642 = vmatprep.subr.mxu0 %v1774
        %2643 = vmatpush1.msra.mxu0 %v1773
        %2644 = vmatprep.subr.mxu0 %v1781
        %2645 = vmatpush1.msra.mxu0 %v1780
        %2646 = vmatprep.subr.mxu0 %v1788
        %2647 = vmatpush1.msra.mxu0 %v1787
        %2648 = vmatprep.subr.mxu0 %v1795
        %2649 = vmatpush1.msra.mxu0 %v1794
        %2650 = vmatprep.subr.mxu0 %v1802
        %2651 = vmatpush1.msra.mxu0 %v1801
        %2652 = vmatprep.subr.mxu0 %v1809
        %2653 = vmatpush1.msra.mxu0 %v1808
        %2654 = vmatprep.subr.mxu0 %v1816
        %2655 = vmatpush1.msra.mxu0 %v1815
        %2656 = vmatprep.subr.mxu0 %v1823
        %2657 = vmatpush1.msra.mxu0 %v1822
        %2658 = vmatprep.subr.mxu0 %v1830
        %2659 = vmatpush1.msra.mxu0 %v1829
        %2660 = vmatprep.subr.mxu0 %v1837
        %2661 = vmatpush1.msra.mxu0 %v1836
        %2662 = vmatprep.subr.mxu0 %v1844
        %2663 = vmatpush1.msra.mxu0 %v1843
        %2664 = vmatprep.subr.mxu0 %v1851
        %2665 = vmatpush1.msra.mxu0 %v1850
        %2666 = vmatprep.subr.mxu0 %v1858
        %2667 = vmatpush1.msra.mxu0 %v1857
        %2668 = vmatprep.subr.mxu0 %v1865
        %2669 = vmatpush1.msra.mxu0 %v1864
        %2670 = vmatprep.subr.mxu0 %v1872
        %2671 = vmatpush1.msra.mxu0 %v1871
        %2672 = vmatprep.subr.mxu0 %v1879
        %2673 = vmatpush1.msra.mxu0 %v1878
        %2674 = vmatprep.subr.mxu0 %v1886
        %2675 = vmatpush1.msra.mxu0 %v1885
        %2676 = vmatprep.subr.mxu0 %v1893
        %2677 = vmatpush1.msra.mxu0 %v1892
        %2678 = vmatprep.subr.mxu0 %v1900
        %2679 = vmatpush1.msra.mxu0 %v1899
        %2680 = vmatprep.subr.mxu0 %v1907
        %2681 = vmatpush1.msra.mxu0 %v1906
        %2682 = vmatprep.subr.mxu0 %v1914
        %2683 = vmatpush1.msra.mxu0 %v1913
        %2684 = vmatprep.subr.mxu0 %v1921
        %2685 = vmatpush1.msra.mxu0 %v1920
        %2686 = vmatprep.subr.mxu0 %v1928
        %2687 = vmatpush1.msra.mxu0 %v1927
        %2688 = vmatprep.subr.mxu0 %v1935
        %2689 = vmatpush1.msra.mxu0 %v1934
        %2690 = vmatprep.subr.mxu0 %v1942
        %2691 = vmatpush1.msra.mxu0 %v1941
        %2692 = vmatprep.subr.mxu0 %v1949
        %2693 = vmatpush1.msra.mxu0 %v1948
        %2694 = vmatprep.subr.mxu0 %v1956
        %2695 = vmatpush1.msra.mxu0 %v1955
        %2696 = vmatprep.subr.mxu0 %v1963
        %2697 = vmatpush1.msra.mxu0 %v1962
        %2698 = vmatprep.subr.mxu0 %v1970
        %2699 = vmatpush1.msra.mxu0 %v1969
        %2700 = vmatprep.subr.mxu0 %v1977
        %2701 = vmatpush1.msra.mxu0 %v1976
        %2702 = vmatprep.subr.mxu0 %v1984
        %2703 = vmatpush1.msra.mxu0 %v1983
        %2704 = vmatprep.mubr.f32.mxu0 %v419
        %2705 = vmatmul.mubr.f32.gmra.mrb[0].mxu0 %v418
        %v2706 = vpop.f32.mrb[0].mxu0
        %v2707 = vadd.f32 %v2636, %v2706
        %v2708 = vpop.f32.mrb[0].mxu0
        %v2709 = vadd.f32 %v2638, %v2708
        %2710 = vdwg.mxu0
        %2711 = vmatprep.subr.mxu0 %v1991
        %2712 = vmatpush1.msra.mxu0 %v1990
        %2713 = vmatprep.subr.mxu0 %v1998
        %2714 = vmatpush1.msra.mxu0 %v1997
        %2715 = vmatprep.subr.mxu0 %v2005
        %2716 = vmatpush1.msra.mxu0 %v2004
        %2717 = vmatprep.subr.mxu0 %v2012
        %2718 = vmatpush1.msra.mxu0 %v2011
        %2719 = vmatprep.subr.mxu0 %v2019
        %2720 = vmatpush1.msra.mxu0 %v2018
        %2721 = vmatprep.subr.mxu0 %v2026
        %2722 = vmatpush1.msra.mxu0 %v2025
        %2723 = vmatprep.subr.mxu0 %v2033
        %2724 = vmatpush1.msra.mxu0 %v2032
        %2725 = vmatprep.subr.mxu0 %v2040
        %2726 = vmatpush1.msra.mxu0 %v2039
        %2727 = vmatprep.subr.mxu0 %v2047
        %2728 = vmatpush1.msra.mxu0 %v2046
        %2729 = vmatprep.subr.mxu0 %v2054
        %2730 = vmatpush1.msra.mxu0 %v2053
        %2731 = vmatprep.subr.mxu0 %v2061
        %2732 = vmatpush1.msra.mxu0 %v2060
        %2733 = vmatprep.subr.mxu0 %v2068
        %2734 = vmatpush1.msra.mxu0 %v2067
        %2735 = vmatprep.subr.mxu0 %v2075
        %2736 = vmatpush1.msra.mxu0 %v2074
        %2737 = vmatprep.subr.mxu0 %v2082
        %2738 = vmatpush1.msra.mxu0 %v2081
        %2739 = vmatprep.subr.mxu0 %v2089
        %2740 = vmatpush1.msra.mxu0 %v2088
        %2741 = vmatprep.subr.mxu0 %v2096
        %2742 = vmatpush1.msra.mxu0 %v2095
        %2743 = vmatprep.subr.mxu0 %v2103
        %2744 = vmatpush1.msra.mxu0 %v2102
        %2745 = vmatprep.subr.mxu0 %v2110
        %2746 = vmatpush1.msra.mxu0 %v2109
        %2747 = vmatprep.subr.mxu0 %v2117
        %2748 = vmatpush1.msra.mxu0 %v2116
        %2749 = vmatprep.subr.mxu0 %v2124
        %2750 = vmatpush1.msra.mxu0 %v2123
        %2751 = vmatprep.subr.mxu0 %v2131
        %2752 = vmatpush1.msra.mxu0 %v2130
        %2753 = vmatprep.subr.mxu0 %v2138
        %2754 = vmatpush1.msra.mxu0 %v2137
        %2755 = vmatprep.subr.mxu0 %v2145
        %2756 = vmatpush1.msra.mxu0 %v2144
        %2757 = vmatprep.subr.mxu0 %v2152
        %2758 = vmatpush1.msra.mxu0 %v2151
        %2759 = vmatprep.subr.mxu0 %v2159
        %2760 = vmatpush1.msra.mxu0 %v2158
        %2761 = vmatprep.subr.mxu0 %v2166
        %2762 = vmatpush1.msra.mxu0 %v2165
        %2763 = vmatprep.subr.mxu0 %v2173
        %2764 = vmatpush1.msra.mxu0 %v2172
        %2765 = vmatprep.subr.mxu0 %v2180
        %2766 = vmatpush1.msra.mxu0 %v2179
        %2767 = vmatprep.subr.mxu0 %v2187
        %2768 = vmatpush1.msra.mxu0 %v2186
        %2769 = vmatprep.subr.mxu0 %v2194
        %2770 = vmatpush1.msra.mxu0 %v2193
        %2771 = vmatprep.subr.mxu0 %v2201
        %2772 = vmatpush1.msra.mxu0 %v2200
        %2773 = vmatprep.subr.mxu0 %v2208
        %2774 = vmatpush1.msra.mxu0 %v2207
        %2775 = vmatprep.mubr.f32.mxu0 %v421
        %2776 = vmatmul.mubr.f32.gmra.mrb[0].mxu0 %v420
        %v2777 = vpop.f32.mrb[0].mxu0
        %v2778 = vadd.f32 %v2707, %v2777
        %v2779 = vpop.f32.mrb[0].mxu0
        %v2780 = vadd.f32 %v2709, %v2779
        %2781 = vdwg.mxu0
        %2782 = vmatprep.subr.mxu0 %v425
        %2783 = vmatpush1.msra.mxu0 %v424
        %2784 = vmatprep.subr.mxu0 %v432
        %2785 = vmatpush1.msra.mxu0 %v431
        %2786 = vmatprep.subr.mxu0 %v439
        %2787 = vmatpush1.msra.mxu0 %v438
        %2788 = vmatprep.subr.mxu0 %v446
        %2789 = vmatpush1.msra.mxu0 %v445
        %2790 = vmatprep.subr.mxu0 %v453
        %2791 = vmatpush1.msra.mxu0 %v452
        %2792 = vmatprep.subr.mxu0 %v460
        %2793 = vmatpush1.msra.mxu0 %v459
        %2794 = vmatprep.subr.mxu0 %v467
        %2795 = vmatpush1.msra.mxu0 %v466
        %2796 = vmatprep.subr.mxu0 %v474
        %2797 = vmatpush1.msra.mxu0 %v473
        %2798 = vmatprep.subr.mxu0 %v481
        %2799 = vmatpush1.msra.mxu0 %v480
        %2800 = vmatprep.subr.mxu0 %v488
        %2801 = vmatpush1.msra.mxu0 %v487
        %2802 = vmatprep.subr.mxu0 %v495
        %2803 = vmatpush1.msra.mxu0 %v494
        %2804 = vmatprep.subr.mxu0 %v502
        %2805 = vmatpush1.msra.mxu0 %v501
        %2806 = vmatprep.subr.mxu0 %v509
        %2807 = vmatpush1.msra.mxu0 %v508
        %2808 = vmatprep.subr.mxu0 %v516
        %2809 = vmatpush1.msra.mxu0 %v515
        %2810 = vmatprep.subr.mxu0 %v523
        %2811 = vmatpush1.msra.mxu0 %v522
        %2812 = vmatprep.subr.mxu0 %v530
        %2813 = vmatpush1.msra.mxu0 %v529
        %2814 = vmatprep.subr.mxu0 %v537
        %2815 = vmatpush1.msra.mxu0 %v536
        %2816 = vmatprep.subr.mxu0 %v544
        %2817 = vmatpush1.msra.mxu0 %v543
        %2818 = vmatprep.subr.mxu0 %v551
        %2819 = vmatpush1.msra.mxu0 %v550
        %2820 = vmatprep.subr.mxu0 %v558
        %2821 = vmatpush1.msra.mxu0 %v557
        %2822 = vmatprep.subr.mxu0 %v565
        %2823 = vmatpush1.msra.mxu0 %v564
        %2824 = vmatprep.subr.mxu0 %v572
        %2825 = vmatpush1.msra.mxu0 %v571
        %2826 = vmatprep.subr.mxu0 %v579
        %2827 = vmatpush1.msra.mxu0 %v578
        %2828 = vmatprep.subr.mxu0 %v586
        %2829 = vmatpush1.msra.mxu0 %v585
        %2830 = vmatprep.subr.mxu0 %v593
        %2831 = vmatpush1.msra.mxu0 %v592
        %2832 = vmatprep.subr.mxu0 %v600
        %2833 = vmatpush1.msra.mxu0 %v599
        %2834 = vmatprep.subr.mxu0 %v607
        %2835 = vmatpush1.msra.mxu0 %v606
        %2836 = vmatprep.subr.mxu0 %v614
        %2837 = vmatpush1.msra.mxu0 %v613
        %2838 = vmatprep.subr.mxu0 %v621
        %2839 = vmatpush1.msra.mxu0 %v620
        %2840 = vmatprep.subr.mxu0 %v628
        %2841 = vmatpush1.msra.mxu0 %v627
        %2842 = vmatprep.subr.mxu0 %v635
        %2843 = vmatpush1.msra.mxu0 %v634
        %2844 = vmatprep.subr.mxu0 %v642
        %2845 = vmatpush1.msra.mxu0 %v641
        %2846 = vmatprep.mubr.f32.mxu0 %v407
        %2847 = vmatmul.mubr.f32.gmra.mrb[0].mxu0 %v406
        %v2848 = vpop.f32.mrb[0].mxu0
        %v2849 = vadd.f32 0.0, %v2848
        %v2850 = vpop.f32.mrb[0].mxu0
        %v2851 = vadd.f32 0.0, %v2850
        %2852 = vdwg.mxu0
        %2853 = vmatprep.subr.mxu0 %v649
        %2854 = vmatpush1.msra.mxu0 %v648
        %2855 = vmatprep.subr.mxu0 %v656
        %2856 = vmatpush1.msra.mxu0 %v655
        %2857 = vmatprep.subr.mxu0 %v663
        %2858 = vmatpush1.msra.mxu0 %v662
        %2859 = vmatprep.subr.mxu0 %v670
        %2860 = vmatpush1.msra.mxu0 %v669
        %2861 = vmatprep.subr.mxu0 %v677
        %2862 = vmatpush1.msra.mxu0 %v676
        %2863 = vmatprep.subr.mxu0 %v684
        %2864 = vmatpush1.msra.mxu0 %v683
        %2865 = vmatprep.subr.mxu0 %v691
        %2866 = vmatpush1.msra.mxu0 %v690
        %2867 = vmatprep.subr.mxu0 %v698
        %2868 = vmatpush1.msra.mxu0 %v697
        %2869 = vmatprep.subr.mxu0 %v705
        %2870 = vmatpush1.msra.mxu0 %v704
        %2871 = vmatprep.subr.mxu0 %v712
        %2872 = vmatpush1.msra.mxu0 %v711
        %2873 = vmatprep.subr.mxu0 %v719
        %2874 = vmatpush1.msra.mxu0 %v718
        %2875 = vmatprep.subr.mxu0 %v726
        %2876 = vmatpush1.msra.mxu0 %v725
        %2877 = vmatprep.subr.mxu0 %v733
        %2878 = vmatpush1.msra.mxu0 %v732
        %2879 = vmatprep.subr.mxu0 %v740
        %2880 = vmatpush1.msra.mxu0 %v739
        %2881 = vmatprep.subr.mxu0 %v747
        %2882 = vmatpush1.msra.mxu0 %v746
        %2883 = vmatprep.subr.mxu0 %v754
        %2884 = vmatpush1.msra.mxu0 %v753
        %2885 = vmatprep.subr.mxu0 %v761
        %2886 = vmatpush1.msra.mxu0 %v760
        %2887 = vmatprep.subr.mxu0 %v768
        %2888 = vmatpush1.msra.mxu0 %v767
        %2889 = vmatprep.subr.mxu0 %v775
        %2890 = vmatpush1.msra.mxu0 %v774
        %2891 = vmatprep.subr.mxu0 %v782
        %2892 = vmatpush1.msra.mxu0 %v781
        %2893 = vmatprep.subr.mxu0 %v789
        %2894 = vmatpush1.msra.mxu0 %v788
        %2895 = vmatprep.subr.mxu0 %v796
        %2896 = vmatpush1.msra.mxu0 %v795
        %2897 = vmatprep.subr.mxu0 %v803
        %2898 = vmatpush1.msra.mxu0 %v802
        %2899 = vmatprep.subr.mxu0 %v810
        %2900 = vmatpush1.msra.mxu0 %v809
        %2901 = vmatprep.subr.mxu0 %v817
        %2902 = vmatpush1.msra.mxu0 %v816
        %2903 = vmatprep.subr.mxu0 %v824
        %2904 = vmatpush1.msra.mxu0 %v823
        %2905 = vmatprep.subr.mxu0 %v831
        %2906 = vmatpush1.msra.mxu0 %v830
        %2907 = vmatprep.subr.mxu0 %v838
        %2908 = vmatpush1.msra.mxu0 %v837
        %2909 = vmatprep.subr.mxu0 %v845
        %2910 = vmatpush1.msra.mxu0 %v844
        %2911 = vmatprep.subr.mxu0 %v852
        %2912 = vmatpush1.msra.mxu0 %v851
        %2913 = vmatprep.subr.mxu0 %v859
        %2914 = vmatpush1.msra.mxu0 %v858
        %2915 = vmatprep.subr.mxu0 %v866
        %2916 = vmatpush1.msra.mxu0 %v865
        %2917 = vmatprep.mubr.f32.mxu0 %v409
        %2918 = vmatmul.mubr.f32.gmra.mrb[0].mxu0 %v408
        %v2919 = vpop.f32.mrb[0].mxu0
        %v2920 = vadd.f32 %v2849, %v2919
        %v2921 = vpop.f32.mrb[0].mxu0
        %v2922 = vadd.f32 %v2851, %v2921
        %2923 = vdwg.mxu0
        %2924 = vmatprep.subr.mxu0 %v873
        %2925 = vmatpush1.msra.mxu0 %v872
        %2926 = vmatprep.subr.mxu0 %v880
        %2927 = vmatpush1.msra.mxu0 %v879
        %2928 = vmatprep.subr.mxu0 %v887
        %2929 = vmatpush1.msra.mxu0 %v886
        %2930 = vmatprep.subr.mxu0 %v894
        %2931 = vmatpush1.msra.mxu0 %v893
        %2932 = vmatprep.subr.mxu0 %v901
        %2933 = vmatpush1.msra.mxu0 %v900
        %2934 = vmatprep.subr.mxu0 %v908
        %2935 = vmatpush1.msra.mxu0 %v907
        %2936 = vmatprep.subr.mxu0 %v915
        %2937 = vmatpush1.msra.mxu0 %v914
        %2938 = vmatprep.subr.mxu0 %v922
        %2939 = vmatpush1.msra.mxu0 %v921
        %2940 = vmatprep.subr.mxu0 %v929
        %2941 = vmatpush1.msra.mxu0 %v928
        %2942 = vmatprep.subr.mxu0 %v936
        %2943 = vmatpush1.msra.mxu0 %v935
        %2944 = vmatprep.subr.mxu0 %v943
        %2945 = vmatpush1.msra.mxu0 %v942
        %2946 = vmatprep.subr.mxu0 %v950
        %2947 = vmatpush1.msra.mxu0 %v949
        %2948 = vmatprep.subr.mxu0 %v957
        %2949 = vmatpush1.msra.mxu0 %v956
        %2950 = vmatprep.subr.mxu0 %v964
        %2951 = vmatpush1.msra.mxu0 %v963
        %2952 = vmatprep.subr.mxu0 %v971
        %2953 = vmatpush1.msra.mxu0 %v970
        %2954 = vmatprep.subr.mxu0 %v978
        %2955 = vmatpush1.msra.mxu0 %v977
        %2956 = vmatprep.subr.mxu0 %v985
        %2957 = vmatpush1.msra.mxu0 %v984
        %2958 = vmatprep.subr.mxu0 %v992
        %2959 = vmatpush1.msra.mxu0 %v991
        %2960 = vmatprep.subr.mxu0 %v999
        %2961 = vmatpush1.msra.mxu0 %v998
        %2962 = vmatprep.subr.mxu0 %v1006
        %2963 = vmatpush1.msra.mxu0 %v1005
        %2964 = vmatprep.subr.mxu0 %v1013
        %2965 = vmatpush1.msra.mxu0 %v1012
        %2966 = vmatprep.subr.mxu0 %v1020
        %2967 = vmatpush1.msra.mxu0 %v1019
        %2968 = vmatprep.subr.mxu0 %v1027
        %2969 = vmatpush1.msra.mxu0 %v1026
        %2970 = vmatprep.subr.mxu0 %v1034
        %2971 = vmatpush1.msra.mxu0 %v1033
        %2972 = vmatprep.subr.mxu0 %v1041
        %2973 = vmatpush1.msra.mxu0 %v1040
        %2974 = vmatprep.subr.mxu0 %v1048
        %2975 = vmatpush1.msra.mxu0 %v1047
        %2976 = vmatprep.subr.mxu0 %v1055
        %2977 = vmatpush1.msra.mxu0 %v1054
        %2978 = vmatprep.subr.mxu0 %v1062
        %2979 = vmatpush1.msra.mxu0 %v1061
        %2980 = vmatprep.subr.mxu0 %v1069
        %2981 = vmatpush1.msra.mxu0 %v1068
        %2982 = vmatprep.subr.mxu0 %v1076
        %2983 = vmatpush1.msra.mxu0 %v1075
        %2984 = vmatprep.subr.mxu0 %v1083
        %2985 = vmatpush1.msra.mxu0 %v1082
        %2986 = vmatprep.subr.mxu0 %v1090
        %2987 = vmatpush1.msra.mxu0 %v1089
        %2988 = vmatprep.mubr.f32.mxu0 %v411
        %2989 = vmatmul.mubr.f32.gmra.mrb[0].mxu0 %v410
        %v2990 = vpop.f32.mrb[0].mxu0
        %v2991 = vadd.f32 %v2920, %v2990
        %v2992 = vpop.f32.mrb[0].mxu0
        %v2993 = vadd.f32 %v2922, %v2992
        %2994 = vdwg.mxu0
        %2995 = vmatprep.subr.mxu0 %v1097
        %2996 = vmatpush1.msra.mxu0 %v1096
        %2997 = vmatprep.subr.mxu0 %v1104
        %2998 = vmatpush1.msra.mxu0 %v1103
        %2999 = vmatprep.subr.mxu0 %v1111
        %3000 = vmatpush1.msra.mxu0 %v1110
        %3001 = vmatprep.subr.mxu0 %v1118
        %3002 = vmatpush1.msra.mxu0 %v1117
        %3003 = vmatprep.subr.mxu0 %v1125
        %3004 = vmatpush1.msra.mxu0 %v1124
        %3005 = vmatprep.subr.mxu0 %v1132
        %3006 = vmatpush1.msra.mxu0 %v1131
        %3007 = vmatprep.subr.mxu0 %v1139
        %3008 = vmatpush1.msra.mxu0 %v1138
        %3009 = vmatprep.subr.mxu0 %v1146
        %3010 = vmatpush1.msra.mxu0 %v1145
        %3011 = vmatprep.subr.mxu0 %v1153
        %3012 = vmatpush1.msra.mxu0 %v1152
        %3013 = vmatprep.subr.mxu0 %v1160
        %3014 = vmatpush1.msra.mxu0 %v1159
        %3015 = vmatprep.subr.mxu0 %v1167
        %3016 = vmatpush1.msra.mxu0 %v1166
        %3017 = vmatprep.subr.mxu0 %v1174
        %3018 = vmatpush1.msra.mxu0 %v1173
        %3019 = vmatprep.subr.mxu0 %v1181
        %3020 = vmatpush1.msra.mxu0 %v1180
        %3021 = vmatprep.subr.mxu0 %v1188
        %3022 = vmatpush1.msra.mxu0 %v1187
        %3023 = vmatprep.subr.mxu0 %v1195
        %3024 = vmatpush1.msra.mxu0 %v1194
        %3025 = vmatprep.subr.mxu0 %v1202
        %3026 = vmatpush1.msra.mxu0 %v1201
        %3027 = vmatprep.subr.mxu0 %v1209
        %3028 = vmatpush1.msra.mxu0 %v1208
        %3029 = vmatprep.subr.mxu0 %v1216
        %3030 = vmatpush1.msra.mxu0 %v1215
        %3031 = vmatprep.subr.mxu0 %v1223
        %3032 = vmatpush1.msra.mxu0 %v1222
        %3033 = vmatprep.subr.mxu0 %v1230
        %3034 = vmatpush1.msra.mxu0 %v1229
        %3035 = vmatprep.subr.mxu0 %v1237
        %3036 = vmatpush1.msra.mxu0 %v1236
        %3037 = vmatprep.subr.mxu0 %v1244
        %3038 = vmatpush1.msra.mxu0 %v1243
        %3039 = vmatprep.subr.mxu0 %v1251
        %3040 = vmatpush1.msra.mxu0 %v1250
        %3041 = vmatprep.subr.mxu0 %v1258
        %3042 = vmatpush1.msra.mxu0 %v1257
        %3043 = vmatprep.subr.mxu0 %v1265
        %3044 = vmatpush1.msra.mxu0 %v1264
        %3045 = vmatprep.subr.mxu0 %v1272
        %3046 = vmatpush1.msra.mxu0 %v1271
        %3047 = vmatprep.subr.mxu0 %v1279
        %3048 = vmatpush1.msra.mxu0 %v1278
        %3049 = vmatprep.subr.mxu0 %v1286
        %3050 = vmatpush1.msra.mxu0 %v1285
        %3051 = vmatprep.subr.mxu0 %v1293
        %3052 = vmatpush1.msra.mxu0 %v1292
        %3053 = vmatprep.subr.mxu0 %v1300
        %3054 = vmatpush1.msra.mxu0 %v1299
        %3055 = vmatprep.subr.mxu0 %v1307
        %3056 = vmatpush1.msra.mxu0 %v1306
        %3057 = vmatprep.subr.mxu0 %v1314
        %3058 = vmatpush1.msra.mxu0 %v1313
        %3059 = vmatprep.mubr.f32.mxu0 %v413
        %3060 = vmatmul.mubr.f32.gmra.mrb[0].mxu0 %v412
        %v3061 = vpop.f32.mrb[0].mxu0
        %v3062 = vadd.f32 %v2991, %v3061
        %v3063 = vpop.f32.mrb[0].mxu0
        %v3064 = vadd.f32 %v2993, %v3063
        %3065 = vdwg.mxu0
        %3066 = vmatprep.subr.mxu0 %v1321
        %3067 = vmatpush1.msra.mxu0 %v1320
        %3068 = vmatprep.subr.mxu0 %v1328
        %3069 = vmatpush1.msra.mxu0 %v1327
        %3070 = vmatprep.subr.mxu0 %v1335
        %3071 = vmatpush1.msra.mxu0 %v1334
        %3072 = vmatprep.subr.mxu0 %v1342
        %3073 = vmatpush1.msra.mxu0 %v1341
        %3074 = vmatprep.subr.mxu0 %v1349
        %3075 = vmatpush1.msra.mxu0 %v1348
        %3076 = vmatprep.subr.mxu0 %v1356
        %3077 = vmatpush1.msra.mxu0 %v1355
        %3078 = vmatprep.subr.mxu0 %v1363
        %3079 = vmatpush1.msra.mxu0 %v1362
        %3080 = vmatprep.subr.mxu0 %v1370
        %3081 = vmatpush1.msra.mxu0 %v1369
        %3082 = vmatprep.subr.mxu0 %v1377
        %3083 = vmatpush1.msra.mxu0 %v1376
        %3084 = vmatprep.subr.mxu0 %v1384
        %3085 = vmatpush1.msra.mxu0 %v1383
        %3086 = vmatprep.subr.mxu0 %v1391
        %3087 = vmatpush1.msra.mxu0 %v1390
        %3088 = vmatprep.subr.mxu0 %v1398
        %3089 = vmatpush1.msra.mxu0 %v1397
        %3090 = vmatprep.subr.mxu0 %v1405
        %3091 = vmatpush1.msra.mxu0 %v1404
        %3092 = vmatprep.subr.mxu0 %v1412
        %3093 = vmatpush1.msra.mxu0 %v1411
        %3094 = vmatprep.subr.mxu0 %v1419
        %3095 = vmatpush1.msra.mxu0 %v1418
        %3096 = vmatprep.subr.mxu0 %v1426
        %3097 = vmatpush1.msra.mxu0 %v1425
        %3098 = vmatprep.subr.mxu0 %v1433
        %3099 = vmatpush1.msra.mxu0 %v1432
        %3100 = vmatprep.subr.mxu0 %v1440
        %3101 = vmatpush1.msra.mxu0 %v1439
        %3102 = vmatprep.subr.mxu0 %v1447
        %3103 = vmatpush1.msra.mxu0 %v1446
        %3104 = vmatprep.subr.mxu0 %v1454
        %3105 = vmatpush1.msra.mxu0 %v1453
        %3106 = vmatprep.subr.mxu0 %v1461
        %3107 = vmatpush1.msra.mxu0 %v1460
        %3108 = vmatprep.subr.mxu0 %v1468
        %3109 = vmatpush1.msra.mxu0 %v1467
        %3110 = vmatprep.subr.mxu0 %v1475
        %3111 = vmatpush1.msra.mxu0 %v1474
        %3112 = vmatprep.subr.mxu0 %v1482
        %3113 = vmatpush1.msra.mxu0 %v1481
        %3114 = vmatprep.subr.mxu0 %v1489
        %3115 = vmatpush1.msra.mxu0 %v1488
        %3116 = vmatprep.subr.mxu0 %v1496
        %3117 = vmatpush1.msra.mxu0 %v1495
        %3118 = vmatprep.subr.mxu0 %v1503
        %3119 = vmatpush1.msra.mxu0 %v1502
        %3120 = vmatprep.subr.mxu0 %v1510
        %3121 = vmatpush1.msra.mxu0 %v1509
        %3122 = vmatprep.subr.mxu0 %v1517
        %3123 = vmatpush1.msra.mxu0 %v1516
        %3124 = vmatprep.subr.mxu0 %v1524
        %3125 = vmatpush1.msra.mxu0 %v1523
        %3126 = vmatprep.subr.mxu0 %v1531
        %3127 = vmatpush1.msra.mxu0 %v1530
        %3128 = vmatprep.subr.mxu0 %v1538
        %3129 = vmatpush1.msra.mxu0 %v1537
        %3130 = vmatprep.mubr.f32.mxu0 %v415
        %3131 = vmatmul.mubr.f32.gmra.mrb[0].mxu0 %v414
        %v3132 = vpop.f32.mrb[0].mxu0
        %v3133 = vadd.f32 %v3062, %v3132
        %v3134 = vpop.f32.mrb[0].mxu0
        %v3135 = vadd.f32 %v3064, %v3134
        %3136 = vdwg.mxu0
        %3137 = vmatprep.subr.mxu0 %v1545
        %3138 = vmatpush1.msra.mxu0 %v1544
        %3139 = vmatprep.subr.mxu0 %v1552
        %3140 = vmatpush1.msra.mxu0 %v1551
        %3141 = vmatprep.subr.mxu0 %v1559
        %3142 = vmatpush1.msra.mxu0 %v1558
        %3143 = vmatprep.subr.mxu0 %v1566
        %3144 = vmatpush1.msra.mxu0 %v1565
        %3145 = vmatprep.subr.mxu0 %v1573
        %3146 = vmatpush1.msra.mxu0 %v1572
        %3147 = vmatprep.subr.mxu0 %v1580
        %3148 = vmatpush1.msra.mxu0 %v1579
        %3149 = vmatprep.subr.mxu0 %v1587
        %3150 = vmatpush1.msra.mxu0 %v1586
        %3151 = vmatprep.subr.mxu0 %v1594
        %3152 = vmatpush1.msra.mxu0 %v1593
        %3153 = vmatprep.subr.mxu0 %v1601
        %3154 = vmatpush1.msra.mxu0 %v1600
        %3155 = vmatprep.subr.mxu0 %v1608
        %3156 = vmatpush1.msra.mxu0 %v1607
        %3157 = vmatprep.subr.mxu0 %v1615
        %3158 = vmatpush1.msra.mxu0 %v1614
        %3159 = vmatprep.subr.mxu0 %v1622
        %3160 = vmatpush1.msra.mxu0 %v1621
        %3161 = vmatprep.subr.mxu0 %v1629
        %3162 = vmatpush1.msra.mxu0 %v1628
        %3163 = vmatprep.subr.mxu0 %v1636
        %3164 = vmatpush1.msra.mxu0 %v1635
        %3165 = vmatprep.subr.mxu0 %v1643
        %3166 = vmatpush1.msra.mxu0 %v1642
        %3167 = vmatprep.subr.mxu0 %v1650
        %3168 = vmatpush1.msra.mxu0 %v1649
        %3169 = vmatprep.subr.mxu0 %v1657
        %3170 = vmatpush1.msra.mxu0 %v1656
        %3171 = vmatprep.subr.mxu0 %v1664
        %3172 = vmatpush1.msra.mxu0 %v1663
        %3173 = vmatprep.subr.mxu0 %v1671
        %3174 = vmatpush1.msra.mxu0 %v1670
        %3175 = vmatprep.subr.mxu0 %v1678
        %3176 = vmatpush1.msra.mxu0 %v1677
        %3177 = vmatprep.subr.mxu0 %v1685
        %3178 = vmatpush1.msra.mxu0 %v1684
        %3179 = vmatprep.subr.mxu0 %v1692
        %3180 = vmatpush1.msra.mxu0 %v1691
        %3181 = vmatprep.subr.mxu0 %v1699
        %3182 = vmatpush1.msra.mxu0 %v1698
        %3183 = vmatprep.subr.mxu0 %v1706
        %3184 = vmatpush1.msra.mxu0 %v1705
        %3185 = vmatprep.subr.mxu0 %v1713
        %3186 = vmatpush1.msra.mxu0 %v1712
        %3187 = vmatprep.subr.mxu0 %v1720
        %3188 = vmatpush1.msra.mxu0 %v1719
        %3189 = vmatprep.subr.mxu0 %v1727
        %3190 = vmatpush1.msra.mxu0 %v1726
        %3191 = vmatprep.subr.mxu0 %v1734
        %3192 = vmatpush1.msra.mxu0 %v1733
        %3193 = vmatprep.subr.mxu0 %v1741
        %3194 = vmatpush1.msra.mxu0 %v1740
        %3195 = vmatprep.subr.mxu0 %v1748
        %3196 = vmatpush1.msra.mxu0 %v1747
        %3197 = vmatprep.subr.mxu0 %v1755
        %3198 = vmatpush1.msra.mxu0 %v1754
        %3199 = vmatprep.subr.mxu0 %v1762
        %3200 = vmatpush1.msra.mxu0 %v1761
        %3201 = vmatprep.mubr.f32.mxu0 %v417
        %3202 = vmatmul.mubr.f32.gmra.mrb[0].mxu0 %v416
        %v3203 = vpop.f32.mrb[0].mxu0
        %v3204 = vadd.f32 %v3133, %v3203
        %v3205 = vpop.f32.mrb[0].mxu0
        %v3206 = vadd.f32 %v3135, %v3205
        %3207 = vdwg.mxu0
        %3208 = vmatprep.subr.mxu0 %v1769
        %3209 = vmatpush1.msra.mxu0 %v1768
        %3210 = vmatprep.subr.mxu0 %v1776
        %3211 = vmatpush1.msra.mxu0 %v1775
        %3212 = vmatprep.subr.mxu0 %v1783
        %3213 = vmatpush1.msra.mxu0 %v1782
        %3214 = vmatprep.subr.mxu0 %v1790
        %3215 = vmatpush1.msra.mxu0 %v1789
        %3216 = vmatprep.subr.mxu0 %v1797
        %3217 = vmatpush1.msra.mxu0 %v1796
        %3218 = vmatprep.subr.mxu0 %v1804
        %3219 = vmatpush1.msra.mxu0 %v1803
        %3220 = vmatprep.subr.mxu0 %v1811
        %3221 = vmatpush1.msra.mxu0 %v1810
        %3222 = vmatprep.subr.mxu0 %v1818
        %3223 = vmatpush1.msra.mxu0 %v1817
        %3224 = vmatprep.subr.mxu0 %v1825
        %3225 = vmatpush1.msra.mxu0 %v1824
        %3226 = vmatprep.subr.mxu0 %v1832
        %3227 = vmatpush1.msra.mxu0 %v1831
        %3228 = vmatprep.subr.mxu0 %v1839
        %3229 = vmatpush1.msra.mxu0 %v1838
        %3230 = vmatprep.subr.mxu0 %v1846
        %3231 = vmatpush1.msra.mxu0 %v1845
        %3232 = vmatprep.subr.mxu0 %v1853
        %3233 = vmatpush1.msra.mxu0 %v1852
        %3234 = vmatprep.subr.mxu0 %v1860
        %3235 = vmatpush1.msra.mxu0 %v1859
        %3236 = vmatprep.subr.mxu0 %v1867
        %3237 = vmatpush1.msra.mxu0 %v1866
        %3238 = vmatprep.subr.mxu0 %v1874
        %3239 = vmatpush1.msra.mxu0 %v1873
        %3240 = vmatprep.subr.mxu0 %v1881
        %3241 = vmatpush1.msra.mxu0 %v1880
        %3242 = vmatprep.subr.mxu0 %v1888
        %3243 = vmatpush1.msra.mxu0 %v1887
        %3244 = vmatprep.subr.mxu0 %v1895
        %3245 = vmatpush1.msra.mxu0 %v1894
        %3246 = vmatprep.subr.mxu0 %v1902
        %3247 = vmatpush1.msra.mxu0 %v1901
        %3248 = vmatprep.subr.mxu0 %v1909
        %3249 = vmatpush1.msra.mxu0 %v1908
        %3250 = vmatprep.subr.mxu0 %v1916
        %3251 = vmatpush1.msra.mxu0 %v1915
        %3252 = vmatprep.subr.mxu0 %v1923
        %3253 = vmatpush1.msra.mxu0 %v1922
        %3254 = vmatprep.subr.mxu0 %v1930
        %3255 = vmatpush1.msra.mxu0 %v1929
        %3256 = vmatprep.subr.mxu0 %v1937
        %3257 = vmatpush1.msra.mxu0 %v1936
        %3258 = vmatprep.subr.mxu0 %v1944
        %3259 = vmatpush1.msra.mxu0 %v1943
        %3260 = vmatprep.subr.mxu0 %v1951
        %3261 = vmatpush1.msra.mxu0 %v1950
        %3262 = vmatprep.subr.mxu0 %v1958
        %3263 = vmatpush1.msra.mxu0 %v1957
        %3264 = vmatprep.subr.mxu0 %v1965
        %3265 = vmatpush1.msra.mxu0 %v1964
        %3266 = vmatprep.subr.mxu0 %v1972
        %3267 = vmatpush1.msra.mxu0 %v1971
        %3268 = vmatprep.subr.mxu0 %v1979
        %3269 = vmatpush1.msra.mxu0 %v1978
        %3270 = vmatprep.subr.mxu0 %v1986
        %3271 = vmatpush1.msra.mxu0 %v1985
        %3272 = vmatprep.mubr.f32.mxu0 %v419
        %3273 = vmatmul.mubr.f32.gmra.mrb[0].mxu0 %v418
        %v3274 = vpop.f32.mrb[0].mxu0
        %v3275 = vadd.f32 %v3204, %v3274
        %v3276 = vpop.f32.mrb[0].mxu0
        %v3277 = vadd.f32 %v3206, %v3276
        %3278 = vdwg.mxu0
        %3279 = vmatprep.subr.mxu0 %v1993
        %3280 = vmatpush1.msra.mxu0 %v1992
        %3281 = vmatprep.subr.mxu0 %v2000
        %3282 = vmatpush1.msra.mxu0 %v1999
        %3283 = vmatprep.subr.mxu0 %v2007
        %3284 = vmatpush1.msra.mxu0 %v2006
        %3285 = vmatprep.subr.mxu0 %v2014
        %3286 = vmatpush1.msra.mxu0 %v2013
        %3287 = vmatprep.subr.mxu0 %v2021
        %3288 = vmatpush1.msra.mxu0 %v2020
        %3289 = vmatprep.subr.mxu0 %v2028
        %3290 = vmatpush1.msra.mxu0 %v2027
        %3291 = vmatprep.subr.mxu0 %v2035
        %3292 = vmatpush1.msra.mxu0 %v2034
        %3293 = vmatprep.subr.mxu0 %v2042
        %3294 = vmatpush1.msra.mxu0 %v2041
        %3295 = vmatprep.subr.mxu0 %v2049
        %3296 = vmatpush1.msra.mxu0 %v2048
        %3297 = vmatprep.subr.mxu0 %v2056
        %3298 = vmatpush1.msra.mxu0 %v2055
        %3299 = vmatprep.subr.mxu0 %v2063
        %3300 = vmatpush1.msra.mxu0 %v2062
        %3301 = vmatprep.subr.mxu0 %v2070
        %3302 = vmatpush1.msra.mxu0 %v2069
        %3303 = vmatprep.subr.mxu0 %v2077
        %3304 = vmatpush1.msra.mxu0 %v2076
        %3305 = vmatprep.subr.mxu0 %v2084
        %3306 = vmatpush1.msra.mxu0 %v2083
        %3307 = vmatprep.subr.mxu0 %v2091
        %3308 = vmatpush1.msra.mxu0 %v2090
        %3309 = vmatprep.subr.mxu0 %v2098
        %3310 = vmatpush1.msra.mxu0 %v2097
        %3311 = vmatprep.subr.mxu0 %v2105
        %3312 = vmatpush1.msra.mxu0 %v2104
        %3313 = vmatprep.subr.mxu0 %v2112
        %3314 = vmatpush1.msra.mxu0 %v2111
        %3315 = vmatprep.subr.mxu0 %v2119
        %3316 = vmatpush1.msra.mxu0 %v2118
        %3317 = vmatprep.subr.mxu0 %v2126
        %3318 = vmatpush1.msra.mxu0 %v2125
        %3319 = vmatprep.subr.mxu0 %v2133
        %3320 = vmatpush1.msra.mxu0 %v2132
        %3321 = vmatprep.subr.mxu0 %v2140
        %3322 = vmatpush1.msra.mxu0 %v2139
        %3323 = vmatprep.subr.mxu0 %v2147
        %3324 = vmatpush1.msra.mxu0 %v2146
        %3325 = vmatprep.subr.mxu0 %v2154
        %3326 = vmatpush1.msra.mxu0 %v2153
        %3327 = vmatprep.subr.mxu0 %v2161
        %3328 = vmatpush1.msra.mxu0 %v2160
        %3329 = vmatprep.subr.mxu0 %v2168
        %3330 = vmatpush1.msra.mxu0 %v2167
        %3331 = vmatprep.subr.mxu0 %v2175
        %3332 = vmatpush1.msra.mxu0 %v2174
        %3333 = vmatprep.subr.mxu0 %v2182
        %3334 = vmatpush1.msra.mxu0 %v2181
        %3335 = vmatprep.subr.mxu0 %v2189
        %3336 = vmatpush1.msra.mxu0 %v2188
        %3337 = vmatprep.subr.mxu0 %v2196
        %3338 = vmatpush1.msra.mxu0 %v2195
        %3339 = vmatprep.subr.mxu0 %v2203
        %3340 = vmatpush1.msra.mxu0 %v2202
        %3341 = vmatprep.subr.mxu0 %v2210
        %3342 = vmatpush1.msra.mxu0 %v2209
        %3343 = vmatprep.mubr.f32.mxu0 %v421
        %3344 = vmatmul.mubr.f32.gmra.mrb[0].mxu0 %v420
        %v3345 = vpop.f32.mrb[0].mxu0
        %v3346 = vadd.f32 %v3275, %v3345
        %v3347 = vpop.f32.mrb[0].mxu0
        %v3348 = vadd.f32 %v3277, %v3347
        %3349 = vdwg.mxu0
        %3350 = vmatprep.subr.mxu0 %v427
        %3351 = vmatpush1.msra.mxu0 %v426
        %3352 = vmatprep.subr.mxu0 %v434
        %3353 = vmatpush1.msra.mxu0 %v433
        %3354 = vmatprep.subr.mxu0 %v441
        %3355 = vmatpush1.msra.mxu0 %v440
        %3356 = vmatprep.subr.mxu0 %v448
        %3357 = vmatpush1.msra.mxu0 %v447
        %3358 = vmatprep.subr.mxu0 %v455
        %3359 = vmatpush1.msra.mxu0 %v454
        %3360 = vmatprep.subr.mxu0 %v462
        %3361 = vmatpush1.msra.mxu0 %v461
        %3362 = vmatprep.subr.mxu0 %v469
        %3363 = vmatpush1.msra.mxu0 %v468
        %3364 = vmatprep.subr.mxu0 %v476
        %3365 = vmatpush1.msra.mxu0 %v475
        %3366 = vmatprep.subr.mxu0 %v483
        %3367 = vmatpush1.msra.mxu0 %v482
        %3368 = vmatprep.subr.mxu0 %v490
        %3369 = vmatpush1.msra.mxu0 %v489
        %3370 = vmatprep.subr.mxu0 %v497
        %3371 = vmatpush1.msra.mxu0 %v496
        %3372 = vmatprep.subr.mxu0 %v504
        %3373 = vmatpush1.msra.mxu0 %v503
        %3374 = vmatprep.subr.mxu0 %v511
        %3375 = vmatpush1.msra.mxu0 %v510
        %3376 = vmatprep.subr.mxu0 %v518
        %3377 = vmatpush1.msra.mxu0 %v517
        %3378 = vmatprep.subr.mxu0 %v525
        %3379 = vmatpush1.msra.mxu0 %v524
        %3380 = vmatprep.subr.mxu0 %v532
        %3381 = vmatpush1.msra.mxu0 %v531
        %3382 = vmatprep.subr.mxu0 %v539
        %3383 = vmatpush1.msra.mxu0 %v538
        %3384 = vmatprep.subr.mxu0 %v546
        %3385 = vmatpush1.msra.mxu0 %v545
        %3386 = vmatprep.subr.mxu0 %v553
        %3387 = vmatpush1.msra.mxu0 %v552
        %3388 = vmatprep.subr.mxu0 %v560
        %3389 = vmatpush1.msra.mxu0 %v559
        %3390 = vmatprep.subr.mxu0 %v567
        %3391 = vmatpush1.msra.mxu0 %v566
        %3392 = vmatprep.subr.mxu0 %v574
        %3393 = vmatpush1.msra.mxu0 %v573
        %3394 = vmatprep.subr.mxu0 %v581
        %3395 = vmatpush1.msra.mxu0 %v580
        %3396 = vmatprep.subr.mxu0 %v588
        %3397 = vmatpush1.msra.mxu0 %v587
        %3398 = vmatprep.subr.mxu0 %v595
        %3399 = vmatpush1.msra.mxu0 %v594
        %3400 = vmatprep.subr.mxu0 %v602
        %3401 = vmatpush1.msra.mxu0 %v601
        %3402 = vmatprep.subr.mxu0 %v609
        %3403 = vmatpush1.msra.mxu0 %v608
        %3404 = vmatprep.subr.mxu0 %v616
        %3405 = vmatpush1.msra.mxu0 %v615
        %3406 = vmatprep.subr.mxu0 %v623
        %3407 = vmatpush1.msra.mxu0 %v622
        %3408 = vmatprep.subr.mxu0 %v630
        %3409 = vmatpush1.msra.mxu0 %v629
        %3410 = vmatprep.subr.mxu0 %v637
        %3411 = vmatpush1.msra.mxu0 %v636
        %3412 = vmatprep.subr.mxu0 %v644
        %3413 = vmatpush1.msra.mxu0 %v643
        %3414 = vmatprep.mubr.f32.mxu0 %v407
        %3415 = vmatmul.mubr.f32.gmra.mrb[0].mxu0 %v406
        %v3416 = vpop.f32.mrb[0].mxu0
        %v3417 = vadd.f32 0.0, %v3416
        %v3418 = vpop.f32.mrb[0].mxu0
        %v3419 = vadd.f32 0.0, %v3418
        %3420 = vdwg.mxu0
        %3421 = vmatprep.subr.mxu0 %v651
        %3422 = vmatpush1.msra.mxu0 %v650
        %3423 = vmatprep.subr.mxu0 %v658
        %3424 = vmatpush1.msra.mxu0 %v657
        %3425 = vmatprep.subr.mxu0 %v665
        %3426 = vmatpush1.msra.mxu0 %v664
        %3427 = vmatprep.subr.mxu0 %v672
        %3428 = vmatpush1.msra.mxu0 %v671
        %3429 = vmatprep.subr.mxu0 %v679
        %3430 = vmatpush1.msra.mxu0 %v678
        %3431 = vmatprep.subr.mxu0 %v686
        %3432 = vmatpush1.msra.mxu0 %v685
        %3433 = vmatprep.subr.mxu0 %v693
        %3434 = vmatpush1.msra.mxu0 %v692
        %3435 = vmatprep.subr.mxu0 %v700
        %3436 = vmatpush1.msra.mxu0 %v699
        %3437 = vmatprep.subr.mxu0 %v707
        %3438 = vmatpush1.msra.mxu0 %v706
        %3439 = vmatprep.subr.mxu0 %v714
        %3440 = vmatpush1.msra.mxu0 %v713
        %3441 = vmatprep.subr.mxu0 %v721
        %3442 = vmatpush1.msra.mxu0 %v720
        %3443 = vmatprep.subr.mxu0 %v728
        %3444 = vmatpush1.msra.mxu0 %v727
        %3445 = vmatprep.subr.mxu0 %v735
        %3446 = vmatpush1.msra.mxu0 %v734
        %3447 = vmatprep.subr.mxu0 %v742
        %3448 = vmatpush1.msra.mxu0 %v741
        %3449 = vmatprep.subr.mxu0 %v749
        %3450 = vmatpush1.msra.mxu0 %v748
        %3451 = vmatprep.subr.mxu0 %v756
        %3452 = vmatpush1.msra.mxu0 %v755
        %3453 = vmatprep.subr.mxu0 %v763
        %3454 = vmatpush1.msra.mxu0 %v762
        %3455 = vmatprep.subr.mxu0 %v770
        %3456 = vmatpush1.msra.mxu0 %v769
        %3457 = vmatprep.subr.mxu0 %v777
        %3458 = vmatpush1.msra.mxu0 %v776
        %3459 = vmatprep.subr.mxu0 %v784
        %3460 = vmatpush1.msra.mxu0 %v783
        %3461 = vmatprep.subr.mxu0 %v791
        %3462 = vmatpush1.msra.mxu0 %v790
        %3463 = vmatprep.subr.mxu0 %v798
        %3464 = vmatpush1.msra.mxu0 %v797
        %3465 = vmatprep.subr.mxu0 %v805
        %3466 = vmatpush1.msra.mxu0 %v804
        %3467 = vmatprep.subr.mxu0 %v812
        %3468 = vmatpush1.msra.mxu0 %v811
        %3469 = vmatprep.subr.mxu0 %v819
        %3470 = vmatpush1.msra.mxu0 %v818
        %3471 = vmatprep.subr.mxu0 %v826
        %3472 = vmatpush1.msra.mxu0 %v825
        %3473 = vmatprep.subr.mxu0 %v833
        %3474 = vmatpush1.msra.mxu0 %v832
        %3475 = vmatprep.subr.mxu0 %v840
        %3476 = vmatpush1.msra.mxu0 %v839
        %3477 = vmatprep.subr.mxu0 %v847
        %3478 = vmatpush1.msra.mxu0 %v846
        %3479 = vmatprep.subr.mxu0 %v854
        %3480 = vmatpush1.msra.mxu0 %v853
        %3481 = vmatprep.subr.mxu0 %v861
        %3482 = vmatpush1.msra.mxu0 %v860
        %3483 = vmatprep.subr.mxu0 %v868
        %3484 = vmatpush1.msra.mxu0 %v867
        %3485 = vmatprep.mubr.f32.mxu0 %v409
        %3486 = vmatmul.mubr.f32.gmra.mrb[0].mxu0 %v408
        %v3487 = vpop.f32.mrb[0].mxu0
        %v3488 = vadd.f32 %v3417, %v3487
        %v3489 = vpop.f32.mrb[0].mxu0
        %v3490 = vadd.f32 %v3419, %v3489
        %3491 = vdwg.mxu0
        %3492 = vmatprep.subr.mxu0 %v875
        %3493 = vmatpush1.msra.mxu0 %v874
        %3494 = vmatprep.subr.mxu0 %v882
        %3495 = vmatpush1.msra.mxu0 %v881
        %3496 = vmatprep.subr.mxu0 %v889
        %3497 = vmatpush1.msra.mxu0 %v888
        %3498 = vmatprep.subr.mxu0 %v896
        %3499 = vmatpush1.msra.mxu0 %v895
        %3500 = vmatprep.subr.mxu0 %v903
        %3501 = vmatpush1.msra.mxu0 %v902
        %3502 = vmatprep.subr.mxu0 %v910
        %3503 = vmatpush1.msra.mxu0 %v909
        %3504 = vmatprep.subr.mxu0 %v917
        %3505 = vmatpush1.msra.mxu0 %v916
        %3506 = vmatprep.subr.mxu0 %v924
        %3507 = vmatpush1.msra.mxu0 %v923
        %3508 = vmatprep.subr.mxu0 %v931
        %3509 = vmatpush1.msra.mxu0 %v930
        %3510 = vmatprep.subr.mxu0 %v938
        %3511 = vmatpush1.msra.mxu0 %v937
        %3512 = vmatprep.subr.mxu0 %v945
        %3513 = vmatpush1.msra.mxu0 %v944
        %3514 = vmatprep.subr.mxu0 %v952
        %3515 = vmatpush1.msra.mxu0 %v951
        %3516 = vmatprep.subr.mxu0 %v959
        %3517 = vmatpush1.msra.mxu0 %v958
        %3518 = vmatprep.subr.mxu0 %v966
        %3519 = vmatpush1.msra.mxu0 %v965
        %3520 = vmatprep.subr.mxu0 %v973
        %3521 = vmatpush1.msra.mxu0 %v972
        %3522 = vmatprep.subr.mxu0 %v980
        %3523 = vmatpush1.msra.mxu0 %v979
        %3524 = vmatprep.subr.mxu0 %v987
        %3525 = vmatpush1.msra.mxu0 %v986
        %3526 = vmatprep.subr.mxu0 %v994
        %3527 = vmatpush1.msra.mxu0 %v993
        %3528 = vmatprep.subr.mxu0 %v1001
        %3529 = vmatpush1.msra.mxu0 %v1000
        %3530 = vmatprep.subr.mxu0 %v1008
        %3531 = vmatpush1.msra.mxu0 %v1007
        %3532 = vmatprep.subr.mxu0 %v1015
        %3533 = vmatpush1.msra.mxu0 %v1014
        %3534 = vmatprep.subr.mxu0 %v1022
        %3535 = vmatpush1.msra.mxu0 %v1021
        %3536 = vmatprep.subr.mxu0 %v1029
        %3537 = vmatpush1.msra.mxu0 %v1028
        %3538 = vmatprep.subr.mxu0 %v1036
        %3539 = vmatpush1.msra.mxu0 %v1035
        %3540 = vmatprep.subr.mxu0 %v1043
        %3541 = vmatpush1.msra.mxu0 %v1042
        %3542 = vmatprep.subr.mxu0 %v1050
        %3543 = vmatpush1.msra.mxu0 %v1049
        %3544 = vmatprep.subr.mxu0 %v1057
        %3545 = vmatpush1.msra.mxu0 %v1056
        %3546 = vmatprep.subr.mxu0 %v1064
        %3547 = vmatpush1.msra.mxu0 %v1063
        %3548 = vmatprep.subr.mxu0 %v1071
        %3549 = vmatpush1.msra.mxu0 %v1070
        %3550 = vmatprep.subr.mxu0 %v1078
        %3551 = vmatpush1.msra.mxu0 %v1077
        %3552 = vmatprep.subr.mxu0 %v1085
        %3553 = vmatpush1.msra.mxu0 %v1084
        %3554 = vmatprep.subr.mxu0 %v1092
        %3555 = vmatpush1.msra.mxu0 %v1091
        %3556 = vmatprep.mubr.f32.mxu0 %v411
        %3557 = vmatmul.mubr.f32.gmra.mrb[0].mxu0 %v410
        %v3558 = vpop.f32.mrb[0].mxu0
        %v3559 = vadd.f32 %v3488, %v3558
        %v3560 = vpop.f32.mrb[0].mxu0
        %v3561 = vadd.f32 %v3490, %v3560
        %3562 = vdwg.mxu0
        %3563 = vmatprep.subr.mxu0 %v1099
        %3564 = vmatpush1.msra.mxu0 %v1098
        %3565 = vmatprep.subr.mxu0 %v1106
        %3566 = vmatpush1.msra.mxu0 %v1105
        %3567 = vmatprep.subr.mxu0 %v1113
        %3568 = vmatpush1.msra.mxu0 %v1112
        %3569 = vmatprep.subr.mxu0 %v1120
        %3570 = vmatpush1.msra.mxu0 %v1119
        %3571 = vmatprep.subr.mxu0 %v1127
        %3572 = vmatpush1.msra.mxu0 %v1126
        %3573 = vmatprep.subr.mxu0 %v1134
        %3574 = vmatpush1.msra.mxu0 %v1133
        %3575 = vmatprep.subr.mxu0 %v1141
        %3576 = vmatpush1.msra.mxu0 %v1140
        %3577 = vmatprep.subr.mxu0 %v1148
        %3578 = vmatpush1.msra.mxu0 %v1147
        %3579 = vmatprep.subr.mxu0 %v1155
        %3580 = vmatpush1.msra.mxu0 %v1154
        %3581 = vmatprep.subr.mxu0 %v1162
        %3582 = vmatpush1.msra.mxu0 %v1161
        %3583 = vmatprep.subr.mxu0 %v1169
        %3584 = vmatpush1.msra.mxu0 %v1168
        %3585 = vmatprep.subr.mxu0 %v1176
        %3586 = vmatpush1.msra.mxu0 %v1175
        %3587 = vmatprep.subr.mxu0 %v1183
        %3588 = vmatpush1.msra.mxu0 %v1182
        %3589 = vmatprep.subr.mxu0 %v1190
        %3590 = vmatpush1.msra.mxu0 %v1189
        %3591 = vmatprep.subr.mxu0 %v1197
        %3592 = vmatpush1.msra.mxu0 %v1196
        %3593 = vmatprep.subr.mxu0 %v1204
        %3594 = vmatpush1.msra.mxu0 %v1203
        %3595 = vmatprep.subr.mxu0 %v1211
        %3596 = vmatpush1.msra.mxu0 %v1210
        %3597 = vmatprep.subr.mxu0 %v1218
        %3598 = vmatpush1.msra.mxu0 %v1217
        %3599 = vmatprep.subr.mxu0 %v1225
        %3600 = vmatpush1.msra.mxu0 %v1224
        %3601 = vmatprep.subr.mxu0 %v1232
        %3602 = vmatpush1.msra.mxu0 %v1231
        %3603 = vmatprep.subr.mxu0 %v1239
        %3604 = vmatpush1.msra.mxu0 %v1238
        %3605 = vmatprep.subr.mxu0 %v1246
        %3606 = vmatpush1.msra.mxu0 %v1245
        %3607 = vmatprep.subr.mxu0 %v1253
        %3608 = vmatpush1.msra.mxu0 %v1252
        %3609 = vmatprep.subr.mxu0 %v1260
        %3610 = vmatpush1.msra.mxu0 %v1259
        %3611 = vmatprep.subr.mxu0 %v1267
        %3612 = vmatpush1.msra.mxu0 %v1266
        %3613 = vmatprep.subr.mxu0 %v1274
        %3614 = vmatpush1.msra.mxu0 %v1273
        %3615 = vmatprep.subr.mxu0 %v1281
        %3616 = vmatpush1.msra.mxu0 %v1280
        %3617 = vmatprep.subr.mxu0 %v1288
        %3618 = vmatpush1.msra.mxu0 %v1287
        %3619 = vmatprep.subr.mxu0 %v1295
        %3620 = vmatpush1.msra.mxu0 %v1294
        %3621 = vmatprep.subr.mxu0 %v1302
        %3622 = vmatpush1.msra.mxu0 %v1301
        %3623 = vmatprep.subr.mxu0 %v1309
        %3624 = vmatpush1.msra.mxu0 %v1308
        %3625 = vmatprep.subr.mxu0 %v1316
        %3626 = vmatpush1.msra.mxu0 %v1315
        %3627 = vmatprep.mubr.f32.mxu0 %v413
        %3628 = vmatmul.mubr.f32.gmra.mrb[0].mxu0 %v412
        %v3629 = vpop.f32.mrb[0].mxu0
        %v3630 = vadd.f32 %v3559, %v3629
        %v3631 = vpop.f32.mrb[0].mxu0
        %v3632 = vadd.f32 %v3561, %v3631
        %3633 = vdwg.mxu0
        %3634 = vmatprep.subr.mxu0 %v1323
        %3635 = vmatpush1.msra.mxu0 %v1322
        %3636 = vmatprep.subr.mxu0 %v1330
        %3637 = vmatpush1.msra.mxu0 %v1329
        %3638 = vmatprep.subr.mxu0 %v1337
        %3639 = vmatpush1.msra.mxu0 %v1336
        %3640 = vmatprep.subr.mxu0 %v1344
        %3641 = vmatpush1.msra.mxu0 %v1343
        %3642 = vmatprep.subr.mxu0 %v1351
        %3643 = vmatpush1.msra.mxu0 %v1350
        %3644 = vmatprep.subr.mxu0 %v1358
        %3645 = vmatpush1.msra.mxu0 %v1357
        %3646 = vmatprep.subr.mxu0 %v1365
        %3647 = vmatpush1.msra.mxu0 %v1364
        %3648 = vmatprep.subr.mxu0 %v1372
        %3649 = vmatpush1.msra.mxu0 %v1371
        %3650 = vmatprep.subr.mxu0 %v1379
        %3651 = vmatpush1.msra.mxu0 %v1378
        %3652 = vmatprep.subr.mxu0 %v1386
        %3653 = vmatpush1.msra.mxu0 %v1385
        %3654 = vmatprep.subr.mxu0 %v1393
        %3655 = vmatpush1.msra.mxu0 %v1392
        %3656 = vmatprep.subr.mxu0 %v1400
        %3657 = vmatpush1.msra.mxu0 %v1399
        %3658 = vmatprep.subr.mxu0 %v1407
        %3659 = vmatpush1.msra.mxu0 %v1406
        %3660 = vmatprep.subr.mxu0 %v1414
        %3661 = vmatpush1.msra.mxu0 %v1413
        %3662 = vmatprep.subr.mxu0 %v1421
        %3663 = vmatpush1.msra.mxu0 %v1420
        %3664 = vmatprep.subr.mxu0 %v1428
        %3665 = vmatpush1.msra.mxu0 %v1427
        %3666 = vmatprep.subr.mxu0 %v1435
        %3667 = vmatpush1.msra.mxu0 %v1434
        %3668 = vmatprep.subr.mxu0 %v1442
        %3669 = vmatpush1.msra.mxu0 %v1441
        %3670 = vmatprep.subr.mxu0 %v1449
        %3671 = vmatpush1.msra.mxu0 %v1448
        %3672 = vmatprep.subr.mxu0 %v1456
        %3673 = vmatpush1.msra.mxu0 %v1455
        %3674 = vmatprep.subr.mxu0 %v1463
        %3675 = vmatpush1.msra.mxu0 %v1462
        %3676 = vmatprep.subr.mxu0 %v1470
        %3677 = vmatpush1.msra.mxu0 %v1469
        %3678 = vmatprep.subr.mxu0 %v1477
        %3679 = vmatpush1.msra.mxu0 %v1476
        %3680 = vmatprep.subr.mxu0 %v1484
        %3681 = vmatpush1.msra.mxu0 %v1483
        %3682 = vmatprep.subr.mxu0 %v1491
        %3683 = vmatpush1.msra.mxu0 %v1490
        %3684 = vmatprep.subr.mxu0 %v1498
        %3685 = vmatpush1.msra.mxu0 %v1497
        %3686 = vmatprep.subr.mxu0 %v1505
        %3687 = vmatpush1.msra.mxu0 %v1504
        %3688 = vmatprep.subr.mxu0 %v1512
        %3689 = vmatpush1.msra.mxu0 %v1511
        %3690 = vmatprep.subr.mxu0 %v1519
        %3691 = vmatpush1.msra.mxu0 %v1518
        %3692 = vmatprep.subr.mxu0 %v1526
        %3693 = vmatpush1.msra.mxu0 %v1525
        %3694 = vmatprep.subr.mxu0 %v1533
        %3695 = vmatpush1.msra.mxu0 %v1532
        %3696 = vmatprep.subr.mxu0 %v1540
        %3697 = vmatpush1.msra.mxu0 %v1539
        %3698 = vmatprep.mubr.f32.mxu0 %v415
        %3699 = vmatmul.mubr.f32.gmra.mrb[0].mxu0 %v414
        %v3700 = vpop.f32.mrb[0].mxu0
        %v3701 = vadd.f32 %v3630, %v3700
        %v3702 = vpop.f32.mrb[0].mxu0
        %v3703 = vadd.f32 %v3632, %v3702
        %3704 = vdwg.mxu0
        %3705 = vmatprep.subr.mxu0 %v1547
        %3706 = vmatpush1.msra.mxu0 %v1546
        %3707 = vmatprep.subr.mxu0 %v1554
        %3708 = vmatpush1.msra.mxu0 %v1553
        %3709 = vmatprep.subr.mxu0 %v1561
        %3710 = vmatpush1.msra.mxu0 %v1560
        %3711 = vmatprep.subr.mxu0 %v1568
        %3712 = vmatpush1.msra.mxu0 %v1567
        %3713 = vmatprep.subr.mxu0 %v1575
        %3714 = vmatpush1.msra.mxu0 %v1574
        %3715 = vmatprep.subr.mxu0 %v1582
        %3716 = vmatpush1.msra.mxu0 %v1581
        %3717 = vmatprep.subr.mxu0 %v1589
        %3718 = vmatpush1.msra.mxu0 %v1588
        %3719 = vmatprep.subr.mxu0 %v1596
        %3720 = vmatpush1.msra.mxu0 %v1595
        %3721 = vmatprep.subr.mxu0 %v1603
        %3722 = vmatpush1.msra.mxu0 %v1602
        %3723 = vmatprep.subr.mxu0 %v1610
        %3724 = vmatpush1.msra.mxu0 %v1609
        %3725 = vmatprep.subr.mxu0 %v1617
        %3726 = vmatpush1.msra.mxu0 %v1616
        %3727 = vmatprep.subr.mxu0 %v1624
        %3728 = vmatpush1.msra.mxu0 %v1623
        %3729 = vmatprep.subr.mxu0 %v1631
        %3730 = vmatpush1.msra.mxu0 %v1630
        %3731 = vmatprep.subr.mxu0 %v1638
        %3732 = vmatpush1.msra.mxu0 %v1637
        %3733 = vmatprep.subr.mxu0 %v1645
        %3734 = vmatpush1.msra.mxu0 %v1644
        %3735 = vmatprep.subr.mxu0 %v1652
        %3736 = vmatpush1.msra.mxu0 %v1651
        %3737 = vmatprep.subr.mxu0 %v1659
        %3738 = vmatpush1.msra.mxu0 %v1658
        %3739 = vmatprep.subr.mxu0 %v1666
        %3740 = vmatpush1.msra.mxu0 %v1665
        %3741 = vmatprep.subr.mxu0 %v1673
        %3742 = vmatpush1.msra.mxu0 %v1672
        %3743 = vmatprep.subr.mxu0 %v1680
        %3744 = vmatpush1.msra.mxu0 %v1679
        %3745 = vmatprep.subr.mxu0 %v1687
        %3746 = vmatpush1.msra.mxu0 %v1686
        %3747 = vmatprep.subr.mxu0 %v1694
        %3748 = vmatpush1.msra.mxu0 %v1693
        %3749 = vmatprep.subr.mxu0 %v1701
        %3750 = vmatpush1.msra.mxu0 %v1700
        %3751 = vmatprep.subr.mxu0 %v1708
        %3752 = vmatpush1.msra.mxu0 %v1707
        %3753 = vmatprep.subr.mxu0 %v1715
        %3754 = vmatpush1.msra.mxu0 %v1714
        %3755 = vmatprep.subr.mxu0 %v1722
        %3756 = vmatpush1.msra.mxu0 %v1721
        %3757 = vmatprep.subr.mxu0 %v1729
        %3758 = vmatpush1.msra.mxu0 %v1728
        %3759 = vmatprep.subr.mxu0 %v1736
        %3760 = vmatpush1.msra.mxu0 %v1735
        %3761 = vmatprep.subr.mxu0 %v1743
        %3762 = vmatpush1.msra.mxu0 %v1742
        %3763 = vmatprep.subr.mxu0 %v1750
        %3764 = vmatpush1.msra.mxu0 %v1749
        %3765 = vmatprep.subr.mxu0 %v1757
        %3766 = vmatpush1.msra.mxu0 %v1756
        %3767 = vmatprep.subr.mxu0 %v1764
        %3768 = vmatpush1.msra.mxu0 %v1763
        %3769 = vmatprep.mubr.f32.mxu0 %v417
        %3770 = vmatmul.mubr.f32.gmra.mrb[0].mxu0 %v416
        %v3771 = vpop.f32.mrb[0].mxu0
        %v3772 = vadd.f32 %v3701, %v3771
        %v3773 = vpop.f32.mrb[0].mxu0
        %v3774 = vadd.f32 %v3703, %v3773
        %3775 = vdwg.mxu0
        %3776 = vmatprep.subr.mxu0 %v1771
        %3777 = vmatpush1.msra.mxu0 %v1770
        %3778 = vmatprep.subr.mxu0 %v1778
        %3779 = vmatpush1.msra.mxu0 %v1777
        %3780 = vmatprep.subr.mxu0 %v1785
        %3781 = vmatpush1.msra.mxu0 %v1784
        %3782 = vmatprep.subr.mxu0 %v1792
        %3783 = vmatpush1.msra.mxu0 %v1791
        %3784 = vmatprep.subr.mxu0 %v1799
        %3785 = vmatpush1.msra.mxu0 %v1798
        %3786 = vmatprep.subr.mxu0 %v1806
        %3787 = vmatpush1.msra.mxu0 %v1805
        %3788 = vmatprep.subr.mxu0 %v1813
        %3789 = vmatpush1.msra.mxu0 %v1812
        %3790 = vmatprep.subr.mxu0 %v1820
        %3791 = vmatpush1.msra.mxu0 %v1819
        %3792 = vmatprep.subr.mxu0 %v1827
        %3793 = vmatpush1.msra.mxu0 %v1826
        %3794 = vmatprep.subr.mxu0 %v1834
        %3795 = vmatpush1.msra.mxu0 %v1833
        %3796 = vmatprep.subr.mxu0 %v1841
        %3797 = vmatpush1.msra.mxu0 %v1840
        %3798 = vmatprep.subr.mxu0 %v1848
        %3799 = vmatpush1.msra.mxu0 %v1847
        %3800 = vmatprep.subr.mxu0 %v1855
        %3801 = vmatpush1.msra.mxu0 %v1854
        %3802 = vmatprep.subr.mxu0 %v1862
        %3803 = vmatpush1.msra.mxu0 %v1861
        %3804 = vmatprep.subr.mxu0 %v1869
        %3805 = vmatpush1.msra.mxu0 %v1868
        %3806 = vmatprep.subr.mxu0 %v1876
        %3807 = vmatpush1.msra.mxu0 %v1875
        %3808 = vmatprep.subr.mxu0 %v1883
        %3809 = vmatpush1.msra.mxu0 %v1882
        %3810 = vmatprep.subr.mxu0 %v1890
        %3811 = vmatpush1.msra.mxu0 %v1889
        %3812 = vmatprep.subr.mxu0 %v1897
        %3813 = vmatpush1.msra.mxu0 %v1896
        %3814 = vmatprep.subr.mxu0 %v1904
        %3815 = vmatpush1.msra.mxu0 %v1903
        %3816 = vmatprep.subr.mxu0 %v1911
        %3817 = vmatpush1.msra.mxu0 %v1910
        %3818 = vmatprep.subr.mxu0 %v1918
        %3819 = vmatpush1.msra.mxu0 %v1917
        %3820 = vmatprep.subr.mxu0 %v1925
        %3821 = vmatpush1.msra.mxu0 %v1924
        %3822 = vmatprep.subr.mxu0 %v1932
        %3823 = vmatpush1.msra.mxu0 %v1931
        %3824 = vmatprep.subr.mxu0 %v1939
        %3825 = vmatpush1.msra.mxu0 %v1938
        %3826 = vmatprep.subr.mxu0 %v1946
        %3827 = vmatpush1.msra.mxu0 %v1945
        %3828 = vmatprep.subr.mxu0 %v1953
        %3829 = vmatpush1.msra.mxu0 %v1952
        %3830 = vmatprep.subr.mxu0 %v1960
        %3831 = vmatpush1.msra.mxu0 %v1959
        %3832 = vmatprep.subr.mxu0 %v1967
        %3833 = vmatpush1.msra.mxu0 %v1966
        %3834 = vmatprep.subr.mxu0 %v1974
        %3835 = vmatpush1.msra.mxu0 %v1973
        %3836 = vmatprep.subr.mxu0 %v1981
        %3837 = vmatpush1.msra.mxu0 %v1980
        %3838 = vmatprep.subr.mxu0 %v1988
        %3839 = vmatpush1.msra.mxu0 %v1987
        %3840 = vmatprep.mubr.f32.mxu0 %v419
        %3841 = vmatmul.mubr.f32.gmra.mrb[0].mxu0 %v418
        %v3842 = vpop.f32.mrb[0].mxu0
        %v3843 = vadd.f32 %v3772, %v3842
        %v3844 = vpop.f32.mrb[0].mxu0
        %v3845 = vadd.f32 %v3774, %v3844
        %3846 = vdwg.mxu0
        %3847 = vmatprep.subr.mxu0 %v1995
        %3848 = vmatpush1.msra.mxu0 %v1994
        %3849 = vmatprep.subr.mxu0 %v2002
        %3850 = vmatpush1.msra.mxu0 %v2001
        %3851 = vmatprep.subr.mxu0 %v2009
        %3852 = vmatpush1.msra.mxu0 %v2008
        %3853 = vmatprep.subr.mxu0 %v2016
        %3854 = vmatpush1.msra.mxu0 %v2015
        %3855 = vmatprep.subr.mxu0 %v2023
        %3856 = vmatpush1.msra.mxu0 %v2022
        %3857 = vmatprep.subr.mxu0 %v2030
        %3858 = vmatpush1.msra.mxu0 %v2029
        %3859 = vmatprep.subr.mxu0 %v2037
        %3860 = vmatpush1.msra.mxu0 %v2036
        %3861 = vmatprep.subr.mxu0 %v2044
        %3862 = vmatpush1.msra.mxu0 %v2043
        %3863 = vmatprep.subr.mxu0 %v2051
        %3864 = vmatpush1.msra.mxu0 %v2050
        %3865 = vmatprep.subr.mxu0 %v2058
        %3866 = vmatpush1.msra.mxu0 %v2057
        %3867 = vmatprep.subr.mxu0 %v2065
        %3868 = vmatpush1.msra.mxu0 %v2064
        %3869 = vmatprep.subr.mxu0 %v2072
        %3870 = vmatpush1.msra.mxu0 %v2071
        %3871 = vmatprep.subr.mxu0 %v2079
        %3872 = vmatpush1.msra.mxu0 %v2078
        %3873 = vmatprep.subr.mxu0 %v2086
        %3874 = vmatpush1.msra.mxu0 %v2085
        %3875 = vmatprep.subr.mxu0 %v2093
        %3876 = vmatpush1.msra.mxu0 %v2092
        %3877 = vmatprep.subr.mxu0 %v2100
        %3878 = vmatpush1.msra.mxu0 %v2099
        %3879 = vmatprep.subr.mxu0 %v2107
        %3880 = vmatpush1.msra.mxu0 %v2106
        %3881 = vmatprep.subr.mxu0 %v2114
        %3882 = vmatpush1.msra.mxu0 %v2113
        %3883 = vmatprep.subr.mxu0 %v2121
        %3884 = vmatpush1.msra.mxu0 %v2120
        %3885 = vmatprep.subr.mxu0 %v2128
        %3886 = vmatpush1.msra.mxu0 %v2127
        %3887 = vmatprep.subr.mxu0 %v2135
        %3888 = vmatpush1.msra.mxu0 %v2134
        %3889 = vmatprep.subr.mxu0 %v2142
        %3890 = vmatpush1.msra.mxu0 %v2141
        %3891 = vmatprep.subr.mxu0 %v2149
        %3892 = vmatpush1.msra.mxu0 %v2148
        %3893 = vmatprep.subr.mxu0 %v2156
        %3894 = vmatpush1.msra.mxu0 %v2155
        %3895 = vmatprep.subr.mxu0 %v2163
        %3896 = vmatpush1.msra.mxu0 %v2162
        %3897 = vmatprep.subr.mxu0 %v2170
        %3898 = vmatpush1.msra.mxu0 %v2169
        %3899 = vmatprep.subr.mxu0 %v2177
        %3900 = vmatpush1.msra.mxu0 %v2176
        %3901 = vmatprep.subr.mxu0 %v2184
        %3902 = vmatpush1.msra.mxu0 %v2183
        %3903 = vmatprep.subr.mxu0 %v2191
        %3904 = vmatpush1.msra.mxu0 %v2190
        %3905 = vmatprep.subr.mxu0 %v2198
        %3906 = vmatpush1.msra.mxu0 %v2197
        %3907 = vmatprep.subr.mxu0 %v2205
        %3908 = vmatpush1.msra.mxu0 %v2204
        %3909 = vmatprep.subr.mxu0 %v2212
        %3910 = vmatpush1.msra.mxu0 %v2211
        %3911 = vmatprep.mubr.f32.mxu0 %v421
        %3912 = vmatmul.mubr.f32.gmra.mrb[0].mxu0 %v420
        %v3913 = vpop.f32.mrb[0].mxu0
        %v3914 = vadd.f32 %v3843, %v3913
        %v3915 = vpop.f32.mrb[0].mxu0
        %v3916 = vadd.f32 %v3845, %v3915
        %3917 = vdwg.mxu0
        %3918 = vmatprep.subr.mxu0 0.0
        %3919 = vmatpush1.msra.mxu0 %v428
        %3920 = vmatprep.subr.mxu0 0.0
        %3921 = vmatpush1.msra.mxu0 %v435
        %3922 = vmatprep.subr.mxu0 0.0
        %3923 = vmatpush1.msra.mxu0 %v442
        %3924 = vmatprep.subr.mxu0 0.0
        %3925 = vmatpush1.msra.mxu0 %v449
        %3926 = vmatprep.subr.mxu0 0.0
        %3927 = vmatpush1.msra.mxu0 %v456
        %3928 = vmatprep.subr.mxu0 0.0
        %3929 = vmatpush1.msra.mxu0 %v463
        %3930 = vmatprep.subr.mxu0 0.0
        %3931 = vmatpush1.msra.mxu0 %v470
        %3932 = vmatprep.subr.mxu0 0.0
        %3933 = vmatpush1.msra.mxu0 %v477
        %3934 = vmatprep.subr.mxu0 0.0
        %3935 = vmatpush1.msra.mxu0 %v484
        %3936 = vmatprep.subr.mxu0 0.0
        %3937 = vmatpush1.msra.mxu0 %v491
        %3938 = vmatprep.subr.mxu0 0.0
        %3939 = vmatpush1.msra.mxu0 %v498
        %3940 = vmatprep.subr.mxu0 0.0
        %3941 = vmatpush1.msra.mxu0 %v505
        %3942 = vmatprep.subr.mxu0 0.0
        %3943 = vmatpush1.msra.mxu0 %v512
        %3944 = vmatprep.subr.mxu0 0.0
        %3945 = vmatpush1.msra.mxu0 %v519
        %3946 = vmatprep.subr.mxu0 0.0
        %3947 = vmatpush1.msra.mxu0 %v526
        %3948 = vmatprep.subr.mxu0 0.0
        %3949 = vmatpush1.msra.mxu0 %v533
        %3950 = vmatprep.subr.mxu0 0.0
        %3951 = vmatpush1.msra.mxu0 %v540
        %3952 = vmatprep.subr.mxu0 0.0
        %3953 = vmatpush1.msra.mxu0 %v547
        %3954 = vmatprep.subr.mxu0 0.0
        %3955 = vmatpush1.msra.mxu0 %v554
        %3956 = vmatprep.subr.mxu0 0.0
        %3957 = vmatpush1.msra.mxu0 %v561
        %3958 = vmatprep.subr.mxu0 0.0
        %3959 = vmatpush1.msra.mxu0 %v568
        %3960 = vmatprep.subr.mxu0 0.0
        %3961 = vmatpush1.msra.mxu0 %v575
        %3962 = vmatprep.subr.mxu0 0.0
        %3963 = vmatpush1.msra.mxu0 %v582
        %3964 = vmatprep.subr.mxu0 0.0
        %3965 = vmatpush1.msra.mxu0 %v589
        %3966 = vmatprep.subr.mxu0 0.0
        %3967 = vmatpush1.msra.mxu0 %v596
        %3968 = vmatprep.subr.mxu0 0.0
        %3969 = vmatpush1.msra.mxu0 %v603
        %3970 = vmatprep.subr.mxu0 0.0
        %3971 = vmatpush1.msra.mxu0 %v610
        %3972 = vmatprep.subr.mxu0 0.0
        %3973 = vmatpush1.msra.mxu0 %v617
        %3974 = vmatprep.subr.mxu0 0.0
        %3975 = vmatpush1.msra.mxu0 %v624
        %3976 = vmatprep.subr.mxu0 0.0
        %3977 = vmatpush1.msra.mxu0 %v631
        %3978 = vmatprep.subr.mxu0 0.0
        %3979 = vmatpush1.msra.mxu0 %v638
        %3980 = vmatprep.subr.mxu0 0.0
        %3981 = vmatpush1.msra.mxu0 %v645
        %3982 = vmatprep.mubr.f32.mxu0 %v407
        %3983 = vmatmul.mubr.f32.gmra.mrb[0].mxu0 %v406
        %v3984 = vpop.f32.mrb[0].mxu0
        %v3985 = vadd.f32 0.0, %v3984
        %v3986 = vpop.f32.mrb[0].mxu0
        %3987 = vdwg.mxu0
        %3988 = vmatprep.subr.mxu0 0.0
        %3989 = vmatpush1.msra.mxu0 %v652
        %3990 = vmatprep.subr.mxu0 0.0
        %3991 = vmatpush1.msra.mxu0 %v659
        %3992 = vmatprep.subr.mxu0 0.0
        %3993 = vmatpush1.msra.mxu0 %v666
        %3994 = vmatprep.subr.mxu0 0.0
        %3995 = vmatpush1.msra.mxu0 %v673
        %3996 = vmatprep.subr.mxu0 0.0
        %3997 = vmatpush1.msra.mxu0 %v680
        %3998 = vmatprep.subr.mxu0 0.0
        %3999 = vmatpush1.msra.mxu0 %v687
        %4000 = vmatprep.subr.mxu0 0.0
        %4001 = vmatpush1.msra.mxu0 %v694
        %4002 = vmatprep.subr.mxu0 0.0
        %4003 = vmatpush1.msra.mxu0 %v701
        %4004 = vmatprep.subr.mxu0 0.0
        %4005 = vmatpush1.msra.mxu0 %v708
        %4006 = vmatprep.subr.mxu0 0.0
        %4007 = vmatpush1.msra.mxu0 %v715
        %4008 = vmatprep.subr.mxu0 0.0
        %4009 = vmatpush1.msra.mxu0 %v722
        %4010 = vmatprep.subr.mxu0 0.0
        %4011 = vmatpush1.msra.mxu0 %v729
        %4012 = vmatprep.subr.mxu0 0.0
        %4013 = vmatpush1.msra.mxu0 %v736
        %4014 = vmatprep.subr.mxu0 0.0
        %4015 = vmatpush1.msra.mxu0 %v743
        %4016 = vmatprep.subr.mxu0 0.0
        %4017 = vmatpush1.msra.mxu0 %v750
        %4018 = vmatprep.subr.mxu0 0.0
        %4019 = vmatpush1.msra.mxu0 %v757
        %4020 = vmatprep.subr.mxu0 0.0
        %4021 = vmatpush1.msra.mxu0 %v764
        %4022 = vmatprep.subr.mxu0 0.0
        %4023 = vmatpush1.msra.mxu0 %v771
        %4024 = vmatprep.subr.mxu0 0.0
        %4025 = vmatpush1.msra.mxu0 %v778
        %4026 = vmatprep.subr.mxu0 0.0
        %4027 = vmatpush1.msra.mxu0 %v785
        %4028 = vmatprep.subr.mxu0 0.0
        %4029 = vmatpush1.msra.mxu0 %v792
        %4030 = vmatprep.subr.mxu0 0.0
        %4031 = vmatpush1.msra.mxu0 %v799
        %4032 = vmatprep.subr.mxu0 0.0
        %4033 = vmatpush1.msra.mxu0 %v806
        %4034 = vmatprep.subr.mxu0 0.0
        %4035 = vmatpush1.msra.mxu0 %v813
        %4036 = vmatprep.subr.mxu0 0.0
        %4037 = vmatpush1.msra.mxu0 %v820
        %4038 = vmatprep.subr.mxu0 0.0
        %4039 = vmatpush1.msra.mxu0 %v827
        %4040 = vmatprep.subr.mxu0 0.0
        %4041 = vmatpush1.msra.mxu0 %v834
        %4042 = vmatprep.subr.mxu0 0.0
        %4043 = vmatpush1.msra.mxu0 %v841
        %4044 = vmatprep.subr.mxu0 0.0
        %4045 = vmatpush1.msra.mxu0 %v848
        %4046 = vmatprep.subr.mxu0 0.0
        %4047 = vmatpush1.msra.mxu0 %v855
        %4048 = vmatprep.subr.mxu0 0.0
        %4049 = vmatpush1.msra.mxu0 %v862
        %4050 = vmatprep.subr.mxu0 0.0
        %4051 = vmatpush1.msra.mxu0 %v869
        %4052 = vmatprep.mubr.f32.mxu0 %v409
        %4053 = vmatmul.mubr.f32.gmra.mrb[0].mxu0 %v408
        %v4054 = vpop.f32.mrb[0].mxu0
        %v4055 = vadd.f32 %v3985, %v4054
        %v4056 = vpop.f32.mrb[0].mxu0
        %4057 = vdwg.mxu0
        %4058 = vmatprep.subr.mxu0 0.0
        %4059 = vmatpush1.msra.mxu0 %v876
        %4060 = vmatprep.subr.mxu0 0.0
        %4061 = vmatpush1.msra.mxu0 %v883
        %4062 = vmatprep.subr.mxu0 0.0
        %4063 = vmatpush1.msra.mxu0 %v890
        %4064 = vmatprep.subr.mxu0 0.0
        %4065 = vmatpush1.msra.mxu0 %v897
        %4066 = vmatprep.subr.mxu0 0.0
        %4067 = vmatpush1.msra.mxu0 %v904
        %4068 = vmatprep.subr.mxu0 0.0
        %4069 = vmatpush1.msra.mxu0 %v911
        %4070 = vmatprep.subr.mxu0 0.0
        %4071 = vmatpush1.msra.mxu0 %v918
        %4072 = vmatprep.subr.mxu0 0.0
        %4073 = vmatpush1.msra.mxu0 %v925
        %4074 = vmatprep.subr.mxu0 0.0
        %4075 = vmatpush1.msra.mxu0 %v932
        %4076 = vmatprep.subr.mxu0 0.0
        %4077 = vmatpush1.msra.mxu0 %v939
        %4078 = vmatprep.subr.mxu0 0.0
        %4079 = vmatpush1.msra.mxu0 %v946
        %4080 = vmatprep.subr.mxu0 0.0
        %4081 = vmatpush1.msra.mxu0 %v953
        %4082 = vmatprep.subr.mxu0 0.0
        %4083 = vmatpush1.msra.mxu0 %v960
        %4084 = vmatprep.subr.mxu0 0.0
        %4085 = vmatpush1.msra.mxu0 %v967
        %4086 = vmatprep.subr.mxu0 0.0
        %4087 = vmatpush1.msra.mxu0 %v974
        %4088 = vmatprep.subr.mxu0 0.0
        %4089 = vmatpush1.msra.mxu0 %v981
        %4090 = vmatprep.subr.mxu0 0.0
        %4091 = vmatpush1.msra.mxu0 %v988
        %4092 = vmatprep.subr.mxu0 0.0
        %4093 = vmatpush1.msra.mxu0 %v995
        %4094 = vmatprep.subr.mxu0 0.0
        %4095 = vmatpush1.msra.mxu0 %v1002
        %4096 = vmatprep.subr.mxu0 0.0
        %4097 = vmatpush1.msra.mxu0 %v1009
        %4098 = vmatprep.subr.mxu0 0.0
        %4099 = vmatpush1.msra.mxu0 %v1016
        %4100 = vmatprep.subr.mxu0 0.0
        %4101 = vmatpush1.msra.mxu0 %v1023
        %4102 = vmatprep.subr.mxu0 0.0
        %4103 = vmatpush1.msra.mxu0 %v1030
        %4104 = vmatprep.subr.mxu0 0.0
        %4105 = vmatpush1.msra.mxu0 %v1037
        %4106 = vmatprep.subr.mxu0 0.0
        %4107 = vmatpush1.msra.mxu0 %v1044
        %4108 = vmatprep.subr.mxu0 0.0
        %4109 = vmatpush1.msra.mxu0 %v1051
        %4110 = vmatprep.subr.mxu0 0.0
        %4111 = vmatpush1.msra.mxu0 %v1058
        %4112 = vmatprep.subr.mxu0 0.0
        %4113 = vmatpush1.msra.mxu0 %v1065
        %4114 = vmatprep.subr.mxu0 0.0
        %4115 = vmatpush1.msra.mxu0 %v1072
        %4116 = vmatprep.subr.mxu0 0.0
        %4117 = vmatpush1.msra.mxu0 %v1079
        %4118 = vmatprep.subr.mxu0 0.0
        %4119 = vmatpush1.msra.mxu0 %v1086
        %4120 = vmatprep.subr.mxu0 0.0
        %4121 = vmatpush1.msra.mxu0 %v1093
        %4122 = vmatprep.mubr.f32.mxu0 %v411
        %4123 = vmatmul.mubr.f32.gmra.mrb[0].mxu0 %v410
        %v4124 = vpop.f32.mrb[0].mxu0
        %v4125 = vadd.f32 %v4055, %v4124
        %v4126 = vpop.f32.mrb[0].mxu0
        %4127 = vdwg.mxu0
        %4128 = vmatprep.subr.mxu0 0.0
        %4129 = vmatpush1.msra.mxu0 %v1100
        %4130 = vmatprep.subr.mxu0 0.0
        %4131 = vmatpush1.msra.mxu0 %v1107
        %4132 = vmatprep.subr.mxu0 0.0
        %4133 = vmatpush1.msra.mxu0 %v1114
        %4134 = vmatprep.subr.mxu0 0.0
        %4135 = vmatpush1.msra.mxu0 %v1121
        %4136 = vmatprep.subr.mxu0 0.0
        %4137 = vmatpush1.msra.mxu0 %v1128
        %4138 = vmatprep.subr.mxu0 0.0
        %4139 = vmatpush1.msra.mxu0 %v1135
        %4140 = vmatprep.subr.mxu0 0.0
        %4141 = vmatpush1.msra.mxu0 %v1142
        %4142 = vmatprep.subr.mxu0 0.0
        %4143 = vmatpush1.msra.mxu0 %v1149
        %4144 = vmatprep.subr.mxu0 0.0
        %4145 = vmatpush1.msra.mxu0 %v1156
        %4146 = vmatprep.subr.mxu0 0.0
        %4147 = vmatpush1.msra.mxu0 %v1163
        %4148 = vmatprep.subr.mxu0 0.0
        %4149 = vmatpush1.msra.mxu0 %v1170
        %4150 = vmatprep.subr.mxu0 0.0
        %4151 = vmatpush1.msra.mxu0 %v1177
        %4152 = vmatprep.subr.mxu0 0.0
        %4153 = vmatpush1.msra.mxu0 %v1184
        %4154 = vmatprep.subr.mxu0 0.0
        %4155 = vmatpush1.msra.mxu0 %v1191
        %4156 = vmatprep.subr.mxu0 0.0
        %4157 = vmatpush1.msra.mxu0 %v1198
        %4158 = vmatprep.subr.mxu0 0.0
        %4159 = vmatpush1.msra.mxu0 %v1205
        %4160 = vmatprep.subr.mxu0 0.0
        %4161 = vmatpush1.msra.mxu0 %v1212
        %4162 = vmatprep.subr.mxu0 0.0
        %4163 = vmatpush1.msra.mxu0 %v1219
        %4164 = vmatprep.subr.mxu0 0.0
        %4165 = vmatpush1.msra.mxu0 %v1226
        %4166 = vmatprep.subr.mxu0 0.0
        %4167 = vmatpush1.msra.mxu0 %v1233
        %4168 = vmatprep.subr.mxu0 0.0
        %4169 = vmatpush1.msra.mxu0 %v1240
        %4170 = vmatprep.subr.mxu0 0.0
        %4171 = vmatpush1.msra.mxu0 %v1247
        %4172 = vmatprep.subr.mxu0 0.0
        %4173 = vmatpush1.msra.mxu0 %v1254
        %4174 = vmatprep.subr.mxu0 0.0
        %4175 = vmatpush1.msra.mxu0 %v1261
        %4176 = vmatprep.subr.mxu0 0.0
        %4177 = vmatpush1.msra.mxu0 %v1268
        %4178 = vmatprep.subr.mxu0 0.0
        %4179 = vmatpush1.msra.mxu0 %v1275
        %4180 = vmatprep.subr.mxu0 0.0
        %4181 = vmatpush1.msra.mxu0 %v1282
        %4182 = vmatprep.subr.mxu0 0.0
        %4183 = vmatpush1.msra.mxu0 %v1289
        %4184 = vmatprep.subr.mxu0 0.0
        %4185 = vmatpush1.msra.mxu0 %v1296
        %4186 = vmatprep.subr.mxu0 0.0
        %4187 = vmatpush1.msra.mxu0 %v1303
        %4188 = vmatprep.subr.mxu0 0.0
        %4189 = vmatpush1.msra.mxu0 %v1310
        %4190 = vmatprep.subr.mxu0 0.0
        %4191 = vmatpush1.msra.mxu0 %v1317
        %4192 = vmatprep.mubr.f32.mxu0 %v413
        %4193 = vmatmul.mubr.f32.gmra.mrb[0].mxu0 %v412
        %v4194 = vpop.f32.mrb[0].mxu0
        %v4195 = vadd.f32 %v4125, %v4194
        %v4196 = vpop.f32.mrb[0].mxu0
        %4197 = vdwg.mxu0
        %4198 = vmatprep.subr.mxu0 0.0
        %4199 = vmatpush1.msra.mxu0 %v1324
        %4200 = vmatprep.subr.mxu0 0.0
        %4201 = vmatpush1.msra.mxu0 %v1331
        %4202 = vmatprep.subr.mxu0 0.0
        %4203 = vmatpush1.msra.mxu0 %v1338
        %4204 = vmatprep.subr.mxu0 0.0
        %4205 = vmatpush1.msra.mxu0 %v1345
        %4206 = vmatprep.subr.mxu0 0.0
        %4207 = vmatpush1.msra.mxu0 %v1352
        %4208 = vmatprep.subr.mxu0 0.0
        %4209 = vmatpush1.msra.mxu0 %v1359
        %4210 = vmatprep.subr.mxu0 0.0
        %4211 = vmatpush1.msra.mxu0 %v1366
        %4212 = vmatprep.subr.mxu0 0.0
        %4213 = vmatpush1.msra.mxu0 %v1373
        %4214 = vmatprep.subr.mxu0 0.0
        %4215 = vmatpush1.msra.mxu0 %v1380
        %4216 = vmatprep.subr.mxu0 0.0
        %4217 = vmatpush1.msra.mxu0 %v1387
        %4218 = vmatprep.subr.mxu0 0.0
        %4219 = vmatpush1.msra.mxu0 %v1394
        %4220 = vmatprep.subr.mxu0 0.0
        %4221 = vmatpush1.msra.mxu0 %v1401
        %4222 = vmatprep.subr.mxu0 0.0
        %4223 = vmatpush1.msra.mxu0 %v1408
        %4224 = vmatprep.subr.mxu0 0.0
        %4225 = vmatpush1.msra.mxu0 %v1415
        %4226 = vmatprep.subr.mxu0 0.0
        %4227 = vmatpush1.msra.mxu0 %v1422
        %4228 = vmatprep.subr.mxu0 0.0
        %4229 = vmatpush1.msra.mxu0 %v1429
        %4230 = vmatprep.subr.mxu0 0.0
        %4231 = vmatpush1.msra.mxu0 %v1436
        %4232 = vmatprep.subr.mxu0 0.0
        %4233 = vmatpush1.msra.mxu0 %v1443
        %4234 = vmatprep.subr.mxu0 0.0
        %4235 = vmatpush1.msra.mxu0 %v1450
        %4236 = vmatprep.subr.mxu0 0.0
        %4237 = vmatpush1.msra.mxu0 %v1457
        %4238 = vmatprep.subr.mxu0 0.0
        %4239 = vmatpush1.msra.mxu0 %v1464
        %4240 = vmatprep.subr.mxu0 0.0
        %4241 = vmatpush1.msra.mxu0 %v1471
        %4242 = vmatprep.subr.mxu0 0.0
        %4243 = vmatpush1.msra.mxu0 %v1478
        %4244 = vmatprep.subr.mxu0 0.0
        %4245 = vmatpush1.msra.mxu0 %v1485
        %4246 = vmatprep.subr.mxu0 0.0
        %4247 = vmatpush1.msra.mxu0 %v1492
        %4248 = vmatprep.subr.mxu0 0.0
        %4249 = vmatpush1.msra.mxu0 %v1499
        %4250 = vmatprep.subr.mxu0 0.0
        %4251 = vmatpush1.msra.mxu0 %v1506
        %4252 = vmatprep.subr.mxu0 0.0
        %4253 = vmatpush1.msra.mxu0 %v1513
        %4254 = vmatprep.subr.mxu0 0.0
        %4255 = vmatpush1.msra.mxu0 %v1520
        %4256 = vmatprep.subr.mxu0 0.0
        %4257 = vmatpush1.msra.mxu0 %v1527
        %4258 = vmatprep.subr.mxu0 0.0
        %4259 = vmatpush1.msra.mxu0 %v1534
        %4260 = vmatprep.subr.mxu0 0.0
        %4261 = vmatpush1.msra.mxu0 %v1541
        %4262 = vmatprep.mubr.f32.mxu0 %v415
        %4263 = vmatmul.mubr.f32.gmra.mrb[0].mxu0 %v414
        %v4264 = vpop.f32.mrb[0].mxu0
        %v4265 = vadd.f32 %v4195, %v4264
        %v4266 = vpop.f32.mrb[0].mxu0
        %4267 = vdwg.mxu0
        %4268 = vmatprep.subr.mxu0 0.0
        %4269 = vmatpush1.msra.mxu0 %v1548
        %4270 = vmatprep.subr.mxu0 0.0
        %4271 = vmatpush1.msra.mxu0 %v1555
        %4272 = vmatprep.subr.mxu0 0.0
        %4273 = vmatpush1.msra.mxu0 %v1562
        %4274 = vmatprep.subr.mxu0 0.0
        %4275 = vmatpush1.msra.mxu0 %v1569
        %4276 = vmatprep.subr.mxu0 0.0
        %4277 = vmatpush1.msra.mxu0 %v1576
        %4278 = vmatprep.subr.mxu0 0.0
        %4279 = vmatpush1.msra.mxu0 %v1583
        %4280 = vmatprep.subr.mxu0 0.0
        %4281 = vmatpush1.msra.mxu0 %v1590
        %4282 = vmatprep.subr.mxu0 0.0
        %4283 = vmatpush1.msra.mxu0 %v1597
        %4284 = vmatprep.subr.mxu0 0.0
        %4285 = vmatpush1.msra.mxu0 %v1604
        %4286 = vmatprep.subr.mxu0 0.0
        %4287 = vmatpush1.msra.mxu0 %v1611
        %4288 = vmatprep.subr.mxu0 0.0
        %4289 = vmatpush1.msra.mxu0 %v1618
        %4290 = vmatprep.subr.mxu0 0.0
        %4291 = vmatpush1.msra.mxu0 %v1625
        %4292 = vmatprep.subr.mxu0 0.0
        %4293 = vmatpush1.msra.mxu0 %v1632
        %4294 = vmatprep.subr.mxu0 0.0
        %4295 = vmatpush1.msra.mxu0 %v1639
        %4296 = vmatprep.subr.mxu0 0.0
        %4297 = vmatpush1.msra.mxu0 %v1646
        %4298 = vmatprep.subr.mxu0 0.0
        %4299 = vmatpush1.msra.mxu0 %v1653
        %4300 = vmatprep.subr.mxu0 0.0
        %4301 = vmatpush1.msra.mxu0 %v1660
        %4302 = vmatprep.subr.mxu0 0.0
        %4303 = vmatpush1.msra.mxu0 %v1667
        %4304 = vmatprep.subr.mxu0 0.0
        %4305 = vmatpush1.msra.mxu0 %v1674
        %4306 = vmatprep.subr.mxu0 0.0
        %4307 = vmatpush1.msra.mxu0 %v1681
        %4308 = vmatprep.subr.mxu0 0.0
        %4309 = vmatpush1.msra.mxu0 %v1688
        %4310 = vmatprep.subr.mxu0 0.0
        %4311 = vmatpush1.msra.mxu0 %v1695
        %4312 = vmatprep.subr.mxu0 0.0
        %4313 = vmatpush1.msra.mxu0 %v1702
        %4314 = vmatprep.subr.mxu0 0.0
        %4315 = vmatpush1.msra.mxu0 %v1709
        %4316 = vmatprep.subr.mxu0 0.0
        %4317 = vmatpush1.msra.mxu0 %v1716
        %4318 = vmatprep.subr.mxu0 0.0
        %4319 = vmatpush1.msra.mxu0 %v1723
        %4320 = vmatprep.subr.mxu0 0.0
        %4321 = vmatpush1.msra.mxu0 %v1730
        %4322 = vmatprep.subr.mxu0 0.0
        %4323 = vmatpush1.msra.mxu0 %v1737
        %4324 = vmatprep.subr.mxu0 0.0
        %4325 = vmatpush1.msra.mxu0 %v1744
        %4326 = vmatprep.subr.mxu0 0.0
        %4327 = vmatpush1.msra.mxu0 %v1751
        %4328 = vmatprep.subr.mxu0 0.0
        %4329 = vmatpush1.msra.mxu0 %v1758
        %4330 = vmatprep.subr.mxu0 0.0
        %4331 = vmatpush1.msra.mxu0 %v1765
        %4332 = vmatprep.mubr.f32.mxu0 %v417
        %4333 = vmatmul.mubr.f32.gmra.mrb[0].mxu0 %v416
        %v4334 = vpop.f32.mrb[0].mxu0
        %v4335 = vadd.f32 %v4265, %v4334
        %v4336 = vpop.f32.mrb[0].mxu0
        %4337 = vdwg.mxu0
        %4338 = vmatprep.subr.mxu0 0.0
        %4339 = vmatpush1.msra.mxu0 %v1772
        %4340 = vmatprep.subr.mxu0 0.0
        %4341 = vmatpush1.msra.mxu0 %v1779
        %4342 = vmatprep.subr.mxu0 0.0
        %4343 = vmatpush1.msra.mxu0 %v1786
        %4344 = vmatprep.subr.mxu0 0.0
        %4345 = vmatpush1.msra.mxu0 %v1793
        %4346 = vmatprep.subr.mxu0 0.0
        %4347 = vmatpush1.msra.mxu0 %v1800
        %4348 = vmatprep.subr.mxu0 0.0
        %4349 = vmatpush1.msra.mxu0 %v1807
        %4350 = vmatprep.subr.mxu0 0.0
        %4351 = vmatpush1.msra.mxu0 %v1814
        %4352 = vmatprep.subr.mxu0 0.0
        %4353 = vmatpush1.msra.mxu0 %v1821
        %4354 = vmatprep.subr.mxu0 0.0
        %4355 = vmatpush1.msra.mxu0 %v1828
        %4356 = vmatprep.subr.mxu0 0.0
        %4357 = vmatpush1.msra.mxu0 %v1835
        %4358 = vmatprep.subr.mxu0 0.0
        %4359 = vmatpush1.msra.mxu0 %v1842
        %4360 = vmatprep.subr.mxu0 0.0
        %4361 = vmatpush1.msra.mxu0 %v1849
        %4362 = vmatprep.subr.mxu0 0.0
        %4363 = vmatpush1.msra.mxu0 %v1856
        %4364 = vmatprep.subr.mxu0 0.0
        %4365 = vmatpush1.msra.mxu0 %v1863
        %4366 = vmatprep.subr.mxu0 0.0
        %4367 = vmatpush1.msra.mxu0 %v1870
        %4368 = vmatprep.subr.mxu0 0.0
        %4369 = vmatpush1.msra.mxu0 %v1877
        %4370 = vmatprep.subr.mxu0 0.0
        %4371 = vmatpush1.msra.mxu0 %v1884
        %4372 = vmatprep.subr.mxu0 0.0
        %4373 = vmatpush1.msra.mxu0 %v1891
        %4374 = vmatprep.subr.mxu0 0.0
        %4375 = vmatpush1.msra.mxu0 %v1898
        %4376 = vmatprep.subr.mxu0 0.0
        %4377 = vmatpush1.msra.mxu0 %v1905
        %4378 = vmatprep.subr.mxu0 0.0
        %4379 = vmatpush1.msra.mxu0 %v1912
        %4380 = vmatprep.subr.mxu0 0.0
        %4381 = vmatpush1.msra.mxu0 %v1919
        %4382 = vmatprep.subr.mxu0 0.0
        %4383 = vmatpush1.msra.mxu0 %v1926
        %4384 = vmatprep.subr.mxu0 0.0
        %4385 = vmatpush1.msra.mxu0 %v1933
        %4386 = vmatprep.subr.mxu0 0.0
        %4387 = vmatpush1.msra.mxu0 %v1940
        %4388 = vmatprep.subr.mxu0 0.0
        %4389 = vmatpush1.msra.mxu0 %v1947
        %4390 = vmatprep.subr.mxu0 0.0
        %4391 = vmatpush1.msra.mxu0 %v1954
        %4392 = vmatprep.subr.mxu0 0.0
        %4393 = vmatpush1.msra.mxu0 %v1961
        %4394 = vmatprep.subr.mxu0 0.0
        %4395 = vmatpush1.msra.mxu0 %v1968
        %4396 = vmatprep.subr.mxu0 0.0
        %4397 = vmatpush1.msra.mxu0 %v1975
        %4398 = vmatprep.subr.mxu0 0.0
        %4399 = vmatpush1.msra.mxu0 %v1982
        %4400 = vmatprep.subr.mxu0 0.0
        %4401 = vmatpush1.msra.mxu0 %v1989
        %4402 = vmatprep.mubr.f32.mxu0 %v419
        %4403 = vmatmul.mubr.f32.gmra.mrb[0].mxu0 %v418
        %v4404 = vpop.f32.mrb[0].mxu0
        %v4405 = vadd.f32 %v4335, %v4404
        %v4406 = vpop.f32.mrb[0].mxu0
        %4407 = vdwg.mxu0
        %4408 = vmatprep.subr.mxu0 0.0
        %4409 = vmatpush1.msra.mxu0 %v1996
        %4410 = vmatprep.subr.mxu0 0.0
        %4411 = vmatpush1.msra.mxu0 %v2003
        %4412 = vmatprep.subr.mxu0 0.0
        %4413 = vmatpush1.msra.mxu0 %v2010
        %4414 = vmatprep.subr.mxu0 0.0
        %4415 = vmatpush1.msra.mxu0 %v2017
        %4416 = vmatprep.subr.mxu0 0.0
        %4417 = vmatpush1.msra.mxu0 %v2024
        %4418 = vmatprep.subr.mxu0 0.0
        %4419 = vmatpush1.msra.mxu0 %v2031
        %4420 = vmatprep.subr.mxu0 0.0
        %4421 = vmatpush1.msra.mxu0 %v2038
        %4422 = vmatprep.subr.mxu0 0.0
        %4423 = vmatpush1.msra.mxu0 %v2045
        %4424 = vmatprep.subr.mxu0 0.0
        %4425 = vmatpush1.msra.mxu0 %v2052
        %4426 = vmatprep.subr.mxu0 0.0
        %4427 = vmatpush1.msra.mxu0 %v2059
        %4428 = vmatprep.subr.mxu0 0.0
        %4429 = vmatpush1.msra.mxu0 %v2066
        %4430 = vmatprep.subr.mxu0 0.0
        %4431 = vmatpush1.msra.mxu0 %v2073
        %4432 = vmatprep.subr.mxu0 0.0
        %4433 = vmatpush1.msra.mxu0 %v2080
        %4434 = vmatprep.subr.mxu0 0.0
        %4435 = vmatpush1.msra.mxu0 %v2087
        %4436 = vmatprep.subr.mxu0 0.0
        %4437 = vmatpush1.msra.mxu0 %v2094
        %4438 = vmatprep.subr.mxu0 0.0
        %4439 = vmatpush1.msra.mxu0 %v2101
        %4440 = vmatprep.subr.mxu0 0.0
        %4441 = vmatpush1.msra.mxu0 %v2108
        %4442 = vmatprep.subr.mxu0 0.0
        %4443 = vmatpush1.msra.mxu0 %v2115
        %4444 = vmatprep.subr.mxu0 0.0
        %4445 = vmatpush1.msra.mxu0 %v2122
        %4446 = vmatprep.subr.mxu0 0.0
        %4447 = vmatpush1.msra.mxu0 %v2129
        %4448 = vmatprep.subr.mxu0 0.0
        %4449 = vmatpush1.msra.mxu0 %v2136
        %4450 = vmatprep.subr.mxu0 0.0
        %4451 = vmatpush1.msra.mxu0 %v2143
        %4452 = vmatprep.subr.mxu0 0.0
        %4453 = vmatpush1.msra.mxu0 %v2150
        %4454 = vmatprep.subr.mxu0 0.0
        %4455 = vmatpush1.msra.mxu0 %v2157
        %4456 = vmatprep.subr.mxu0 0.0
        %4457 = vmatpush1.msra.mxu0 %v2164
        %4458 = vmatprep.subr.mxu0 0.0
        %4459 = vmatpush1.msra.mxu0 %v2171
        %4460 = vmatprep.subr.mxu0 0.0
        %4461 = vmatpush1.msra.mxu0 %v2178
        %4462 = vmatprep.subr.mxu0 0.0
        %4463 = vmatpush1.msra.mxu0 %v2185
        %4464 = vmatprep.subr.mxu0 0.0
        %4465 = vmatpush1.msra.mxu0 %v2192
        %4466 = vmatprep.subr.mxu0 0.0
        %4467 = vmatpush1.msra.mxu0 %v2199
        %4468 = vmatprep.subr.mxu0 0.0
        %4469 = vmatpush1.msra.mxu0 %v2206
        %4470 = vmatprep.subr.mxu0 0.0
        %4471 = vmatpush1.msra.mxu0 %v2213
        %4472 = vmatprep.mubr.f32.mxu0 %v421
        %4473 = vmatmul.mubr.f32.gmra.mrb[0].mxu0 %v420
        %v4474 = vpop.f32.mrb[0].mxu0
        %v4475 = vadd.f32 %v4405, %v4474
        %v4476 = vpop.f32.mrb[0].mxu0
        %4477 = vdwg.mxu0
        %v4478 = vadd.f32 %v399, %v2778
        %v4479 = vadd.f32 %v400, %v2780
        %v4480 = vadd.f32 %v401, %v3346
        %v4481 = vadd.f32 %v402, %v3348
        %v4482 = vadd.f32 %v403, %v3914
        %v4483 = vadd.f32 %v404, %v3916
        %v4484 = vadd.f32 %v405, %v4475
        %4485 = vst [vmem:[#allocation2] sm:$0xff] %v4478
        %4486 = vst [vmem:[#allocation2 + $0x8] sm:$0xff] %v4479
        %4487 = vst [vmem:[#allocation2 + $0x10] sm:$0xff] %v4480
        %4488 = vst [vmem:[#allocation2 + $0x18] sm:$0xff] %v4481
        %4489 = vst [vmem:[#allocation2 + $0x20] sm:$0xff] %v4482
        %4490 = vst [vmem:[#allocation2 + $0x28] sm:$0xff] %v4483
        %vm4491 = vcmask 146432
        %4492 = vst.msk [vmem:[#allocation2 + $0x30] sm:$0xff] %vm4491, %v4484
        %p4493 = scmp.eq.s32.totalorder %s23, 2
        // Predicated region
        $region69: #{encoder_forward.1} parent=59 // pred_check
          %p4494 = pneg %p4493
        $region70: #{encoder_forward.1} parent=59 // pred_check_branch
          %4496 = sbr.rel (%p4494) target = $region72
        $region71: #{encoder_forward.1} parent=59 // pred_region
          %s4497 = sld [smem:[#allocation3]]
          %s4498 = sld [smem:[#allocation3 + $0x1]]
          %s4499 = sld [smem:[#allocation3 + $0x2]]
          %v4500 = vld [vmem:[#allocation2] sm:$0xff]
          %v4501 = vld [vmem:[#allocation2 + $0x8] sm:$0xff]
          %v4502 = vld [vmem:[#allocation2 + $0x10] sm:$0xff]
          %v4503 = vld [vmem:[#allocation2 + $0x18] sm:$0xff]
          %v4504 = vld [vmem:[#allocation2 + $0x20] sm:$0xff]
          %v4505 = vld [vmem:[#allocation2 + $0x28] sm:$0xff]
          %v4506 = vld [vmem:[#allocation2 + $0x30] sm:$0xff]
          %v4507 = vld [vmem:[%s2] sm:$0x7f]
          %v4509 = vlaneseq
          %v4510 = vshrl.u32 %v4509, 7
          %v4511 = vsub.s32 0, %v4510
          %v4512 = vrot.slane %v4507, %v4511
          %v4513 = vlaneseq
          %v4514 = vshrl.u32 %v4513, 7
          %v4515 = vsub.s32 1, %v4514
          %v4516 = vrot.slane %v4507, %v4515
          %v4517 = vlaneseq
          %v4518 = vshrl.u32 %v4517, 7
          %v4519 = vsub.s32 2, %v4518
          %v4520 = vrot.slane %v4507, %v4519
          %v4521 = vlaneseq
          %v4522 = vshrl.u32 %v4521, 7
          %v4523 = vsub.s32 3, %v4522
          %v4524 = vrot.slane %v4507, %v4523
          %v4525 = vlaneseq
          %v4526 = vshrl.u32 %v4525, 7
          %v4527 = vsub.s32 4, %v4526
          %v4528 = vrot.slane %v4507, %v4527
          %v4529 = vlaneseq
          %v4530 = vshrl.u32 %v4529, 7
          %v4531 = vsub.s32 5, %v4530
          %v4532 = vrot.slane %v4507, %v4531
          %v4533 = vlaneseq
          %v4534 = vshrl.u32 %v4533, 7
          %v4535 = vsub.s32 6, %v4534
          %v4536 = vrot.slane %v4507, %v4535
          %v4544 = vadd.f32 %v4500, %v4512
          %v4545 = vadd.f32 %v4501, %v4516
          %v4546 = vadd.f32 %v4502, %v4520
          %v4547 = vadd.f32 %v4503, %v4524
          %v4548 = vadd.f32 %v4504, %v4528
          %v4549 = vadd.f32 %v4505, %v4532
          %v4550 = vadd.f32 %v4506, %v4536
          %vm4551 = vcmp.ge.f32.partialorder %v4544, 0.0
          %vm4552 = vcmp.ge.f32.partialorder %v4545, 0.0
          %vm4553 = vcmp.ge.f32.partialorder %v4546, 0.0
          %vm4554 = vcmp.ge.f32.partialorder %v4547, 0.0
          %vm4555 = vcmp.ge.f32.partialorder %v4548, 0.0
          %vm4556 = vcmp.ge.f32.partialorder %v4549, 0.0
          %vm4557 = vcmp.ge.f32.partialorder %v4550, 0.0
          %v4558 = vstv %s4497
          %v4559 = vmul.f32 %v4558, %v4544
          %v4560 = vmul.f32 %v4558, %v4545
          %v4561 = vmul.f32 %v4558, %v4546
          %v4562 = vmul.f32 %v4558, %v4547
          %v4563 = vmul.f32 %v4558, %v4548
          %v4564 = vmul.f32 %v4558, %v4549
          %v4565 = vmul.f32 %v4558, %v4550
          %v4566 = vsel %vm4551, %v4544, %v4559
          %v4567 = vsel %vm4552, %v4545, %v4560
          %v4568 = vsel %vm4553, %v4546, %v4561
          %v4569 = vsel %vm4554, %v4547, %v4562
          %v4570 = vsel %vm4555, %v4548, %v4563
          %v4571 = vsel %vm4556, %v4549, %v4564
          %v4572 = vsel %vm4557, %v4550, %v4565
          %v4573 = vld [vmem:[%s3] sm:$0xff]
          %v4574 = vld [vmem:[%s3 + $0x8] sm:$0xff]
          %v4575 = vld [vmem:[%s3 + $0x10] sm:$0xff]
          %v4576 = vld [vmem:[%s3 + $0x18] sm:$0xff]
          %v4577 = vld [vmem:[%s3 + $0x20] sm:$0xff]
          %v4578 = vld [vmem:[%s3 + $0x28] sm:$0xff]
          %v4579 = vld [vmem:[%s3 + $0x30] sm:$0xff]
          %v4580 = vld [vmem:[%s3 + $0x38] sm:$0xff]
          %v4581 = vld [vmem:[%s3 + $0x40] sm:$0xff]
          %v4582 = vld [vmem:[%s3 + $0x48] sm:$0xff]
          %v4583 = vld [vmem:[%s3 + $0x50] sm:$0xff]
          %v4584 = vld [vmem:[%s3 + $0x58] sm:$0xff]
          %v4585 = vld [vmem:[%s3 + $0x60] sm:$0xff]
          %v4586 = vld [vmem:[%s3 + $0x68] sm:$0xff]
          %v4587 = vld [vmem:[%s3 + $0x70] sm:$0xff]
          %v4588 = vld [vmem:[%s3 + $0x78] sm:$0xff]
          %v4589 = vld [vmem:[%s3 + $0x80] sm:$0xff]
          %v4590 = vld [vmem:[%s3 + $0x88] sm:$0xff]
          %v4591 = vld [vmem:[%s3 + $0x90] sm:$0xff]
          %v4592 = vld [vmem:[%s3 + $0x98] sm:$0xff]
          %v4593 = vld [vmem:[%s3 + $0xa0] sm:$0xff]
          %v4594 = vld [vmem:[%s3 + $0xa8] sm:$0xff]
          %v4595 = vld [vmem:[%s3 + $0xb0] sm:$0xff]
          %v4596 = vld [vmem:[%s3 + $0xb8] sm:$0xff]
          %v4597 = vld [vmem:[%s3 + $0xc0] sm:$0xff]
          %v4598 = vld [vmem:[%s3 + $0xc8] sm:$0xff]
          %v4599 = vld [vmem:[%s3 + $0xd0] sm:$0xff]
          %v4600 = vld [vmem:[%s3 + $0xd8] sm:$0xff]
          %v4601 = vld [vmem:[%s3 + $0xe0] sm:$0xff]
          %v4602 = vld [vmem:[%s3 + $0xe8] sm:$0xff]
          %v4603 = vld [vmem:[%s3 + $0xf0] sm:$0xff]
          %v4604 = vld [vmem:[%s3 + $0xf8] sm:$0xff]
          %v4605 = vld [vmem:[%s3 + $0x100] sm:$0xff]
          %v4606 = vld [vmem:[%s3 + $0x108] sm:$0xff]
          %v4607 = vld [vmem:[%s3 + $0x110] sm:$0xff]
          %v4608 = vld [vmem:[%s3 + $0x118] sm:$0xff]
          %v4609 = vld [vmem:[%s3 + $0x120] sm:$0xff]
          %v4610 = vld [vmem:[%s3 + $0x128] sm:$0xff]
          %v4611 = vld [vmem:[%s3 + $0x130] sm:$0xff]
          %v4612 = vld [vmem:[%s3 + $0x138] sm:$0xff]
          %v4613 = vld [vmem:[%s3 + $0x140] sm:$0xff]
          %v4614 = vld [vmem:[%s3 + $0x148] sm:$0xff]
          %v4615 = vld [vmem:[%s3 + $0x150] sm:$0xff]
          %v4616 = vld [vmem:[%s3 + $0x158] sm:$0xff]
          %v4617 = vld [vmem:[%s3 + $0x160] sm:$0xff]
          %v4618 = vld [vmem:[%s3 + $0x168] sm:$0xff]
          %v4619 = vld [vmem:[%s3 + $0x170] sm:$0xff]
          %v4620 = vld [vmem:[%s3 + $0x178] sm:$0xff]
          %v4621 = vld [vmem:[%s3 + $0x180] sm:$0xff]
          %v4622 = vld [vmem:[%s3 + $0x188] sm:$0xff]
          %v4623 = vld [vmem:[%s3 + $0x190] sm:$0xff]
          %v4624 = vld [vmem:[%s3 + $0x198] sm:$0xff]
          %v4625 = vld [vmem:[%s3 + $0x1a0] sm:$0xff]
          %v4626 = vld [vmem:[%s3 + $0x1a8] sm:$0xff]
          %v4627 = vld [vmem:[%s3 + $0x1b0] sm:$0xff]
          %v4628 = vld [vmem:[%s3 + $0x1b8] sm:$0xff]
          %v4629 = vld [vmem:[%s3 + $0x1c0] sm:$0xff]
          %v4630 = vld [vmem:[%s3 + $0x1c8] sm:$0xff]
          %v4631 = vld [vmem:[%s3 + $0x1d0] sm:$0xff]
          %v4632 = vld [vmem:[%s3 + $0x1d8] sm:$0xff]
          %v4633 = vld [vmem:[%s3 + $0x1e0] sm:$0xff]
          %v4634 = vld [vmem:[%s3 + $0x1e8] sm:$0xff]
          %v4635 = vld [vmem:[%s3 + $0x1f0] sm:$0xff]
          %v4636 = vld [vmem:[%s3 + $0x1f8] sm:$0xff]
          %v4637 = vld [vmem:[%s3 + $0x200] sm:$0xff]
          %v4638 = vld [vmem:[%s3 + $0x208] sm:$0xff]
          %v4639 = vld [vmem:[%s3 + $0x210] sm:$0xff]
          %v4640 = vld [vmem:[%s3 + $0x218] sm:$0xff]
          %v4641 = vld [vmem:[%s3 + $0x220] sm:$0xff]
          %v4642 = vld [vmem:[%s3 + $0x228] sm:$0xff]
          %v4643 = vld [vmem:[%s3 + $0x230] sm:$0xff]
          %v4644 = vld [vmem:[%s3 + $0x238] sm:$0xff]
          %v4645 = vld [vmem:[%s3 + $0x240] sm:$0xff]
          %v4646 = vld [vmem:[%s3 + $0x248] sm:$0xff]
          %v4647 = vld [vmem:[%s3 + $0x250] sm:$0xff]
          %v4648 = vld [vmem:[%s3 + $0x258] sm:$0xff]
          %v4649 = vld [vmem:[%s3 + $0x260] sm:$0xff]
          %v4650 = vld [vmem:[%s3 + $0x268] sm:$0xff]
          %v4651 = vld [vmem:[%s3 + $0x270] sm:$0xff]
          %v4652 = vld [vmem:[%s3 + $0x278] sm:$0xff]
          %v4653 = vld [vmem:[%s3 + $0x280] sm:$0xff]
          %v4654 = vld [vmem:[%s3 + $0x288] sm:$0xff]
          %v4655 = vld [vmem:[%s3 + $0x290] sm:$0xff]
          %v4656 = vld [vmem:[%s3 + $0x298] sm:$0xff]
          %v4657 = vld [vmem:[%s3 + $0x2a0] sm:$0xff]
          %v4658 = vld [vmem:[%s3 + $0x2a8] sm:$0xff]
          %v4659 = vld [vmem:[%s3 + $0x2b0] sm:$0xff]
          %v4660 = vld [vmem:[%s3 + $0x2b8] sm:$0xff]
          %v4661 = vld [vmem:[%s3 + $0x2c0] sm:$0xff]
          %v4662 = vld [vmem:[%s3 + $0x2c8] sm:$0xff]
          %v4663 = vld [vmem:[%s3 + $0x2d0] sm:$0xff]
          %v4664 = vld [vmem:[%s3 + $0x2d8] sm:$0xff]
          %v4665 = vld [vmem:[%s3 + $0x2e0] sm:$0xff]
          %v4666 = vld [vmem:[%s3 + $0x2e8] sm:$0xff]
          %v4667 = vld [vmem:[%s3 + $0x2f0] sm:$0xff]
          %v4668 = vld [vmem:[%s3 + $0x2f8] sm:$0xff]
          %v4669 = vld [vmem:[%s3 + $0x300] sm:$0xff]
          %v4670 = vld [vmem:[%s3 + $0x308] sm:$0xff]
          %v4671 = vld [vmem:[%s3 + $0x310] sm:$0xff]
          %v4672 = vld [vmem:[%s3 + $0x318] sm:$0xff]
          %v4673 = vld [vmem:[%s3 + $0x320] sm:$0xff]
          %v4674 = vld [vmem:[%s3 + $0x328] sm:$0xff]
          %v4675 = vld [vmem:[%s3 + $0x330] sm:$0xff]
          %v4676 = vld [vmem:[%s3 + $0x338] sm:$0xff]
          %v4677 = vld [vmem:[%s3 + $0x340] sm:$0xff]
          %v4678 = vld [vmem:[%s3 + $0x348] sm:$0xff]
          %v4679 = vld [vmem:[%s3 + $0x350] sm:$0xff]
          %v4680 = vld [vmem:[%s3 + $0x358] sm:$0xff]
          %v4681 = vld [vmem:[%s3 + $0x360] sm:$0xff]
          %v4682 = vld [vmem:[%s3 + $0x368] sm:$0xff]
          %v4683 = vld [vmem:[%s3 + $0x370] sm:$0xff]
          %v4684 = vld [vmem:[%s3 + $0x378] sm:$0xff]
          %v4685 = vld [vmem:[%s3 + $0x380] sm:$0xff]
          %v4686 = vld [vmem:[%s3 + $0x388] sm:$0xff]
          %v4687 = vld [vmem:[%s3 + $0x390] sm:$0xff]
          %v4688 = vld [vmem:[%s3 + $0x398] sm:$0xff]
          %v4689 = vld [vmem:[%s3 + $0x3a0] sm:$0xff]
          %v4690 = vld [vmem:[%s3 + $0x3a8] sm:$0xff]
          %v4691 = vld [vmem:[%s3 + $0x3b0] sm:$0xff]
          %v4692 = vld [vmem:[%s3 + $0x3b8] sm:$0xff]
          %v4693 = vld [vmem:[%s3 + $0x3c0] sm:$0xff]
          %v4694 = vld [vmem:[%s3 + $0x3c8] sm:$0xff]
          %v4695 = vld [vmem:[%s3 + $0x3d0] sm:$0xff]
          %v4696 = vld [vmem:[%s3 + $0x3d8] sm:$0xff]
          %v4697 = vld [vmem:[%s3 + $0x3e0] sm:$0xff]
          %v4698 = vld [vmem:[%s3 + $0x3e8] sm:$0xff]
          %v4699 = vld [vmem:[%s3 + $0x3f0] sm:$0xff]
          %v4700 = vld [vmem:[%s3 + $0x3f8] sm:$0xff]
          %v4701 = vld [vmem:[%s3 + $0x400] sm:$0xff]
          %v4702 = vld [vmem:[%s3 + $0x408] sm:$0xff]
          %v4703 = vld [vmem:[%s3 + $0x410] sm:$0xff]
          %v4704 = vld [vmem:[%s3 + $0x418] sm:$0xff]
          %v4705 = vld [vmem:[%s3 + $0x420] sm:$0xff]
          %v4706 = vld [vmem:[%s3 + $0x428] sm:$0xff]
          %v4707 = vld [vmem:[%s3 + $0x430] sm:$0xff]
          %v4708 = vld [vmem:[%s3 + $0x438] sm:$0xff]
          %v4709 = vld [vmem:[%s3 + $0x440] sm:$0xff]
          %v4710 = vld [vmem:[%s3 + $0x448] sm:$0xff]
          %v4711 = vld [vmem:[%s3 + $0x450] sm:$0xff]
          %v4712 = vld [vmem:[%s3 + $0x458] sm:$0xff]
          %v4713 = vld [vmem:[%s3 + $0x460] sm:$0xff]
          %v4714 = vld [vmem:[%s3 + $0x468] sm:$0xff]
          %v4715 = vld [vmem:[%s3 + $0x470] sm:$0xff]
          %v4716 = vld [vmem:[%s3 + $0x478] sm:$0xff]
          %v4717 = vld [vmem:[%s3 + $0x480] sm:$0xff]
          %v4718 = vld [vmem:[%s3 + $0x488] sm:$0xff]
          %v4719 = vld [vmem:[%s3 + $0x490] sm:$0xff]
          %v4720 = vld [vmem:[%s3 + $0x498] sm:$0xff]
          %v4721 = vld [vmem:[%s3 + $0x4a0] sm:$0xff]
          %v4722 = vld [vmem:[%s3 + $0x4a8] sm:$0xff]
          %v4723 = vld [vmem:[%s3 + $0x4b0] sm:$0xff]
          %v4724 = vld [vmem:[%s3 + $0x4b8] sm:$0xff]
          %v4725 = vld [vmem:[%s3 + $0x4c0] sm:$0xff]
          %v4726 = vld [vmem:[%s3 + $0x4c8] sm:$0xff]
          %v4727 = vld [vmem:[%s3 + $0x4d0] sm:$0xff]
          %v4728 = vld [vmem:[%s3 + $0x4d8] sm:$0xff]
          %v4729 = vld [vmem:[%s3 + $0x4e0] sm:$0xff]
          %v4730 = vld [vmem:[%s3 + $0x4e8] sm:$0xff]
          %v4731 = vld [vmem:[%s3 + $0x4f0] sm:$0xff]
          %v4732 = vld [vmem:[%s3 + $0x4f8] sm:$0xff]
          %v4733 = vld [vmem:[%s3 + $0x500] sm:$0xff]
          %v4734 = vld [vmem:[%s3 + $0x508] sm:$0xff]
          %v4735 = vld [vmem:[%s3 + $0x510] sm:$0xff]
          %v4736 = vld [vmem:[%s3 + $0x518] sm:$0xff]
          %v4737 = vld [vmem:[%s3 + $0x520] sm:$0xff]
          %v4738 = vld [vmem:[%s3 + $0x528] sm:$0xff]
          %v4739 = vld [vmem:[%s3 + $0x530] sm:$0xff]
          %v4740 = vld [vmem:[%s3 + $0x538] sm:$0xff]
          %v4741 = vld [vmem:[%s3 + $0x540] sm:$0xff]
          %v4742 = vld [vmem:[%s3 + $0x548] sm:$0xff]
          %v4743 = vld [vmem:[%s3 + $0x550] sm:$0xff]
          %v4744 = vld [vmem:[%s3 + $0x558] sm:$0xff]
          %v4745 = vld [vmem:[%s3 + $0x560] sm:$0xff]
          %v4746 = vld [vmem:[%s3 + $0x568] sm:$0xff]
          %v4747 = vld [vmem:[%s3 + $0x570] sm:$0xff]
          %v4748 = vld [vmem:[%s3 + $0x578] sm:$0xff]
          %v4749 = vld [vmem:[%s3 + $0x580] sm:$0xff]
          %v4750 = vld [vmem:[%s3 + $0x588] sm:$0xff]
          %v4751 = vld [vmem:[%s3 + $0x590] sm:$0xff]
          %v4752 = vld [vmem:[%s3 + $0x598] sm:$0xff]
          %v4753 = vld [vmem:[%s3 + $0x5a0] sm:$0xff]
          %v4754 = vld [vmem:[%s3 + $0x5a8] sm:$0xff]
          %v4755 = vld [vmem:[%s3 + $0x5b0] sm:$0xff]
          %v4756 = vld [vmem:[%s3 + $0x5b8] sm:$0xff]
          %v4757 = vld [vmem:[%s3 + $0x5c0] sm:$0xff]
          %v4758 = vld [vmem:[%s3 + $0x5c8] sm:$0xff]
          %v4759 = vld [vmem:[%s3 + $0x5d0] sm:$0xff]
          %v4760 = vld [vmem:[%s3 + $0x5d8] sm:$0xff]
          %v4761 = vld [vmem:[%s3 + $0x5e0] sm:$0xff]
          %v4762 = vld [vmem:[%s3 + $0x5e8] sm:$0xff]
          %v4763 = vld [vmem:[%s3 + $0x5f0] sm:$0xff]
          %v4764 = vld [vmem:[%s3 + $0x5f8] sm:$0xff]
          %v4765 = vld [vmem:[%s3 + $0x600] sm:$0xff]
          %v4766 = vld [vmem:[%s3 + $0x608] sm:$0xff]
          %v4767 = vld [vmem:[%s3 + $0x610] sm:$0xff]
          %v4768 = vld [vmem:[%s3 + $0x618] sm:$0xff]
          %v4769 = vld [vmem:[%s3 + $0x620] sm:$0xff]
          %v4770 = vld [vmem:[%s3 + $0x628] sm:$0xff]
          %v4771 = vld [vmem:[%s3 + $0x630] sm:$0xff]
          %v4772 = vld [vmem:[%s3 + $0x638] sm:$0xff]
          %v4773 = vld [vmem:[%s3 + $0x640] sm:$0xff]
          %v4774 = vld [vmem:[%s3 + $0x648] sm:$0xff]
          %v4775 = vld [vmem:[%s3 + $0x650] sm:$0xff]
          %v4776 = vld [vmem:[%s3 + $0x658] sm:$0xff]
          %v4777 = vld [vmem:[%s3 + $0x660] sm:$0xff]
          %v4778 = vld [vmem:[%s3 + $0x668] sm:$0xff]
          %v4779 = vld [vmem:[%s3 + $0x670] sm:$0xff]
          %v4780 = vld [vmem:[%s3 + $0x678] sm:$0xff]
          %v4781 = vld [vmem:[%s3 + $0x680] sm:$0xff]
          %v4782 = vld [vmem:[%s3 + $0x688] sm:$0xff]
          %v4783 = vld [vmem:[%s3 + $0x690] sm:$0xff]
          %v4784 = vld [vmem:[%s3 + $0x698] sm:$0xff]
          %v4785 = vld [vmem:[%s3 + $0x6a0] sm:$0xff]
          %v4786 = vld [vmem:[%s3 + $0x6a8] sm:$0xff]
          %v4787 = vld [vmem:[%s3 + $0x6b0] sm:$0xff]
          %v4788 = vld [vmem:[%s3 + $0x6b8] sm:$0xff]
          %v4789 = vld [vmem:[%s3 + $0x6c0] sm:$0xff]
          %v4790 = vld [vmem:[%s3 + $0x6c8] sm:$0xff]
          %v4791 = vld [vmem:[%s3 + $0x6d0] sm:$0xff]
          %v4792 = vld [vmem:[%s3 + $0x6d8] sm:$0xff]
          %v4793 = vld [vmem:[%s3 + $0x6e0] sm:$0xff]
          %v4794 = vld [vmem:[%s3 + $0x6e8] sm:$0xff]
          %v4795 = vld [vmem:[%s3 + $0x6f0] sm:$0xff]
          %v4796 = vld [vmem:[%s3 + $0x6f8] sm:$0xff]
          %v4797 = vld [vmem:[%s3 + $0x700] sm:$0xff]
          %v4798 = vld [vmem:[%s3 + $0x708] sm:$0xff]
          %v4799 = vld [vmem:[%s3 + $0x710] sm:$0xff]
          %v4800 = vld [vmem:[%s3 + $0x718] sm:$0xff]
          %v4801 = vld [vmem:[%s3 + $0x720] sm:$0xff]
          %v4802 = vld [vmem:[%s3 + $0x728] sm:$0xff]
          %v4803 = vld [vmem:[%s3 + $0x730] sm:$0xff]
          %v4804 = vld [vmem:[%s3 + $0x738] sm:$0xff]
          %v4805 = vld [vmem:[%s3 + $0x740] sm:$0xff]
          %v4806 = vld [vmem:[%s3 + $0x748] sm:$0xff]
          %v4807 = vld [vmem:[%s3 + $0x750] sm:$0xff]
          %v4808 = vld [vmem:[%s3 + $0x758] sm:$0xff]
          %v4809 = vld [vmem:[%s3 + $0x760] sm:$0xff]
          %v4810 = vld [vmem:[%s3 + $0x768] sm:$0xff]
          %v4811 = vld [vmem:[%s3 + $0x770] sm:$0xff]
          %v4812 = vld [vmem:[%s3 + $0x778] sm:$0xff]
          %v4813 = vld [vmem:[%s3 + $0x780] sm:$0xff]
          %v4814 = vld [vmem:[%s3 + $0x788] sm:$0xff]
          %v4815 = vld [vmem:[%s3 + $0x790] sm:$0xff]
          %v4816 = vld [vmem:[%s3 + $0x798] sm:$0xff]
          %v4817 = vld [vmem:[%s3 + $0x7a0] sm:$0xff]
          %v4818 = vld [vmem:[%s3 + $0x7a8] sm:$0xff]
          %v4819 = vld [vmem:[%s3 + $0x7b0] sm:$0xff]
          %v4820 = vld [vmem:[%s3 + $0x7b8] sm:$0xff]
          %v4821 = vld [vmem:[%s3 + $0x7c0] sm:$0xff]
          %v4822 = vld [vmem:[%s3 + $0x7c8] sm:$0xff]
          %v4823 = vld [vmem:[%s3 + $0x7d0] sm:$0xff]
          %v4824 = vld [vmem:[%s3 + $0x7d8] sm:$0xff]
          %v4825 = vld [vmem:[%s3 + $0x7e0] sm:$0xff]
          %v4826 = vld [vmem:[%s3 + $0x7e8] sm:$0xff]
          %v4827 = vld [vmem:[%s3 + $0x7f0] sm:$0xff]
          %v4828 = vld [vmem:[%s3 + $0x7f8] sm:$0xff]
          %v4829 = vld [vmem:[%s3 + $0x800] sm:$0xff]
          %v4830 = vld [vmem:[%s3 + $0x808] sm:$0xff]
          %v4831 = vld [vmem:[%s3 + $0x810] sm:$0xff]
          %v4832 = vld [vmem:[%s3 + $0x818] sm:$0xff]
          %v4833 = vld [vmem:[%s3 + $0x820] sm:$0xff]
          %v4834 = vld [vmem:[%s3 + $0x828] sm:$0xff]
          %v4835 = vld [vmem:[%s3 + $0x830] sm:$0xff]
          %v4836 = vld [vmem:[%s3 + $0x838] sm:$0xff]
          %v4837 = vld [vmem:[%s3 + $0x840] sm:$0xff]
          %v4838 = vld [vmem:[%s3 + $0x848] sm:$0xff]
          %v4839 = vld [vmem:[%s3 + $0x850] sm:$0xff]
          %v4840 = vld [vmem:[%s3 + $0x858] sm:$0xff]
          %v4841 = vld [vmem:[%s3 + $0x860] sm:$0xff]
          %v4842 = vld [vmem:[%s3 + $0x868] sm:$0xff]
          %v4843 = vld [vmem:[%s3 + $0x870] sm:$0xff]
          %v4844 = vld [vmem:[%s3 + $0x878] sm:$0xff]
          %v4845 = vld [vmem:[%s3 + $0x880] sm:$0xff]
          %v4846 = vld [vmem:[%s3 + $0x888] sm:$0xff]
          %v4847 = vld [vmem:[%s3 + $0x890] sm:$0xff]
          %v4848 = vld [vmem:[%s3 + $0x898] sm:$0xff]
          %v4849 = vld [vmem:[%s3 + $0x8a0] sm:$0xff]
          %v4850 = vld [vmem:[%s3 + $0x8a8] sm:$0xff]
          %v4851 = vld [vmem:[%s3 + $0x8b0] sm:$0xff]
          %v4852 = vld [vmem:[%s3 + $0x8b8] sm:$0xff]
          %v4853 = vld [vmem:[%s3 + $0x8c0] sm:$0xff]
          %v4854 = vld [vmem:[%s3 + $0x8c8] sm:$0xff]
          %v4855 = vld [vmem:[%s3 + $0x8d0] sm:$0xff]
          %v4856 = vld [vmem:[%s3 + $0x8d8] sm:$0xff]
          %v4857 = vld [vmem:[%s3 + $0x8e0] sm:$0xff]
          %v4858 = vld [vmem:[%s3 + $0x8e8] sm:$0xff]
          %v4859 = vld [vmem:[%s3 + $0x8f0] sm:$0xff]
          %v4860 = vld [vmem:[%s3 + $0x8f8] sm:$0xff]
          %v4861 = vld [vmem:[%s3 + $0x900] sm:$0xff]
          %v4862 = vld [vmem:[%s3 + $0x908] sm:$0xff]
          %v4863 = vld [vmem:[%s3 + $0x910] sm:$0xff]
          %v4864 = vld [vmem:[%s3 + $0x918] sm:$0xff]
          %v4865 = vld [vmem:[%s3 + $0x920] sm:$0xff]
          %v4866 = vld [vmem:[%s3 + $0x928] sm:$0xff]
          %v4867 = vld [vmem:[%s3 + $0x930] sm:$0xff]
          %v4868 = vld [vmem:[%s3 + $0x938] sm:$0xff]
          %v4869 = vld [vmem:[%s3 + $0x940] sm:$0xff]
          %v4870 = vld [vmem:[%s3 + $0x948] sm:$0xff]
          %v4871 = vld [vmem:[%s3 + $0x950] sm:$0xff]
          %v4872 = vld [vmem:[%s3 + $0x958] sm:$0xff]
          %v4873 = vld [vmem:[%s3 + $0x960] sm:$0xff]
          %v4874 = vld [vmem:[%s3 + $0x968] sm:$0xff]
          %v4875 = vld [vmem:[%s3 + $0x970] sm:$0xff]
          %v4876 = vld [vmem:[%s3 + $0x978] sm:$0xff]
          %v4877 = vld [vmem:[%s3 + $0x980] sm:$0xff]
          %v4878 = vld [vmem:[%s3 + $0x988] sm:$0xff]
          %v4879 = vld [vmem:[%s3 + $0x990] sm:$0xff]
          %v4880 = vld [vmem:[%s3 + $0x998] sm:$0xff]
          %v4881 = vld [vmem:[%s3 + $0x9a0] sm:$0xff]
          %v4882 = vld [vmem:[%s3 + $0x9a8] sm:$0xff]
          %v4883 = vld [vmem:[%s3 + $0x9b0] sm:$0xff]
          %v4884 = vld [vmem:[%s3 + $0x9b8] sm:$0xff]
          %v4885 = vld [vmem:[%s3 + $0x9c0] sm:$0xff]
          %v4886 = vld [vmem:[%s3 + $0x9c8] sm:$0xff]
          %v4887 = vld [vmem:[%s3 + $0x9d0] sm:$0xff]
          %v4888 = vld [vmem:[%s3 + $0x9d8] sm:$0xff]
          %v4889 = vld [vmem:[%s3 + $0x9e0] sm:$0xff]
          %v4890 = vld [vmem:[%s3 + $0x9e8] sm:$0xff]
          %v4891 = vld [vmem:[%s3 + $0x9f0] sm:$0xff]
          %v4892 = vld [vmem:[%s3 + $0x9f8] sm:$0xff]
          %v4893 = vld [vmem:[%s3 + $0xa00] sm:$0xff]
          %v4894 = vld [vmem:[%s3 + $0xa08] sm:$0xff]
          %v4895 = vld [vmem:[%s3 + $0xa10] sm:$0xff]
          %v4896 = vld [vmem:[%s3 + $0xa18] sm:$0xff]
          %v4897 = vld [vmem:[%s3 + $0xa20] sm:$0xff]
          %v4898 = vld [vmem:[%s3 + $0xa28] sm:$0xff]
          %v4899 = vld [vmem:[%s3 + $0xa30] sm:$0xff]
          %v4900 = vld [vmem:[%s3 + $0xa38] sm:$0xff]
          %v4901 = vld [vmem:[%s3 + $0xa40] sm:$0xff]
          %v4902 = vld [vmem:[%s3 + $0xa48] sm:$0xff]
          %v4903 = vld [vmem:[%s3 + $0xa50] sm:$0xff]
          %v4904 = vld [vmem:[%s3 + $0xa58] sm:$0xff]
          %v4905 = vld [vmem:[%s3 + $0xa60] sm:$0xff]
          %v4906 = vld [vmem:[%s3 + $0xa68] sm:$0xff]
          %v4907 = vld [vmem:[%s3 + $0xa70] sm:$0xff]
          %v4908 = vld [vmem:[%s3 + $0xa78] sm:$0xff]
          %v4909 = vld [vmem:[%s3 + $0xa80] sm:$0xff]
          %v4910 = vld [vmem:[%s3 + $0xa88] sm:$0xff]
          %v4911 = vld [vmem:[%s3 + $0xa90] sm:$0xff]
          %v4912 = vld [vmem:[%s3 + $0xa98] sm:$0xff]
          %v4913 = vld [vmem:[%s3 + $0xaa0] sm:$0xff]
          %v4914 = vld [vmem:[%s3 + $0xaa8] sm:$0xff]
          %v4915 = vld [vmem:[%s3 + $0xab0] sm:$0xff]
          %v4916 = vld [vmem:[%s3 + $0xab8] sm:$0xff]
          %v4917 = vld [vmem:[%s3 + $0xac0] sm:$0xff]
          %v4918 = vld [vmem:[%s3 + $0xac8] sm:$0xff]
          %v4919 = vld [vmem:[%s3 + $0xad0] sm:$0xff]
          %v4920 = vld [vmem:[%s3 + $0xad8] sm:$0xff]
          %v4921 = vld [vmem:[%s3 + $0xae0] sm:$0xff]
          %v4922 = vld [vmem:[%s3 + $0xae8] sm:$0xff]
          %v4923 = vld [vmem:[%s3 + $0xaf0] sm:$0xff]
          %v4924 = vld [vmem:[%s3 + $0xaf8] sm:$0xff]
          %v4925 = vld [vmem:[%s3 + $0xb00] sm:$0xff]
          %v4926 = vld [vmem:[%s3 + $0xb08] sm:$0xff]
          %v4927 = vld [vmem:[%s3 + $0xb10] sm:$0xff]
          %v4928 = vld [vmem:[%s3 + $0xb18] sm:$0xff]
          %v4929 = vld [vmem:[%s3 + $0xb20] sm:$0xff]
          %v4930 = vld [vmem:[%s3 + $0xb28] sm:$0xff]
          %v4931 = vld [vmem:[%s3 + $0xb30] sm:$0xff]
          %v4932 = vld [vmem:[%s3 + $0xb38] sm:$0xff]
          %v4933 = vld [vmem:[%s3 + $0xb40] sm:$0xff]
          %v4934 = vld [vmem:[%s3 + $0xb48] sm:$0xff]
          %v4935 = vld [vmem:[%s3 + $0xb50] sm:$0xff]
          %v4936 = vld [vmem:[%s3 + $0xb58] sm:$0xff]
          %v4937 = vld [vmem:[%s3 + $0xb60] sm:$0xff]
          %v4938 = vld [vmem:[%s3 + $0xb68] sm:$0xff]
          %v4939 = vld [vmem:[%s3 + $0xb70] sm:$0xff]
          %v4940 = vld [vmem:[%s3 + $0xb78] sm:$0xff]
          %v4941 = vld [vmem:[%s3 + $0xb80] sm:$0xff]
          %v4942 = vld [vmem:[%s3 + $0xb88] sm:$0xff]
          %v4943 = vld [vmem:[%s3 + $0xb90] sm:$0xff]
          %v4944 = vld [vmem:[%s3 + $0xb98] sm:$0xff]
          %v4945 = vld [vmem:[%s3 + $0xba0] sm:$0xff]
          %v4946 = vld [vmem:[%s3 + $0xba8] sm:$0xff]
          %v4947 = vld [vmem:[%s3 + $0xbb0] sm:$0xff]
          %v4948 = vld [vmem:[%s3 + $0xbb8] sm:$0xff]
          %v4949 = vld [vmem:[%s3 + $0xbc0] sm:$0xff]
          %v4950 = vld [vmem:[%s3 + $0xbc8] sm:$0xff]
          %v4951 = vld [vmem:[%s3 + $0xbd0] sm:$0xff]
          %v4952 = vld [vmem:[%s3 + $0xbd8] sm:$0xff]
          %v4953 = vld [vmem:[%s3 + $0xbe0] sm:$0xff]
          %v4954 = vld [vmem:[%s3 + $0xbe8] sm:$0xff]
          %v4955 = vld [vmem:[%s3 + $0xbf0] sm:$0xff]
          %v4956 = vld [vmem:[%s3 + $0xbf8] sm:$0xff]
          %v4957 = vld [vmem:[%s3 + $0xc00] sm:$0xff]
          %v4958 = vld [vmem:[%s3 + $0xc08] sm:$0xff]
          %v4959 = vld [vmem:[%s3 + $0xc10] sm:$0xff]
          %v4960 = vld [vmem:[%s3 + $0xc18] sm:$0xff]
          %v4961 = vld [vmem:[%s3 + $0xc20] sm:$0xff]
          %v4962 = vld [vmem:[%s3 + $0xc28] sm:$0xff]
          %v4963 = vld [vmem:[%s3 + $0xc30] sm:$0xff]
          %v4964 = vld [vmem:[%s3 + $0xc38] sm:$0xff]
          %v4965 = vld [vmem:[%s3 + $0xc40] sm:$0x3]
          %v4966 = vld [vmem:[%s3 + $0xc48] sm:$0x3]
          %v4967 = vld [vmem:[%s3 + $0xc50] sm:$0x3]
          %v4968 = vld [vmem:[%s3 + $0xc58] sm:$0x3]
          %v4969 = vld [vmem:[%s4] sm:$0xf]
          %v4971 = vlaneseq
          %v4972 = vshrl.u32 %v4971, 7
          %v4973 = vsub.s32 0, %v4972
          %v4974 = vrot.slane %v4969, %v4973
          %v4975 = vlaneseq
          %v4976 = vshrl.u32 %v4975, 7
          %v4977 = vsub.s32 1, %v4976
          %v4978 = vrot.slane %v4969, %v4977
          %v4979 = vlaneseq
          %v4980 = vshrl.u32 %v4979, 7
          %v4981 = vsub.s32 2, %v4980
          %v4982 = vrot.slane %v4969, %v4981
          %v4983 = vlaneseq
          %v4984 = vshrl.u32 %v4983, 7
          %v4985 = vsub.s32 3, %v4984
          %v4986 = vrot.slane %v4969, %v4985
          %v4992 = vsel %vm4491, %v4572, 0
          %vm4994 = vcmask 1041408
          %v4996 = vsel %vm4994, %v4965, 0
          %v4999 = vsel %vm4994, %v4966, 0
          %v5002 = vsel %vm4994, %v4967, 0
          %v5005 = vsel %vm4994, %v4968, 0
          %5007 = vmatprep.subr.mxu0 %v4574
          %5008 = vmatpush1.msra.mxu0 %v4573
          %5009 = vmatprep.subr.mxu0 %v4578
          %5010 = vmatpush1.msra.mxu0 %v4577
          %5011 = vmatprep.subr.mxu0 %v4582
          %5012 = vmatpush1.msra.mxu0 %v4581
          %5013 = vmatprep.subr.mxu0 %v4586
          %5014 = vmatpush1.msra.mxu0 %v4585
          %5015 = vmatprep.subr.mxu0 %v4590
          %5016 = vmatpush1.msra.mxu0 %v4589
          %5017 = vmatprep.subr.mxu0 %v4594
          %5018 = vmatpush1.msra.mxu0 %v4593
          %5019 = vmatprep.subr.mxu0 %v4598
          %5020 = vmatpush1.msra.mxu0 %v4597
          %5021 = vmatprep.subr.mxu0 %v4602
          %5022 = vmatpush1.msra.mxu0 %v4601
          %5023 = vmatprep.subr.mxu0 %v4606
          %5024 = vmatpush1.msra.mxu0 %v4605
          %5025 = vmatprep.subr.mxu0 %v4610
          %5026 = vmatpush1.msra.mxu0 %v4609
          %5027 = vmatprep.subr.mxu0 %v4614
          %5028 = vmatpush1.msra.mxu0 %v4613
          %5029 = vmatprep.subr.mxu0 %v4618
          %5030 = vmatpush1.msra.mxu0 %v4617
          %5031 = vmatprep.subr.mxu0 %v4622
          %5032 = vmatpush1.msra.mxu0 %v4621
          %5033 = vmatprep.subr.mxu0 %v4626
          %5034 = vmatpush1.msra.mxu0 %v4625
          %5035 = vmatprep.subr.mxu0 %v4630
          %5036 = vmatpush1.msra.mxu0 %v4629
          %5037 = vmatprep.subr.mxu0 %v4634
          %5038 = vmatpush1.msra.mxu0 %v4633
          %5039 = vmatprep.subr.mxu0 %v4638
          %5040 = vmatpush1.msra.mxu0 %v4637
          %5041 = vmatprep.subr.mxu0 %v4642
          %5042 = vmatpush1.msra.mxu0 %v4641
          %5043 = vmatprep.subr.mxu0 %v4646
          %5044 = vmatpush1.msra.mxu0 %v4645
          %5045 = vmatprep.subr.mxu0 %v4650
          %5046 = vmatpush1.msra.mxu0 %v4649
          %5047 = vmatprep.subr.mxu0 %v4654
          %5048 = vmatpush1.msra.mxu0 %v4653
          %5049 = vmatprep.subr.mxu0 %v4658
          %5050 = vmatpush1.msra.mxu0 %v4657
          %5051 = vmatprep.subr.mxu0 %v4662
          %5052 = vmatpush1.msra.mxu0 %v4661
          %5053 = vmatprep.subr.mxu0 %v4666
          %5054 = vmatpush1.msra.mxu0 %v4665
          %5055 = vmatprep.subr.mxu0 %v4670
          %5056 = vmatpush1.msra.mxu0 %v4669
          %5057 = vmatprep.subr.mxu0 %v4674
          %5058 = vmatpush1.msra.mxu0 %v4673
          %5059 = vmatprep.subr.mxu0 %v4678
          %5060 = vmatpush1.msra.mxu0 %v4677
          %5061 = vmatprep.subr.mxu0 %v4682
          %5062 = vmatpush1.msra.mxu0 %v4681
          %5063 = vmatprep.subr.mxu0 %v4686
          %5064 = vmatpush1.msra.mxu0 %v4685
          %5065 = vmatprep.subr.mxu0 %v4690
          %5066 = vmatpush1.msra.mxu0 %v4689
          %5067 = vmatprep.subr.mxu0 %v4694
          %5068 = vmatpush1.msra.mxu0 %v4693
          %5069 = vmatprep.subr.mxu0 %v4698
          %5070 = vmatpush1.msra.mxu0 %v4697
          %5071 = vmatprep.mubr.f32.mxu0 %v4567
          %5072 = vmatmul.mubr.f32.gmra.mrb[0].mxu0 %v4566
          %v5073 = vpop.f32.mrb[0].mxu0
          %v5074 = vadd.f32 %v4974, %v5073
          %v5075 = vpop.f32.mrb[0].mxu0
          %v5076 = vadd.f32 %v4978, %v5075
          %5077 = vdwg.mxu0
          %5078 = vmatprep.subr.mxu0 %v4702
          %5079 = vmatpush1.msra.mxu0 %v4701
          %5080 = vmatprep.subr.mxu0 %v4706
          %5081 = vmatpush1.msra.mxu0 %v4705
          %5082 = vmatprep.subr.mxu0 %v4710
          %5083 = vmatpush1.msra.mxu0 %v4709
          %5084 = vmatprep.subr.mxu0 %v4714
          %5085 = vmatpush1.msra.mxu0 %v4713
          %5086 = vmatprep.subr.mxu0 %v4718
          %5087 = vmatpush1.msra.mxu0 %v4717
          %5088 = vmatprep.subr.mxu0 %v4722
          %5089 = vmatpush1.msra.mxu0 %v4721
          %5090 = vmatprep.subr.mxu0 %v4726
          %5091 = vmatpush1.msra.mxu0 %v4725
          %5092 = vmatprep.subr.mxu0 %v4730
          %5093 = vmatpush1.msra.mxu0 %v4729
          %5094 = vmatprep.subr.mxu0 %v4734
          %5095 = vmatpush1.msra.mxu0 %v4733
          %5096 = vmatprep.subr.mxu0 %v4738
          %5097 = vmatpush1.msra.mxu0 %v4737
          %5098 = vmatprep.subr.mxu0 %v4742
          %5099 = vmatpush1.msra.mxu0 %v4741
          %5100 = vmatprep.subr.mxu0 %v4746
          %5101 = vmatpush1.msra.mxu0 %v4745
          %5102 = vmatprep.subr.mxu0 %v4750
          %5103 = vmatpush1.msra.mxu0 %v4749
          %5104 = vmatprep.subr.mxu0 %v4754
          %5105 = vmatpush1.msra.mxu0 %v4753
          %5106 = vmatprep.subr.mxu0 %v4758
          %5107 = vmatpush1.msra.mxu0 %v4757
          %5108 = vmatprep.subr.mxu0 %v4762
          %5109 = vmatpush1.msra.mxu0 %v4761
          %5110 = vmatprep.subr.mxu0 %v4766
          %5111 = vmatpush1.msra.mxu0 %v4765
          %5112 = vmatprep.subr.mxu0 %v4770
          %5113 = vmatpush1.msra.mxu0 %v4769
          %5114 = vmatprep.subr.mxu0 %v4774
          %5115 = vmatpush1.msra.mxu0 %v4773
          %5116 = vmatprep.subr.mxu0 %v4778
          %5117 = vmatpush1.msra.mxu0 %v4777
          %5118 = vmatprep.subr.mxu0 %v4782
          %5119 = vmatpush1.msra.mxu0 %v4781
          %5120 = vmatprep.subr.mxu0 %v4786
          %5121 = vmatpush1.msra.mxu0 %v4785
          %5122 = vmatprep.subr.mxu0 %v4790
          %5123 = vmatpush1.msra.mxu0 %v4789
          %5124 = vmatprep.subr.mxu0 %v4794
          %5125 = vmatpush1.msra.mxu0 %v4793
          %5126 = vmatprep.subr.mxu0 %v4798
          %5127 = vmatpush1.msra.mxu0 %v4797
          %5128 = vmatprep.subr.mxu0 %v4802
          %5129 = vmatpush1.msra.mxu0 %v4801
          %5130 = vmatprep.subr.mxu0 %v4806
          %5131 = vmatpush1.msra.mxu0 %v4805
          %5132 = vmatprep.subr.mxu0 %v4810
          %5133 = vmatpush1.msra.mxu0 %v4809
          %5134 = vmatprep.subr.mxu0 %v4814
          %5135 = vmatpush1.msra.mxu0 %v4813
          %5136 = vmatprep.subr.mxu0 %v4818
          %5137 = vmatpush1.msra.mxu0 %v4817
          %5138 = vmatprep.subr.mxu0 %v4822
          %5139 = vmatpush1.msra.mxu0 %v4821
          %5140 = vmatprep.subr.mxu0 %v4826
          %5141 = vmatpush1.msra.mxu0 %v4825
          %5142 = vmatprep.mubr.f32.mxu0 %v4569
          %5143 = vmatmul.mubr.f32.gmra.mrb[0].mxu0 %v4568
          %v5144 = vpop.f32.mrb[0].mxu0
          %v5145 = vadd.f32 %v5074, %v5144
          %v5146 = vpop.f32.mrb[0].mxu0
          %v5147 = vadd.f32 %v5076, %v5146
          %5148 = vdwg.mxu0
          %5149 = vmatprep.subr.mxu0 %v4830
          %5150 = vmatpush1.msra.mxu0 %v4829
          %5151 = vmatprep.subr.mxu0 %v4834
          %5152 = vmatpush1.msra.mxu0 %v4833
          %5153 = vmatprep.subr.mxu0 %v4838
          %5154 = vmatpush1.msra.mxu0 %v4837
          %5155 = vmatprep.subr.mxu0 %v4842
          %5156 = vmatpush1.msra.mxu0 %v4841
          %5157 = vmatprep.subr.mxu0 %v4846
          %5158 = vmatpush1.msra.mxu0 %v4845
          %5159 = vmatprep.subr.mxu0 %v4850
          %5160 = vmatpush1.msra.mxu0 %v4849
          %5161 = vmatprep.subr.mxu0 %v4854
          %5162 = vmatpush1.msra.mxu0 %v4853
          %5163 = vmatprep.subr.mxu0 %v4858
          %5164 = vmatpush1.msra.mxu0 %v4857
          %5165 = vmatprep.subr.mxu0 %v4862
          %5166 = vmatpush1.msra.mxu0 %v4861
          %5167 = vmatprep.subr.mxu0 %v4866
          %5168 = vmatpush1.msra.mxu0 %v4865
          %5169 = vmatprep.subr.mxu0 %v4870
          %5170 = vmatpush1.msra.mxu0 %v4869
          %5171 = vmatprep.subr.mxu0 %v4874
          %5172 = vmatpush1.msra.mxu0 %v4873
          %5173 = vmatprep.subr.mxu0 %v4878
          %5174 = vmatpush1.msra.mxu0 %v4877
          %5175 = vmatprep.subr.mxu0 %v4882
          %5176 = vmatpush1.msra.mxu0 %v4881
          %5177 = vmatprep.subr.mxu0 %v4886
          %5178 = vmatpush1.msra.mxu0 %v4885
          %5179 = vmatprep.subr.mxu0 %v4890
          %5180 = vmatpush1.msra.mxu0 %v4889
          %5181 = vmatprep.subr.mxu0 %v4894
          %5182 = vmatpush1.msra.mxu0 %v4893
          %5183 = vmatprep.subr.mxu0 %v4898
          %5184 = vmatpush1.msra.mxu0 %v4897
          %5185 = vmatprep.subr.mxu0 %v4902
          %5186 = vmatpush1.msra.mxu0 %v4901
          %5187 = vmatprep.subr.mxu0 %v4906
          %5188 = vmatpush1.msra.mxu0 %v4905
          %5189 = vmatprep.subr.mxu0 %v4910
          %5190 = vmatpush1.msra.mxu0 %v4909
          %5191 = vmatprep.subr.mxu0 %v4914
          %5192 = vmatpush1.msra.mxu0 %v4913
          %5193 = vmatprep.subr.mxu0 %v4918
          %5194 = vmatpush1.msra.mxu0 %v4917
          %5195 = vmatprep.subr.mxu0 %v4922
          %5196 = vmatpush1.msra.mxu0 %v4921
          %5197 = vmatprep.subr.mxu0 %v4926
          %5198 = vmatpush1.msra.mxu0 %v4925
          %5199 = vmatprep.subr.mxu0 %v4930
          %5200 = vmatpush1.msra.mxu0 %v4929
          %5201 = vmatprep.subr.mxu0 %v4934
          %5202 = vmatpush1.msra.mxu0 %v4933
          %5203 = vmatprep.subr.mxu0 %v4938
          %5204 = vmatpush1.msra.mxu0 %v4937
          %5205 = vmatprep.subr.mxu0 %v4942
          %5206 = vmatpush1.msra.mxu0 %v4941
          %5207 = vmatprep.subr.mxu0 %v4946
          %5208 = vmatpush1.msra.mxu0 %v4945
          %5209 = vmatprep.subr.mxu0 %v4950
          %5210 = vmatpush1.msra.mxu0 %v4949
          %5211 = vmatprep.subr.mxu0 %v4954
          %5212 = vmatpush1.msra.mxu0 %v4953
          %5213 = vmatprep.mubr.f32.mxu0 %v4571
          %5214 = vmatmul.mubr.f32.gmra.mrb[0].mxu0 %v4570
          %v5215 = vpop.f32.mrb[0].mxu0
          %v5216 = vadd.f32 %v5145, %v5215
          %v5217 = vpop.f32.mrb[0].mxu0
          %v5218 = vadd.f32 %v5147, %v5217
          %5219 = vdwg.mxu0
          %5220 = vmatprep.subr.mxu0 %v4958
          %5221 = vmatpush1.msra.mxu0 %v4957
          %5222 = vmatprep.subr.mxu0 %v4962
          %5223 = vmatpush1.msra.mxu0 %v4961
          %5224 = vmatprep.subr.mxu0 %v4999
          %5225 = vmatpush1.msra.mxu0 %v4996
          %5226 = vmatprep.subr.mxu0 0.0
          %5227 = vmatpush1.msra.mxu0 0.0
          %5228 = vmatprep.subr.mxu0 0.0
          %5229 = vmatpush1.msra.mxu0 0.0
          %5230 = vmatprep.subr.mxu0 0.0
          %5231 = vmatpush1.msra.mxu0 0.0
          %5232 = vmatprep.subr.mxu0 0.0
          %5233 = vmatpush1.msra.mxu0 0.0
          %5234 = vmatprep.subr.mxu0 0.0
          %5235 = vmatpush1.msra.mxu0 0.0
          %5236 = vmatprep.subr.mxu0 0.0
          %5237 = vmatpush1.msra.mxu0 0.0
          %5238 = vmatprep.subr.mxu0 0.0
          %5239 = vmatpush1.msra.mxu0 0.0
          %5240 = vmatprep.subr.mxu0 0.0
          %5241 = vmatpush1.msra.mxu0 0.0
          %5242 = vmatprep.subr.mxu0 0.0
          %5243 = vmatpush1.msra.mxu0 0.0
          %5244 = vmatprep.subr.mxu0 0.0
          %5245 = vmatpush1.msra.mxu0 0.0
          %5246 = vmatprep.subr.mxu0 0.0
          %5247 = vmatpush1.msra.mxu0 0.0
          %5248 = vmatprep.subr.mxu0 0.0
          %5249 = vmatpush1.msra.mxu0 0.0
          %5250 = vmatprep.subr.mxu0 0.0
          %5251 = vmatpush1.msra.mxu0 0.0
          %5252 = vmatprep.subr.mxu0 0.0
          %5253 = vmatpush1.msra.mxu0 0.0
          %5254 = vmatprep.subr.mxu0 0.0
          %5255 = vmatpush1.msra.mxu0 0.0
          %5256 = vmatprep.subr.mxu0 0.0
          %5257 = vmatpush1.msra.mxu0 0.0
          %5258 = vmatprep.subr.mxu0 0.0
          %5259 = vmatpush1.msra.mxu0 0.0
          %5260 = vmatprep.subr.mxu0 0.0
          %5261 = vmatpush1.msra.mxu0 0.0
          %5262 = vmatprep.subr.mxu0 0.0
          %5263 = vmatpush1.msra.mxu0 0.0
          %5264 = vmatprep.subr.mxu0 0.0
          %5265 = vmatpush1.msra.mxu0 0.0
          %5266 = vmatprep.subr.mxu0 0.0
          %5267 = vmatpush1.msra.mxu0 0.0
          %5268 = vmatprep.subr.mxu0 0.0
          %5269 = vmatpush1.msra.mxu0 0.0
          %5270 = vmatprep.subr.mxu0 0.0
          %5271 = vmatpush1.msra.mxu0 0.0
          %5272 = vmatprep.subr.mxu0 0.0
          %5273 = vmatpush1.msra.mxu0 0.0
          %5274 = vmatprep.subr.mxu0 0.0
          %5275 = vmatpush1.msra.mxu0 0.0
          %5276 = vmatprep.subr.mxu0 0.0
          %5277 = vmatpush1.msra.mxu0 0.0
          %5278 = vmatprep.subr.mxu0 0.0
          %5279 = vmatpush1.msra.mxu0 0.0
          %5280 = vmatprep.subr.mxu0 0.0
          %5281 = vmatpush1.msra.mxu0 0.0
          %5282 = vmatprep.subr.mxu0 0.0
          %5283 = vmatpush1.msra.mxu0 0.0
          %5284 = vmatprep.mubr.f32.mxu0 0.0
          %5285 = vmatmul.mubr.f32.gmra.mrb[0].mxu0 %v4992
          %v5286 = vpop.f32.mrb[0].mxu0
          %v5287 = vadd.f32 %v5216, %v5286
          %v5288 = vpop.f32.mrb[0].mxu0
          %v5289 = vadd.f32 %v5218, %v5288
          %5290 = vdwg.mxu0
          %5291 = vmatprep.subr.mxu0 %v4576
          %5292 = vmatpush1.msra.mxu0 %v4575
          %5293 = vmatprep.subr.mxu0 %v4580
          %5294 = vmatpush1.msra.mxu0 %v4579
          %5295 = vmatprep.subr.mxu0 %v4584
          %5296 = vmatpush1.msra.mxu0 %v4583
          %5297 = vmatprep.subr.mxu0 %v4588
          %5298 = vmatpush1.msra.mxu0 %v4587
          %5299 = vmatprep.subr.mxu0 %v4592
          %5300 = vmatpush1.msra.mxu0 %v4591
          %5301 = vmatprep.subr.mxu0 %v4596
          %5302 = vmatpush1.msra.mxu0 %v4595
          %5303 = vmatprep.subr.mxu0 %v4600
          %5304 = vmatpush1.msra.mxu0 %v4599
          %5305 = vmatprep.subr.mxu0 %v4604
          %5306 = vmatpush1.msra.mxu0 %v4603
          %5307 = vmatprep.subr.mxu0 %v4608
          %5308 = vmatpush1.msra.mxu0 %v4607
          %5309 = vmatprep.subr.mxu0 %v4612
          %5310 = vmatpush1.msra.mxu0 %v4611
          %5311 = vmatprep.subr.mxu0 %v4616
          %5312 = vmatpush1.msra.mxu0 %v4615
          %5313 = vmatprep.subr.mxu0 %v4620
          %5314 = vmatpush1.msra.mxu0 %v4619
          %5315 = vmatprep.subr.mxu0 %v4624
          %5316 = vmatpush1.msra.mxu0 %v4623
          %5317 = vmatprep.subr.mxu0 %v4628
          %5318 = vmatpush1.msra.mxu0 %v4627
          %5319 = vmatprep.subr.mxu0 %v4632
          %5320 = vmatpush1.msra.mxu0 %v4631
          %5321 = vmatprep.subr.mxu0 %v4636
          %5322 = vmatpush1.msra.mxu0 %v4635
          %5323 = vmatprep.subr.mxu0 %v4640
          %5324 = vmatpush1.msra.mxu0 %v4639
          %5325 = vmatprep.subr.mxu0 %v4644
          %5326 = vmatpush1.msra.mxu0 %v4643
          %5327 = vmatprep.subr.mxu0 %v4648
          %5328 = vmatpush1.msra.mxu0 %v4647
          %5329 = vmatprep.subr.mxu0 %v4652
          %5330 = vmatpush1.msra.mxu0 %v4651
          %5331 = vmatprep.subr.mxu0 %v4656
          %5332 = vmatpush1.msra.mxu0 %v4655
          %5333 = vmatprep.subr.mxu0 %v4660
          %5334 = vmatpush1.msra.mxu0 %v4659
          %5335 = vmatprep.subr.mxu0 %v4664
          %5336 = vmatpush1.msra.mxu0 %v4663
          %5337 = vmatprep.subr.mxu0 %v4668
          %5338 = vmatpush1.msra.mxu0 %v4667
          %5339 = vmatprep.subr.mxu0 %v4672
          %5340 = vmatpush1.msra.mxu0 %v4671
          %5341 = vmatprep.subr.mxu0 %v4676
          %5342 = vmatpush1.msra.mxu0 %v4675
          %5343 = vmatprep.subr.mxu0 %v4680
          %5344 = vmatpush1.msra.mxu0 %v4679
          %5345 = vmatprep.subr.mxu0 %v4684
          %5346 = vmatpush1.msra.mxu0 %v4683
          %5347 = vmatprep.subr.mxu0 %v4688
          %5348 = vmatpush1.msra.mxu0 %v4687
          %5349 = vmatprep.subr.mxu0 %v4692
          %5350 = vmatpush1.msra.mxu0 %v4691
          %5351 = vmatprep.subr.mxu0 %v4696
          %5352 = vmatpush1.msra.mxu0 %v4695
          %5353 = vmatprep.subr.mxu0 %v4700
          %5354 = vmatpush1.msra.mxu0 %v4699
          %5355 = vmatprep.mubr.f32.mxu0 %v4567
          %5356 = vmatmul.mubr.f32.gmra.mrb[0].mxu0 %v4566
          %v5357 = vpop.f32.mrb[0].mxu0
          %v5358 = vadd.f32 %v4982, %v5357
          %v5359 = vpop.f32.mrb[0].mxu0
          %v5360 = vadd.f32 %v4986, %v5359
          %5361 = vdwg.mxu0
          %5362 = vmatprep.subr.mxu0 %v4704
          %5363 = vmatpush1.msra.mxu0 %v4703
          %5364 = vmatprep.subr.mxu0 %v4708
          %5365 = vmatpush1.msra.mxu0 %v4707
          %5366 = vmatprep.subr.mxu0 %v4712
          %5367 = vmatpush1.msra.mxu0 %v4711
          %5368 = vmatprep.subr.mxu0 %v4716
          %5369 = vmatpush1.msra.mxu0 %v4715
          %5370 = vmatprep.subr.mxu0 %v4720
          %5371 = vmatpush1.msra.mxu0 %v4719
          %5372 = vmatprep.subr.mxu0 %v4724
          %5373 = vmatpush1.msra.mxu0 %v4723
          %5374 = vmatprep.subr.mxu0 %v4728
          %5375 = vmatpush1.msra.mxu0 %v4727
          %5376 = vmatprep.subr.mxu0 %v4732
          %5377 = vmatpush1.msra.mxu0 %v4731
          %5378 = vmatprep.subr.mxu0 %v4736
          %5379 = vmatpush1.msra.mxu0 %v4735
          %5380 = vmatprep.subr.mxu0 %v4740
          %5381 = vmatpush1.msra.mxu0 %v4739
          %5382 = vmatprep.subr.mxu0 %v4744
          %5383 = vmatpush1.msra.mxu0 %v4743
          %5384 = vmatprep.subr.mxu0 %v4748
          %5385 = vmatpush1.msra.mxu0 %v4747
          %5386 = vmatprep.subr.mxu0 %v4752
          %5387 = vmatpush1.msra.mxu0 %v4751
          %5388 = vmatprep.subr.mxu0 %v4756
          %5389 = vmatpush1.msra.mxu0 %v4755
          %5390 = vmatprep.subr.mxu0 %v4760
          %5391 = vmatpush1.msra.mxu0 %v4759
          %5392 = vmatprep.subr.mxu0 %v4764
          %5393 = vmatpush1.msra.mxu0 %v4763
          %5394 = vmatprep.subr.mxu0 %v4768
          %5395 = vmatpush1.msra.mxu0 %v4767
          %5396 = vmatprep.subr.mxu0 %v4772
          %5397 = vmatpush1.msra.mxu0 %v4771
          %5398 = vmatprep.subr.mxu0 %v4776
          %5399 = vmatpush1.msra.mxu0 %v4775
          %5400 = vmatprep.subr.mxu0 %v4780
          %5401 = vmatpush1.msra.mxu0 %v4779
          %5402 = vmatprep.subr.mxu0 %v4784
          %5403 = vmatpush1.msra.mxu0 %v4783
          %5404 = vmatprep.subr.mxu0 %v4788
          %5405 = vmatpush1.msra.mxu0 %v4787
          %5406 = vmatprep.subr.mxu0 %v4792
          %5407 = vmatpush1.msra.mxu0 %v4791
          %5408 = vmatprep.subr.mxu0 %v4796
          %5409 = vmatpush1.msra.mxu0 %v4795
          %5410 = vmatprep.subr.mxu0 %v4800
          %5411 = vmatpush1.msra.mxu0 %v4799
          %5412 = vmatprep.subr.mxu0 %v4804
          %5413 = vmatpush1.msra.mxu0 %v4803
          %5414 = vmatprep.subr.mxu0 %v4808
          %5415 = vmatpush1.msra.mxu0 %v4807
          %5416 = vmatprep.subr.mxu0 %v4812
          %5417 = vmatpush1.msra.mxu0 %v4811
          %5418 = vmatprep.subr.mxu0 %v4816
          %5419 = vmatpush1.msra.mxu0 %v4815
          %5420 = vmatprep.subr.mxu0 %v4820
          %5421 = vmatpush1.msra.mxu0 %v4819
          %5422 = vmatprep.subr.mxu0 %v4824
          %5423 = vmatpush1.msra.mxu0 %v4823
          %5424 = vmatprep.subr.mxu0 %v4828
          %5425 = vmatpush1.msra.mxu0 %v4827
          %5426 = vmatprep.mubr.f32.mxu0 %v4569
          %5427 = vmatmul.mubr.f32.gmra.mrb[0].mxu0 %v4568
          %v5428 = vpop.f32.mrb[0].mxu0
          %v5429 = vadd.f32 %v5358, %v5428
          %v5430 = vpop.f32.mrb[0].mxu0
          %v5431 = vadd.f32 %v5360, %v5430
          %5432 = vdwg.mxu0
          %5433 = vmatprep.subr.mxu0 %v4832
          %5434 = vmatpush1.msra.mxu0 %v4831
          %5435 = vmatprep.subr.mxu0 %v4836
          %5436 = vmatpush1.msra.mxu0 %v4835
          %5437 = vmatprep.subr.mxu0 %v4840
          %5438 = vmatpush1.msra.mxu0 %v4839
          %5439 = vmatprep.subr.mxu0 %v4844
          %5440 = vmatpush1.msra.mxu0 %v4843
          %5441 = vmatprep.subr.mxu0 %v4848
          %5442 = vmatpush1.msra.mxu0 %v4847
          %5443 = vmatprep.subr.mxu0 %v4852
          %5444 = vmatpush1.msra.mxu0 %v4851
          %5445 = vmatprep.subr.mxu0 %v4856
          %5446 = vmatpush1.msra.mxu0 %v4855
          %5447 = vmatprep.subr.mxu0 %v4860
          %5448 = vmatpush1.msra.mxu0 %v4859
          %5449 = vmatprep.subr.mxu0 %v4864
          %5450 = vmatpush1.msra.mxu0 %v4863
          %5451 = vmatprep.subr.mxu0 %v4868
          %5452 = vmatpush1.msra.mxu0 %v4867
          %5453 = vmatprep.subr.mxu0 %v4872
          %5454 = vmatpush1.msra.mxu0 %v4871
          %5455 = vmatprep.subr.mxu0 %v4876
          %5456 = vmatpush1.msra.mxu0 %v4875
          %5457 = vmatprep.subr.mxu0 %v4880
          %5458 = vmatpush1.msra.mxu0 %v4879
          %5459 = vmatprep.subr.mxu0 %v4884
          %5460 = vmatpush1.msra.mxu0 %v4883
          %5461 = vmatprep.subr.mxu0 %v4888
          %5462 = vmatpush1.msra.mxu0 %v4887
          %5463 = vmatprep.subr.mxu0 %v4892
          %5464 = vmatpush1.msra.mxu0 %v4891
          %5465 = vmatprep.subr.mxu0 %v4896
          %5466 = vmatpush1.msra.mxu0 %v4895
          %5467 = vmatprep.subr.mxu0 %v4900
          %5468 = vmatpush1.msra.mxu0 %v4899
          %5469 = vmatprep.subr.mxu0 %v4904
          %5470 = vmatpush1.msra.mxu0 %v4903
          %5471 = vmatprep.subr.mxu0 %v4908
          %5472 = vmatpush1.msra.mxu0 %v4907
          %5473 = vmatprep.subr.mxu0 %v4912
          %5474 = vmatpush1.msra.mxu0 %v4911
          %5475 = vmatprep.subr.mxu0 %v4916
          %5476 = vmatpush1.msra.mxu0 %v4915
          %5477 = vmatprep.subr.mxu0 %v4920
          %5478 = vmatpush1.msra.mxu0 %v4919
          %5479 = vmatprep.subr.mxu0 %v4924
          %5480 = vmatpush1.msra.mxu0 %v4923
          %5481 = vmatprep.subr.mxu0 %v4928
          %5482 = vmatpush1.msra.mxu0 %v4927
          %5483 = vmatprep.subr.mxu0 %v4932
          %5484 = vmatpush1.msra.mxu0 %v4931
          %5485 = vmatprep.subr.mxu0 %v4936
          %5486 = vmatpush1.msra.mxu0 %v4935
          %5487 = vmatprep.subr.mxu0 %v4940
          %5488 = vmatpush1.msra.mxu0 %v4939
          %5489 = vmatprep.subr.mxu0 %v4944
          %5490 = vmatpush1.msra.mxu0 %v4943
          %5491 = vmatprep.subr.mxu0 %v4948
          %5492 = vmatpush1.msra.mxu0 %v4947
          %5493 = vmatprep.subr.mxu0 %v4952
          %5494 = vmatpush1.msra.mxu0 %v4951
          %5495 = vmatprep.subr.mxu0 %v4956
          %5496 = vmatpush1.msra.mxu0 %v4955
          %5497 = vmatprep.mubr.f32.mxu0 %v4571
          %5498 = vmatmul.mubr.f32.gmra.mrb[0].mxu0 %v4570
          %v5499 = vpop.f32.mrb[0].mxu0
          %v5500 = vadd.f32 %v5429, %v5499
          %v5501 = vpop.f32.mrb[0].mxu0
          %v5502 = vadd.f32 %v5431, %v5501
          %5503 = vdwg.mxu0
          %5504 = vmatprep.subr.mxu0 %v4960
          %5505 = vmatpush1.msra.mxu0 %v4959
          %5506 = vmatprep.subr.mxu0 %v4964
          %5507 = vmatpush1.msra.mxu0 %v4963
          %5508 = vmatprep.subr.mxu0 %v5005
          %5509 = vmatpush1.msra.mxu0 %v5002
          %5510 = vmatprep.subr.mxu0 0.0
          %5511 = vmatpush1.msra.mxu0 0.0
          %5512 = vmatprep.subr.mxu0 0.0
          %5513 = vmatpush1.msra.mxu0 0.0
          %5514 = vmatprep.subr.mxu0 0.0
          %5515 = vmatpush1.msra.mxu0 0.0
          %5516 = vmatprep.subr.mxu0 0.0
          %5517 = vmatpush1.msra.mxu0 0.0
          %5518 = vmatprep.subr.mxu0 0.0
          %5519 = vmatpush1.msra.mxu0 0.0
          %5520 = vmatprep.subr.mxu0 0.0
          %5521 = vmatpush1.msra.mxu0 0.0
          %5522 = vmatprep.subr.mxu0 0.0
          %5523 = vmatpush1.msra.mxu0 0.0
          %5524 = vmatprep.subr.mxu0 0.0
          %5525 = vmatpush1.msra.mxu0 0.0
          %5526 = vmatprep.subr.mxu0 0.0
          %5527 = vmatpush1.msra.mxu0 0.0
          %5528 = vmatprep.subr.mxu0 0.0
          %5529 = vmatpush1.msra.mxu0 0.0
          %5530 = vmatprep.subr.mxu0 0.0
          %5531 = vmatpush1.msra.mxu0 0.0
          %5532 = vmatprep.subr.mxu0 0.0
          %5533 = vmatpush1.msra.mxu0 0.0
          %5534 = vmatprep.subr.mxu0 0.0
          %5535 = vmatpush1.msra.mxu0 0.0
          %5536 = vmatprep.subr.mxu0 0.0
          %5537 = vmatpush1.msra.mxu0 0.0
          %5538 = vmatprep.subr.mxu0 0.0
          %5539 = vmatpush1.msra.mxu0 0.0
          %5540 = vmatprep.subr.mxu0 0.0
          %5541 = vmatpush1.msra.mxu0 0.0
          %5542 = vmatprep.subr.mxu0 0.0
          %5543 = vmatpush1.msra.mxu0 0.0
          %5544 = vmatprep.subr.mxu0 0.0
          %5545 = vmatpush1.msra.mxu0 0.0
          %5546 = vmatprep.subr.mxu0 0.0
          %5547 = vmatpush1.msra.mxu0 0.0
          %5548 = vmatprep.subr.mxu0 0.0
          %5549 = vmatpush1.msra.mxu0 0.0
          %5550 = vmatprep.subr.mxu0 0.0
          %5551 = vmatpush1.msra.mxu0 0.0
          %5552 = vmatprep.subr.mxu0 0.0
          %5553 = vmatpush1.msra.mxu0 0.0
          %5554 = vmatprep.subr.mxu0 0.0
          %5555 = vmatpush1.msra.mxu0 0.0
          %5556 = vmatprep.subr.mxu0 0.0
          %5557 = vmatpush1.msra.mxu0 0.0
          %5558 = vmatprep.subr.mxu0 0.0
          %5559 = vmatpush1.msra.mxu0 0.0
          %5560 = vmatprep.subr.mxu0 0.0
          %5561 = vmatpush1.msra.mxu0 0.0
          %5562 = vmatprep.subr.mxu0 0.0
          %5563 = vmatpush1.msra.mxu0 0.0
          %5564 = vmatprep.subr.mxu0 0.0
          %5565 = vmatpush1.msra.mxu0 0.0
          %5566 = vmatprep.subr.mxu0 0.0
          %5567 = vmatpush1.msra.mxu0 0.0
          %5568 = vmatprep.mubr.f32.mxu0 0.0
          %5569 = vmatmul.mubr.f32.gmra.mrb[0].mxu0 %v4992
          %v5570 = vpop.f32.mrb[0].mxu0
          %v5571 = vadd.f32 %v5500, %v5570
          %v5572 = vpop.f32.mrb[0].mxu0
          %v5573 = vadd.f32 %v5502, %v5572
          %5574 = vdwg.mxu0
          %vm5575 = vcmp.ge.f32.partialorder %v5287, 0.0
          %vm5576 = vcmp.ge.f32.partialorder %v5289, 0.0
          %vm5577 = vcmp.ge.f32.partialorder %v5571, 0.0
          %vm5578 = vcmp.ge.f32.partialorder %v5573, 0.0
          %v5579 = vstv %s4498
          %v5580 = vmul.f32 %v5579, %v5287
          %v5581 = vmul.f32 %v5579, %v5289
          %v5582 = vmul.f32 %v5579, %v5571
          %v5583 = vmul.f32 %v5579, %v5573
          %v5584 = vsel %vm5575, %v5287, %v5580
          %v5585 = vsel %vm5576, %v5289, %v5581
          %v5586 = vsel %vm5577, %v5571, %v5582
          %v5587 = vsel %vm5578, %v5573, %v5583
          %v5588 = vld [vmem:[%s5] sm:$0xff]
          %v5589 = vld [vmem:[%s5 + $0x8] sm:$0xff]
          %v5590 = vld [vmem:[%s5 + $0x10] sm:$0xff]
          %v5591 = vld [vmem:[%s5 + $0x18] sm:$0xff]
          %v5592 = vld [vmem:[%s5 + $0x20] sm:$0xff]
          %v5593 = vld [vmem:[%s5 + $0x28] sm:$0xff]
          %v5594 = vld [vmem:[%s5 + $0x30] sm:$0xff]
          %v5595 = vld [vmem:[%s5 + $0x38] sm:$0xff]
          %v5596 = vld [vmem:[%s5 + $0x40] sm:$0xff]
          %v5597 = vld [vmem:[%s5 + $0x48] sm:$0xff]
          %v5598 = vld [vmem:[%s5 + $0x50] sm:$0xff]
          %v5599 = vld [vmem:[%s5 + $0x58] sm:$0xff]
          %v5600 = vld [vmem:[%s5 + $0x60] sm:$0xff]
          %v5601 = vld [vmem:[%s5 + $0x68] sm:$0xff]
          %v5602 = vld [vmem:[%s5 + $0x70] sm:$0xff]
          %v5603 = vld [vmem:[%s5 + $0x78] sm:$0xff]
          %v5604 = vld [vmem:[%s5 + $0x80] sm:$0xff]
          %v5605 = vld [vmem:[%s5 + $0x88] sm:$0xff]
          %v5606 = vld [vmem:[%s5 + $0x90] sm:$0xff]
          %v5607 = vld [vmem:[%s5 + $0x98] sm:$0xff]
          %v5608 = vld [vmem:[%s5 + $0xa0] sm:$0xff]
          %v5609 = vld [vmem:[%s5 + $0xa8] sm:$0xff]
          %v5610 = vld [vmem:[%s5 + $0xb0] sm:$0xff]
          %v5611 = vld [vmem:[%s5 + $0xb8] sm:$0xff]
          %v5612 = vld [vmem:[%s5 + $0xc0] sm:$0xff]
          %v5613 = vld [vmem:[%s5 + $0xc8] sm:$0xff]
          %v5614 = vld [vmem:[%s5 + $0xd0] sm:$0xff]
          %v5615 = vld [vmem:[%s5 + $0xd8] sm:$0xff]
          %v5616 = vld [vmem:[%s5 + $0xe0] sm:$0xff]
          %v5617 = vld [vmem:[%s5 + $0xe8] sm:$0xff]
          %v5618 = vld [vmem:[%s5 + $0xf0] sm:$0xff]
          %v5619 = vld [vmem:[%s5 + $0xf8] sm:$0xff]
          %v5620 = vld [vmem:[%s5 + $0x100] sm:$0xff]
          %v5621 = vld [vmem:[%s5 + $0x108] sm:$0xff]
          %v5622 = vld [vmem:[%s5 + $0x110] sm:$0xff]
          %v5623 = vld [vmem:[%s5 + $0x118] sm:$0xff]
          %v5624 = vld [vmem:[%s5 + $0x120] sm:$0xff]
          %v5625 = vld [vmem:[%s5 + $0x128] sm:$0xff]
          %v5626 = vld [vmem:[%s5 + $0x130] sm:$0xff]
          %v5627 = vld [vmem:[%s5 + $0x138] sm:$0xff]
          %v5628 = vld [vmem:[%s5 + $0x140] sm:$0xff]
          %v5629 = vld [vmem:[%s5 + $0x148] sm:$0xff]
          %v5630 = vld [vmem:[%s5 + $0x150] sm:$0xff]
          %v5631 = vld [vmem:[%s5 + $0x158] sm:$0xff]
          %v5632 = vld [vmem:[%s5 + $0x160] sm:$0xff]
          %v5633 = vld [vmem:[%s5 + $0x168] sm:$0xff]
          %v5634 = vld [vmem:[%s5 + $0x170] sm:$0xff]
          %v5635 = vld [vmem:[%s5 + $0x178] sm:$0xff]
          %v5636 = vld [vmem:[%s5 + $0x180] sm:$0xff]
          %v5637 = vld [vmem:[%s5 + $0x188] sm:$0xff]
          %v5638 = vld [vmem:[%s5 + $0x190] sm:$0xff]
          %v5639 = vld [vmem:[%s5 + $0x198] sm:$0xff]
          %v5640 = vld [vmem:[%s5 + $0x1a0] sm:$0xff]
          %v5641 = vld [vmem:[%s5 + $0x1a8] sm:$0xff]
          %v5642 = vld [vmem:[%s5 + $0x1b0] sm:$0xff]
          %v5643 = vld [vmem:[%s5 + $0x1b8] sm:$0xff]
          %v5644 = vld [vmem:[%s5 + $0x1c0] sm:$0xff]
          %v5645 = vld [vmem:[%s5 + $0x1c8] sm:$0xff]
          %v5646 = vld [vmem:[%s5 + $0x1d0] sm:$0xff]
          %v5647 = vld [vmem:[%s5 + $0x1d8] sm:$0xff]
          %v5648 = vld [vmem:[%s5 + $0x1e0] sm:$0xff]
          %v5649 = vld [vmem:[%s5 + $0x1e8] sm:$0xff]
          %v5650 = vld [vmem:[%s5 + $0x1f0] sm:$0xff]
          %v5651 = vld [vmem:[%s5 + $0x1f8] sm:$0xff]
          %v5652 = vld [vmem:[%s5 + $0x200] sm:$0xff]
          %v5653 = vld [vmem:[%s5 + $0x208] sm:$0xff]
          %v5654 = vld [vmem:[%s5 + $0x210] sm:$0xff]
          %v5655 = vld [vmem:[%s5 + $0x218] sm:$0xff]
          %v5656 = vld [vmem:[%s5 + $0x220] sm:$0xff]
          %v5657 = vld [vmem:[%s5 + $0x228] sm:$0xff]
          %v5658 = vld [vmem:[%s5 + $0x230] sm:$0xff]
          %v5659 = vld [vmem:[%s5 + $0x238] sm:$0xff]
          %v5660 = vld [vmem:[%s5 + $0x240] sm:$0xff]
          %v5661 = vld [vmem:[%s5 + $0x248] sm:$0xff]
          %v5662 = vld [vmem:[%s5 + $0x250] sm:$0xff]
          %v5663 = vld [vmem:[%s5 + $0x258] sm:$0xff]
          %v5664 = vld [vmem:[%s5 + $0x260] sm:$0xff]
          %v5665 = vld [vmem:[%s5 + $0x268] sm:$0xff]
          %v5666 = vld [vmem:[%s5 + $0x270] sm:$0xff]
          %v5667 = vld [vmem:[%s5 + $0x278] sm:$0xff]
          %v5668 = vld [vmem:[%s5 + $0x280] sm:$0xff]
          %v5669 = vld [vmem:[%s5 + $0x288] sm:$0xff]
          %v5670 = vld [vmem:[%s5 + $0x290] sm:$0xff]
          %v5671 = vld [vmem:[%s5 + $0x298] sm:$0xff]
          %v5672 = vld [vmem:[%s5 + $0x2a0] sm:$0xff]
          %v5673 = vld [vmem:[%s5 + $0x2a8] sm:$0xff]
          %v5674 = vld [vmem:[%s5 + $0x2b0] sm:$0xff]
          %v5675 = vld [vmem:[%s5 + $0x2b8] sm:$0xff]
          %v5676 = vld [vmem:[%s5 + $0x2c0] sm:$0xff]
          %v5677 = vld [vmem:[%s5 + $0x2c8] sm:$0xff]
          %v5678 = vld [vmem:[%s5 + $0x2d0] sm:$0xff]
          %v5679 = vld [vmem:[%s5 + $0x2d8] sm:$0xff]
          %v5680 = vld [vmem:[%s5 + $0x2e0] sm:$0xff]
          %v5681 = vld [vmem:[%s5 + $0x2e8] sm:$0xff]
          %v5682 = vld [vmem:[%s5 + $0x2f0] sm:$0xff]
          %v5683 = vld [vmem:[%s5 + $0x2f8] sm:$0xff]
          %v5684 = vld [vmem:[%s5 + $0x300] sm:$0xff]
          %v5685 = vld [vmem:[%s5 + $0x308] sm:$0xff]
          %v5686 = vld [vmem:[%s5 + $0x310] sm:$0xff]
          %v5687 = vld [vmem:[%s5 + $0x318] sm:$0xff]
          %v5688 = vld [vmem:[%s5 + $0x320] sm:$0xff]
          %v5689 = vld [vmem:[%s5 + $0x328] sm:$0xff]
          %v5690 = vld [vmem:[%s5 + $0x330] sm:$0xff]
          %v5691 = vld [vmem:[%s5 + $0x338] sm:$0xff]
          %v5692 = vld [vmem:[%s5 + $0x340] sm:$0xff]
          %v5693 = vld [vmem:[%s5 + $0x348] sm:$0xff]
          %v5694 = vld [vmem:[%s5 + $0x350] sm:$0xff]
          %v5695 = vld [vmem:[%s5 + $0x358] sm:$0xff]
          %v5696 = vld [vmem:[%s5 + $0x360] sm:$0xff]
          %v5697 = vld [vmem:[%s5 + $0x368] sm:$0xff]
          %v5698 = vld [vmem:[%s5 + $0x370] sm:$0xff]
          %v5699 = vld [vmem:[%s5 + $0x378] sm:$0xff]
          %v5700 = vld [vmem:[%s5 + $0x380] sm:$0xff]
          %v5701 = vld [vmem:[%s5 + $0x388] sm:$0xff]
          %v5702 = vld [vmem:[%s5 + $0x390] sm:$0xff]
          %v5703 = vld [vmem:[%s5 + $0x398] sm:$0xff]
          %v5704 = vld [vmem:[%s5 + $0x3a0] sm:$0xff]
          %v5705 = vld [vmem:[%s5 + $0x3a8] sm:$0xff]
          %v5706 = vld [vmem:[%s5 + $0x3b0] sm:$0xff]
          %v5707 = vld [vmem:[%s5 + $0x3b8] sm:$0xff]
          %v5708 = vld [vmem:[%s5 + $0x3c0] sm:$0xff]
          %v5709 = vld [vmem:[%s5 + $0x3c8] sm:$0xff]
          %v5710 = vld [vmem:[%s5 + $0x3d0] sm:$0xff]
          %v5711 = vld [vmem:[%s5 + $0x3d8] sm:$0xff]
          %v5712 = vld [vmem:[%s5 + $0x3e0] sm:$0xff]
          %v5713 = vld [vmem:[%s5 + $0x3e8] sm:$0xff]
          %v5714 = vld [vmem:[%s5 + $0x3f0] sm:$0xff]
          %v5715 = vld [vmem:[%s5 + $0x3f8] sm:$0xff]
          %v5716 = vld [vmem:[%s6] sm:$0x3]
          %v5718 = vlaneseq
          %v5719 = vshrl.u32 %v5718, 7
          %v5720 = vsub.s32 0, %v5719
          %v5721 = vrot.slane %v5716, %v5720
          %v5722 = vlaneseq
          %v5723 = vshrl.u32 %v5722, 7
          %v5724 = vsub.s32 1, %v5723
          %v5725 = vrot.slane %v5716, %v5724
          %5728 = vmatprep.subr.mxu0 %v5589
          %5729 = vmatpush1.msra.mxu0 %v5588
          %5730 = vmatprep.subr.mxu0 %v5591
          %5731 = vmatpush1.msra.mxu0 %v5590
          %5732 = vmatprep.subr.mxu0 %v5593
          %5733 = vmatpush1.msra.mxu0 %v5592
          %5734 = vmatprep.subr.mxu0 %v5595
          %5735 = vmatpush1.msra.mxu0 %v5594
          %5736 = vmatprep.subr.mxu0 %v5597
          %5737 = vmatpush1.msra.mxu0 %v5596
          %5738 = vmatprep.subr.mxu0 %v5599
          %5739 = vmatpush1.msra.mxu0 %v5598
          %5740 = vmatprep.subr.mxu0 %v5601
          %5741 = vmatpush1.msra.mxu0 %v5600
          %5742 = vmatprep.subr.mxu0 %v5603
          %5743 = vmatpush1.msra.mxu0 %v5602
          %5744 = vmatprep.subr.mxu0 %v5605
          %5745 = vmatpush1.msra.mxu0 %v5604
          %5746 = vmatprep.subr.mxu0 %v5607
          %5747 = vmatpush1.msra.mxu0 %v5606
          %5748 = vmatprep.subr.mxu0 %v5609
          %5749 = vmatpush1.msra.mxu0 %v5608
          %5750 = vmatprep.subr.mxu0 %v5611
          %5751 = vmatpush1.msra.mxu0 %v5610
          %5752 = vmatprep.subr.mxu0 %v5613
          %5753 = vmatpush1.msra.mxu0 %v5612
          %5754 = vmatprep.subr.mxu0 %v5615
          %5755 = vmatpush1.msra.mxu0 %v5614
          %5756 = vmatprep.subr.mxu0 %v5617
          %5757 = vmatpush1.msra.mxu0 %v5616
          %5758 = vmatprep.subr.mxu0 %v5619
          %5759 = vmatpush1.msra.mxu0 %v5618
          %5760 = vmatprep.subr.mxu0 %v5621
          %5761 = vmatpush1.msra.mxu0 %v5620
          %5762 = vmatprep.subr.mxu0 %v5623
          %5763 = vmatpush1.msra.mxu0 %v5622
          %5764 = vmatprep.subr.mxu0 %v5625
          %5765 = vmatpush1.msra.mxu0 %v5624
          %5766 = vmatprep.subr.mxu0 %v5627
          %5767 = vmatpush1.msra.mxu0 %v5626
          %5768 = vmatprep.subr.mxu0 %v5629
          %5769 = vmatpush1.msra.mxu0 %v5628
          %5770 = vmatprep.subr.mxu0 %v5631
          %5771 = vmatpush1.msra.mxu0 %v5630
          %5772 = vmatprep.subr.mxu0 %v5633
          %5773 = vmatpush1.msra.mxu0 %v5632
          %5774 = vmatprep.subr.mxu0 %v5635
          %5775 = vmatpush1.msra.mxu0 %v5634
          %5776 = vmatprep.subr.mxu0 %v5637
          %5777 = vmatpush1.msra.mxu0 %v5636
          %5778 = vmatprep.subr.mxu0 %v5639
          %5779 = vmatpush1.msra.mxu0 %v5638
          %5780 = vmatprep.subr.mxu0 %v5641
          %5781 = vmatpush1.msra.mxu0 %v5640
          %5782 = vmatprep.subr.mxu0 %v5643
          %5783 = vmatpush1.msra.mxu0 %v5642
          %5784 = vmatprep.subr.mxu0 %v5645
          %5785 = vmatpush1.msra.mxu0 %v5644
          %5786 = vmatprep.subr.mxu0 %v5647
          %5787 = vmatpush1.msra.mxu0 %v5646
          %5788 = vmatprep.subr.mxu0 %v5649
          %5789 = vmatpush1.msra.mxu0 %v5648
          %5790 = vmatprep.subr.mxu0 %v5651
          %5791 = vmatpush1.msra.mxu0 %v5650
          %5792 = vmatprep.mubr.f32.mxu0 %v5585
          %5793 = vmatmul.mubr.f32.gmra.mrb[0].mxu0 %v5584
          %v5794 = vpop.f32.mrb[0].mxu0
          %v5795 = vadd.f32 %v5721, %v5794
          %v5796 = vpop.f32.mrb[0].mxu0
          %v5797 = vadd.f32 %v5725, %v5796
          %5798 = vdwg.mxu0
          %5799 = vmatprep.subr.mxu0 %v5653
          %5800 = vmatpush1.msra.mxu0 %v5652
          %5801 = vmatprep.subr.mxu0 %v5655
          %5802 = vmatpush1.msra.mxu0 %v5654
          %5803 = vmatprep.subr.mxu0 %v5657
          %5804 = vmatpush1.msra.mxu0 %v5656
          %5805 = vmatprep.subr.mxu0 %v5659
          %5806 = vmatpush1.msra.mxu0 %v5658
          %5807 = vmatprep.subr.mxu0 %v5661
          %5808 = vmatpush1.msra.mxu0 %v5660
          %5809 = vmatprep.subr.mxu0 %v5663
          %5810 = vmatpush1.msra.mxu0 %v5662
          %5811 = vmatprep.subr.mxu0 %v5665
          %5812 = vmatpush1.msra.mxu0 %v5664
          %5813 = vmatprep.subr.mxu0 %v5667
          %5814 = vmatpush1.msra.mxu0 %v5666
          %5815 = vmatprep.subr.mxu0 %v5669
          %5816 = vmatpush1.msra.mxu0 %v5668
          %5817 = vmatprep.subr.mxu0 %v5671
          %5818 = vmatpush1.msra.mxu0 %v5670
          %5819 = vmatprep.subr.mxu0 %v5673
          %5820 = vmatpush1.msra.mxu0 %v5672
          %5821 = vmatprep.subr.mxu0 %v5675
          %5822 = vmatpush1.msra.mxu0 %v5674
          %5823 = vmatprep.subr.mxu0 %v5677
          %5824 = vmatpush1.msra.mxu0 %v5676
          %5825 = vmatprep.subr.mxu0 %v5679
          %5826 = vmatpush1.msra.mxu0 %v5678
          %5827 = vmatprep.subr.mxu0 %v5681
          %5828 = vmatpush1.msra.mxu0 %v5680
          %5829 = vmatprep.subr.mxu0 %v5683
          %5830 = vmatpush1.msra.mxu0 %v5682
          %5831 = vmatprep.subr.mxu0 %v5685
          %5832 = vmatpush1.msra.mxu0 %v5684
          %5833 = vmatprep.subr.mxu0 %v5687
          %5834 = vmatpush1.msra.mxu0 %v5686
          %5835 = vmatprep.subr.mxu0 %v5689
          %5836 = vmatpush1.msra.mxu0 %v5688
          %5837 = vmatprep.subr.mxu0 %v5691
          %5838 = vmatpush1.msra.mxu0 %v5690
          %5839 = vmatprep.subr.mxu0 %v5693
          %5840 = vmatpush1.msra.mxu0 %v5692
          %5841 = vmatprep.subr.mxu0 %v5695
          %5842 = vmatpush1.msra.mxu0 %v5694
          %5843 = vmatprep.subr.mxu0 %v5697
          %5844 = vmatpush1.msra.mxu0 %v5696
          %5845 = vmatprep.subr.mxu0 %v5699
          %5846 = vmatpush1.msra.mxu0 %v5698
          %5847 = vmatprep.subr.mxu0 %v5701
          %5848 = vmatpush1.msra.mxu0 %v5700
          %5849 = vmatprep.subr.mxu0 %v5703
          %5850 = vmatpush1.msra.mxu0 %v5702
          %5851 = vmatprep.subr.mxu0 %v5705
          %5852 = vmatpush1.msra.mxu0 %v5704
          %5853 = vmatprep.subr.mxu0 %v5707
          %5854 = vmatpush1.msra.mxu0 %v5706
          %5855 = vmatprep.subr.mxu0 %v5709
          %5856 = vmatpush1.msra.mxu0 %v5708
          %5857 = vmatprep.subr.mxu0 %v5711
          %5858 = vmatpush1.msra.mxu0 %v5710
          %5859 = vmatprep.subr.mxu0 %v5713
          %5860 = vmatpush1.msra.mxu0 %v5712
          %5861 = vmatprep.subr.mxu0 %v5715
          %5862 = vmatpush1.msra.mxu0 %v5714
          %5863 = vmatprep.mubr.f32.mxu0 %v5587
          %5864 = vmatmul.mubr.f32.gmra.mrb[0].mxu0 %v5586
          %v5865 = vpop.f32.mrb[0].mxu0
          %v5866 = vadd.f32 %v5795, %v5865
          %v5867 = vpop.f32.mrb[0].mxu0
          %v5868 = vadd.f32 %v5797, %v5867
          %5869 = vdwg.mxu0
          %vm5870 = vcmp.ge.f32.partialorder %v5866, 0.0
          %vm5871 = vcmp.ge.f32.partialorder %v5868, 0.0
          %v5872 = vstv %s4499
          %v5873 = vmul.f32 %v5872, %v5866
          %v5874 = vmul.f32 %v5872, %v5868
          %v5875 = vsel %vm5870, %v5866, %v5873
          %v5876 = vsel %vm5871, %v5868, %v5874
          %v5877 = vld [vmem:[%s7] sm:$0xff]
          %v5878 = vld [vmem:[%s7 + $0x8] sm:$0xff]
          %v5879 = vld [vmem:[%s7 + $0x10] sm:$0xff]
          %v5880 = vld [vmem:[%s7 + $0x18] sm:$0xff]
          %v5881 = vld [vmem:[%s7 + $0x20] sm:$0xff]
          %v5882 = vld [vmem:[%s7 + $0x28] sm:$0xff]
          %v5883 = vld [vmem:[%s7 + $0x30] sm:$0xff]
          %v5884 = vld [vmem:[%s7 + $0x38] sm:$0xff]
          %v5885 = vld [vmem:[%s7 + $0x40] sm:$0xff]
          %v5886 = vld [vmem:[%s7 + $0x48] sm:$0xff]
          %v5887 = vld [vmem:[%s7 + $0x50] sm:$0xff]
          %v5888 = vld [vmem:[%s7 + $0x58] sm:$0xff]
          %v5889 = vld [vmem:[%s7 + $0x60] sm:$0xff]
          %v5890 = vld [vmem:[%s7 + $0x68] sm:$0xff]
          %v5891 = vld [vmem:[%s7 + $0x70] sm:$0xff]
          %v5892 = vld [vmem:[%s7 + $0x78] sm:$0xff]
          %v5893 = vld [vmem:[%s7 + $0x80] sm:$0xff]
          %v5894 = vld [vmem:[%s7 + $0x88] sm:$0xff]
          %v5895 = vld [vmem:[%s7 + $0x90] sm:$0xff]
          %v5896 = vld [vmem:[%s7 + $0x98] sm:$0xff]
          %v5897 = vld [vmem:[%s7 + $0xa0] sm:$0xff]
          %v5898 = vld [vmem:[%s7 + $0xa8] sm:$0xff]
          %v5899 = vld [vmem:[%s7 + $0xb0] sm:$0xff]
          %v5900 = vld [vmem:[%s7 + $0xb8] sm:$0xff]
          %v5901 = vld [vmem:[%s7 + $0xc0] sm:$0xff]
          %v5902 = vld [vmem:[%s7 + $0xc8] sm:$0xff]
          %v5903 = vld [vmem:[%s7 + $0xd0] sm:$0xff]
          %v5904 = vld [vmem:[%s7 + $0xd8] sm:$0xff]
          %v5905 = vld [vmem:[%s7 + $0xe0] sm:$0xff]
          %v5906 = vld [vmem:[%s7 + $0xe8] sm:$0xff]
          %v5907 = vld [vmem:[%s7 + $0xf0] sm:$0xff]
          %v5908 = vld [vmem:[%s7 + $0xf8] sm:$0xff]
          %v5909 = vld [vmem:[%s8] sm:$0x1]
          %v5911 = vlaneseq
          %v5912 = vshrl.u32 %v5911, 7
          %v5913 = vsub.s32 0, %v5912
          %v5914 = vrot.slane %v5909, %v5913
          %5916 = vmatprep.subr.mxu0 0.0
          %5917 = vmatpush1.msra.mxu0 %v5877
          %5918 = vmatprep.subr.mxu0 0.0
          %5919 = vmatpush1.msra.mxu0 %v5878
          %5920 = vmatprep.subr.mxu0 0.0
          %5921 = vmatpush1.msra.mxu0 %v5879
          %5922 = vmatprep.subr.mxu0 0.0
          %5923 = vmatpush1.msra.mxu0 %v5880
          %5924 = vmatprep.subr.mxu0 0.0
          %5925 = vmatpush1.msra.mxu0 %v5881
          %5926 = vmatprep.subr.mxu0 0.0
          %5927 = vmatpush1.msra.mxu0 %v5882
          %5928 = vmatprep.subr.mxu0 0.0
          %5929 = vmatpush1.msra.mxu0 %v5883
          %5930 = vmatprep.subr.mxu0 0.0
          %5931 = vmatpush1.msra.mxu0 %v5884
          %5932 = vmatprep.subr.mxu0 0.0
          %5933 = vmatpush1.msra.mxu0 %v5885
          %5934 = vmatprep.subr.mxu0 0.0
          %5935 = vmatpush1.msra.mxu0 %v5886
          %5936 = vmatprep.subr.mxu0 0.0
          %5937 = vmatpush1.msra.mxu0 %v5887
          %5938 = vmatprep.subr.mxu0 0.0
          %5939 = vmatpush1.msra.mxu0 %v5888
          %5940 = vmatprep.subr.mxu0 0.0
          %5941 = vmatpush1.msra.mxu0 %v5889
          %5942 = vmatprep.subr.mxu0 0.0
          %5943 = vmatpush1.msra.mxu0 %v5890
          %5944 = vmatprep.subr.mxu0 0.0
          %5945 = vmatpush1.msra.mxu0 %v5891
          %5946 = vmatprep.subr.mxu0 0.0
          %5947 = vmatpush1.msra.mxu0 %v5892
          %5948 = vmatprep.subr.mxu0 0.0
          %5949 = vmatpush1.msra.mxu0 %v5893
          %5950 = vmatprep.subr.mxu0 0.0
          %5951 = vmatpush1.msra.mxu0 %v5894
          %5952 = vmatprep.subr.mxu0 0.0
          %5953 = vmatpush1.msra.mxu0 %v5895
          %5954 = vmatprep.subr.mxu0 0.0
          %5955 = vmatpush1.msra.mxu0 %v5896
          %5956 = vmatprep.subr.mxu0 0.0
          %5957 = vmatpush1.msra.mxu0 %v5897
          %5958 = vmatprep.subr.mxu0 0.0
          %5959 = vmatpush1.msra.mxu0 %v5898
          %5960 = vmatprep.subr.mxu0 0.0
          %5961 = vmatpush1.msra.mxu0 %v5899
          %5962 = vmatprep.subr.mxu0 0.0
          %5963 = vmatpush1.msra.mxu0 %v5900
          %5964 = vmatprep.subr.mxu0 0.0
          %5965 = vmatpush1.msra.mxu0 %v5901
          %5966 = vmatprep.subr.mxu0 0.0
          %5967 = vmatpush1.msra.mxu0 %v5902
          %5968 = vmatprep.subr.mxu0 0.0
          %5969 = vmatpush1.msra.mxu0 %v5903
          %5970 = vmatprep.subr.mxu0 0.0
          %5971 = vmatpush1.msra.mxu0 %v5904
          %5972 = vmatprep.subr.mxu0 0.0
          %5973 = vmatpush1.msra.mxu0 %v5905
          %5974 = vmatprep.subr.mxu0 0.0
          %5975 = vmatpush1.msra.mxu0 %v5906
          %5976 = vmatprep.subr.mxu0 0.0
          %5977 = vmatpush1.msra.mxu0 %v5907
          %5978 = vmatprep.subr.mxu0 0.0
          %5979 = vmatpush1.msra.mxu0 %v5908
          %5980 = vmatprep.mubr.f32.mxu0 %v5876
          %5981 = vmatmul.mubr.f32.gmra.mrb[0].mxu0 %v5875
          %v5982 = vpop.f32.mrb[0].mxu0
          %v5983 = vadd.f32 %v5914, %v5982
          %v5984 = vpop.f32.mrb[0].mxu0
          %5985 = vdwg.mxu0
          %vm5986 = vcmask 490496
          %5987 = vst.msk [vmem:[#allocation6] sm:$0xff] %vm5986, %v5983
        $region72: #{encoder_forward.1} parent=59 // pred_fallthru
          _
        // Predicated region
        $region73: #{encoder_forward.1} parent=59 // pred_check
          %p5988 = pneg %p256
        $region74: #{encoder_forward.1} parent=59 // pred_check_branch
          %5990 = sbr.rel (%p5988) target = $region76
        $region75: #{encoder_forward.1} parent=59 // pred_region
          %s5992 = ssub.s32 128, 128
          %5993 = vsyncadd [#allocation4], %s5992
          %s5995 = sshll.u32 [#allocation6], 4
          %s5996 = int_to_ptr.vmem [resolvable:$true] %s5995
          %5998 = dma.vmem_to_hbm [thread:$0]  %s5996, 128, %s10, [#allocation4]
        $region76: #{encoder_forward.1} parent=59 // pred_fallthru
          _
        // Predicated region
        $region77: #{encoder_forward.1} parent=59 // pred_check
          %p5999 = pneg %p256
        $region78: #{encoder_forward.1} parent=59 // pred_check_branch
          %6001 = sbr.rel (%p5999) target = $region80
        $region79: #{encoder_forward.1} parent=59 // pred_region
          %6002 = dma.done [#allocation4], 128
        $region80: #{encoder_forward.1} parent=59 // pred_fallthru
          _
      $region60: #{encoder_forward.1} parent=5 // pred_fallthru
        _
      %p6003 = scmp.le.s32.totalorder 2, %s18
      // Predicated region
      $region81: #{encoder_forward.1} parent=5 // pred_check
        %p6004 = pneg %p6003
      $region82: #{encoder_forward.1} parent=5 // pred_check_branch
        %6006 = sbr.rel (%p6004) target = $region84
      $region83: #{encoder_forward.1} parent=5 // pred_region
        %s6007 = ssub.s32 %s18, 2
      $region84: #{encoder_forward.1} parent=5 // pred_fallthru
        _
    $region6: #{encoder_forward.1} parent=1 // loop_footer
      %s22 = sadd.s32 1, %s18
    $region7: #{encoder_forward.1} parent=1 // loop_footer_branch
      %17 = sbr.rel target = $region3
    $region8: #{encoder_forward.1} parent=1 // loop_exit
      _
    %6008 = vsyncpa [#allocation4], 1
    %s6009 = scalar_lea.sflag [#allocation4], 1
    %6010 = vsyncpa %s6009, 1
    %6011 = vsyncpa [#allocation5], 1
    %s6012 = scalar_lea.sflag [#allocation5], 1
    %6013 = vsyncpa %s6012, 1

</llo_original>
